<compile_context>
chip_gen: v6e
topology: v6e:2x2x1
jax: 0.10.0
libtpu: 0.0.40
codegen_flags: <defaults>
</compile_context>

<pallas_src>
import functools

import numpy as np
import jax
import jax.numpy as jnp
from jax import lax
from jax.experimental import pallas as pl
from jax.experimental.pallas import tpu as pltpu

NEG_SLOPE = 0.01  # F.leaky_relu default
KSIZE = 3
ENC_CH = [(1, 8), (8, 16), (16, 32), (32, 64)]
DEC_CH = [(64, 32), (32, 16), (16, 8), (8, 1)]


# ---------------------------------------------------------------------------
# Static per-layer geometry (square images)
# ---------------------------------------------------------------------------
def _layer_geometry(hw_in):
    geo = []
    h = hw_in
    for ci, co in ENC_CH:                      # valid conv: H -> H-2
        geo.append(dict(kind="conv", Hi=h, Wi=h, Ho=h - 2, Wo=h - 2, Ci=ci, Co=co))
        h -= 2
    for ci, co in DEC_CH:                      # transposed conv: H -> H+2
        geo.append(dict(kind="convT", Hi=h, Wi=h, Ho=h + 2, Wo=h + 2, Ci=ci, Co=co))
        h += 2
    return geo


# ---------------------------------------------------------------------------
# Host-side weight conversion: PyTorch conv weights -> banded matmul matrices
# ---------------------------------------------------------------------------
def _band_conv(w, Wi):
    """Valid Conv2d weight (Co,Ci,3,3) -> (3, Wi*Ci, Wo*Co)."""
    w = np.asarray(w, np.float32)
    Co, Ci, KH, KW = w.shape
    Wo = Wi - KW + 1
    m = np.zeros((KH, Wi * Ci, Wo * Co), np.float32)
    for kh in range(KH):
        for kw in range(KW):
            blk = np.transpose(w[:, :, kh, kw])          # (Ci, Co)
            for wo in range(Wo):
                wi = wo + kw
                m[kh, wi * Ci:(wi + 1) * Ci, wo * Co:(wo + 1) * Co] = blk
    return m


def _band_convT(w, Wi):
    """ConvTranspose2d weight (Ci,Co,3,3), stride=1, pad=0 -> (3, Wi*Ci, Wo*Co).

    Band kh is applied to row (ho + kh) of the input after it has been
    zero-padded by 2 rows on top and bottom (done inside the kernel), i.e. it
    carries the spatial offset dh = 2 - kh (the required kernel flip /
    channel swap is baked in here).
    """
    w = np.asarray(w, np.float32)
    Ci, Co, KH, KW = w.shape
    Wo = Wi + KW - 1
    m = np.zeros((KH, Wi * Ci, Wo * Co), np.float32)
    for kh in range(KH):
        dh = KH - 1 - kh
        for wi in range(Wi):
            for dw in range(KW):
                wo = wi + dw
                m[kh, wi * Ci:(wi + 1) * Ci, wo * Co:(wo + 1) * Co] = w[:, :, dh, dw]
    return m


def prepare_params(params, hw_in=16):
    """One-time conversion of PyTorch-layout params to kernel form."""
    geo = _layer_geometry(hw_in)
    names = [f"enc{i}" for i in range(1, 5)] + [f"dec{i}" for i in range(1, 5)]
    wmats, brows = [], []
    for g, name in zip(geo, names):
        w = np.asarray(jax.device_get(params[f"{name}_w"]))
        b = np.asarray(jax.device_get(params[f"{name}_b"]), np.float32)
        m = _band_conv(w, g["Wi"]) if g["kind"] == "conv" else _band_convT(w, g["Wi"])
        wmats.append(jnp.asarray(m))
        brows.append(jnp.asarray(np.tile(b, g["Wo"]).reshape(1, -1)))
    return tuple(wmats), tuple(brows), geo


# ---------------------------------------------------------------------------
# The fused Pallas kernel (all 8 layers, one image per grid step)
# ---------------------------------------------------------------------------
def _autoencoder_kernel(*refs, geo):
    x_ref = refs[0]            # (H0, W0*C0)
    w_refs = refs[1:9]         # 8 x (3, K_l, N_l)
    b_refs = refs[9:17]        # 8 x (1, N_l)
    o_ref = refs[17]           # (Ho_last, Wo_last*Co_last)
    pad_ref = refs[18]         # VMEM scratch (zero-padded staging slab)

    # Zero the staging slab once per image; all padding rows read below stay 0.
    pad_ref[...] = jnp.zeros(pad_ref.shape, jnp.float32)

    def band_matmul(get_row, w_ref, b_ref):
        acc = jnp.dot(get_row(0), w_ref[0], preferred_element_type=jnp.float32)
        acc = acc + jnp.dot(get_row(1), w_ref[1], preferred_element_type=jnp.float32)
        acc = acc + jnp.dot(get_row(2), w_ref[2], preferred_element_type=jnp.float32)
        return acc + b_ref[...]

    # -------- Encoder: activations stay as in-register values ----------------
    a = x_ref[...]
    li = 0
    for g in geo[:4]:
        Ho = g["Ho"]
        y = band_matmul(lambda kh: a[kh:kh + Ho, :], w_refs[li], b_refs[li])
        a = jnp.where(y > 0, y, NEG_SLOPE * y)          # leaky_relu
        li += 1

    # -------- Decoder: "full" conv via zero-padded VMEM staging --------------
    for j, g in enumerate(geo[4:]):
        Hi, K = g["Hi"], g["Wi"] * g["Ci"]
        Ho = g["Ho"]
        # place the activation 2 rows down inside the (still-)zero slab
        pad_ref[2:2 + Hi, 0:K] = a
        y = band_matmul(lambda kh: pad_ref[kh:kh + Ho, 0:K],
                        w_refs[li], b_refs[li])
        y = jnp.where(y > 0, y, NEG_SLOPE * y)          # leaky_relu (last layer too, per spec)
        if j == 3:
            # sigmoid = 1 / (1 + exp(-y)):  exp on EUP + approx reciprocal
            y = pl.reciprocal(1.0 + jnp.exp(-y), approx=True)
        a = y
        li += 1

    o_ref[...] = a.astype(o_ref.dtype)


# ---------------------------------------------------------------------------
# Wrapper
# ---------------------------------------------------------------------------
def autoencoder_forward(x_nchw, wmats, brows, geo):
    n, c, h, w = x_nchw.shape
    assert c == ENC_CH[0][0] and h == w
    # NCHW -> per-image 2-D rows (H, W*C)
    x_rows = jnp.transpose(x_nchw, (0, 2, 3, 1)).reshape(n, h, w * c)

    out_h = geo[-1]["Ho"]
    out_n = geo[-1]["Wo"] * geo[-1]["Co"]

    in_specs = [pl.BlockSpec((None, h, w * c), lambda i: (i, 0, 0))]
    for m in wmats:
        in_specs.append(pl.BlockSpec(m.shape, lambda i: (0, 0, 0)))
    for b in brows:
        in_specs.append(pl.BlockSpec(b.shape, lambda i: (0, 0)))
    out_specs = pl.BlockSpec((None, out_h, out_n), lambda i: (i, 0, 0))

    # Scratch slab big enough for the largest zero-padded decoder input.
    max_rows = max(g["Hi"] + 4 for g in geo[4:])
    max_cols = max(g["Wi"] * g["Ci"] for g in geo)
    max_rows = ((max_rows + 7) // 8) * 8
    max_cols = ((max_cols + 127) // 128) * 128

    flops = 2 * n * sum(3 * g["Ho"] * (g["Wi"] * g["Ci"]) * (g["Wo"] * g["Co"])
                        for g in geo)
    bytes_accessed = 4 * (x_rows.size + sum(m.size for m in wmats)
                          + sum(b.size for b in brows) + n * out_h * out_n)
    cost = pl.CostEstimate(flops=flops,
                           transcendentals=n * out_h * out_n,
                           bytes_accessed=bytes_accessed)

    out = pl.pallas_call(
        functools.partial(_autoencoder_kernel, geo=geo),
        out_shape=jax.ShapeDtypeStruct((n, out_h, out_n), jnp.float32),
        grid=(n,),
        in_specs=in_specs,
        out_specs=out_specs,
        scratch_shapes=[pltpu.VMEM((max_rows, max_cols), jnp.float32)],
        compiler_params=pltpu.CompilerParams(
            dimension_semantics=("parallel",),          # v7x: shard images over both TCs
            vmem_limit_bytes=32 * 1024 * 1024),
        cost_estimate=cost,
    )(x_rows, *wmats, *brows)

    # (N, Ho, Wo*Co) -> NCHW (Co = 1)
    co = geo[-1]["Co"]
    return out.reshape(n, out_h, geo[-1]["Wo"], co).transpose(0, 3, 1, 2)


# ---------------------------------------------------------------------------
# Pure-JAX reference (straight port of the PyTorch module) for validation
# ---------------------------------------------------------------------------
def reference_forward(params, x_nchw):
    dn = ("NCHW", "OIHW", "NCHW")
    y = x_nchw
    for i in range(1, 5):
        w, b = params[f"enc{i}_w"], params[f"enc{i}_b"]
        y = lax.conv_general_dilated(y, w, (1, 1), "VALID", dimension_numbers=dn)
        y = y + b[None, :, None, None]
        y = jnp.where(y > 0, y, NEG_SLOPE * y)
    for i in range(1, 5):
        w, b = params[f"dec{i}_w"], params[f"dec{i}_b"]     # (Ci,Co,3,3)
        w_eq = jnp.transpose(w[:, :, ::-1, ::-1], (1, 0, 2, 3))
        y = lax.conv_general_dilated(y, w_eq, (1, 1), [(2, 2), (2, 2)],
                                     dimension_numbers=dn)
        y = y + b[None, :, None, None]
        y = jnp.where(y > 0, y, NEG_SLOPE * y)
        if i == 4:
            y = jax.nn.sigmoid(y)
    return y


# ---------------------------------------------------------------------------
# Deterministic synthetic parameters (PyTorch-native layouts)
# ---------------------------------------------------------------------------
def init_params(key):
    params = {}
    keys = jax.random.split(key, 16)
    idx = 0
    for i, (ci, co) in enumerate(ENC_CH):                       # Conv2d: (Co,Ci,KH,KW)
        fan_in = ci * KSIZE * KSIZE
        params[f"enc{i+1}_w"] = jax.random.normal(
            keys[idx], (co, ci, KSIZE, KSIZE), jnp.float32) / np.sqrt(fan_in)
        params[f"enc{i+1}_b"] = 0.05 * jax.random.normal(keys[idx + 1], (co,), jnp.float32)
        idx += 2
    for i, (ci, co) in enumerate(DEC_CH):                       # ConvTranspose2d: (Ci,Co,KH,KW)
        fan_in = ci * KSIZE * KSIZE
        params[f"dec{i+1}_w"] = jax.random.normal(
            keys[idx], (ci, co, KSIZE, KSIZE), jnp.float32) / np.sqrt(fan_in)
        params[f"dec{i+1}_b"] = 0.05 * jax.random.normal(keys[idx + 1], (co,), jnp.float32)
        idx += 2
    return params


if __name__ == "__main__":
    key = jax.random.PRNGKey(0)
    pkey, xkey = jax.random.split(key)
    params = init_params(pkey)

    # Input: batch=2, 1 channel, 16x16 (NCHW, PyTorch convention)
    x = jax.random.normal(xkey, (2, 1, 16, 16), jnp.float32)

    wmats, brows, geo = prepare_params(params, hw_in=16)

    fwd = jax.jit(functools.partial(autoencoder_forward, geo=geo))
    out = jax.block_until_ready(fwd(x, wmats, brows))

    assert out.shape == (2, 1, 16, 16), out.shape
    assert bool(jnp.all(jnp.isfinite(out)))
    assert bool(jnp.all((out >= 0.0) & (out <= 1.0)))           # sigmoid range

    ref = jax.jit(reference_forward)(params, x)
    err = float(jnp.max(jnp.abs(out - ref)))
    assert err < 2e-2, f"max abs diff vs reference = {err}"

    print("KERNEL_OK")
</pallas_src>

<mosaic_0001>
module attributes {stable_mosaic.version = 11 : i64} {
  func.func @_autoencoder_kernel(%arg0: i32, %arg1: memref<1x16x16xf32, #tpu.memory_space<vmem>>, %arg2: memref<3x16x112xf32, #tpu.memory_space<vmem>>, %arg3: memref<3x112x192xf32, #tpu.memory_space<vmem>>, %arg4: memref<3x192x320xf32, #tpu.memory_space<vmem>>, %arg5: memref<3x320x512xf32, #tpu.memory_space<vmem>>, %arg6: memref<3x512x320xf32, #tpu.memory_space<vmem>>, %arg7: memref<3x320x192xf32, #tpu.memory_space<vmem>>, %arg8: memref<3x192x112xf32, #tpu.memory_space<vmem>>, %arg9: memref<3x112x16xf32, #tpu.memory_space<vmem>>, %arg10: memref<1x112xf32, #tpu.memory_space<vmem>>, %arg11: memref<1x192xf32, #tpu.memory_space<vmem>>, %arg12: memref<1x320xf32, #tpu.memory_space<vmem>>, %arg13: memref<1x512xf32, #tpu.memory_space<vmem>>, %arg14: memref<1x320xf32, #tpu.memory_space<vmem>>, %arg15: memref<1x192xf32, #tpu.memory_space<vmem>>, %arg16: memref<1x112xf32, #tpu.memory_space<vmem>>, %arg17: memref<1x16xf32, #tpu.memory_space<vmem>>, %arg18: memref<1x16x16xf32, #tpu.memory_space<vmem>>, %arg19: memref<24x512xf32, #tpu.memory_space<vmem>>) attributes {dimension_semantics = [#tpu.dimension_semantics<parallel>], iteration_bounds = array<i64: 2>, scalar_prefetch = 0 : i64, scratch_operands = 1 : i64, tpu.core_type = #tpu.core_type<tc>, window_params = [{transform_indices = @transform_0, window_bounds = array<i64: 1, 16, 16>}, {pipeline_mode = #tpu.pipeline_mode<synchronous>, transform_indices = @transform_1, window_bounds = array<i64: 3, 16, 112>}, {pipeline_mode = #tpu.pipeline_mode<synchronous>, transform_indices = @transform_2, window_bounds = array<i64: 3, 112, 192>}, {pipeline_mode = #tpu.pipeline_mode<synchronous>, transform_indices = @transform_3, window_bounds = array<i64: 3, 192, 320>}, {pipeline_mode = #tpu.pipeline_mode<synchronous>, transform_indices = @transform_4, window_bounds = array<i64: 3, 320, 512>}, {pipeline_mode = #tpu.pipeline_mode<synchronous>, transform_indices = @transform_5, window_bounds = array<i64: 3, 512, 320>}, {pipeline_mode = #tpu.pipeline_mode<synchronous>, transform_indices = @transform_6, window_bounds = array<i64: 3, 320, 192>}, {pipeline_mode = #tpu.pipeline_mode<synchronous>, transform_indices = @transform_7, window_bounds = array<i64: 3, 192, 112>}, {pipeline_mode = #tpu.pipeline_mode<synchronous>, transform_indices = @transform_8, window_bounds = array<i64: 3, 112, 16>}, {pipeline_mode = #tpu.pipeline_mode<synchronous>, transform_indices = @transform_9, window_bounds = array<i64: 1, 112>}, {pipeline_mode = #tpu.pipeline_mode<synchronous>, transform_indices = @transform_10, window_bounds = array<i64: 1, 192>}, {pipeline_mode = #tpu.pipeline_mode<synchronous>, transform_indices = @transform_11, window_bounds = array<i64: 1, 320>}, {pipeline_mode = #tpu.pipeline_mode<synchronous>, transform_indices = @transform_12, window_bounds = array<i64: 1, 512>}, {pipeline_mode = #tpu.pipeline_mode<synchronous>, transform_indices = @transform_13, window_bounds = array<i64: 1, 320>}, {pipeline_mode = #tpu.pipeline_mode<synchronous>, transform_indices = @transform_14, window_bounds = array<i64: 1, 192>}, {pipeline_mode = #tpu.pipeline_mode<synchronous>, transform_indices = @transform_15, window_bounds = array<i64: 1, 112>}, {pipeline_mode = #tpu.pipeline_mode<synchronous>, transform_indices = @transform_16, window_bounds = array<i64: 1, 16>}, {transform_indices = @transform_17, window_bounds = array<i64: 1, 16, 16>}]} {
    %cst = arith.constant 0.000000e+00 : f32
    %0 = vector.broadcast %cst : f32 to vector<24x512xf32>
    %c0 = arith.constant 0 : index
    %c0_0 = arith.constant 0 : index
    %1 = vector.load %arg19[%c0, %c0_0] : memref<24x512xf32, #tpu.memory_space<vmem>>, vector<24x512xf32>
    tpu.vector_store %arg19[%c0, %c0_0], %0 {strides = array<i32>} : memref<24x512xf32, #tpu.memory_space<vmem>>, vector<24x512xf32>,
    %c0_1 = arith.constant 0 : index
    %c0_2 = arith.constant 0 : index
    %c0_3 = arith.constant 0 : index
    %2 = vector.load %arg1[%c0_1, %c0_2, %c0_3] : memref<1x16x16xf32, #tpu.memory_space<vmem>>, vector<1x16x16xf32>
    %3 = vector.shape_cast %2 : vector<1x16x16xf32> to vector<16x16xf32>
    %4 = vector.extract_strided_slice %3 {offsets = [0, 0], sizes = [14, 16], strides = [1, 1]} : vector<16x16xf32> to vector<14x16xf32>
    %c0_4 = arith.constant 0 : index
    %c0_5 = arith.constant 0 : index
    %c0_6 = arith.constant 0 : index
    %5 = vector.load %arg2[%c0_4, %c0_5, %c0_6] : memref<3x16x112xf32, #tpu.memory_space<vmem>>, vector<1x16x112xf32>
    %6 = vector.shape_cast %5 : vector<1x16x112xf32> to vector<16x112xf32>
    %cst_7 = arith.constant dense<0.000000e+00> : vector<14x112xf32>
    %7 = tpu.matmul %4, %6, %cst_7 {dimension_numbers = #tpu.dot_dimension_numbers<[1], [0], [0], [1], [0, 0, 1, 1], [], []>} : vector<14x16xf32>, vector<16x112xf32>, vector<14x112xf32> -> vector<14x112xf32>
    %8 = vector.extract_strided_slice %3 {offsets = [1, 0], sizes = [14, 16], strides = [1, 1]} : vector<16x16xf32> to vector<14x16xf32>
    %c1 = arith.constant 1 : index
    %c0_8 = arith.constant 0 : index
    %c0_9 = arith.constant 0 : index
    %9 = vector.load %arg2[%c1, %c0_8, %c0_9] : memref<3x16x112xf32, #tpu.memory_space<vmem>>, vector<1x16x112xf32>
    %10 = vector.shape_cast %9 : vector<1x16x112xf32> to vector<16x112xf32>
    %cst_10 = arith.constant dense<0.000000e+00> : vector<14x112xf32>
    %11 = tpu.matmul %8, %10, %cst_10 {dimension_numbers = #tpu.dot_dimension_numbers<[1], [0], [0], [1], [0, 0, 1, 1], [], []>} : vector<14x16xf32>, vector<16x112xf32>, vector<14x112xf32> -> vector<14x112xf32>
    %12 = arith.addf %7, %11 : vector<14x112xf32>
    %13 = vector.extract_strided_slice %3 {offsets = [2, 0], sizes = [14, 16], strides = [1, 1]} : vector<16x16xf32> to vector<14x16xf32>
    %c2 = arith.constant 2 : index
    %c0_11 = arith.constant 0 : index
    %c0_12 = arith.constant 0 : index
    %14 = vector.load %arg2[%c2, %c0_11, %c0_12] : memref<3x16x112xf32, #tpu.memory_space<vmem>>, vector<1x16x112xf32>
    %15 = vector.shape_cast %14 : vector<1x16x112xf32> to vector<16x112xf32>
    %cst_13 = arith.constant dense<0.000000e+00> : vector<14x112xf32>
    %16 = tpu.matmul %13, %15, %cst_13 {dimension_numbers = #tpu.dot_dimension_numbers<[1], [0], [0], [1], [0, 0, 1, 1], [], []>} : vector<14x16xf32>, vector<16x112xf32>, vector<14x112xf32> -> vector<14x112xf32>
    %17 = arith.addf %12, %16 : vector<14x112xf32>
    %c0_14 = arith.constant 0 : index
    %c0_15 = arith.constant 0 : index
    %18 = vector.load %arg10[%c0_14, %c0_15] : memref<1x112xf32, #tpu.memory_space<vmem>>, vector<1x112xf32>
    %19 = vector.broadcast %18 : vector<1x112xf32> to vector<14x112xf32>
    %20 = arith.addf %17, %19 : vector<14x112xf32>
    %cst_16 = arith.constant 0.000000e+00 : f32
    %21 = vector.broadcast %cst_16 : f32 to vector<14x112xf32>
    %22 = arith.cmpf ogt, %20, %21 : vector<14x112xf32>
    %cst_17 = arith.constant 0.00999999977 : f32
    %23 = vector.broadcast %cst_17 : f32 to vector<14x112xf32>
    %24 = arith.mulf %23, %20 : vector<14x112xf32>
    %25 = arith.select %22, %20, %24 : vector<14x112xi1>, vector<14x112xf32>
    %26 = vector.extract_strided_slice %25 {offsets = [0, 0], sizes = [12, 112], strides = [1, 1]} : vector<14x112xf32> to vector<12x112xf32>
    %c0_18 = arith.constant 0 : index
    %c0_19 = arith.constant 0 : index
    %c0_20 = arith.constant 0 : index
    %27 = vector.load %arg3[%c0_18, %c0_19, %c0_20] : memref<3x112x192xf32, #tpu.memory_space<vmem>>, vector<1x112x192xf32>
    %28 = vector.shape_cast %27 : vector<1x112x192xf32> to vector<112x192xf32>
    %cst_21 = arith.constant dense<0.000000e+00> : vector<12x192xf32>
    %29 = tpu.matmul %26, %28, %cst_21 {dimension_numbers = #tpu.dot_dimension_numbers<[1], [0], [0], [1], [0, 0, 1, 1], [], []>} : vector<12x112xf32>, vector<112x192xf32>, vector<12x192xf32> -> vector<12x192xf32>
    %30 = vector.extract_strided_slice %25 {offsets = [1, 0], sizes = [12, 112], strides = [1, 1]} : vector<14x112xf32> to vector<12x112xf32>
    %c1_22 = arith.constant 1 : index
    %c0_23 = arith.constant 0 : index
    %c0_24 = arith.constant 0 : index
    %31 = vector.load %arg3[%c1_22, %c0_23, %c0_24] : memref<3x112x192xf32, #tpu.memory_space<vmem>>, vector<1x112x192xf32>
    %32 = vector.shape_cast %31 : vector<1x112x192xf32> to vector<112x192xf32>
    %cst_25 = arith.constant dense<0.000000e+00> : vector<12x192xf32>
    %33 = tpu.matmul %30, %32, %cst_25 {dimension_numbers = #tpu.dot_dimension_numbers<[1], [0], [0], [1], [0, 0, 1, 1], [], []>} : vector<12x112xf32>, vector<112x192xf32>, vector<12x192xf32> -> vector<12x192xf32>
    %34 = arith.addf %29, %33 : vector<12x192xf32>
    %35 = vector.extract_strided_slice %25 {offsets = [2, 0], sizes = [12, 112], strides = [1, 1]} : vector<14x112xf32> to vector<12x112xf32>
    %c2_26 = arith.constant 2 : index
    %c0_27 = arith.constant 0 : index
    %c0_28 = arith.constant 0 : index
    %36 = vector.load %arg3[%c2_26, %c0_27, %c0_28] : memref<3x112x192xf32, #tpu.memory_space<vmem>>, vector<1x112x192xf32>
    %37 = vector.shape_cast %36 : vector<1x112x192xf32> to vector<112x192xf32>
    %cst_29 = arith.constant dense<0.000000e+00> : vector<12x192xf32>
    %38 = tpu.matmul %35, %37, %cst_29 {dimension_numbers = #tpu.dot_dimension_numbers<[1], [0], [0], [1], [0, 0, 1, 1], [], []>} : vector<12x112xf32>, vector<112x192xf32>, vector<12x192xf32> -> vector<12x192xf32>
    %39 = arith.addf %34, %38 : vector<12x192xf32>
    %c0_30 = arith.constant 0 : index
    %c0_31 = arith.constant 0 : index
    %40 = vector.load %arg11[%c0_30, %c0_31] : memref<1x192xf32, #tpu.memory_space<vmem>>, vector<1x192xf32>
    %41 = vector.broadcast %40 : vector<1x192xf32> to vector<12x192xf32>
    %42 = arith.addf %39, %41 : vector<12x192xf32>
    %cst_32 = arith.constant 0.000000e+00 : f32
    %43 = vector.broadcast %cst_32 : f32 to vector<12x192xf32>
    %44 = arith.cmpf ogt, %42, %43 : vector<12x192xf32>
    %cst_33 = arith.constant 0.00999999977 : f32
    %45 = vector.broadcast %cst_33 : f32 to vector<12x192xf32>
    %46 = arith.mulf %45, %42 : vector<12x192xf32>
    %47 = arith.select %44, %42, %46 : vector<12x192xi1>, vector<12x192xf32>
    %48 = vector.extract_strided_slice %47 {offsets = [0, 0], sizes = [10, 192], strides = [1, 1]} : vector<12x192xf32> to vector<10x192xf32>
    %c0_34 = arith.constant 0 : index
    %c0_35 = arith.constant 0 : index
    %c0_36 = arith.constant 0 : index
    %49 = vector.load %arg4[%c0_34, %c0_35, %c0_36] : memref<3x192x320xf32, #tpu.memory_space<vmem>>, vector<1x192x320xf32>
    %50 = vector.shape_cast %49 : vector<1x192x320xf32> to vector<192x320xf32>
    %cst_37 = arith.constant dense<0.000000e+00> : vector<10x320xf32>
    %51 = tpu.matmul %48, %50, %cst_37 {dimension_numbers = #tpu.dot_dimension_numbers<[1], [0], [0], [1], [0, 0, 1, 1], [], []>} : vector<10x192xf32>, vector<192x320xf32>, vector<10x320xf32> -> vector<10x320xf32>
    %52 = vector.extract_strided_slice %47 {offsets = [1, 0], sizes = [10, 192], strides = [1, 1]} : vector<12x192xf32> to vector<10x192xf32>
    %c1_38 = arith.constant 1 : index
    %c0_39 = arith.constant 0 : index
    %c0_40 = arith.constant 0 : index
    %53 = vector.load %arg4[%c1_38, %c0_39, %c0_40] : memref<3x192x320xf32, #tpu.memory_space<vmem>>, vector<1x192x320xf32>
    %54 = vector.shape_cast %53 : vector<1x192x320xf32> to vector<192x320xf32>
    %cst_41 = arith.constant dense<0.000000e+00> : vector<10x320xf32>
    %55 = tpu.matmul %52, %54, %cst_41 {dimension_numbers = #tpu.dot_dimension_numbers<[1], [0], [0], [1], [0, 0, 1, 1], [], []>} : vector<10x192xf32>, vector<192x320xf32>, vector<10x320xf32> -> vector<10x320xf32>
    %56 = arith.addf %51, %55 : vector<10x320xf32>
    %57 = vector.extract_strided_slice %47 {offsets = [2, 0], sizes = [10, 192], strides = [1, 1]} : vector<12x192xf32> to vector<10x192xf32>
    %c2_42 = arith.constant 2 : index
    %c0_43 = arith.constant 0 : index
    %c0_44 = arith.constant 0 : index
    %58 = vector.load %arg4[%c2_42, %c0_43, %c0_44] : memref<3x192x320xf32, #tpu.memory_space<vmem>>, vector<1x192x320xf32>
    %59 = vector.shape_cast %58 : vector<1x192x320xf32> to vector<192x320xf32>
    %cst_45 = arith.constant dense<0.000000e+00> : vector<10x320xf32>
    %60 = tpu.matmul %57, %59, %cst_45 {dimension_numbers = #tpu.dot_dimension_numbers<[1], [0], [0], [1], [0, 0, 1, 1], [], []>} : vector<10x192xf32>, vector<192x320xf32>, vector<10x320xf32> -> vector<10x320xf32>
    %61 = arith.addf %56, %60 : vector<10x320xf32>
    %c0_46 = arith.constant 0 : index
    %c0_47 = arith.constant 0 : index
    %62 = vector.load %arg12[%c0_46, %c0_47] : memref<1x320xf32, #tpu.memory_space<vmem>>, vector<1x320xf32>
    %63 = vector.broadcast %62 : vector<1x320xf32> to vector<10x320xf32>
    %64 = arith.addf %61, %63 : vector<10x320xf32>
    %cst_48 = arith.constant 0.000000e+00 : f32
    %65 = vector.broadcast %cst_48 : f32 to vector<10x320xf32>
    %66 = arith.cmpf ogt, %64, %65 : vector<10x320xf32>
    %cst_49 = arith.constant 0.00999999977 : f32
    %67 = vector.broadcast %cst_49 : f32 to vector<10x320xf32>
    %68 = arith.mulf %67, %64 : vector<10x320xf32>
    %69 = arith.select %66, %64, %68 : vector<10x320xi1>, vector<10x320xf32>
    %70 = vector.extract_strided_slice %69 {offsets = [0, 0], sizes = [8, 320], strides = [1, 1]} : vector<10x320xf32> to vector<8x320xf32>
    %c0_50 = arith.constant 0 : index
    %c0_51 = arith.constant 0 : index
    %c0_52 = arith.constant 0 : index
    %71 = vector.load %arg5[%c0_50, %c0_51, %c0_52] : memref<3x320x512xf32, #tpu.memory_space<vmem>>, vector<1x320x512xf32>
    %72 = vector.shape_cast %71 : vector<1x320x512xf32> to vector<320x512xf32>
    %cst_53 = arith.constant dense<0.000000e+00> : vector<8x512xf32>
    %73 = tpu.matmul %70, %72, %cst_53 {dimension_numbers = #tpu.dot_dimension_numbers<[1], [0], [0], [1], [0, 0, 1, 1], [], []>} : vector<8x320xf32>, vector<320x512xf32>, vector<8x512xf32> -> vector<8x512xf32>
    %74 = vector.extract_strided_slice %69 {offsets = [1, 0], sizes = [8, 320], strides = [1, 1]} : vector<10x320xf32> to vector<8x320xf32>
    %c1_54 = arith.constant 1 : index
    %c0_55 = arith.constant 0 : index
    %c0_56 = arith.constant 0 : index
    %75 = vector.load %arg5[%c1_54, %c0_55, %c0_56] : memref<3x320x512xf32, #tpu.memory_space<vmem>>, vector<1x320x512xf32>
    %76 = vector.shape_cast %75 : vector<1x320x512xf32> to vector<320x512xf32>
    %cst_57 = arith.constant dense<0.000000e+00> : vector<8x512xf32>
    %77 = tpu.matmul %74, %76, %cst_57 {dimension_numbers = #tpu.dot_dimension_numbers<[1], [0], [0], [1], [0, 0, 1, 1], [], []>} : vector<8x320xf32>, vector<320x512xf32>, vector<8x512xf32> -> vector<8x512xf32>
    %78 = arith.addf %73, %77 : vector<8x512xf32>
    %79 = vector.extract_strided_slice %69 {offsets = [2, 0], sizes = [8, 320], strides = [1, 1]} : vector<10x320xf32> to vector<8x320xf32>
    %c2_58 = arith.constant 2 : index
    %c0_59 = arith.constant 0 : index
    %c0_60 = arith.constant 0 : index
    %80 = vector.load %arg5[%c2_58, %c0_59, %c0_60] : memref<3x320x512xf32, #tpu.memory_space<vmem>>, vector<1x320x512xf32>
    %81 = vector.shape_cast %80 : vector<1x320x512xf32> to vector<320x512xf32>
    %cst_61 = arith.constant dense<0.000000e+00> : vector<8x512xf32>
    %82 = tpu.matmul %79, %81, %cst_61 {dimension_numbers = #tpu.dot_dimension_numbers<[1], [0], [0], [1], [0, 0, 1, 1], [], []>} : vector<8x320xf32>, vector<320x512xf32>, vector<8x512xf32> -> vector<8x512xf32>
    %83 = arith.addf %78, %82 : vector<8x512xf32>
    %c0_62 = arith.constant 0 : index
    %c0_63 = arith.constant 0 : index
    %84 = vector.load %arg13[%c0_62, %c0_63] : memref<1x512xf32, #tpu.memory_space<vmem>>, vector<1x512xf32>
    %85 = vector.broadcast %84 : vector<1x512xf32> to vector<8x512xf32>
    %86 = arith.addf %83, %85 : vector<8x512xf32>
    %cst_64 = arith.constant 0.000000e+00 : f32
    %87 = vector.broadcast %cst_64 : f32 to vector<8x512xf32>
    %88 = arith.cmpf ogt, %86, %87 : vector<8x512xf32>
    %cst_65 = arith.constant 0.00999999977 : f32
    %89 = vector.broadcast %cst_65 : f32 to vector<8x512xf32>
    %90 = arith.mulf %89, %86 : vector<8x512xf32>
    %91 = arith.select %88, %86, %90 : vector<8x512xi1>, vector<8x512xf32>
    %c2_66 = arith.constant 2 : index
    %c0_67 = arith.constant 0 : index
    %92 = vector.load %arg19[%c2_66, %c0_67] : memref<24x512xf32, #tpu.memory_space<vmem>>, vector<8x512xf32>
    tpu.vector_store %arg19[%c2_66, %c0_67], %91 {strides = array<i32>} : memref<24x512xf32, #tpu.memory_space<vmem>>, vector<8x512xf32>,
    %c0_68 = arith.constant 0 : index
    %c0_69 = arith.constant 0 : index
    %93 = vector.load %arg19[%c0_68, %c0_69] : memref<24x512xf32, #tpu.memory_space<vmem>>, vector<10x512xf32>
    %c0_70 = arith.constant 0 : index
    %c0_71 = arith.constant 0 : index
    %c0_72 = arith.constant 0 : index
    %94 = vector.load %arg6[%c0_70, %c0_71, %c0_72] : memref<3x512x320xf32, #tpu.memory_space<vmem>>, vector<1x512x320xf32>
    %95 = vector.shape_cast %94 : vector<1x512x320xf32> to vector<512x320xf32>
    %cst_73 = arith.constant dense<0.000000e+00> : vector<10x320xf32>
    %96 = tpu.matmul %93, %95, %cst_73 {dimension_numbers = #tpu.dot_dimension_numbers<[1], [0], [0], [1], [0, 0, 1, 1], [], []>} : vector<10x512xf32>, vector<512x320xf32>, vector<10x320xf32> -> vector<10x320xf32>
    %c1_74 = arith.constant 1 : index
    %c0_75 = arith.constant 0 : index
    %97 = vector.load %arg19[%c1_74, %c0_75] : memref<24x512xf32, #tpu.memory_space<vmem>>, vector<10x512xf32>
    %c1_76 = arith.constant 1 : index
    %c0_77 = arith.constant 0 : index
    %c0_78 = arith.constant 0 : index
    %98 = vector.load %arg6[%c1_76, %c0_77, %c0_78] : memref<3x512x320xf32, #tpu.memory_space<vmem>>, vector<1x512x320xf32>
    %99 = vector.shape_cast %98 : vector<1x512x320xf32> to vector<512x320xf32>
    %cst_79 = arith.constant dense<0.000000e+00> : vector<10x320xf32>
    %100 = tpu.matmul %97, %99, %cst_79 {dimension_numbers = #tpu.dot_dimension_numbers<[1], [0], [0], [1], [0, 0, 1, 1], [], []>} : vector<10x512xf32>, vector<512x320xf32>, vector<10x320xf32> -> vector<10x320xf32>
    %101 = arith.addf %96, %100 : vector<10x320xf32>
    %c2_80 = arith.constant 2 : index
    %c0_81 = arith.constant 0 : index
    %102 = vector.load %arg19[%c2_80, %c0_81] : memref<24x512xf32, #tpu.memory_space<vmem>>, vector<10x512xf32>
    %c2_82 = arith.constant 2 : index
    %c0_83 = arith.constant 0 : index
    %c0_84 = arith.constant 0 : index
    %103 = vector.load %arg6[%c2_82, %c0_83, %c0_84] : memref<3x512x320xf32, #tpu.memory_space<vmem>>, vector<1x512x320xf32>
    %104 = vector.shape_cast %103 : vector<1x512x320xf32> to vector<512x320xf32>
    %cst_85 = arith.constant dense<0.000000e+00> : vector<10x320xf32>
    %105 = tpu.matmul %102, %104, %cst_85 {dimension_numbers = #tpu.dot_dimension_numbers<[1], [0], [0], [1], [0, 0, 1, 1], [], []>} : vector<10x512xf32>, vector<512x320xf32>, vector<10x320xf32> -> vector<10x320xf32>
    %106 = arith.addf %101, %105 : vector<10x320xf32>
    %c0_86 = arith.constant 0 : index
    %c0_87 = arith.constant 0 : index
    %107 = vector.load %arg14[%c0_86, %c0_87] : memref<1x320xf32, #tpu.memory_space<vmem>>, vector<1x320xf32>
    %108 = vector.broadcast %107 : vector<1x320xf32> to vector<10x320xf32>
    %109 = arith.addf %106, %108 : vector<10x320xf32>
    %cst_88 = arith.constant 0.000000e+00 : f32
    %110 = vector.broadcast %cst_88 : f32 to vector<10x320xf32>
    %111 = arith.cmpf ogt, %109, %110 : vector<10x320xf32>
    %cst_89 = arith.constant 0.00999999977 : f32
    %112 = vector.broadcast %cst_89 : f32 to vector<10x320xf32>
    %113 = arith.mulf %112, %109 : vector<10x320xf32>
    %114 = arith.select %111, %109, %113 : vector<10x320xi1>, vector<10x320xf32>
    %c2_90 = arith.constant 2 : index
    %c0_91 = arith.constant 0 : index
    %115 = vector.load %arg19[%c2_90, %c0_91] : memref<24x512xf32, #tpu.memory_space<vmem>>, vector<10x320xf32>
    tpu.vector_store %arg19[%c2_90, %c0_91], %114 {strides = array<i32>} : memref<24x512xf32, #tpu.memory_space<vmem>>, vector<10x320xf32>,
    %c0_92 = arith.constant 0 : index
    %c0_93 = arith.constant 0 : index
    %116 = vector.load %arg19[%c0_92, %c0_93] : memref<24x512xf32, #tpu.memory_space<vmem>>, vector<12x320xf32>
    %c0_94 = arith.constant 0 : index
    %c0_95 = arith.constant 0 : index
    %c0_96 = arith.constant 0 : index
    %117 = vector.load %arg7[%c0_94, %c0_95, %c0_96] : memref<3x320x192xf32, #tpu.memory_space<vmem>>, vector<1x320x192xf32>
    %118 = vector.shape_cast %117 : vector<1x320x192xf32> to vector<320x192xf32>
    %cst_97 = arith.constant dense<0.000000e+00> : vector<12x192xf32>
    %119 = tpu.matmul %116, %118, %cst_97 {dimension_numbers = #tpu.dot_dimension_numbers<[1], [0], [0], [1], [0, 0, 1, 1], [], []>} : vector<12x320xf32>, vector<320x192xf32>, vector<12x192xf32> -> vector<12x192xf32>
    %c1_98 = arith.constant 1 : index
    %c0_99 = arith.constant 0 : index
    %120 = vector.load %arg19[%c1_98, %c0_99] : memref<24x512xf32, #tpu.memory_space<vmem>>, vector<12x320xf32>
    %c1_100 = arith.constant 1 : index
    %c0_101 = arith.constant 0 : index
    %c0_102 = arith.constant 0 : index
    %121 = vector.load %arg7[%c1_100, %c0_101, %c0_102] : memref<3x320x192xf32, #tpu.memory_space<vmem>>, vector<1x320x192xf32>
    %122 = vector.shape_cast %121 : vector<1x320x192xf32> to vector<320x192xf32>
    %cst_103 = arith.constant dense<0.000000e+00> : vector<12x192xf32>
    %123 = tpu.matmul %120, %122, %cst_103 {dimension_numbers = #tpu.dot_dimension_numbers<[1], [0], [0], [1], [0, 0, 1, 1], [], []>} : vector<12x320xf32>, vector<320x192xf32>, vector<12x192xf32> -> vector<12x192xf32>
    %124 = arith.addf %119, %123 : vector<12x192xf32>
    %c2_104 = arith.constant 2 : index
    %c0_105 = arith.constant 0 : index
    %125 = vector.load %arg19[%c2_104, %c0_105] : memref<24x512xf32, #tpu.memory_space<vmem>>, vector<12x320xf32>
    %c2_106 = arith.constant 2 : index
    %c0_107 = arith.constant 0 : index
    %c0_108 = arith.constant 0 : index
    %126 = vector.load %arg7[%c2_106, %c0_107, %c0_108] : memref<3x320x192xf32, #tpu.memory_space<vmem>>, vector<1x320x192xf32>
    %127 = vector.shape_cast %126 : vector<1x320x192xf32> to vector<320x192xf32>
    %cst_109 = arith.constant dense<0.000000e+00> : vector<12x192xf32>
    %128 = tpu.matmul %125, %127, %cst_109 {dimension_numbers = #tpu.dot_dimension_numbers<[1], [0], [0], [1], [0, 0, 1, 1], [], []>} : vector<12x320xf32>, vector<320x192xf32>, vector<12x192xf32> -> vector<12x192xf32>
    %129 = arith.addf %124, %128 : vector<12x192xf32>
    %c0_110 = arith.constant 0 : index
    %c0_111 = arith.constant 0 : index
    %130 = vector.load %arg15[%c0_110, %c0_111] : memref<1x192xf32, #tpu.memory_space<vmem>>, vector<1x192xf32>
    %131 = vector.broadcast %130 : vector<1x192xf32> to vector<12x192xf32>
    %132 = arith.addf %129, %131 : vector<12x192xf32>
    %cst_112 = arith.constant 0.000000e+00 : f32
    %133 = vector.broadcast %cst_112 : f32 to vector<12x192xf32>
    %134 = arith.cmpf ogt, %132, %133 : vector<12x192xf32>
    %cst_113 = arith.constant 0.00999999977 : f32
    %135 = vector.broadcast %cst_113 : f32 to vector<12x192xf32>
    %136 = arith.mulf %135, %132 : vector<12x192xf32>
    %137 = arith.select %134, %132, %136 : vector<12x192xi1>, vector<12x192xf32>
    %c2_114 = arith.constant 2 : index
    %c0_115 = arith.constant 0 : index
    %138 = vector.load %arg19[%c2_114, %c0_115] : memref<24x512xf32, #tpu.memory_space<vmem>>, vector<12x192xf32>
    tpu.vector_store %arg19[%c2_114, %c0_115], %137 {strides = array<i32>} : memref<24x512xf32, #tpu.memory_space<vmem>>, vector<12x192xf32>,
    %c0_116 = arith.constant 0 : index
    %c0_117 = arith.constant 0 : index
    %139 = vector.load %arg19[%c0_116, %c0_117] : memref<24x512xf32, #tpu.memory_space<vmem>>, vector<14x192xf32>
    %c0_118 = arith.constant 0 : index
    %c0_119 = arith.constant 0 : index
    %c0_120 = arith.constant 0 : index
    %140 = vector.load %arg8[%c0_118, %c0_119, %c0_120] : memref<3x192x112xf32, #tpu.memory_space<vmem>>, vector<1x192x112xf32>
    %141 = vector.shape_cast %140 : vector<1x192x112xf32> to vector<192x112xf32>
    %cst_121 = arith.constant dense<0.000000e+00> : vector<14x112xf32>
    %142 = tpu.matmul %139, %141, %cst_121 {dimension_numbers = #tpu.dot_dimension_numbers<[1], [0], [0], [1], [0, 0, 1, 1], [], []>} : vector<14x192xf32>, vector<192x112xf32>, vector<14x112xf32> -> vector<14x112xf32>
    %c1_122 = arith.constant 1 : index
    %c0_123 = arith.constant 0 : index
    %143 = vector.load %arg19[%c1_122, %c0_123] : memref<24x512xf32, #tpu.memory_space<vmem>>, vector<14x192xf32>
    %c1_124 = arith.constant 1 : index
    %c0_125 = arith.constant 0 : index
    %c0_126 = arith.constant 0 : index
    %144 = vector.load %arg8[%c1_124, %c0_125, %c0_126] : memref<3x192x112xf32, #tpu.memory_space<vmem>>, vector<1x192x112xf32>
    %145 = vector.shape_cast %144 : vector<1x192x112xf32> to vector<192x112xf32>
    %cst_127 = arith.constant dense<0.000000e+00> : vector<14x112xf32>
    %146 = tpu.matmul %143, %145, %cst_127 {dimension_numbers = #tpu.dot_dimension_numbers<[1], [0], [0], [1], [0, 0, 1, 1], [], []>} : vector<14x192xf32>, vector<192x112xf32>, vector<14x112xf32> -> vector<14x112xf32>
    %147 = arith.addf %142, %146 : vector<14x112xf32>
    %c2_128 = arith.constant 2 : index
    %c0_129 = arith.constant 0 : index
    %148 = vector.load %arg19[%c2_128, %c0_129] : memref<24x512xf32, #tpu.memory_space<vmem>>, vector<14x192xf32>
    %c2_130 = arith.constant 2 : index
    %c0_131 = arith.constant 0 : index
    %c0_132 = arith.constant 0 : index
    %149 = vector.load %arg8[%c2_130, %c0_131, %c0_132] : memref<3x192x112xf32, #tpu.memory_space<vmem>>, vector<1x192x112xf32>
    %150 = vector.shape_cast %149 : vector<1x192x112xf32> to vector<192x112xf32>
    %cst_133 = arith.constant dense<0.000000e+00> : vector<14x112xf32>
    %151 = tpu.matmul %148, %150, %cst_133 {dimension_numbers = #tpu.dot_dimension_numbers<[1], [0], [0], [1], [0, 0, 1, 1], [], []>} : vector<14x192xf32>, vector<192x112xf32>, vector<14x112xf32> -> vector<14x112xf32>
    %152 = arith.addf %147, %151 : vector<14x112xf32>
    %c0_134 = arith.constant 0 : index
    %c0_135 = arith.constant 0 : index
    %153 = vector.load %arg16[%c0_134, %c0_135] : memref<1x112xf32, #tpu.memory_space<vmem>>, vector<1x112xf32>
    %154 = vector.broadcast %153 : vector<1x112xf32> to vector<14x112xf32>
    %155 = arith.addf %152, %154 : vector<14x112xf32>
    %cst_136 = arith.constant 0.000000e+00 : f32
    %156 = vector.broadcast %cst_136 : f32 to vector<14x112xf32>
    %157 = arith.cmpf ogt, %155, %156 : vector<14x112xf32>
    %cst_137 = arith.constant 0.00999999977 : f32
    %158 = vector.broadcast %cst_137 : f32 to vector<14x112xf32>
    %159 = arith.mulf %158, %155 : vector<14x112xf32>
    %160 = arith.select %157, %155, %159 : vector<14x112xi1>, vector<14x112xf32>
    %c2_138 = arith.constant 2 : index
    %c0_139 = arith.constant 0 : index
    %161 = vector.load %arg19[%c2_138, %c0_139] : memref<24x512xf32, #tpu.memory_space<vmem>>, vector<14x112xf32>
    tpu.vector_store %arg19[%c2_138, %c0_139], %160 {strides = array<i32>} : memref<24x512xf32, #tpu.memory_space<vmem>>, vector<14x112xf32>,
    %c0_140 = arith.constant 0 : index
    %c0_141 = arith.constant 0 : index
    %162 = vector.load %arg19[%c0_140, %c0_141] : memref<24x512xf32, #tpu.memory_space<vmem>>, vector<16x112xf32>
    %c0_142 = arith.constant 0 : index
    %c0_143 = arith.constant 0 : index
    %c0_144 = arith.constant 0 : index
    %163 = vector.load %arg9[%c0_142, %c0_143, %c0_144] : memref<3x112x16xf32, #tpu.memory_space<vmem>>, vector<1x112x16xf32>
    %164 = vector.shape_cast %163 : vector<1x112x16xf32> to vector<112x16xf32>
    %cst_145 = arith.constant dense<0.000000e+00> : vector<16x16xf32>
    %165 = tpu.matmul %162, %164, %cst_145 {dimension_numbers = #tpu.dot_dimension_numbers<[1], [0], [0], [1], [0, 0, 1, 1], [], []>} : vector<16x112xf32>, vector<112x16xf32>, vector<16x16xf32> -> vector<16x16xf32>
    %c1_146 = arith.constant 1 : index
    %c0_147 = arith.constant 0 : index
    %166 = vector.load %arg19[%c1_146, %c0_147] : memref<24x512xf32, #tpu.memory_space<vmem>>, vector<16x112xf32>
    %c1_148 = arith.constant 1 : index
    %c0_149 = arith.constant 0 : index
    %c0_150 = arith.constant 0 : index
    %167 = vector.load %arg9[%c1_148, %c0_149, %c0_150] : memref<3x112x16xf32, #tpu.memory_space<vmem>>, vector<1x112x16xf32>
    %168 = vector.shape_cast %167 : vector<1x112x16xf32> to vector<112x16xf32>
    %cst_151 = arith.constant dense<0.000000e+00> : vector<16x16xf32>
    %169 = tpu.matmul %166, %168, %cst_151 {dimension_numbers = #tpu.dot_dimension_numbers<[1], [0], [0], [1], [0, 0, 1, 1], [], []>} : vector<16x112xf32>, vector<112x16xf32>, vector<16x16xf32> -> vector<16x16xf32>
    %170 = arith.addf %165, %169 : vector<16x16xf32>
    %c2_152 = arith.constant 2 : index
    %c0_153 = arith.constant 0 : index
    %171 = vector.load %arg19[%c2_152, %c0_153] : memref<24x512xf32, #tpu.memory_space<vmem>>, vector<16x112xf32>
    %c2_154 = arith.constant 2 : index
    %c0_155 = arith.constant 0 : index
    %c0_156 = arith.constant 0 : index
    %172 = vector.load %arg9[%c2_154, %c0_155, %c0_156] : memref<3x112x16xf32, #tpu.memory_space<vmem>>, vector<1x112x16xf32>
    %173 = vector.shape_cast %172 : vector<1x112x16xf32> to vector<112x16xf32>
    %cst_157 = arith.constant dense<0.000000e+00> : vector<16x16xf32>
    %174 = tpu.matmul %171, %173, %cst_157 {dimension_numbers = #tpu.dot_dimension_numbers<[1], [0], [0], [1], [0, 0, 1, 1], [], []>} : vector<16x112xf32>, vector<112x16xf32>, vector<16x16xf32> -> vector<16x16xf32>
    %175 = arith.addf %170, %174 : vector<16x16xf32>
    %c0_158 = arith.constant 0 : index
    %c0_159 = arith.constant 0 : index
    %176 = vector.load %arg17[%c0_158, %c0_159] : memref<1x16xf32, #tpu.memory_space<vmem>>, vector<1x16xf32>
    %177 = vector.broadcast %176 : vector<1x16xf32> to vector<16x16xf32>
    %178 = arith.addf %175, %177 : vector<16x16xf32>
    %cst_160 = arith.constant 0.000000e+00 : f32
    %179 = vector.broadcast %cst_160 : f32 to vector<16x16xf32>
    %180 = arith.cmpf ogt, %178, %179 : vector<16x16xf32>
    %cst_161 = arith.constant 0.00999999977 : f32
    %181 = vector.broadcast %cst_161 : f32 to vector<16x16xf32>
    %182 = arith.mulf %181, %178 : vector<16x16xf32>
    %183 = arith.select %180, %178, %182 : vector<16x16xi1>, vector<16x16xf32>
    %cst_162 = arith.constant 0.000000e+00 : f32
    %184 = vector.broadcast %cst_162 : f32 to vector<16x16xf32>
    %185 = arith.subf %184, %183 : vector<16x16xf32>
    %186 = math.exp %185 : vector<16x16xf32>
    %cst_163 = arith.constant 1.000000e+00 : f32
    %187 = vector.broadcast %cst_163 : f32 to vector<16x16xf32>
    %188 = arith.addf %187, %186 : vector<16x16xf32>
    %189 = tpu.reciprocal %188 {approx = true} : vector<16x16xf32> -> vector<16x16xf32>
    %c0_164 = arith.constant 0 : index
    %c0_165 = arith.constant 0 : index
    %c0_166 = arith.constant 0 : index
    %190 = vector.load %arg18[%c0_164, %c0_165, %c0_166] : memref<1x16x16xf32, #tpu.memory_space<vmem>>, vector<1x16x16xf32>
    %191 = vector.shape_cast %190 : vector<1x16x16xf32> to vector<16x16xf32>
    %192 = vector.shape_cast %189 : vector<16x16xf32> to vector<1x16x16xf32>
    tpu.vector_store %arg18[%c0_164, %c0_165, %c0_166], %192 {strides = array<i32>} : memref<1x16x16xf32, #tpu.memory_space<vmem>>, vector<1x16x16xf32>,
    return
  }
  func.func @transform_0(%arg0: i32) -> (i32, i32, i32) {
    %c0_i32 = arith.constant 0 : i32
    %c0_i32_0 = arith.constant 0 : i32
    %c0_i32_1 = arith.constant 0 : i32
    return %arg0, %c0_i32, %c0_i32_0 : i32, i32, i32
  }
  func.func @transform_1(%arg0: i32) -> (i32, i32, i32) {
    %c0_i32 = arith.constant 0 : i32
    %c0_i32_0 = arith.constant 0 : i32
    %c0_i32_1 = arith.constant 0 : i32
    %c0_i32_2 = arith.constant 0 : i32
    return %c0_i32, %c0_i32_0, %c0_i32_1 : i32, i32, i32
  }
  func.func @transform_2(%arg0: i32) -> (i32, i32, i32) {
    %c0_i32 = arith.constant 0 : i32
    %c0_i32_0 = arith.constant 0 : i32
    %c0_i32_1 = arith.constant 0 : i32
    %c0_i32_2 = arith.constant 0 : i32
    return %c0_i32, %c0_i32_0, %c0_i32_1 : i32, i32, i32
  }
  func.func @transform_3(%arg0: i32) -> (i32, i32, i32) {
    %c0_i32 = arith.constant 0 : i32
    %c0_i32_0 = arith.constant 0 : i32
    %c0_i32_1 = arith.constant 0 : i32
    %c0_i32_2 = arith.constant 0 : i32
    return %c0_i32, %c0_i32_0, %c0_i32_1 : i32, i32, i32
  }
  func.func @transform_4(%arg0: i32) -> (i32, i32, i32) {
    %c0_i32 = arith.constant 0 : i32
    %c0_i32_0 = arith.constant 0 : i32
    %c0_i32_1 = arith.constant 0 : i32
    %c0_i32_2 = arith.constant 0 : i32
    return %c0_i32, %c0_i32_0, %c0_i32_1 : i32, i32, i32
  }
  func.func @transform_5(%arg0: i32) -> (i32, i32, i32) {
    %c0_i32 = arith.constant 0 : i32
    %c0_i32_0 = arith.constant 0 : i32
    %c0_i32_1 = arith.constant 0 : i32
    %c0_i32_2 = arith.constant 0 : i32
    return %c0_i32, %c0_i32_0, %c0_i32_1 : i32, i32, i32
  }
  func.func @transform_6(%arg0: i32) -> (i32, i32, i32) {
    %c0_i32 = arith.constant 0 : i32
    %c0_i32_0 = arith.constant 0 : i32
    %c0_i32_1 = arith.constant 0 : i32
    %c0_i32_2 = arith.constant 0 : i32
    return %c0_i32, %c0_i32_0, %c0_i32_1 : i32, i32, i32
  }
  func.func @transform_7(%arg0: i32) -> (i32, i32, i32) {
    %c0_i32 = arith.constant 0 : i32
    %c0_i32_0 = arith.constant 0 : i32
    %c0_i32_1 = arith.constant 0 : i32
    %c0_i32_2 = arith.constant 0 : i32
    return %c0_i32, %c0_i32_0, %c0_i32_1 : i32, i32, i32
  }
  func.func @transform_8(%arg0: i32) -> (i32, i32, i32) {
    %c0_i32 = arith.constant 0 : i32
    %c0_i32_0 = arith.constant 0 : i32
    %c0_i32_1 = arith.constant 0 : i32
    %c0_i32_2 = arith.constant 0 : i32
    return %c0_i32, %c0_i32_0, %c0_i32_1 : i32, i32, i32
  }
  func.func @transform_9(%arg0: i32) -> (i32, i32) {
    %c0_i32 = arith.constant 0 : i32
    %c0_i32_0 = arith.constant 0 : i32
    %c0_i32_1 = arith.constant 0 : i32
    return %c0_i32, %c0_i32_0 : i32, i32
  }
  func.func @transform_10(%arg0: i32) -> (i32, i32) {
    %c0_i32 = arith.constant 0 : i32
    %c0_i32_0 = arith.constant 0 : i32
    %c0_i32_1 = arith.constant 0 : i32
    return %c0_i32, %c0_i32_0 : i32, i32
  }
  func.func @transform_11(%arg0: i32) -> (i32, i32) {
    %c0_i32 = arith.constant 0 : i32
    %c0_i32_0 = arith.constant 0 : i32
    %c0_i32_1 = arith.constant 0 : i32
    return %c0_i32, %c0_i32_0 : i32, i32
  }
  func.func @transform_12(%arg0: i32) -> (i32, i32) {
    %c0_i32 = arith.constant 0 : i32
    %c0_i32_0 = arith.constant 0 : i32
    %c0_i32_1 = arith.constant 0 : i32
    return %c0_i32, %c0_i32_0 : i32, i32
  }
  func.func @transform_13(%arg0: i32) -> (i32, i32) {
    %c0_i32 = arith.constant 0 : i32
    %c0_i32_0 = arith.constant 0 : i32
    %c0_i32_1 = arith.constant 0 : i32
    return %c0_i32, %c0_i32_0 : i32, i32
  }
  func.func @transform_14(%arg0: i32) -> (i32, i32) {
    %c0_i32 = arith.constant 0 : i32
    %c0_i32_0 = arith.constant 0 : i32
    %c0_i32_1 = arith.constant 0 : i32
    return %c0_i32, %c0_i32_0 : i32, i32
  }
  func.func @transform_15(%arg0: i32) -> (i32, i32) {
    %c0_i32 = arith.constant 0 : i32
    %c0_i32_0 = arith.constant 0 : i32
    %c0_i32_1 = arith.constant 0 : i32
    return %c0_i32, %c0_i32_0 : i32, i32
  }
  func.func @transform_16(%arg0: i32) -> (i32, i32) {
    %c0_i32 = arith.constant 0 : i32
    %c0_i32_0 = arith.constant 0 : i32
    %c0_i32_1 = arith.constant 0 : i32
    return %c0_i32, %c0_i32_0 : i32, i32
  }
  func.func @transform_17(%arg0: i32) -> (i32, i32, i32) {
    %c0_i32 = arith.constant 0 : i32
    %c0_i32_0 = arith.constant 0 : i32
    %c0_i32_1 = arith.constant 0 : i32
    return %arg0, %c0_i32, %c0_i32_0 : i32, i32, i32
  }
}

</mosaic_0001>

<llo_original>
// kernel: autoencoder_forward.1
$region0: #{autoencoder_forward.1}
  #allocation0 [shape = 'u32[]', space=smem, size = 0x4, offset = 0x4, fixed_abs, tag = 'smem constant byte address 0x4 - core index']
  #allocation1 [shape = 'u32[144,128]{1,0:T(1,128)}', space=vmem, size = 0x12000, scoped, tag = 'internal scratch']
  #allocation2 [shape = 'f32[24,512]{1,0:T(8,128)}', space=vmem, size = 0xc000, scoped, tag = 'scratch operand']
  %s0 = inlined_call_operand.vmem [shape: f32[2,16,16], index: 0, kind: input, shape index: {}]
  %s1 = inlined_call_operand.vmem [shape: f32[3,16,112], index: 1, kind: input, shape index: {}]
  %s2 = inlined_call_operand.vmem [shape: f32[3,112,192], index: 2, kind: input, shape index: {}]
  %s3 = inlined_call_operand.vmem [shape: f32[3,192,320], index: 3, kind: input, shape index: {}]
  %s4 = inlined_call_operand.vmem [shape: f32[3,320,512], index: 4, kind: input, shape index: {}]
  %s5 = inlined_call_operand.vmem [shape: f32[3,512,320], index: 5, kind: input, shape index: {}]
  %s6 = inlined_call_operand.vmem [shape: f32[3,320,192], index: 6, kind: input, shape index: {}]
  %s7 = inlined_call_operand.vmem [shape: f32[3,192,112], index: 7, kind: input, shape index: {}]
  %s8 = inlined_call_operand.vmem [shape: f32[3,112,16], index: 8, kind: input, shape index: {}]
  %s9 = inlined_call_operand.vmem [shape: f32[1,112], index: 9, kind: input, shape index: {}]
  %s10 = inlined_call_operand.vmem [shape: f32[1,192], index: 10, kind: input, shape index: {}]
  %s11 = inlined_call_operand.vmem [shape: f32[1,320], index: 11, kind: input, shape index: {}]
  %s12 = inlined_call_operand.vmem [shape: f32[1,512], index: 12, kind: input, shape index: {}]
  %s13 = inlined_call_operand.vmem [shape: f32[1,320], index: 13, kind: input, shape index: {}]
  %s14 = inlined_call_operand.vmem [shape: f32[1,192], index: 14, kind: input, shape index: {}]
  %s15 = inlined_call_operand.vmem [shape: f32[1,112], index: 15, kind: input, shape index: {}]
  %s16 = inlined_call_operand.vmem [shape: f32[1,16], index: 16, kind: input, shape index: {}]
  %s17 = inlined_call_operand.hbm [shape: f32[2,16,16], index: 17, kind: output, shape index: {}]
  %s18 = sld [smem:[#allocation0]]
  $region101: #{autoencoder_forward.1} parent=0
    _
  %s20 = ssub.s32 1, %s18
  %s21 = scalar_select 0, %s20, %s18
  $region1: #{autoencoder_forward.1} parent=0
    #allocation3 [shape = 'u8[16384]{0}', space=vmem, size = 0x4000, scoped, tag = 'output window, operand 0']
    #allocation4 [shape = 's32[2]{0}', space=sflag, size = 0x8, scoped, tag = 'scoped memory for autoencoder_forward.1']
    %22 = vsyncpa [#allocation4], 0
    %s23 = scalar_lea.sflag [#allocation4], 1
    %24 = vsyncpa %s23, 0
    loop: start=0, step=1, limit=4
    $region2: #{autoencoder_forward.1} parent=1 // loop_pre_header
      _
    $region3: #{autoencoder_forward.1} parent=1 // loop_header
      %s26 = sphi 0, %s30
      %p27 = scmp.ge.s32.totalorder %s26, 4
      %s36 = sphi 0, %s38
      %s39 = sphi 0, %s36
      %s40 = sphi 0, %s39
      %s56 = sphi 0, %s40
      %s60 = sphi 0, %s60
      %s62 = sphi 0, %s60
      %s63 = sphi 0, %s62
      %s77 = sphi 0, %s63
      %s81 = sphi 0, %s81
      %s83 = sphi 0, %s81
      %s84 = sphi 0, %s83
      %s98 = sphi 0, %s84
      %s102 = sphi 0, %s102
      %s104 = sphi 0, %s102
      %s105 = sphi 0, %s104
      %s119 = sphi 0, %s105
      %s123 = sphi 0, %s123
      %s125 = sphi 0, %s123
      %s126 = sphi 0, %s125
      %s140 = sphi 0, %s126
      %s144 = sphi 0, %s144
      %s146 = sphi 0, %s144
      %s147 = sphi 0, %s146
      %s161 = sphi 0, %s147
      %s165 = sphi 0, %s165
      %s167 = sphi 0, %s165
      %s168 = sphi 0, %s167
      %s182 = sphi 0, %s168
      %s186 = sphi 0, %s186
      %s188 = sphi 0, %s186
      %s189 = sphi 0, %s188
      %s203 = sphi 0, %s189
      %s207 = sphi 0, %s207
      %s209 = sphi 0, %s207
      %s210 = sphi 0, %s209
      %s224 = sphi 0, %s210
      %s228 = sphi 0, %s228
      %s230 = sphi 0, %s228
      %s231 = sphi 0, %s230
      %s245 = sphi 0, %s231
      %s249 = sphi 0, %s249
      %s251 = sphi 0, %s249
      %s252 = sphi 0, %s251
      %s266 = sphi 0, %s252
      %s270 = sphi 0, %s270
      %s272 = sphi 0, %s270
      %s273 = sphi 0, %s272
      %s287 = sphi 0, %s273
      %s291 = sphi 0, %s291
      %s293 = sphi 0, %s291
      %s294 = sphi 0, %s293
      %s308 = sphi 0, %s294
      %s312 = sphi 0, %s312
      %s314 = sphi 0, %s312
      %s315 = sphi 0, %s314
      %s329 = sphi 0, %s315
      %s333 = sphi 0, %s333
      %s335 = sphi 0, %s333
      %s336 = sphi 0, %s335
      %s350 = sphi 0, %s336
      %s354 = sphi 0, %s354
      %s356 = sphi 0, %s354
      %s357 = sphi 0, %s356
      %s371 = sphi 0, %s357
      %s375 = sphi 0, %s375
      %s377 = sphi 0, %s375
      %s378 = sphi 0, %s377
      %s392 = sphi 0, %s378
      %s398 = sphi 0, %s400
      %s401 = sphi 0, %s398
      %s402 = sphi 0, %s401
      %s418 = sphi 0, %s402
    $region4: #{autoencoder_forward.1} parent=1 // loop_header_branch
      %29 = sbr.rel (%p27) target = $region8
    $region5: #{autoencoder_forward.1} parent=1 // loop_body
      %s31 = ssub.s32 %s26, 1
      %s32 = ssub.s32 %s26, 2
      %s33 = sadd.s32 %s26, 1
      %s34 = ssub.s32 %s26, %s33
      %p35 = scmp.eq.s32.totalorder %s34, 0
      %s37 = sadd.s32 %s36, 1
      %s38 = scalar_select %p35, %s36, %s37
      %p41 = pneg %p35
      %p42 = scmp.eq.s32.totalorder %s26, 1
      %p43 = por %p41, %p42
      %p44 = scmp.ne.s32.totalorder %s36, %s39
      %p45 = scmp.eq.s32.totalorder %s26, 0
      %p46 = por %p44, %p45
      %p47 = scmp.ne.s32.totalorder %s36, %s39
      %p48 = scmp.eq.s32.totalorder %s31, 1
      %p49 = por %p47, %p48
      %p50 = scmp.ne.s32.totalorder %s39, %s40
      %p51 = scmp.eq.s32.totalorder %s31, 0
      %p52 = por %p50, %p51
      %p53 = scmp.ne.s32.totalorder %s39, %s40
      %p54 = scmp.eq.s32.totalorder %s32, 1
      %p55 = por %p53, %p54
      %p57 = scmp.ne.s32.totalorder %s40, %s56
      %p58 = scmp.eq.s32.totalorder %s32, 0
      %p59 = por %p57, %p58
      %s61 = sadd.s32 %s60, 1
      %p64 = scmp.eq.s32.totalorder %s26, 1
      %p65 = scmp.ne.s32.totalorder %s60, %s62
      %p66 = scmp.eq.s32.totalorder %s26, 0
      %p67 = por %p65, %p66
      %p68 = scmp.ne.s32.totalorder %s60, %s62
      %p69 = scmp.eq.s32.totalorder %s31, 1
      %p70 = por %p68, %p69
      %p71 = scmp.ne.s32.totalorder %s62, %s63
      %p72 = scmp.eq.s32.totalorder %s31, 0
      %p73 = por %p71, %p72
      %p74 = scmp.ne.s32.totalorder %s62, %s63
      %p75 = scmp.eq.s32.totalorder %s32, 1
      %p76 = por %p74, %p75
      %p78 = scmp.ne.s32.totalorder %s63, %s77
      %p79 = scmp.eq.s32.totalorder %s32, 0
      %p80 = por %p78, %p79
      %s82 = sadd.s32 %s81, 1
      %p85 = scmp.eq.s32.totalorder %s26, 1
      %p86 = scmp.ne.s32.totalorder %s81, %s83
      %p87 = scmp.eq.s32.totalorder %s26, 0
      %p88 = por %p86, %p87
      %p89 = scmp.ne.s32.totalorder %s81, %s83
      %p90 = scmp.eq.s32.totalorder %s31, 1
      %p91 = por %p89, %p90
      %p92 = scmp.ne.s32.totalorder %s83, %s84
      %p93 = scmp.eq.s32.totalorder %s31, 0
      %p94 = por %p92, %p93
      %p95 = scmp.ne.s32.totalorder %s83, %s84
      %p96 = scmp.eq.s32.totalorder %s32, 1
      %p97 = por %p95, %p96
      %p99 = scmp.ne.s32.totalorder %s84, %s98
      %p100 = scmp.eq.s32.totalorder %s32, 0
      %p101 = por %p99, %p100
      %s103 = sadd.s32 %s102, 1
      %p106 = scmp.eq.s32.totalorder %s26, 1
      %p107 = scmp.ne.s32.totalorder %s102, %s104
      %p108 = scmp.eq.s32.totalorder %s26, 0
      %p109 = por %p107, %p108
      %p110 = scmp.ne.s32.totalorder %s102, %s104
      %p111 = scmp.eq.s32.totalorder %s31, 1
      %p112 = por %p110, %p111
      %p113 = scmp.ne.s32.totalorder %s104, %s105
      %p114 = scmp.eq.s32.totalorder %s31, 0
      %p115 = por %p113, %p114
      %p116 = scmp.ne.s32.totalorder %s104, %s105
      %p117 = scmp.eq.s32.totalorder %s32, 1
      %p118 = por %p116, %p117
      %p120 = scmp.ne.s32.totalorder %s105, %s119
      %p121 = scmp.eq.s32.totalorder %s32, 0
      %p122 = por %p120, %p121
      %s124 = sadd.s32 %s123, 1
      %p127 = scmp.eq.s32.totalorder %s26, 1
      %p128 = scmp.ne.s32.totalorder %s123, %s125
      %p129 = scmp.eq.s32.totalorder %s26, 0
      %p130 = por %p128, %p129
      %p131 = scmp.ne.s32.totalorder %s123, %s125
      %p132 = scmp.eq.s32.totalorder %s31, 1
      %p133 = por %p131, %p132
      %p134 = scmp.ne.s32.totalorder %s125, %s126
      %p135 = scmp.eq.s32.totalorder %s31, 0
      %p136 = por %p134, %p135
      %p137 = scmp.ne.s32.totalorder %s125, %s126
      %p138 = scmp.eq.s32.totalorder %s32, 1
      %p139 = por %p137, %p138
      %p141 = scmp.ne.s32.totalorder %s126, %s140
      %p142 = scmp.eq.s32.totalorder %s32, 0
      %p143 = por %p141, %p142
      %s145 = sadd.s32 %s144, 1
      %p148 = scmp.eq.s32.totalorder %s26, 1
      %p149 = scmp.ne.s32.totalorder %s144, %s146
      %p150 = scmp.eq.s32.totalorder %s26, 0
      %p151 = por %p149, %p150
      %p152 = scmp.ne.s32.totalorder %s144, %s146
      %p153 = scmp.eq.s32.totalorder %s31, 1
      %p154 = por %p152, %p153
      %p155 = scmp.ne.s32.totalorder %s146, %s147
      %p156 = scmp.eq.s32.totalorder %s31, 0
      %p157 = por %p155, %p156
      %p158 = scmp.ne.s32.totalorder %s146, %s147
      %p159 = scmp.eq.s32.totalorder %s32, 1
      %p160 = por %p158, %p159
      %p162 = scmp.ne.s32.totalorder %s147, %s161
      %p163 = scmp.eq.s32.totalorder %s32, 0
      %p164 = por %p162, %p163
      %s166 = sadd.s32 %s165, 1
      %p169 = scmp.eq.s32.totalorder %s26, 1
      %p170 = scmp.ne.s32.totalorder %s165, %s167
      %p171 = scmp.eq.s32.totalorder %s26, 0
      %p172 = por %p170, %p171
      %p173 = scmp.ne.s32.totalorder %s165, %s167
      %p174 = scmp.eq.s32.totalorder %s31, 1
      %p175 = por %p173, %p174
      %p176 = scmp.ne.s32.totalorder %s167, %s168
      %p177 = scmp.eq.s32.totalorder %s31, 0
      %p178 = por %p176, %p177
      %p179 = scmp.ne.s32.totalorder %s167, %s168
      %p180 = scmp.eq.s32.totalorder %s32, 1
      %p181 = por %p179, %p180
      %p183 = scmp.ne.s32.totalorder %s168, %s182
      %p184 = scmp.eq.s32.totalorder %s32, 0
      %p185 = por %p183, %p184
      %s187 = sadd.s32 %s186, 1
      %p190 = scmp.eq.s32.totalorder %s26, 1
      %p191 = scmp.ne.s32.totalorder %s186, %s188
      %p192 = scmp.eq.s32.totalorder %s26, 0
      %p193 = por %p191, %p192
      %p194 = scmp.ne.s32.totalorder %s186, %s188
      %p195 = scmp.eq.s32.totalorder %s31, 1
      %p196 = por %p194, %p195
      %p197 = scmp.ne.s32.totalorder %s188, %s189
      %p198 = scmp.eq.s32.totalorder %s31, 0
      %p199 = por %p197, %p198
      %p200 = scmp.ne.s32.totalorder %s188, %s189
      %p201 = scmp.eq.s32.totalorder %s32, 1
      %p202 = por %p200, %p201
      %p204 = scmp.ne.s32.totalorder %s189, %s203
      %p205 = scmp.eq.s32.totalorder %s32, 0
      %p206 = por %p204, %p205
      %s208 = sadd.s32 %s207, 1
      %p211 = scmp.eq.s32.totalorder %s26, 1
      %p212 = scmp.ne.s32.totalorder %s207, %s209
      %p213 = scmp.eq.s32.totalorder %s26, 0
      %p214 = por %p212, %p213
      %p215 = scmp.ne.s32.totalorder %s207, %s209
      %p216 = scmp.eq.s32.totalorder %s31, 1
      %p217 = por %p215, %p216
      %p218 = scmp.ne.s32.totalorder %s209, %s210
      %p219 = scmp.eq.s32.totalorder %s31, 0
      %p220 = por %p218, %p219
      %p221 = scmp.ne.s32.totalorder %s209, %s210
      %p222 = scmp.eq.s32.totalorder %s32, 1
      %p223 = por %p221, %p222
      %p225 = scmp.ne.s32.totalorder %s210, %s224
      %p226 = scmp.eq.s32.totalorder %s32, 0
      %p227 = por %p225, %p226
      %s229 = sadd.s32 %s228, 1
      %p232 = scmp.eq.s32.totalorder %s26, 1
      %p233 = scmp.ne.s32.totalorder %s228, %s230
      %p234 = scmp.eq.s32.totalorder %s26, 0
      %p235 = por %p233, %p234
      %p236 = scmp.ne.s32.totalorder %s228, %s230
      %p237 = scmp.eq.s32.totalorder %s31, 1
      %p238 = por %p236, %p237
      %p239 = scmp.ne.s32.totalorder %s230, %s231
      %p240 = scmp.eq.s32.totalorder %s31, 0
      %p241 = por %p239, %p240
      %p242 = scmp.ne.s32.totalorder %s230, %s231
      %p243 = scmp.eq.s32.totalorder %s32, 1
      %p244 = por %p242, %p243
      %p246 = scmp.ne.s32.totalorder %s231, %s245
      %p247 = scmp.eq.s32.totalorder %s32, 0
      %p248 = por %p246, %p247
      %s250 = sadd.s32 %s249, 1
      %p253 = scmp.eq.s32.totalorder %s26, 1
      %p254 = scmp.ne.s32.totalorder %s249, %s251
      %p255 = scmp.eq.s32.totalorder %s26, 0
      %p256 = por %p254, %p255
      %p257 = scmp.ne.s32.totalorder %s249, %s251
      %p258 = scmp.eq.s32.totalorder %s31, 1
      %p259 = por %p257, %p258
      %p260 = scmp.ne.s32.totalorder %s251, %s252
      %p261 = scmp.eq.s32.totalorder %s31, 0
      %p262 = por %p260, %p261
      %p263 = scmp.ne.s32.totalorder %s251, %s252
      %p264 = scmp.eq.s32.totalorder %s32, 1
      %p265 = por %p263, %p264
      %p267 = scmp.ne.s32.totalorder %s252, %s266
      %p268 = scmp.eq.s32.totalorder %s32, 0
      %p269 = por %p267, %p268
      %s271 = sadd.s32 %s270, 1
      %p274 = scmp.eq.s32.totalorder %s26, 1
      %p275 = scmp.ne.s32.totalorder %s270, %s272
      %p276 = scmp.eq.s32.totalorder %s26, 0
      %p277 = por %p275, %p276
      %p278 = scmp.ne.s32.totalorder %s270, %s272
      %p279 = scmp.eq.s32.totalorder %s31, 1
      %p280 = por %p278, %p279
      %p281 = scmp.ne.s32.totalorder %s272, %s273
      %p282 = scmp.eq.s32.totalorder %s31, 0
      %p283 = por %p281, %p282
      %p284 = scmp.ne.s32.totalorder %s272, %s273
      %p285 = scmp.eq.s32.totalorder %s32, 1
      %p286 = por %p284, %p285
      %p288 = scmp.ne.s32.totalorder %s273, %s287
      %p289 = scmp.eq.s32.totalorder %s32, 0
      %p290 = por %p288, %p289
      %s292 = sadd.s32 %s291, 1
      %p295 = scmp.eq.s32.totalorder %s26, 1
      %p296 = scmp.ne.s32.totalorder %s291, %s293
      %p297 = scmp.eq.s32.totalorder %s26, 0
      %p298 = por %p296, %p297
      %p299 = scmp.ne.s32.totalorder %s291, %s293
      %p300 = scmp.eq.s32.totalorder %s31, 1
      %p301 = por %p299, %p300
      %p302 = scmp.ne.s32.totalorder %s293, %s294
      %p303 = scmp.eq.s32.totalorder %s31, 0
      %p304 = por %p302, %p303
      %p305 = scmp.ne.s32.totalorder %s293, %s294
      %p306 = scmp.eq.s32.totalorder %s32, 1
      %p307 = por %p305, %p306
      %p309 = scmp.ne.s32.totalorder %s294, %s308
      %p310 = scmp.eq.s32.totalorder %s32, 0
      %p311 = por %p309, %p310
      %s313 = sadd.s32 %s312, 1
      %p316 = scmp.eq.s32.totalorder %s26, 1
      %p317 = scmp.ne.s32.totalorder %s312, %s314
      %p318 = scmp.eq.s32.totalorder %s26, 0
      %p319 = por %p317, %p318
      %p320 = scmp.ne.s32.totalorder %s312, %s314
      %p321 = scmp.eq.s32.totalorder %s31, 1
      %p322 = por %p320, %p321
      %p323 = scmp.ne.s32.totalorder %s314, %s315
      %p324 = scmp.eq.s32.totalorder %s31, 0
      %p325 = por %p323, %p324
      %p326 = scmp.ne.s32.totalorder %s314, %s315
      %p327 = scmp.eq.s32.totalorder %s32, 1
      %p328 = por %p326, %p327
      %p330 = scmp.ne.s32.totalorder %s315, %s329
      %p331 = scmp.eq.s32.totalorder %s32, 0
      %p332 = por %p330, %p331
      %s334 = sadd.s32 %s333, 1
      %p337 = scmp.eq.s32.totalorder %s26, 1
      %p338 = scmp.ne.s32.totalorder %s333, %s335
      %p339 = scmp.eq.s32.totalorder %s26, 0
      %p340 = por %p338, %p339
      %p341 = scmp.ne.s32.totalorder %s333, %s335
      %p342 = scmp.eq.s32.totalorder %s31, 1
      %p343 = por %p341, %p342
      %p344 = scmp.ne.s32.totalorder %s335, %s336
      %p345 = scmp.eq.s32.totalorder %s31, 0
      %p346 = por %p344, %p345
      %p347 = scmp.ne.s32.totalorder %s335, %s336
      %p348 = scmp.eq.s32.totalorder %s32, 1
      %p349 = por %p347, %p348
      %p351 = scmp.ne.s32.totalorder %s336, %s350
      %p352 = scmp.eq.s32.totalorder %s32, 0
      %p353 = por %p351, %p352
      %s355 = sadd.s32 %s354, 1
      %p358 = scmp.eq.s32.totalorder %s26, 1
      %p359 = scmp.ne.s32.totalorder %s354, %s356
      %p360 = scmp.eq.s32.totalorder %s26, 0
      %p361 = por %p359, %p360
      %p362 = scmp.ne.s32.totalorder %s354, %s356
      %p363 = scmp.eq.s32.totalorder %s31, 1
      %p364 = por %p362, %p363
      %p365 = scmp.ne.s32.totalorder %s356, %s357
      %p366 = scmp.eq.s32.totalorder %s31, 0
      %p367 = por %p365, %p366
      %p368 = scmp.ne.s32.totalorder %s356, %s357
      %p369 = scmp.eq.s32.totalorder %s32, 1
      %p370 = por %p368, %p369
      %p372 = scmp.ne.s32.totalorder %s357, %s371
      %p373 = scmp.eq.s32.totalorder %s32, 0
      %p374 = por %p372, %p373
      %s376 = sadd.s32 %s375, 1
      %p379 = scmp.eq.s32.totalorder %s26, 1
      %p380 = scmp.ne.s32.totalorder %s375, %s377
      %p381 = scmp.eq.s32.totalorder %s26, 0
      %p382 = por %p380, %p381
      %p383 = scmp.ne.s32.totalorder %s375, %s377
      %p384 = scmp.eq.s32.totalorder %s31, 1
      %p385 = por %p383, %p384
      %p386 = scmp.ne.s32.totalorder %s377, %s378
      %p387 = scmp.eq.s32.totalorder %s31, 0
      %p388 = por %p386, %p387
      %p389 = scmp.ne.s32.totalorder %s377, %s378
      %p390 = scmp.eq.s32.totalorder %s32, 1
      %p391 = por %p389, %p390
      %p393 = scmp.ne.s32.totalorder %s378, %s392
      %p394 = scmp.eq.s32.totalorder %s32, 0
      %p395 = por %p393, %p394
      %s396 = ssub.s32 %s26, %s33
      %p397 = scmp.eq.s32.totalorder %s396, 0
      %s399 = sadd.s32 %s398, 1
      %s400 = scalar_select %p397, %s398, %s399
      %p403 = pneg %p397
      %p404 = scmp.eq.s32.totalorder %s26, 1
      %p405 = por %p403, %p404
      %p406 = scmp.ne.s32.totalorder %s398, %s401
      %p407 = scmp.eq.s32.totalorder %s26, 0
      %p408 = por %p406, %p407
      %p409 = scmp.ne.s32.totalorder %s398, %s401
      %p410 = scmp.eq.s32.totalorder %s31, 1
      %p411 = por %p409, %p410
      %p412 = scmp.ne.s32.totalorder %s401, %s402
      %p413 = scmp.eq.s32.totalorder %s31, 0
      %p414 = por %p412, %p413
      %p415 = scmp.ne.s32.totalorder %s401, %s402
      %p416 = scmp.eq.s32.totalorder %s32, 1
      %p417 = por %p415, %p416
      %p419 = scmp.ne.s32.totalorder %s402, %s418
      %p420 = scmp.eq.s32.totalorder %s32, 0
      %p421 = por %p419, %p420
      %p422 = scmp.le.s32.totalorder 1, %s26
      %p423 = scmp.lt.s32.totalorder %s26, 3
      %p424 = pnand %p422, %p423
      %p425 = pneg %p424
      // Predicated region
      $region9: #{autoencoder_forward.1} parent=5 // pred_check
        _
      $region10: #{autoencoder_forward.1} parent=5 // pred_check_branch
        %427 = sbr.rel (%p424) target = $region12
      $region11: #{autoencoder_forward.1} parent=5 // pred_region
        %s428 = ssub.s32 %s26, 1
        // Predicated region
        $region13: #{autoencoder_forward.1} parent=11 // pred_check
          %p429 = pneg %p73
        $region14: #{autoencoder_forward.1} parent=11 // pred_check_branch
          %431 = sbr.rel (%p429) target = $region16
        $region15: #{autoencoder_forward.1} parent=11 // pred_region
          _
        $region16: #{autoencoder_forward.1} parent=11 // pred_fallthru
          _
        // Predicated region
        $region17: #{autoencoder_forward.1} parent=11 // pred_check
          %p432 = pneg %p94
        $region18: #{autoencoder_forward.1} parent=11 // pred_check_branch
          %434 = sbr.rel (%p432) target = $region20
        $region19: #{autoencoder_forward.1} parent=11 // pred_region
          _
        $region20: #{autoencoder_forward.1} parent=11 // pred_fallthru
          _
        // Predicated region
        $region21: #{autoencoder_forward.1} parent=11 // pred_check
          %p435 = pneg %p115
        $region22: #{autoencoder_forward.1} parent=11 // pred_check_branch
          %437 = sbr.rel (%p435) target = $region24
        $region23: #{autoencoder_forward.1} parent=11 // pred_region
          _
        $region24: #{autoencoder_forward.1} parent=11 // pred_fallthru
          _
        // Predicated region
        $region25: #{autoencoder_forward.1} parent=11 // pred_check
          %p438 = pneg %p136
        $region26: #{autoencoder_forward.1} parent=11 // pred_check_branch
          %440 = sbr.rel (%p438) target = $region28
        $region27: #{autoencoder_forward.1} parent=11 // pred_region
          _
        $region28: #{autoencoder_forward.1} parent=11 // pred_fallthru
          _
        // Predicated region
        $region29: #{autoencoder_forward.1} parent=11 // pred_check
          %p441 = pneg %p157
        $region30: #{autoencoder_forward.1} parent=11 // pred_check_branch
          %443 = sbr.rel (%p441) target = $region32
        $region31: #{autoencoder_forward.1} parent=11 // pred_region
          _
        $region32: #{autoencoder_forward.1} parent=11 // pred_fallthru
          _
        // Predicated region
        $region33: #{autoencoder_forward.1} parent=11 // pred_check
          %p444 = pneg %p178
        $region34: #{autoencoder_forward.1} parent=11 // pred_check_branch
          %446 = sbr.rel (%p444) target = $region36
        $region35: #{autoencoder_forward.1} parent=11 // pred_region
          _
        $region36: #{autoencoder_forward.1} parent=11 // pred_fallthru
          _
        // Predicated region
        $region37: #{autoencoder_forward.1} parent=11 // pred_check
          %p447 = pneg %p199
        $region38: #{autoencoder_forward.1} parent=11 // pred_check_branch
          %449 = sbr.rel (%p447) target = $region40
        $region39: #{autoencoder_forward.1} parent=11 // pred_region
          _
        $region40: #{autoencoder_forward.1} parent=11 // pred_fallthru
          _
        // Predicated region
        $region41: #{autoencoder_forward.1} parent=11 // pred_check
          %p450 = pneg %p220
        $region42: #{autoencoder_forward.1} parent=11 // pred_check_branch
          %452 = sbr.rel (%p450) target = $region44
        $region43: #{autoencoder_forward.1} parent=11 // pred_region
          _
        $region44: #{autoencoder_forward.1} parent=11 // pred_fallthru
          _
        // Predicated region
        $region45: #{autoencoder_forward.1} parent=11 // pred_check
          %p453 = pneg %p241
        $region46: #{autoencoder_forward.1} parent=11 // pred_check_branch
          %455 = sbr.rel (%p453) target = $region48
        $region47: #{autoencoder_forward.1} parent=11 // pred_region
          _
        $region48: #{autoencoder_forward.1} parent=11 // pred_fallthru
          _
        // Predicated region
        $region49: #{autoencoder_forward.1} parent=11 // pred_check
          %p456 = pneg %p262
        $region50: #{autoencoder_forward.1} parent=11 // pred_check_branch
          %458 = sbr.rel (%p456) target = $region52
        $region51: #{autoencoder_forward.1} parent=11 // pred_region
          _
        $region52: #{autoencoder_forward.1} parent=11 // pred_fallthru
          _
        // Predicated region
        $region53: #{autoencoder_forward.1} parent=11 // pred_check
          %p459 = pneg %p283
        $region54: #{autoencoder_forward.1} parent=11 // pred_check_branch
          %461 = sbr.rel (%p459) target = $region56
        $region55: #{autoencoder_forward.1} parent=11 // pred_region
          _
        $region56: #{autoencoder_forward.1} parent=11 // pred_fallthru
          _
        // Predicated region
        $region57: #{autoencoder_forward.1} parent=11 // pred_check
          %p462 = pneg %p304
        $region58: #{autoencoder_forward.1} parent=11 // pred_check_branch
          %464 = sbr.rel (%p462) target = $region60
        $region59: #{autoencoder_forward.1} parent=11 // pred_region
          _
        $region60: #{autoencoder_forward.1} parent=11 // pred_fallthru
          _
        // Predicated region
        $region61: #{autoencoder_forward.1} parent=11 // pred_check
          %p465 = pneg %p325
        $region62: #{autoencoder_forward.1} parent=11 // pred_check_branch
          %467 = sbr.rel (%p465) target = $region64
        $region63: #{autoencoder_forward.1} parent=11 // pred_region
          _
        $region64: #{autoencoder_forward.1} parent=11 // pred_fallthru
          _
        // Predicated region
        $region65: #{autoencoder_forward.1} parent=11 // pred_check
          %p468 = pneg %p346
        $region66: #{autoencoder_forward.1} parent=11 // pred_check_branch
          %470 = sbr.rel (%p468) target = $region68
        $region67: #{autoencoder_forward.1} parent=11 // pred_region
          _
        $region68: #{autoencoder_forward.1} parent=11 // pred_fallthru
          _
        // Predicated region
        $region69: #{autoencoder_forward.1} parent=11 // pred_check
          %p471 = pneg %p367
        $region70: #{autoencoder_forward.1} parent=11 // pred_check_branch
          %473 = sbr.rel (%p471) target = $region72
        $region71: #{autoencoder_forward.1} parent=11 // pred_region
          _
        $region72: #{autoencoder_forward.1} parent=11 // pred_fallthru
          _
        // Predicated region
        $region73: #{autoencoder_forward.1} parent=11 // pred_check
          %p474 = pneg %p388
        $region74: #{autoencoder_forward.1} parent=11 // pred_check_branch
          %476 = sbr.rel (%p474) target = $region76
        $region75: #{autoencoder_forward.1} parent=11 // pred_region
          _
        $region76: #{autoencoder_forward.1} parent=11 // pred_fallthru
          _
      $region12: #{autoencoder_forward.1} parent=5 // pred_fallthru
        _
      %p477 = scmp.lt.s32.totalorder %s26, 2
      // Predicated region
      $region77: #{autoencoder_forward.1} parent=5 // pred_check
        %p478 = pneg %p477
      $region78: #{autoencoder_forward.1} parent=5 // pred_check_branch
        %480 = sbr.rel (%p478) target = $region80
      $region79: #{autoencoder_forward.1} parent=5 // pred_region
        // Predicated region
        $region81: #{autoencoder_forward.1} parent=79 // pred_check
          %p481 = pneg %p46
        $region82: #{autoencoder_forward.1} parent=79 // pred_check_branch
          %483 = sbr.rel (%p481) target = $region84
        $region83: #{autoencoder_forward.1} parent=79 // pred_region
          %p484 = scmp.lt.s32.totalorder %s26, 1
          %s485 = scalar_select %p484, %s26, 1
          %s486 = smul.addr %s485, 2
          %s487 = smul.addr %s486, 8
          %s488 = scalar_lea.vmem %s0, %s487
        $region84: #{autoencoder_forward.1} parent=79 // pred_fallthru
          _
      $region80: #{autoencoder_forward.1} parent=5 // pred_fallthru
        _
      %p489 = scmp.le.s32.totalorder 1, %s26
      %p490 = scmp.lt.s32.totalorder %s26, 3
      %p491 = pnand %p489, %p490
      %p492 = pneg %p491
      // Predicated region
      $region85: #{autoencoder_forward.1} parent=5 // pred_check
        _
      $region86: #{autoencoder_forward.1} parent=5 // pred_check_branch
        %494 = sbr.rel (%p491) target = $region88
      $region87: #{autoencoder_forward.1} parent=5 // pred_region
        %s495 = ssub.s32 %s26, 1
        %p496 = scmp.lt.s32.totalorder %s31, 1
        %s497 = scalar_select %p496, %s31, 1
        %s498 = smul.addr %s497, 2
        %s499 = smul.addr %s498, 8
        %s500 = scalar_lea.vmem %s0, %s499
        %p501 = pneg %p52
        %p502 = pneg %p49
        %p503 = pneg %p73
        %p504 = pneg %p70
        %p505 = pneg %p94
        %p506 = pneg %p91
        %p507 = pneg %p115
        %p508 = pneg %p112
        %p509 = pneg %p136
        %p510 = pneg %p133
        %p511 = pneg %p157
        %p512 = pneg %p154
        %p513 = pneg %p178
        %p514 = pneg %p175
        %p515 = pneg %p199
        %p516 = pneg %p196
        %p517 = pneg %p220
        %p518 = pneg %p217
        %p519 = pneg %p241
        %p520 = pneg %p238
        %p521 = pneg %p262
        %p522 = pneg %p259
        %p523 = pneg %p283
        %p524 = pneg %p280
        %p525 = pneg %p304
        %p526 = pneg %p301
        %p527 = pneg %p325
        %p528 = pneg %p322
        %p529 = pneg %p346
        %p530 = pneg %p343
        %p531 = pneg %p367
        %p532 = pneg %p364
        %p533 = pneg %p388
        %p534 = pneg %p385
        %p535 = pneg %p414
        %p536 = pneg %p411
        %s537 = sand.u32 %s401, 1
        %s538 = scalar_lea.sflag [#allocation4], %s537
        %s539 = sand.u32 %s401, 1
        %s540 = smul.addr %s539, 16
        %s541 = scalar_lea.vmem [#allocation3], %s540
        %p542 = scmp.lt.s32.totalorder %s31, 1
        %s543 = scalar_select %p542, %s31, 1
        %s544 = smul.addr %s543, 2
        %s545 = smul.addr %s544, 8
        %s546 = scalar_lea.vmem %s0, %s545
        %547 = vst [vmem:[#allocation2] sm:$0xff] 0.0
        %548 = vst [vmem:[#allocation2 + $0x8] sm:$0xff] 0.0
        %549 = vst [vmem:[#allocation2 + $0x10] sm:$0xff] 0.0
        %550 = vst [vmem:[#allocation2 + $0x18] sm:$0xff] 0.0
        %551 = vst [vmem:[#allocation2 + $0x20] sm:$0xff] 0.0
        %552 = vst [vmem:[#allocation2 + $0x28] sm:$0xff] 0.0
        %553 = vst [vmem:[#allocation2 + $0x30] sm:$0xff] 0.0
        %554 = vst [vmem:[#allocation2 + $0x38] sm:$0xff] 0.0
        %555 = vst [vmem:[#allocation2 + $0x40] sm:$0xff] 0.0
        %556 = vst [vmem:[#allocation2 + $0x48] sm:$0xff] 0.0
        %557 = vst [vmem:[#allocation2 + $0x50] sm:$0xff] 0.0
        %558 = vst [vmem:[#allocation2 + $0x58] sm:$0xff] 0.0
        %v559 = vld [vmem:[%s546] sm:$0xff]
        %v560 = vld [vmem:[%s546 + $0x8] sm:$0xff]
        %v561 = vld [vmem:[%s1] sm:$0xff]
        %v562 = vld [vmem:[%s1 + $0x8] sm:$0xff]
        %s563 = scalar_lea.vmem %s1, 16
        %v564 = vld [vmem:[%s563] sm:$0xff]
        %v565 = vld [vmem:[%s563 + $0x8] sm:$0xff]
        %vm568 = vcmask 1046528
        %v569 = vrot.slane %v559, 1
        %v570 = vrot.slane %v560, 1
        %v571 = vsel %vm568, %v569, %v570
        %vm572 = vcmask 130048
        %v573 = vsel %vm572, %v571, 0
        %v575 = vsel %vm572, %v570, 0
        %577 = vmatprep.subr.mxu0 0.0
        %578 = vmatpush1.msra.mxu0 0.0
        %579 = vmatprep.subr.mxu0 0.0
        %580 = vmatpush1.msra.mxu0 0.0
        %581 = vmatprep.subr.mxu0 0.0
        %582 = vmatpush1.msra.mxu0 0.0
        %583 = vmatprep.subr.mxu0 0.0
        %584 = vmatpush1.msra.mxu0 0.0
        %585 = vmatprep.subr.mxu0 0.0
        %586 = vmatpush1.msra.mxu0 0.0
        %587 = vmatprep.subr.mxu0 0.0
        %588 = vmatpush1.msra.mxu0 0.0
        %589 = vmatprep.subr.mxu0 0.0
        %590 = vmatpush1.msra.mxu0 0.0
        %591 = vmatprep.subr.mxu0 0.0
        %592 = vmatpush1.msra.mxu0 0.0
        %593 = vmatprep.subr.mxu0 0.0
        %594 = vmatpush1.msra.mxu0 0.0
        %595 = vmatprep.subr.mxu0 0.0
        %596 = vmatpush1.msra.mxu0 0.0
        %597 = vmatprep.subr.mxu0 0.0
        %598 = vmatpush1.msra.mxu0 0.0
        %599 = vmatprep.subr.mxu0 0.0
        %600 = vmatpush1.msra.mxu0 0.0
        %601 = vmatprep.subr.mxu0 0.0
        %602 = vmatpush1.msra.mxu0 0.0
        %603 = vmatprep.subr.mxu0 0.0
        %604 = vmatpush1.msra.mxu0 0.0
        %605 = vmatprep.subr.mxu0 0.0
        %606 = vmatpush1.msra.mxu0 %v565
        %607 = vmatprep.subr.mxu0 0.0
        %608 = vmatpush1.msra.mxu0 %v564
        %609 = vmatprep.subr.mxu0 0.0
        %610 = vmatpush2.msra.mxu0 0.0
        %611 = vmatprep.subr.mxu0 0.0
        %612 = vmatpush2.msra.mxu0 0.0
        %613 = vmatprep.subr.mxu0 0.0
        %614 = vmatpush2.msra.mxu0 0.0
        %615 = vmatprep.subr.mxu0 0.0
        %616 = vmatpush2.msra.mxu0 0.0
        %617 = vmatprep.subr.mxu0 0.0
        %618 = vmatpush2.msra.mxu0 0.0
        %619 = vmatprep.subr.mxu0 0.0
        %620 = vmatpush2.msra.mxu0 0.0
        %621 = vmatprep.subr.mxu0 0.0
        %622 = vmatpush2.msra.mxu0 0.0
        %623 = vmatprep.subr.mxu0 0.0
        %624 = vmatpush2.msra.mxu0 0.0
        %625 = vmatprep.subr.mxu0 0.0
        %626 = vmatpush2.msra.mxu0 0.0
        %627 = vmatprep.subr.mxu0 0.0
        %628 = vmatpush2.msra.mxu0 0.0
        %629 = vmatprep.subr.mxu0 0.0
        %630 = vmatpush2.msra.mxu0 0.0
        %631 = vmatprep.subr.mxu0 0.0
        %632 = vmatpush2.msra.mxu0 0.0
        %633 = vmatprep.subr.mxu0 0.0
        %634 = vmatpush2.msra.mxu0 0.0
        %635 = vmatprep.subr.mxu0 0.0
        %636 = vmatpush2.msra.mxu0 0.0
        %637 = vmatprep.subr.mxu0 0.0
        %638 = vmatpush2.msra.mxu0 0.0
        %639 = vmatprep.subr.mxu0 0.0
        %640 = vmatpush2.msra.mxu0 0.0
        %641 = vmatprep.mubr.f32.mxu0 0.0
        %642 = vmatmul.mubr.f32.gmra.mxu0 %v573
        %v643 = vpop.f32.mrf.mxu0
        %v644 = vadd.f32 0.0, %v643
        %v645 = vpop.f32.mrf.mxu0
        %646 = vmatprep.mubr.f32.mxu0 0.0
        %647 = vmatmul.mubr.f32.gmra.mxu0 %v575
        %v648 = vpop.f32.mrf.mxu0
        %v649 = vadd.f32 0.0, %v648
        %v650 = vpop.f32.mrf.mxu0
        %651 = vdwg.mxu0
        %v652 = vsel %vm572, %v559, 0
        %v654 = vsel %vm572, %v560, 0
        %656 = vmatprep.subr.mxu0 0.0
        %657 = vmatpush1.msra.mxu0 0.0
        %658 = vmatprep.subr.mxu0 0.0
        %659 = vmatpush1.msra.mxu0 0.0
        %660 = vmatprep.subr.mxu0 0.0
        %661 = vmatpush1.msra.mxu0 0.0
        %662 = vmatprep.subr.mxu0 0.0
        %663 = vmatpush1.msra.mxu0 0.0
        %664 = vmatprep.subr.mxu0 0.0
        %665 = vmatpush1.msra.mxu0 0.0
        %666 = vmatprep.subr.mxu0 0.0
        %667 = vmatpush1.msra.mxu0 0.0
        %668 = vmatprep.subr.mxu0 0.0
        %669 = vmatpush1.msra.mxu0 0.0
        %670 = vmatprep.subr.mxu0 0.0
        %671 = vmatpush1.msra.mxu0 0.0
        %672 = vmatprep.subr.mxu0 0.0
        %673 = vmatpush1.msra.mxu0 0.0
        %674 = vmatprep.subr.mxu0 0.0
        %675 = vmatpush1.msra.mxu0 0.0
        %676 = vmatprep.subr.mxu0 0.0
        %677 = vmatpush1.msra.mxu0 0.0
        %678 = vmatprep.subr.mxu0 0.0
        %679 = vmatpush1.msra.mxu0 0.0
        %680 = vmatprep.subr.mxu0 0.0
        %681 = vmatpush1.msra.mxu0 0.0
        %682 = vmatprep.subr.mxu0 0.0
        %683 = vmatpush1.msra.mxu0 0.0
        %684 = vmatprep.subr.mxu0 0.0
        %685 = vmatpush1.msra.mxu0 %v562
        %686 = vmatprep.subr.mxu0 0.0
        %687 = vmatpush1.msra.mxu0 %v561
        %688 = vmatprep.subr.mxu0 0.0
        %689 = vmatpush2.msra.mxu0 0.0
        %690 = vmatprep.subr.mxu0 0.0
        %691 = vmatpush2.msra.mxu0 0.0
        %692 = vmatprep.subr.mxu0 0.0
        %693 = vmatpush2.msra.mxu0 0.0
        %694 = vmatprep.subr.mxu0 0.0
        %695 = vmatpush2.msra.mxu0 0.0
        %696 = vmatprep.subr.mxu0 0.0
        %697 = vmatpush2.msra.mxu0 0.0
        %698 = vmatprep.subr.mxu0 0.0
        %699 = vmatpush2.msra.mxu0 0.0
        %700 = vmatprep.subr.mxu0 0.0
        %701 = vmatpush2.msra.mxu0 0.0
        %702 = vmatprep.subr.mxu0 0.0
        %703 = vmatpush2.msra.mxu0 0.0
        %704 = vmatprep.subr.mxu0 0.0
        %705 = vmatpush2.msra.mxu0 0.0
        %706 = vmatprep.subr.mxu0 0.0
        %707 = vmatpush2.msra.mxu0 0.0
        %708 = vmatprep.subr.mxu0 0.0
        %709 = vmatpush2.msra.mxu0 0.0
        %710 = vmatprep.subr.mxu0 0.0
        %711 = vmatpush2.msra.mxu0 0.0
        %712 = vmatprep.subr.mxu0 0.0
        %713 = vmatpush2.msra.mxu0 0.0
        %714 = vmatprep.subr.mxu0 0.0
        %715 = vmatpush2.msra.mxu0 0.0
        %716 = vmatprep.subr.mxu0 0.0
        %717 = vmatpush2.msra.mxu0 0.0
        %718 = vmatprep.subr.mxu0 0.0
        %719 = vmatpush2.msra.mxu0 0.0
        %720 = vmatprep.mubr.f32.mxu0 0.0
        %721 = vmatmul.mubr.f32.gmra.mxu0 %v652
        %v722 = vpop.f32.mrf.mxu0
        %v723 = vadd.f32 %v644, %v722
        %v724 = vpop.f32.mrf.mxu0
        %725 = vmatprep.mubr.f32.mxu0 0.0
        %726 = vmatmul.mubr.f32.gmra.mxu0 %v654
        %v727 = vpop.f32.mrf.mxu0
        %v728 = vadd.f32 %v649, %v727
        %v729 = vpop.f32.mrf.mxu0
        %730 = vdwg.mxu0
        %s731 = scalar_lea.vmem %s1, 32
        %v732 = vld [vmem:[%s731] sm:$0xff]
        %v733 = vld [vmem:[%s731 + $0x8] sm:$0xff]
        %vm734 = vcmask 1045504
        %v735 = vrot.slane %v559, 2
        %v736 = vrot.slane %v560, 2
        %v737 = vsel %vm734, %v735, %v736
        %v738 = vsel %vm572, %v737, 0
        %v740 = vsel %vm572, %v736, 0
        %742 = vmatprep.subr.mxu0 0.0
        %743 = vmatpush1.msra.mxu0 0.0
        %744 = vmatprep.subr.mxu0 0.0
        %745 = vmatpush1.msra.mxu0 0.0
        %746 = vmatprep.subr.mxu0 0.0
        %747 = vmatpush1.msra.mxu0 0.0
        %748 = vmatprep.subr.mxu0 0.0
        %749 = vmatpush1.msra.mxu0 0.0
        %750 = vmatprep.subr.mxu0 0.0
        %751 = vmatpush1.msra.mxu0 0.0
        %752 = vmatprep.subr.mxu0 0.0
        %753 = vmatpush1.msra.mxu0 0.0
        %754 = vmatprep.subr.mxu0 0.0
        %755 = vmatpush1.msra.mxu0 0.0
        %756 = vmatprep.subr.mxu0 0.0
        %757 = vmatpush1.msra.mxu0 0.0
        %758 = vmatprep.subr.mxu0 0.0
        %759 = vmatpush1.msra.mxu0 0.0
        %760 = vmatprep.subr.mxu0 0.0
        %761 = vmatpush1.msra.mxu0 0.0
        %762 = vmatprep.subr.mxu0 0.0
        %763 = vmatpush1.msra.mxu0 0.0
        %764 = vmatprep.subr.mxu0 0.0
        %765 = vmatpush1.msra.mxu0 0.0
        %766 = vmatprep.subr.mxu0 0.0
        %767 = vmatpush1.msra.mxu0 0.0
        %768 = vmatprep.subr.mxu0 0.0
        %769 = vmatpush1.msra.mxu0 0.0
        %770 = vmatprep.subr.mxu0 0.0
        %771 = vmatpush1.msra.mxu0 %v733
        %772 = vmatprep.subr.mxu0 0.0
        %773 = vmatpush1.msra.mxu0 %v732
        %774 = vmatprep.subr.mxu0 0.0
        %775 = vmatpush2.msra.mxu0 0.0
        %776 = vmatprep.subr.mxu0 0.0
        %777 = vmatpush2.msra.mxu0 0.0
        %778 = vmatprep.subr.mxu0 0.0
        %779 = vmatpush2.msra.mxu0 0.0
        %780 = vmatprep.subr.mxu0 0.0
        %781 = vmatpush2.msra.mxu0 0.0
        %782 = vmatprep.subr.mxu0 0.0
        %783 = vmatpush2.msra.mxu0 0.0
        %784 = vmatprep.subr.mxu0 0.0
        %785 = vmatpush2.msra.mxu0 0.0
        %786 = vmatprep.subr.mxu0 0.0
        %787 = vmatpush2.msra.mxu0 0.0
        %788 = vmatprep.subr.mxu0 0.0
        %789 = vmatpush2.msra.mxu0 0.0
        %790 = vmatprep.subr.mxu0 0.0
        %791 = vmatpush2.msra.mxu0 0.0
        %792 = vmatprep.subr.mxu0 0.0
        %793 = vmatpush2.msra.mxu0 0.0
        %794 = vmatprep.subr.mxu0 0.0
        %795 = vmatpush2.msra.mxu0 0.0
        %796 = vmatprep.subr.mxu0 0.0
        %797 = vmatpush2.msra.mxu0 0.0
        %798 = vmatprep.subr.mxu0 0.0
        %799 = vmatpush2.msra.mxu0 0.0
        %800 = vmatprep.subr.mxu0 0.0
        %801 = vmatpush2.msra.mxu0 0.0
        %802 = vmatprep.subr.mxu0 0.0
        %803 = vmatpush2.msra.mxu0 0.0
        %804 = vmatprep.subr.mxu0 0.0
        %805 = vmatpush2.msra.mxu0 0.0
        %806 = vmatprep.mubr.f32.mxu0 0.0
        %807 = vmatmul.mubr.f32.gmra.mxu0 %v738
        %v808 = vpop.f32.mrf.mxu0
        %v809 = vadd.f32 0.0, %v808
        %v810 = vpop.f32.mrf.mxu0
        %811 = vmatprep.mubr.f32.mxu0 0.0
        %812 = vmatmul.mubr.f32.gmra.mxu0 %v740
        %v813 = vpop.f32.mrf.mxu0
        %v814 = vadd.f32 0.0, %v813
        %v815 = vpop.f32.mrf.mxu0
        %816 = vdwg.mxu0
        %v817 = vadd.f32 %v723, %v809
        %v818 = vadd.f32 %v728, %v814
        %v819 = vld [vmem:[%s9] sm:$0x1]
        %v821 = vlaneseq
        %v822 = vshrl.u32 %v821, 7
        %v823 = vsub.s32 0, %v822
        %v824 = vrot.slane %v819, %v823
        %v826 = vadd.f32 %v817, %v824
        %v827 = vadd.f32 %v818, %v824
        %vm828 = vcmp.gt.f32.partialorder %v826, 0.0
        %vm829 = vcmp.gt.f32.partialorder %v827, 0.0
        %v830 = vmul.f32 %v826, 0.01
        %v831 = vmul.f32 %v827, 0.01
        %v832 = vsel %vm828, %v826, %v830
        %v833 = vsel %vm829, %v827, %v831
        %v834 = vld [vmem:[%s2] sm:$0xff]
        %v835 = vld [vmem:[%s2 + $0x8] sm:$0xff]
        %v836 = vld [vmem:[%s2 + $0x10] sm:$0xff]
        %v837 = vld [vmem:[%s2 + $0x18] sm:$0xff]
        %v838 = vld [vmem:[%s2 + $0x20] sm:$0xff]
        %v839 = vld [vmem:[%s2 + $0x28] sm:$0xff]
        %v840 = vld [vmem:[%s2 + $0x30] sm:$0xff]
        %v841 = vld [vmem:[%s2 + $0x38] sm:$0xff]
        %v842 = vld [vmem:[%s2 + $0x40] sm:$0xff]
        %v843 = vld [vmem:[%s2 + $0x48] sm:$0xff]
        %v844 = vld [vmem:[%s2 + $0x50] sm:$0xff]
        %v845 = vld [vmem:[%s2 + $0x58] sm:$0xff]
        %v846 = vld [vmem:[%s2 + $0x60] sm:$0xff]
        %v847 = vld [vmem:[%s2 + $0x68] sm:$0xff]
        %v848 = vld [vmem:[%s2 + $0x70] sm:$0xff]
        %v849 = vld [vmem:[%s2 + $0x78] sm:$0xff]
        %v850 = vld [vmem:[%s2 + $0x80] sm:$0xff]
        %v851 = vld [vmem:[%s2 + $0x88] sm:$0xff]
        %v852 = vld [vmem:[%s2 + $0x90] sm:$0xff]
        %v853 = vld [vmem:[%s2 + $0x98] sm:$0xff]
        %v854 = vld [vmem:[%s2 + $0xa0] sm:$0xff]
        %v855 = vld [vmem:[%s2 + $0xa8] sm:$0xff]
        %v856 = vld [vmem:[%s2 + $0xb0] sm:$0xff]
        %v857 = vld [vmem:[%s2 + $0xb8] sm:$0xff]
        %v858 = vld [vmem:[%s2 + $0xc0] sm:$0xff]
        %v859 = vld [vmem:[%s2 + $0xc8] sm:$0xff]
        %v860 = vld [vmem:[%s2 + $0xd0] sm:$0xff]
        %v861 = vld [vmem:[%s2 + $0xd8] sm:$0xff]
        %s862 = scalar_lea.vmem %s2, 224
        %v863 = vld [vmem:[%s862] sm:$0xff]
        %v864 = vld [vmem:[%s862 + $0x8] sm:$0xff]
        %v865 = vld [vmem:[%s862 + $0x10] sm:$0xff]
        %v866 = vld [vmem:[%s862 + $0x18] sm:$0xff]
        %v867 = vld [vmem:[%s862 + $0x20] sm:$0xff]
        %v868 = vld [vmem:[%s862 + $0x28] sm:$0xff]
        %v869 = vld [vmem:[%s862 + $0x30] sm:$0xff]
        %v870 = vld [vmem:[%s862 + $0x38] sm:$0xff]
        %v871 = vld [vmem:[%s862 + $0x40] sm:$0xff]
        %v872 = vld [vmem:[%s862 + $0x48] sm:$0xff]
        %v873 = vld [vmem:[%s862 + $0x50] sm:$0xff]
        %v874 = vld [vmem:[%s862 + $0x58] sm:$0xff]
        %v875 = vld [vmem:[%s862 + $0x60] sm:$0xff]
        %v876 = vld [vmem:[%s862 + $0x68] sm:$0xff]
        %v877 = vld [vmem:[%s862 + $0x70] sm:$0xff]
        %v878 = vld [vmem:[%s862 + $0x78] sm:$0xff]
        %v879 = vld [vmem:[%s862 + $0x80] sm:$0xff]
        %v880 = vld [vmem:[%s862 + $0x88] sm:$0xff]
        %v881 = vld [vmem:[%s862 + $0x90] sm:$0xff]
        %v882 = vld [vmem:[%s862 + $0x98] sm:$0xff]
        %v883 = vld [vmem:[%s862 + $0xa0] sm:$0xff]
        %v884 = vld [vmem:[%s862 + $0xa8] sm:$0xff]
        %v885 = vld [vmem:[%s862 + $0xb0] sm:$0xff]
        %v886 = vld [vmem:[%s862 + $0xb8] sm:$0xff]
        %v887 = vld [vmem:[%s862 + $0xc0] sm:$0xff]
        %v888 = vld [vmem:[%s862 + $0xc8] sm:$0xff]
        %v889 = vld [vmem:[%s862 + $0xd0] sm:$0xff]
        %v890 = vld [vmem:[%s862 + $0xd8] sm:$0xff]
        %v893 = vrot.slane %v832, 1
        %v894 = vrot.slane %v833, 1
        %v895 = vsel %vm568, %v893, %v894
        %vm896 = vcmask 916480
        %v897 = vsel %vm896, %v895, 0
        %v899 = vsel %vm896, %v894, 0
        %901 = vmatprep.subr.mxu0 0.0
        %902 = vmatpush1.msra.mxu0 0.0
        %903 = vmatprep.subr.mxu0 0.0
        %904 = vmatpush1.msra.mxu0 0.0
        %905 = vmatprep.subr.mxu0 %v890
        %906 = vmatpush1.msra.mxu0 %v889
        %907 = vmatprep.subr.mxu0 %v888
        %908 = vmatpush1.msra.mxu0 %v887
        %909 = vmatprep.subr.mxu0 %v886
        %910 = vmatpush1.msra.mxu0 %v885
        %911 = vmatprep.subr.mxu0 %v884
        %912 = vmatpush1.msra.mxu0 %v883
        %913 = vmatprep.subr.mxu0 %v882
        %914 = vmatpush1.msra.mxu0 %v881
        %915 = vmatprep.subr.mxu0 %v880
        %916 = vmatpush1.msra.mxu0 %v879
        %917 = vmatprep.subr.mxu0 %v878
        %918 = vmatpush1.msra.mxu0 %v877
        %919 = vmatprep.subr.mxu0 %v876
        %920 = vmatpush1.msra.mxu0 %v875
        %921 = vmatprep.subr.mxu0 %v874
        %922 = vmatpush1.msra.mxu0 %v873
        %923 = vmatprep.subr.mxu0 %v872
        %924 = vmatpush1.msra.mxu0 %v871
        %925 = vmatprep.subr.mxu0 %v870
        %926 = vmatpush1.msra.mxu0 %v869
        %927 = vmatprep.subr.mxu0 %v868
        %928 = vmatpush1.msra.mxu0 %v867
        %929 = vmatprep.subr.mxu0 %v866
        %930 = vmatpush1.msra.mxu0 %v865
        %931 = vmatprep.subr.mxu0 %v864
        %932 = vmatpush1.msra.mxu0 %v863
        %933 = vmatprep.subr.mxu0 0.0
        %934 = vmatpush2.msra.mxu0 0.0
        %935 = vmatprep.subr.mxu0 0.0
        %936 = vmatpush2.msra.mxu0 0.0
        %937 = vmatprep.subr.mxu0 0.0
        %938 = vmatpush2.msra.mxu0 0.0
        %939 = vmatprep.subr.mxu0 0.0
        %940 = vmatpush2.msra.mxu0 0.0
        %941 = vmatprep.subr.mxu0 0.0
        %942 = vmatpush2.msra.mxu0 0.0
        %943 = vmatprep.subr.mxu0 0.0
        %944 = vmatpush2.msra.mxu0 0.0
        %945 = vmatprep.subr.mxu0 0.0
        %946 = vmatpush2.msra.mxu0 0.0
        %947 = vmatprep.subr.mxu0 0.0
        %948 = vmatpush2.msra.mxu0 0.0
        %949 = vmatprep.subr.mxu0 0.0
        %950 = vmatpush2.msra.mxu0 0.0
        %951 = vmatprep.subr.mxu0 0.0
        %952 = vmatpush2.msra.mxu0 0.0
        %953 = vmatprep.subr.mxu0 0.0
        %954 = vmatpush2.msra.mxu0 0.0
        %955 = vmatprep.subr.mxu0 0.0
        %956 = vmatpush2.msra.mxu0 0.0
        %957 = vmatprep.subr.mxu0 0.0
        %958 = vmatpush2.msra.mxu0 0.0
        %959 = vmatprep.subr.mxu0 0.0
        %960 = vmatpush2.msra.mxu0 0.0
        %961 = vmatprep.subr.mxu0 0.0
        %962 = vmatpush2.msra.mxu0 0.0
        %963 = vmatprep.subr.mxu0 0.0
        %964 = vmatpush2.msra.mxu0 0.0
        %965 = vmatprep.mubr.f32.mxu0 0.0
        %966 = vmatmul.mubr.f32.gmra.mxu0 %v897
        %v967 = vpop.f32.mrf.mxu0
        %v968 = vadd.f32 0.0, %v967
        %v969 = vpop.f32.mrf.mxu0
        %v970 = vadd.f32 0.0, %v969
        %971 = vmatprep.mubr.f32.mxu0 0.0
        %972 = vmatmul.mubr.f32.gmra.mxu0 %v899
        %v973 = vpop.f32.mrf.mxu0
        %v974 = vadd.f32 0.0, %v973
        %v975 = vpop.f32.mrf.mxu0
        %v976 = vadd.f32 0.0, %v975
        %977 = vdwg.mxu0
        %v978 = vsel %vm896, %v832, 0
        %v980 = vsel %vm896, %v833, 0
        %982 = vmatprep.subr.mxu0 0.0
        %983 = vmatpush1.msra.mxu0 0.0
        %984 = vmatprep.subr.mxu0 0.0
        %985 = vmatpush1.msra.mxu0 0.0
        %986 = vmatprep.subr.mxu0 %v861
        %987 = vmatpush1.msra.mxu0 %v860
        %988 = vmatprep.subr.mxu0 %v859
        %989 = vmatpush1.msra.mxu0 %v858
        %990 = vmatprep.subr.mxu0 %v857
        %991 = vmatpush1.msra.mxu0 %v856
        %992 = vmatprep.subr.mxu0 %v855
        %993 = vmatpush1.msra.mxu0 %v854
        %994 = vmatprep.subr.mxu0 %v853
        %995 = vmatpush1.msra.mxu0 %v852
        %996 = vmatprep.subr.mxu0 %v851
        %997 = vmatpush1.msra.mxu0 %v850
        %998 = vmatprep.subr.mxu0 %v849
        %999 = vmatpush1.msra.mxu0 %v848
        %1000 = vmatprep.subr.mxu0 %v847
        %1001 = vmatpush1.msra.mxu0 %v846
        %1002 = vmatprep.subr.mxu0 %v845
        %1003 = vmatpush1.msra.mxu0 %v844
        %1004 = vmatprep.subr.mxu0 %v843
        %1005 = vmatpush1.msra.mxu0 %v842
        %1006 = vmatprep.subr.mxu0 %v841
        %1007 = vmatpush1.msra.mxu0 %v840
        %1008 = vmatprep.subr.mxu0 %v839
        %1009 = vmatpush1.msra.mxu0 %v838
        %1010 = vmatprep.subr.mxu0 %v837
        %1011 = vmatpush1.msra.mxu0 %v836
        %1012 = vmatprep.subr.mxu0 %v835
        %1013 = vmatpush1.msra.mxu0 %v834
        %1014 = vmatprep.subr.mxu0 0.0
        %1015 = vmatpush2.msra.mxu0 0.0
        %1016 = vmatprep.subr.mxu0 0.0
        %1017 = vmatpush2.msra.mxu0 0.0
        %1018 = vmatprep.subr.mxu0 0.0
        %1019 = vmatpush2.msra.mxu0 0.0
        %1020 = vmatprep.subr.mxu0 0.0
        %1021 = vmatpush2.msra.mxu0 0.0
        %1022 = vmatprep.subr.mxu0 0.0
        %1023 = vmatpush2.msra.mxu0 0.0
        %1024 = vmatprep.subr.mxu0 0.0
        %1025 = vmatpush2.msra.mxu0 0.0
        %1026 = vmatprep.subr.mxu0 0.0
        %1027 = vmatpush2.msra.mxu0 0.0
        %1028 = vmatprep.subr.mxu0 0.0
        %1029 = vmatpush2.msra.mxu0 0.0
        %1030 = vmatprep.subr.mxu0 0.0
        %1031 = vmatpush2.msra.mxu0 0.0
        %1032 = vmatprep.subr.mxu0 0.0
        %1033 = vmatpush2.msra.mxu0 0.0
        %1034 = vmatprep.subr.mxu0 0.0
        %1035 = vmatpush2.msra.mxu0 0.0
        %1036 = vmatprep.subr.mxu0 0.0
        %1037 = vmatpush2.msra.mxu0 0.0
        %1038 = vmatprep.subr.mxu0 0.0
        %1039 = vmatpush2.msra.mxu0 0.0
        %1040 = vmatprep.subr.mxu0 0.0
        %1041 = vmatpush2.msra.mxu0 0.0
        %1042 = vmatprep.subr.mxu0 0.0
        %1043 = vmatpush2.msra.mxu0 0.0
        %1044 = vmatprep.subr.mxu0 0.0
        %1045 = vmatpush2.msra.mxu0 0.0
        %1046 = vmatprep.mubr.f32.mxu0 0.0
        %1047 = vmatmul.mubr.f32.gmra.mxu0 %v978
        %v1048 = vpop.f32.mrf.mxu0
        %v1049 = vadd.f32 %v968, %v1048
        %v1050 = vpop.f32.mrf.mxu0
        %v1051 = vadd.f32 %v970, %v1050
        %1052 = vmatprep.mubr.f32.mxu0 0.0
        %1053 = vmatmul.mubr.f32.gmra.mxu0 %v980
        %v1054 = vpop.f32.mrf.mxu0
        %v1055 = vadd.f32 %v974, %v1054
        %v1056 = vpop.f32.mrf.mxu0
        %v1057 = vadd.f32 %v976, %v1056
        %1058 = vdwg.mxu0
        %s1059 = scalar_lea.vmem %s2, 448
        %v1060 = vld [vmem:[%s1059] sm:$0xff]
        %v1061 = vld [vmem:[%s1059 + $0x8] sm:$0xff]
        %v1062 = vld [vmem:[%s1059 + $0x10] sm:$0xff]
        %v1063 = vld [vmem:[%s1059 + $0x18] sm:$0xff]
        %v1064 = vld [vmem:[%s1059 + $0x20] sm:$0xff]
        %v1065 = vld [vmem:[%s1059 + $0x28] sm:$0xff]
        %v1066 = vld [vmem:[%s1059 + $0x30] sm:$0xff]
        %v1067 = vld [vmem:[%s1059 + $0x38] sm:$0xff]
        %v1068 = vld [vmem:[%s1059 + $0x40] sm:$0xff]
        %v1069 = vld [vmem:[%s1059 + $0x48] sm:$0xff]
        %v1070 = vld [vmem:[%s1059 + $0x50] sm:$0xff]
        %v1071 = vld [vmem:[%s1059 + $0x58] sm:$0xff]
        %v1072 = vld [vmem:[%s1059 + $0x60] sm:$0xff]
        %v1073 = vld [vmem:[%s1059 + $0x68] sm:$0xff]
        %v1074 = vld [vmem:[%s1059 + $0x70] sm:$0xff]
        %v1075 = vld [vmem:[%s1059 + $0x78] sm:$0xff]
        %v1076 = vld [vmem:[%s1059 + $0x80] sm:$0xff]
        %v1077 = vld [vmem:[%s1059 + $0x88] sm:$0xff]
        %v1078 = vld [vmem:[%s1059 + $0x90] sm:$0xff]
        %v1079 = vld [vmem:[%s1059 + $0x98] sm:$0xff]
        %v1080 = vld [vmem:[%s1059 + $0xa0] sm:$0xff]
        %v1081 = vld [vmem:[%s1059 + $0xa8] sm:$0xff]
        %v1082 = vld [vmem:[%s1059 + $0xb0] sm:$0xff]
        %v1083 = vld [vmem:[%s1059 + $0xb8] sm:$0xff]
        %v1084 = vld [vmem:[%s1059 + $0xc0] sm:$0xff]
        %v1085 = vld [vmem:[%s1059 + $0xc8] sm:$0xff]
        %v1086 = vld [vmem:[%s1059 + $0xd0] sm:$0xff]
        %v1087 = vld [vmem:[%s1059 + $0xd8] sm:$0xff]
        %v1088 = vrot.slane %v832, 2
        %v1089 = vrot.slane %v833, 2
        %v1090 = vsel %vm734, %v1088, %v1089
        %v1091 = vsel %vm896, %v1090, 0
        %v1093 = vsel %vm896, %v1089, 0
        %1095 = vmatprep.subr.mxu0 0.0
        %1096 = vmatpush1.msra.mxu0 0.0
        %1097 = vmatprep.subr.mxu0 0.0
        %1098 = vmatpush1.msra.mxu0 0.0
        %1099 = vmatprep.subr.mxu0 %v1087
        %1100 = vmatpush1.msra.mxu0 %v1086
        %1101 = vmatprep.subr.mxu0 %v1085
        %1102 = vmatpush1.msra.mxu0 %v1084
        %1103 = vmatprep.subr.mxu0 %v1083
        %1104 = vmatpush1.msra.mxu0 %v1082
        %1105 = vmatprep.subr.mxu0 %v1081
        %1106 = vmatpush1.msra.mxu0 %v1080
        %1107 = vmatprep.subr.mxu0 %v1079
        %1108 = vmatpush1.msra.mxu0 %v1078
        %1109 = vmatprep.subr.mxu0 %v1077
        %1110 = vmatpush1.msra.mxu0 %v1076
        %1111 = vmatprep.subr.mxu0 %v1075
        %1112 = vmatpush1.msra.mxu0 %v1074
        %1113 = vmatprep.subr.mxu0 %v1073
        %1114 = vmatpush1.msra.mxu0 %v1072
        %1115 = vmatprep.subr.mxu0 %v1071
        %1116 = vmatpush1.msra.mxu0 %v1070
        %1117 = vmatprep.subr.mxu0 %v1069
        %1118 = vmatpush1.msra.mxu0 %v1068
        %1119 = vmatprep.subr.mxu0 %v1067
        %1120 = vmatpush1.msra.mxu0 %v1066
        %1121 = vmatprep.subr.mxu0 %v1065
        %1122 = vmatpush1.msra.mxu0 %v1064
        %1123 = vmatprep.subr.mxu0 %v1063
        %1124 = vmatpush1.msra.mxu0 %v1062
        %1125 = vmatprep.subr.mxu0 %v1061
        %1126 = vmatpush1.msra.mxu0 %v1060
        %1127 = vmatprep.subr.mxu0 0.0
        %1128 = vmatpush2.msra.mxu0 0.0
        %1129 = vmatprep.subr.mxu0 0.0
        %1130 = vmatpush2.msra.mxu0 0.0
        %1131 = vmatprep.subr.mxu0 0.0
        %1132 = vmatpush2.msra.mxu0 0.0
        %1133 = vmatprep.subr.mxu0 0.0
        %1134 = vmatpush2.msra.mxu0 0.0
        %1135 = vmatprep.subr.mxu0 0.0
        %1136 = vmatpush2.msra.mxu0 0.0
        %1137 = vmatprep.subr.mxu0 0.0
        %1138 = vmatpush2.msra.mxu0 0.0
        %1139 = vmatprep.subr.mxu0 0.0
        %1140 = vmatpush2.msra.mxu0 0.0
        %1141 = vmatprep.subr.mxu0 0.0
        %1142 = vmatpush2.msra.mxu0 0.0
        %1143 = vmatprep.subr.mxu0 0.0
        %1144 = vmatpush2.msra.mxu0 0.0
        %1145 = vmatprep.subr.mxu0 0.0
        %1146 = vmatpush2.msra.mxu0 0.0
        %1147 = vmatprep.subr.mxu0 0.0
        %1148 = vmatpush2.msra.mxu0 0.0
        %1149 = vmatprep.subr.mxu0 0.0
        %1150 = vmatpush2.msra.mxu0 0.0
        %1151 = vmatprep.subr.mxu0 0.0
        %1152 = vmatpush2.msra.mxu0 0.0
        %1153 = vmatprep.subr.mxu0 0.0
        %1154 = vmatpush2.msra.mxu0 0.0
        %1155 = vmatprep.subr.mxu0 0.0
        %1156 = vmatpush2.msra.mxu0 0.0
        %1157 = vmatprep.subr.mxu0 0.0
        %1158 = vmatpush2.msra.mxu0 0.0
        %1159 = vmatprep.mubr.f32.mxu0 0.0
        %1160 = vmatmul.mubr.f32.gmra.mxu0 %v1091
        %v1161 = vpop.f32.mrf.mxu0
        %v1162 = vadd.f32 0.0, %v1161
        %v1163 = vpop.f32.mrf.mxu0
        %v1164 = vadd.f32 0.0, %v1163
        %1165 = vmatprep.mubr.f32.mxu0 0.0
        %1166 = vmatmul.mubr.f32.gmra.mxu0 %v1093
        %v1167 = vpop.f32.mrf.mxu0
        %v1168 = vadd.f32 0.0, %v1167
        %v1169 = vpop.f32.mrf.mxu0
        %v1170 = vadd.f32 0.0, %v1169
        %1171 = vdwg.mxu0
        %v1172 = vadd.f32 %v1049, %v1162
        %v1173 = vadd.f32 %v1051, %v1164
        %v1174 = vadd.f32 %v1055, %v1168
        %v1175 = vadd.f32 %v1057, %v1170
        %v1176 = vld [vmem:[%s10] sm:$0x3]
        %v1178 = vlaneseq
        %v1179 = vshrl.u32 %v1178, 7
        %v1180 = vsub.s32 0, %v1179
        %v1181 = vrot.slane %v1176, %v1180
        %v1182 = vlaneseq
        %v1183 = vshrl.u32 %v1182, 7
        %v1184 = vsub.s32 1, %v1183
        %v1185 = vrot.slane %v1176, %v1184
        %v1188 = vadd.f32 %v1172, %v1181
        %v1189 = vadd.f32 %v1173, %v1185
        %v1190 = vadd.f32 %v1174, %v1181
        %v1191 = vadd.f32 %v1175, %v1185
        %vm1192 = vcmp.gt.f32.partialorder %v1188, 0.0
        %vm1193 = vcmp.gt.f32.partialorder %v1189, 0.0
        %vm1194 = vcmp.gt.f32.partialorder %v1190, 0.0
        %vm1195 = vcmp.gt.f32.partialorder %v1191, 0.0
        %v1196 = vmul.f32 %v1188, 0.01
        %v1197 = vmul.f32 %v1189, 0.01
        %v1198 = vmul.f32 %v1190, 0.01
        %v1199 = vmul.f32 %v1191, 0.01
        %v1200 = vsel %vm1192, %v1188, %v1196
        %v1201 = vsel %vm1193, %v1189, %v1197
        %v1202 = vsel %vm1194, %v1190, %v1198
        %v1203 = vsel %vm1195, %v1191, %v1199
        %v1204 = vld [vmem:[%s3] sm:$0xff]
        %v1205 = vld [vmem:[%s3 + $0x8] sm:$0xff]
        %v1206 = vld [vmem:[%s3 + $0x10] sm:$0xff]
        %v1207 = vld [vmem:[%s3 + $0x18] sm:$0xff]
        %v1208 = vld [vmem:[%s3 + $0x20] sm:$0xff]
        %v1209 = vld [vmem:[%s3 + $0x28] sm:$0xff]
        %v1210 = vld [vmem:[%s3 + $0x30] sm:$0xff]
        %v1211 = vld [vmem:[%s3 + $0x38] sm:$0xff]
        %v1212 = vld [vmem:[%s3 + $0x40] sm:$0xff]
        %v1213 = vld [vmem:[%s3 + $0x48] sm:$0xff]
        %v1214 = vld [vmem:[%s3 + $0x50] sm:$0xff]
        %v1215 = vld [vmem:[%s3 + $0x58] sm:$0xff]
        %v1216 = vld [vmem:[%s3 + $0x60] sm:$0xff]
        %v1217 = vld [vmem:[%s3 + $0x68] sm:$0xff]
        %v1218 = vld [vmem:[%s3 + $0x70] sm:$0xff]
        %v1219 = vld [vmem:[%s3 + $0x78] sm:$0xff]
        %v1220 = vld [vmem:[%s3 + $0x80] sm:$0xff]
        %v1221 = vld [vmem:[%s3 + $0x88] sm:$0xff]
        %v1222 = vld [vmem:[%s3 + $0x90] sm:$0xff]
        %v1223 = vld [vmem:[%s3 + $0x98] sm:$0xff]
        %v1224 = vld [vmem:[%s3 + $0xa0] sm:$0xff]
        %v1225 = vld [vmem:[%s3 + $0xa8] sm:$0xff]
        %v1226 = vld [vmem:[%s3 + $0xb0] sm:$0xff]
        %v1227 = vld [vmem:[%s3 + $0xb8] sm:$0xff]
        %v1228 = vld [vmem:[%s3 + $0xc0] sm:$0xff]
        %v1229 = vld [vmem:[%s3 + $0xc8] sm:$0xff]
        %v1230 = vld [vmem:[%s3 + $0xd0] sm:$0xff]
        %v1231 = vld [vmem:[%s3 + $0xd8] sm:$0xff]
        %v1232 = vld [vmem:[%s3 + $0xe0] sm:$0xff]
        %v1233 = vld [vmem:[%s3 + $0xe8] sm:$0xff]
        %v1234 = vld [vmem:[%s3 + $0xf0] sm:$0xff]
        %v1235 = vld [vmem:[%s3 + $0xf8] sm:$0xff]
        %v1236 = vld [vmem:[%s3 + $0x100] sm:$0xff]
        %v1237 = vld [vmem:[%s3 + $0x108] sm:$0xff]
        %v1238 = vld [vmem:[%s3 + $0x110] sm:$0xff]
        %v1239 = vld [vmem:[%s3 + $0x118] sm:$0xff]
        %v1240 = vld [vmem:[%s3 + $0x120] sm:$0xff]
        %v1241 = vld [vmem:[%s3 + $0x128] sm:$0xff]
        %v1242 = vld [vmem:[%s3 + $0x130] sm:$0xff]
        %v1243 = vld [vmem:[%s3 + $0x138] sm:$0xff]
        %v1244 = vld [vmem:[%s3 + $0x140] sm:$0xff]
        %v1245 = vld [vmem:[%s3 + $0x148] sm:$0xff]
        %v1246 = vld [vmem:[%s3 + $0x150] sm:$0xff]
        %v1247 = vld [vmem:[%s3 + $0x158] sm:$0xff]
        %v1248 = vld [vmem:[%s3 + $0x160] sm:$0xff]
        %v1249 = vld [vmem:[%s3 + $0x168] sm:$0xff]
        %v1250 = vld [vmem:[%s3 + $0x170] sm:$0xff]
        %v1251 = vld [vmem:[%s3 + $0x178] sm:$0xff]
        %v1252 = vld [vmem:[%s3 + $0x180] sm:$0xff]
        %v1253 = vld [vmem:[%s3 + $0x188] sm:$0xff]
        %v1254 = vld [vmem:[%s3 + $0x190] sm:$0xff]
        %v1255 = vld [vmem:[%s3 + $0x198] sm:$0xff]
        %v1256 = vld [vmem:[%s3 + $0x1a0] sm:$0xff]
        %v1257 = vld [vmem:[%s3 + $0x1a8] sm:$0xff]
        %v1258 = vld [vmem:[%s3 + $0x1b0] sm:$0xff]
        %v1259 = vld [vmem:[%s3 + $0x1b8] sm:$0xff]
        %v1260 = vld [vmem:[%s3 + $0x1c0] sm:$0xff]
        %v1261 = vld [vmem:[%s3 + $0x1c8] sm:$0xff]
        %v1262 = vld [vmem:[%s3 + $0x1d0] sm:$0xff]
        %v1263 = vld [vmem:[%s3 + $0x1d8] sm:$0xff]
        %v1264 = vld [vmem:[%s3 + $0x1e0] sm:$0xff]
        %v1265 = vld [vmem:[%s3 + $0x1e8] sm:$0xff]
        %v1266 = vld [vmem:[%s3 + $0x1f0] sm:$0xff]
        %v1267 = vld [vmem:[%s3 + $0x1f8] sm:$0xff]
        %v1268 = vld [vmem:[%s3 + $0x200] sm:$0xff]
        %v1269 = vld [vmem:[%s3 + $0x208] sm:$0xff]
        %v1270 = vld [vmem:[%s3 + $0x210] sm:$0xff]
        %v1271 = vld [vmem:[%s3 + $0x218] sm:$0xff]
        %v1272 = vld [vmem:[%s3 + $0x220] sm:$0xff]
        %v1273 = vld [vmem:[%s3 + $0x228] sm:$0xff]
        %v1274 = vld [vmem:[%s3 + $0x230] sm:$0xff]
        %v1275 = vld [vmem:[%s3 + $0x238] sm:$0xff]
        %s1276 = scalar_lea.vmem %s3, 576
        %v1277 = vld [vmem:[%s1276] sm:$0xff]
        %v1278 = vld [vmem:[%s1276 + $0x8] sm:$0xff]
        %v1279 = vld [vmem:[%s1276 + $0x10] sm:$0xff]
        %v1280 = vld [vmem:[%s1276 + $0x18] sm:$0xff]
        %v1281 = vld [vmem:[%s1276 + $0x20] sm:$0xff]
        %v1282 = vld [vmem:[%s1276 + $0x28] sm:$0xff]
        %v1283 = vld [vmem:[%s1276 + $0x30] sm:$0xff]
        %v1284 = vld [vmem:[%s1276 + $0x38] sm:$0xff]
        %v1285 = vld [vmem:[%s1276 + $0x40] sm:$0xff]
        %v1286 = vld [vmem:[%s1276 + $0x48] sm:$0xff]
        %v1287 = vld [vmem:[%s1276 + $0x50] sm:$0xff]
        %v1288 = vld [vmem:[%s1276 + $0x58] sm:$0xff]
        %v1289 = vld [vmem:[%s1276 + $0x60] sm:$0xff]
        %v1290 = vld [vmem:[%s1276 + $0x68] sm:$0xff]
        %v1291 = vld [vmem:[%s1276 + $0x70] sm:$0xff]
        %v1292 = vld [vmem:[%s1276 + $0x78] sm:$0xff]
        %v1293 = vld [vmem:[%s1276 + $0x80] sm:$0xff]
        %v1294 = vld [vmem:[%s1276 + $0x88] sm:$0xff]
        %v1295 = vld [vmem:[%s1276 + $0x90] sm:$0xff]
        %v1296 = vld [vmem:[%s1276 + $0x98] sm:$0xff]
        %v1297 = vld [vmem:[%s1276 + $0xa0] sm:$0xff]
        %v1298 = vld [vmem:[%s1276 + $0xa8] sm:$0xff]
        %v1299 = vld [vmem:[%s1276 + $0xb0] sm:$0xff]
        %v1300 = vld [vmem:[%s1276 + $0xb8] sm:$0xff]
        %v1301 = vld [vmem:[%s1276 + $0xc0] sm:$0xff]
        %v1302 = vld [vmem:[%s1276 + $0xc8] sm:$0xff]
        %v1303 = vld [vmem:[%s1276 + $0xd0] sm:$0xff]
        %v1304 = vld [vmem:[%s1276 + $0xd8] sm:$0xff]
        %v1305 = vld [vmem:[%s1276 + $0xe0] sm:$0xff]
        %v1306 = vld [vmem:[%s1276 + $0xe8] sm:$0xff]
        %v1307 = vld [vmem:[%s1276 + $0xf0] sm:$0xff]
        %v1308 = vld [vmem:[%s1276 + $0xf8] sm:$0xff]
        %v1309 = vld [vmem:[%s1276 + $0x100] sm:$0xff]
        %v1310 = vld [vmem:[%s1276 + $0x108] sm:$0xff]
        %v1311 = vld [vmem:[%s1276 + $0x110] sm:$0xff]
        %v1312 = vld [vmem:[%s1276 + $0x118] sm:$0xff]
        %v1313 = vld [vmem:[%s1276 + $0x120] sm:$0xff]
        %v1314 = vld [vmem:[%s1276 + $0x128] sm:$0xff]
        %v1315 = vld [vmem:[%s1276 + $0x130] sm:$0xff]
        %v1316 = vld [vmem:[%s1276 + $0x138] sm:$0xff]
        %v1317 = vld [vmem:[%s1276 + $0x140] sm:$0xff]
        %v1318 = vld [vmem:[%s1276 + $0x148] sm:$0xff]
        %v1319 = vld [vmem:[%s1276 + $0x150] sm:$0xff]
        %v1320 = vld [vmem:[%s1276 + $0x158] sm:$0xff]
        %v1321 = vld [vmem:[%s1276 + $0x160] sm:$0xff]
        %v1322 = vld [vmem:[%s1276 + $0x168] sm:$0xff]
        %v1323 = vld [vmem:[%s1276 + $0x170] sm:$0xff]
        %v1324 = vld [vmem:[%s1276 + $0x178] sm:$0xff]
        %v1325 = vld [vmem:[%s1276 + $0x180] sm:$0xff]
        %v1326 = vld [vmem:[%s1276 + $0x188] sm:$0xff]
        %v1327 = vld [vmem:[%s1276 + $0x190] sm:$0xff]
        %v1328 = vld [vmem:[%s1276 + $0x198] sm:$0xff]
        %v1329 = vld [vmem:[%s1276 + $0x1a0] sm:$0xff]
        %v1330 = vld [vmem:[%s1276 + $0x1a8] sm:$0xff]
        %v1331 = vld [vmem:[%s1276 + $0x1b0] sm:$0xff]
        %v1332 = vld [vmem:[%s1276 + $0x1b8] sm:$0xff]
        %v1333 = vld [vmem:[%s1276 + $0x1c0] sm:$0xff]
        %v1334 = vld [vmem:[%s1276 + $0x1c8] sm:$0xff]
        %v1335 = vld [vmem:[%s1276 + $0x1d0] sm:$0xff]
        %v1336 = vld [vmem:[%s1276 + $0x1d8] sm:$0xff]
        %v1337 = vld [vmem:[%s1276 + $0x1e0] sm:$0xff]
        %v1338 = vld [vmem:[%s1276 + $0x1e8] sm:$0xff]
        %v1339 = vld [vmem:[%s1276 + $0x1f0] sm:$0xff]
        %v1340 = vld [vmem:[%s1276 + $0x1f8] sm:$0xff]
        %v1341 = vld [vmem:[%s1276 + $0x200] sm:$0xff]
        %v1342 = vld [vmem:[%s1276 + $0x208] sm:$0xff]
        %v1343 = vld [vmem:[%s1276 + $0x210] sm:$0xff]
        %v1344 = vld [vmem:[%s1276 + $0x218] sm:$0xff]
        %v1345 = vld [vmem:[%s1276 + $0x220] sm:$0xff]
        %v1346 = vld [vmem:[%s1276 + $0x228] sm:$0xff]
        %v1347 = vld [vmem:[%s1276 + $0x230] sm:$0xff]
        %v1348 = vld [vmem:[%s1276 + $0x238] sm:$0xff]
        %v1353 = vrot.slane %v1200, 1
        %v1354 = vrot.slane %v1202, 1
        %v1355 = vsel %vm568, %v1353, %v1354
        %v1356 = vrot.slane %v1201, 1
        %v1357 = vrot.slane %v1203, 1
        %v1358 = vsel %vm568, %v1356, %v1357
        %vm1361 = vcmask 523264
        %v1362 = vsel %vm1361, %v1358, 0
        %v1364 = vsel %vm1361, %v1357, 0
        %1366 = vmatprep.subr.mxu0 %v1323
        %1367 = vmatpush1.msra.mxu0 %v1322
        %1368 = vmatprep.subr.mxu0 %v1320
        %1369 = vmatpush1.msra.mxu0 %v1319
        %1370 = vmatprep.subr.mxu0 %v1317
        %1371 = vmatpush1.msra.mxu0 %v1316
        %1372 = vmatprep.subr.mxu0 %v1314
        %1373 = vmatpush1.msra.mxu0 %v1313
        %1374 = vmatprep.subr.mxu0 %v1311
        %1375 = vmatpush1.msra.mxu0 %v1310
        %1376 = vmatprep.subr.mxu0 %v1308
        %1377 = vmatpush1.msra.mxu0 %v1307
        %1378 = vmatprep.subr.mxu0 %v1305
        %1379 = vmatpush1.msra.mxu0 %v1304
        %1380 = vmatprep.subr.mxu0 %v1302
        %1381 = vmatpush1.msra.mxu0 %v1301
        %1382 = vmatprep.subr.mxu0 %v1299
        %1383 = vmatpush1.msra.mxu0 %v1298
        %1384 = vmatprep.subr.mxu0 %v1296
        %1385 = vmatpush1.msra.mxu0 %v1295
        %1386 = vmatprep.subr.mxu0 %v1293
        %1387 = vmatpush1.msra.mxu0 %v1292
        %1388 = vmatprep.subr.mxu0 %v1290
        %1389 = vmatpush1.msra.mxu0 %v1289
        %1390 = vmatprep.subr.mxu0 %v1287
        %1391 = vmatpush1.msra.mxu0 %v1286
        %1392 = vmatprep.subr.mxu0 %v1284
        %1393 = vmatpush1.msra.mxu0 %v1283
        %1394 = vmatprep.subr.mxu0 %v1281
        %1395 = vmatpush1.msra.mxu0 %v1280
        %1396 = vmatprep.subr.mxu0 %v1278
        %1397 = vmatpush1.msra.mxu0 %v1277
        %1398 = vmatprep.subr.mxu0 0.0
        %1399 = vmatpush2.msra.mxu0 0.0
        %1400 = vmatprep.subr.mxu0 0.0
        %1401 = vmatpush2.msra.mxu0 0.0
        %1402 = vmatprep.subr.mxu0 0.0
        %1403 = vmatpush2.msra.mxu0 0.0
        %1404 = vmatprep.subr.mxu0 0.0
        %1405 = vmatpush2.msra.mxu0 0.0
        %1406 = vmatprep.subr.mxu0 0.0
        %1407 = vmatpush2.msra.mxu0 0.0
        %1408 = vmatprep.subr.mxu0 0.0
        %1409 = vmatpush2.msra.mxu0 0.0
        %1410 = vmatprep.subr.mxu0 0.0
        %1411 = vmatpush2.msra.mxu0 0.0
        %1412 = vmatprep.subr.mxu0 0.0
        %1413 = vmatpush2.msra.mxu0 0.0
        %1414 = vmatprep.subr.mxu0 %v1347
        %1415 = vmatpush2.msra.mxu0 %v1346
        %1416 = vmatprep.subr.mxu0 %v1344
        %1417 = vmatpush2.msra.mxu0 %v1343
        %1418 = vmatprep.subr.mxu0 %v1341
        %1419 = vmatpush2.msra.mxu0 %v1340
        %1420 = vmatprep.subr.mxu0 %v1338
        %1421 = vmatpush2.msra.mxu0 %v1337
        %1422 = vmatprep.subr.mxu0 %v1335
        %1423 = vmatpush2.msra.mxu0 %v1334
        %1424 = vmatprep.subr.mxu0 %v1332
        %1425 = vmatpush2.msra.mxu0 %v1331
        %1426 = vmatprep.subr.mxu0 %v1329
        %1427 = vmatpush2.msra.mxu0 %v1328
        %1428 = vmatprep.subr.mxu0 %v1326
        %1429 = vmatpush2.msra.mxu0 %v1325
        %1430 = vmatprep.mubr.f32.mxu0 %v1362
        %1431 = vmatmul.mubr.f32.gmra.mxu0 %v1355
        %v1432 = vpop.f32.mrf.mxu0
        %v1433 = vadd.f32 0.0, %v1432
        %v1434 = vpop.f32.mrf.mxu0
        %v1435 = vadd.f32 0.0, %v1434
        %1436 = vmatprep.mubr.f32.mxu0 %v1364
        %1437 = vmatmul.mubr.f32.gmra.mxu0 %v1354
        %v1438 = vpop.f32.mrf.mxu0
        %v1439 = vadd.f32 0.0, %v1438
        %v1440 = vpop.f32.mrf.mxu0
        %v1441 = vadd.f32 0.0, %v1440
        %1442 = vdwg.mxu0
        %1443 = vmatprep.subr.mxu0 0.0
        %1444 = vmatpush1.msra.mxu0 %v1324
        %1445 = vmatprep.subr.mxu0 0.0
        %1446 = vmatpush1.msra.mxu0 %v1321
        %1447 = vmatprep.subr.mxu0 0.0
        %1448 = vmatpush1.msra.mxu0 %v1318
        %1449 = vmatprep.subr.mxu0 0.0
        %1450 = vmatpush1.msra.mxu0 %v1315
        %1451 = vmatprep.subr.mxu0 0.0
        %1452 = vmatpush1.msra.mxu0 %v1312
        %1453 = vmatprep.subr.mxu0 0.0
        %1454 = vmatpush1.msra.mxu0 %v1309
        %1455 = vmatprep.subr.mxu0 0.0
        %1456 = vmatpush1.msra.mxu0 %v1306
        %1457 = vmatprep.subr.mxu0 0.0
        %1458 = vmatpush1.msra.mxu0 %v1303
        %1459 = vmatprep.subr.mxu0 0.0
        %1460 = vmatpush1.msra.mxu0 %v1300
        %1461 = vmatprep.subr.mxu0 0.0
        %1462 = vmatpush1.msra.mxu0 %v1297
        %1463 = vmatprep.subr.mxu0 0.0
        %1464 = vmatpush1.msra.mxu0 %v1294
        %1465 = vmatprep.subr.mxu0 0.0
        %1466 = vmatpush1.msra.mxu0 %v1291
        %1467 = vmatprep.subr.mxu0 0.0
        %1468 = vmatpush1.msra.mxu0 %v1288
        %1469 = vmatprep.subr.mxu0 0.0
        %1470 = vmatpush1.msra.mxu0 %v1285
        %1471 = vmatprep.subr.mxu0 0.0
        %1472 = vmatpush1.msra.mxu0 %v1282
        %1473 = vmatprep.subr.mxu0 0.0
        %1474 = vmatpush1.msra.mxu0 %v1279
        %1475 = vmatprep.subr.mxu0 0.0
        %1476 = vmatpush2.msra.mxu0 0.0
        %1477 = vmatprep.subr.mxu0 0.0
        %1478 = vmatpush2.msra.mxu0 0.0
        %1479 = vmatprep.subr.mxu0 0.0
        %1480 = vmatpush2.msra.mxu0 0.0
        %1481 = vmatprep.subr.mxu0 0.0
        %1482 = vmatpush2.msra.mxu0 0.0
        %1483 = vmatprep.subr.mxu0 0.0
        %1484 = vmatpush2.msra.mxu0 0.0
        %1485 = vmatprep.subr.mxu0 0.0
        %1486 = vmatpush2.msra.mxu0 0.0
        %1487 = vmatprep.subr.mxu0 0.0
        %1488 = vmatpush2.msra.mxu0 0.0
        %1489 = vmatprep.subr.mxu0 0.0
        %1490 = vmatpush2.msra.mxu0 0.0
        %1491 = vmatprep.subr.mxu0 0.0
        %1492 = vmatpush2.msra.mxu0 %v1348
        %1493 = vmatprep.subr.mxu0 0.0
        %1494 = vmatpush2.msra.mxu0 %v1345
        %1495 = vmatprep.subr.mxu0 0.0
        %1496 = vmatpush2.msra.mxu0 %v1342
        %1497 = vmatprep.subr.mxu0 0.0
        %1498 = vmatpush2.msra.mxu0 %v1339
        %1499 = vmatprep.subr.mxu0 0.0
        %1500 = vmatpush2.msra.mxu0 %v1336
        %1501 = vmatprep.subr.mxu0 0.0
        %1502 = vmatpush2.msra.mxu0 %v1333
        %1503 = vmatprep.subr.mxu0 0.0
        %1504 = vmatpush2.msra.mxu0 %v1330
        %1505 = vmatprep.subr.mxu0 0.0
        %1506 = vmatpush2.msra.mxu0 %v1327
        %1507 = vmatprep.mubr.f32.mxu0 %v1362
        %1508 = vmatmul.mubr.f32.gmra.mxu0 %v1355
        %v1509 = vpop.f32.mrf.mxu0
        %v1510 = vadd.f32 0.0, %v1509
        %v1511 = vpop.f32.mrf.mxu0
        %1512 = vmatprep.mubr.f32.mxu0 %v1364
        %1513 = vmatmul.mubr.f32.gmra.mxu0 %v1354
        %v1514 = vpop.f32.mrf.mxu0
        %v1515 = vadd.f32 0.0, %v1514
        %v1516 = vpop.f32.mrf.mxu0
        %1517 = vdwg.mxu0
        %v1518 = vsel %vm1361, %v1201, 0
        %v1520 = vsel %vm1361, %v1203, 0
        %1522 = vmatprep.subr.mxu0 %v1250
        %1523 = vmatpush1.msra.mxu0 %v1249
        %1524 = vmatprep.subr.mxu0 %v1247
        %1525 = vmatpush1.msra.mxu0 %v1246
        %1526 = vmatprep.subr.mxu0 %v1244
        %1527 = vmatpush1.msra.mxu0 %v1243
        %1528 = vmatprep.subr.mxu0 %v1241
        %1529 = vmatpush1.msra.mxu0 %v1240
        %1530 = vmatprep.subr.mxu0 %v1238
        %1531 = vmatpush1.msra.mxu0 %v1237
        %1532 = vmatprep.subr.mxu0 %v1235
        %1533 = vmatpush1.msra.mxu0 %v1234
        %1534 = vmatprep.subr.mxu0 %v1232
        %1535 = vmatpush1.msra.mxu0 %v1231
        %1536 = vmatprep.subr.mxu0 %v1229
        %1537 = vmatpush1.msra.mxu0 %v1228
        %1538 = vmatprep.subr.mxu0 %v1226
        %1539 = vmatpush1.msra.mxu0 %v1225
        %1540 = vmatprep.subr.mxu0 %v1223
        %1541 = vmatpush1.msra.mxu0 %v1222
        %1542 = vmatprep.subr.mxu0 %v1220
        %1543 = vmatpush1.msra.mxu0 %v1219
        %1544 = vmatprep.subr.mxu0 %v1217
        %1545 = vmatpush1.msra.mxu0 %v1216
        %1546 = vmatprep.subr.mxu0 %v1214
        %1547 = vmatpush1.msra.mxu0 %v1213
        %1548 = vmatprep.subr.mxu0 %v1211
        %1549 = vmatpush1.msra.mxu0 %v1210
        %1550 = vmatprep.subr.mxu0 %v1208
        %1551 = vmatpush1.msra.mxu0 %v1207
        %1552 = vmatprep.subr.mxu0 %v1205
        %1553 = vmatpush1.msra.mxu0 %v1204
        %1554 = vmatprep.subr.mxu0 0.0
        %1555 = vmatpush2.msra.mxu0 0.0
        %1556 = vmatprep.subr.mxu0 0.0
        %1557 = vmatpush2.msra.mxu0 0.0
        %1558 = vmatprep.subr.mxu0 0.0
        %1559 = vmatpush2.msra.mxu0 0.0
        %1560 = vmatprep.subr.mxu0 0.0
        %1561 = vmatpush2.msra.mxu0 0.0
        %1562 = vmatprep.subr.mxu0 0.0
        %1563 = vmatpush2.msra.mxu0 0.0
        %1564 = vmatprep.subr.mxu0 0.0
        %1565 = vmatpush2.msra.mxu0 0.0
        %1566 = vmatprep.subr.mxu0 0.0
        %1567 = vmatpush2.msra.mxu0 0.0
        %1568 = vmatprep.subr.mxu0 0.0
        %1569 = vmatpush2.msra.mxu0 0.0
        %1570 = vmatprep.subr.mxu0 %v1274
        %1571 = vmatpush2.msra.mxu0 %v1273
        %1572 = vmatprep.subr.mxu0 %v1271
        %1573 = vmatpush2.msra.mxu0 %v1270
        %1574 = vmatprep.subr.mxu0 %v1268
        %1575 = vmatpush2.msra.mxu0 %v1267
        %1576 = vmatprep.subr.mxu0 %v1265
        %1577 = vmatpush2.msra.mxu0 %v1264
        %1578 = vmatprep.subr.mxu0 %v1262
        %1579 = vmatpush2.msra.mxu0 %v1261
        %1580 = vmatprep.subr.mxu0 %v1259
        %1581 = vmatpush2.msra.mxu0 %v1258
        %1582 = vmatprep.subr.mxu0 %v1256
        %1583 = vmatpush2.msra.mxu0 %v1255
        %1584 = vmatprep.subr.mxu0 %v1253
        %1585 = vmatpush2.msra.mxu0 %v1252
        %1586 = vmatprep.mubr.f32.mxu0 %v1518
        %1587 = vmatmul.mubr.f32.gmra.mxu0 %v1200
        %v1588 = vpop.f32.mrf.mxu0
        %v1589 = vadd.f32 %v1433, %v1588
        %v1590 = vpop.f32.mrf.mxu0
        %v1591 = vadd.f32 %v1435, %v1590
        %1592 = vmatprep.mubr.f32.mxu0 %v1520
        %1593 = vmatmul.mubr.f32.gmra.mxu0 %v1202
        %v1594 = vpop.f32.mrf.mxu0
        %v1595 = vadd.f32 %v1439, %v1594
        %v1596 = vpop.f32.mrf.mxu0
        %v1597 = vadd.f32 %v1441, %v1596
        %1598 = vdwg.mxu0
        %1599 = vmatprep.subr.mxu0 0.0
        %1600 = vmatpush1.msra.mxu0 %v1251
        %1601 = vmatprep.subr.mxu0 0.0
        %1602 = vmatpush1.msra.mxu0 %v1248
        %1603 = vmatprep.subr.mxu0 0.0
        %1604 = vmatpush1.msra.mxu0 %v1245
        %1605 = vmatprep.subr.mxu0 0.0
        %1606 = vmatpush1.msra.mxu0 %v1242
        %1607 = vmatprep.subr.mxu0 0.0
        %1608 = vmatpush1.msra.mxu0 %v1239
        %1609 = vmatprep.subr.mxu0 0.0
        %1610 = vmatpush1.msra.mxu0 %v1236
        %1611 = vmatprep.subr.mxu0 0.0
        %1612 = vmatpush1.msra.mxu0 %v1233
        %1613 = vmatprep.subr.mxu0 0.0
        %1614 = vmatpush1.msra.mxu0 %v1230
        %1615 = vmatprep.subr.mxu0 0.0
        %1616 = vmatpush1.msra.mxu0 %v1227
        %1617 = vmatprep.subr.mxu0 0.0
        %1618 = vmatpush1.msra.mxu0 %v1224
        %1619 = vmatprep.subr.mxu0 0.0
        %1620 = vmatpush1.msra.mxu0 %v1221
        %1621 = vmatprep.subr.mxu0 0.0
        %1622 = vmatpush1.msra.mxu0 %v1218
        %1623 = vmatprep.subr.mxu0 0.0
        %1624 = vmatpush1.msra.mxu0 %v1215
        %1625 = vmatprep.subr.mxu0 0.0
        %1626 = vmatpush1.msra.mxu0 %v1212
        %1627 = vmatprep.subr.mxu0 0.0
        %1628 = vmatpush1.msra.mxu0 %v1209
        %1629 = vmatprep.subr.mxu0 0.0
        %1630 = vmatpush1.msra.mxu0 %v1206
        %1631 = vmatprep.subr.mxu0 0.0
        %1632 = vmatpush2.msra.mxu0 0.0
        %1633 = vmatprep.subr.mxu0 0.0
        %1634 = vmatpush2.msra.mxu0 0.0
        %1635 = vmatprep.subr.mxu0 0.0
        %1636 = vmatpush2.msra.mxu0 0.0
        %1637 = vmatprep.subr.mxu0 0.0
        %1638 = vmatpush2.msra.mxu0 0.0
        %1639 = vmatprep.subr.mxu0 0.0
        %1640 = vmatpush2.msra.mxu0 0.0
        %1641 = vmatprep.subr.mxu0 0.0
        %1642 = vmatpush2.msra.mxu0 0.0
        %1643 = vmatprep.subr.mxu0 0.0
        %1644 = vmatpush2.msra.mxu0 0.0
        %1645 = vmatprep.subr.mxu0 0.0
        %1646 = vmatpush2.msra.mxu0 0.0
        %1647 = vmatprep.subr.mxu0 0.0
        %1648 = vmatpush2.msra.mxu0 %v1275
        %1649 = vmatprep.subr.mxu0 0.0
        %1650 = vmatpush2.msra.mxu0 %v1272
        %1651 = vmatprep.subr.mxu0 0.0
        %1652 = vmatpush2.msra.mxu0 %v1269
        %1653 = vmatprep.subr.mxu0 0.0
        %1654 = vmatpush2.msra.mxu0 %v1266
        %1655 = vmatprep.subr.mxu0 0.0
        %1656 = vmatpush2.msra.mxu0 %v1263
        %1657 = vmatprep.subr.mxu0 0.0
        %1658 = vmatpush2.msra.mxu0 %v1260
        %1659 = vmatprep.subr.mxu0 0.0
        %1660 = vmatpush2.msra.mxu0 %v1257
        %1661 = vmatprep.subr.mxu0 0.0
        %1662 = vmatpush2.msra.mxu0 %v1254
        %1663 = vmatprep.mubr.f32.mxu0 %v1518
        %1664 = vmatmul.mubr.f32.gmra.mxu0 %v1200
        %v1665 = vpop.f32.mrf.mxu0
        %v1666 = vadd.f32 %v1510, %v1665
        %v1667 = vpop.f32.mrf.mxu0
        %1668 = vmatprep.mubr.f32.mxu0 %v1520
        %1669 = vmatmul.mubr.f32.gmra.mxu0 %v1202
        %v1670 = vpop.f32.mrf.mxu0
        %v1671 = vadd.f32 %v1515, %v1670
        %v1672 = vpop.f32.mrf.mxu0
        %1673 = vdwg.mxu0
        %s1674 = scalar_lea.vmem %s3, 1152
        %v1675 = vld [vmem:[%s1674] sm:$0xff]
        %v1676 = vld [vmem:[%s1674 + $0x8] sm:$0xff]
        %v1677 = vld [vmem:[%s1674 + $0x10] sm:$0xff]
        %v1678 = vld [vmem:[%s1674 + $0x18] sm:$0xff]
        %v1679 = vld [vmem:[%s1674 + $0x20] sm:$0xff]
        %v1680 = vld [vmem:[%s1674 + $0x28] sm:$0xff]
        %v1681 = vld [vmem:[%s1674 + $0x30] sm:$0xff]
        %v1682 = vld [vmem:[%s1674 + $0x38] sm:$0xff]
        %v1683 = vld [vmem:[%s1674 + $0x40] sm:$0xff]
        %v1684 = vld [vmem:[%s1674 + $0x48] sm:$0xff]
        %v1685 = vld [vmem:[%s1674 + $0x50] sm:$0xff]
        %v1686 = vld [vmem:[%s1674 + $0x58] sm:$0xff]
        %v1687 = vld [vmem:[%s1674 + $0x60] sm:$0xff]
        %v1688 = vld [vmem:[%s1674 + $0x68] sm:$0xff]
        %v1689 = vld [vmem:[%s1674 + $0x70] sm:$0xff]
        %v1690 = vld [vmem:[%s1674 + $0x78] sm:$0xff]
        %v1691 = vld [vmem:[%s1674 + $0x80] sm:$0xff]
        %v1692 = vld [vmem:[%s1674 + $0x88] sm:$0xff]
        %v1693 = vld [vmem:[%s1674 + $0x90] sm:$0xff]
        %v1694 = vld [vmem:[%s1674 + $0x98] sm:$0xff]
        %v1695 = vld [vmem:[%s1674 + $0xa0] sm:$0xff]
        %v1696 = vld [vmem:[%s1674 + $0xa8] sm:$0xff]
        %v1697 = vld [vmem:[%s1674 + $0xb0] sm:$0xff]
        %v1698 = vld [vmem:[%s1674 + $0xb8] sm:$0xff]
        %v1699 = vld [vmem:[%s1674 + $0xc0] sm:$0xff]
        %v1700 = vld [vmem:[%s1674 + $0xc8] sm:$0xff]
        %v1701 = vld [vmem:[%s1674 + $0xd0] sm:$0xff]
        %v1702 = vld [vmem:[%s1674 + $0xd8] sm:$0xff]
        %v1703 = vld [vmem:[%s1674 + $0xe0] sm:$0xff]
        %v1704 = vld [vmem:[%s1674 + $0xe8] sm:$0xff]
        %v1705 = vld [vmem:[%s1674 + $0xf0] sm:$0xff]
        %v1706 = vld [vmem:[%s1674 + $0xf8] sm:$0xff]
        %v1707 = vld [vmem:[%s1674 + $0x100] sm:$0xff]
        %v1708 = vld [vmem:[%s1674 + $0x108] sm:$0xff]
        %v1709 = vld [vmem:[%s1674 + $0x110] sm:$0xff]
        %v1710 = vld [vmem:[%s1674 + $0x118] sm:$0xff]
        %v1711 = vld [vmem:[%s1674 + $0x120] sm:$0xff]
        %v1712 = vld [vmem:[%s1674 + $0x128] sm:$0xff]
        %v1713 = vld [vmem:[%s1674 + $0x130] sm:$0xff]
        %v1714 = vld [vmem:[%s1674 + $0x138] sm:$0xff]
        %v1715 = vld [vmem:[%s1674 + $0x140] sm:$0xff]
        %v1716 = vld [vmem:[%s1674 + $0x148] sm:$0xff]
        %v1717 = vld [vmem:[%s1674 + $0x150] sm:$0xff]
        %v1718 = vld [vmem:[%s1674 + $0x158] sm:$0xff]
        %v1719 = vld [vmem:[%s1674 + $0x160] sm:$0xff]
        %v1720 = vld [vmem:[%s1674 + $0x168] sm:$0xff]
        %v1721 = vld [vmem:[%s1674 + $0x170] sm:$0xff]
        %v1722 = vld [vmem:[%s1674 + $0x178] sm:$0xff]
        %v1723 = vld [vmem:[%s1674 + $0x180] sm:$0xff]
        %v1724 = vld [vmem:[%s1674 + $0x188] sm:$0xff]
        %v1725 = vld [vmem:[%s1674 + $0x190] sm:$0xff]
        %v1726 = vld [vmem:[%s1674 + $0x198] sm:$0xff]
        %v1727 = vld [vmem:[%s1674 + $0x1a0] sm:$0xff]
        %v1728 = vld [vmem:[%s1674 + $0x1a8] sm:$0xff]
        %v1729 = vld [vmem:[%s1674 + $0x1b0] sm:$0xff]
        %v1730 = vld [vmem:[%s1674 + $0x1b8] sm:$0xff]
        %v1731 = vld [vmem:[%s1674 + $0x1c0] sm:$0xff]
        %v1732 = vld [vmem:[%s1674 + $0x1c8] sm:$0xff]
        %v1733 = vld [vmem:[%s1674 + $0x1d0] sm:$0xff]
        %v1734 = vld [vmem:[%s1674 + $0x1d8] sm:$0xff]
        %v1735 = vld [vmem:[%s1674 + $0x1e0] sm:$0xff]
        %v1736 = vld [vmem:[%s1674 + $0x1e8] sm:$0xff]
        %v1737 = vld [vmem:[%s1674 + $0x1f0] sm:$0xff]
        %v1738 = vld [vmem:[%s1674 + $0x1f8] sm:$0xff]
        %v1739 = vld [vmem:[%s1674 + $0x200] sm:$0xff]
        %v1740 = vld [vmem:[%s1674 + $0x208] sm:$0xff]
        %v1741 = vld [vmem:[%s1674 + $0x210] sm:$0xff]
        %v1742 = vld [vmem:[%s1674 + $0x218] sm:$0xff]
        %v1743 = vld [vmem:[%s1674 + $0x220] sm:$0xff]
        %v1744 = vld [vmem:[%s1674 + $0x228] sm:$0xff]
        %v1745 = vld [vmem:[%s1674 + $0x230] sm:$0xff]
        %v1746 = vld [vmem:[%s1674 + $0x238] sm:$0xff]
        %v1747 = vrot.slane %v1200, 2
        %v1748 = vrot.slane %v1202, 2
        %v1749 = vsel %vm734, %v1747, %v1748
        %v1750 = vrot.slane %v1201, 2
        %v1751 = vrot.slane %v1203, 2
        %v1752 = vsel %vm734, %v1750, %v1751
        %v1755 = vsel %vm1361, %v1752, 0
        %v1757 = vsel %vm1361, %v1751, 0
        %1759 = vmatprep.subr.mxu0 %v1721
        %1760 = vmatpush1.msra.mxu0 %v1720
        %1761 = vmatprep.subr.mxu0 %v1718
        %1762 = vmatpush1.msra.mxu0 %v1717
        %1763 = vmatprep.subr.mxu0 %v1715
        %1764 = vmatpush1.msra.mxu0 %v1714
        %1765 = vmatprep.subr.mxu0 %v1712
        %1766 = vmatpush1.msra.mxu0 %v1711
        %1767 = vmatprep.subr.mxu0 %v1709
        %1768 = vmatpush1.msra.mxu0 %v1708
        %1769 = vmatprep.subr.mxu0 %v1706
        %1770 = vmatpush1.msra.mxu0 %v1705
        %1771 = vmatprep.subr.mxu0 %v1703
        %1772 = vmatpush1.msra.mxu0 %v1702
        %1773 = vmatprep.subr.mxu0 %v1700
        %1774 = vmatpush1.msra.mxu0 %v1699
        %1775 = vmatprep.subr.mxu0 %v1697
        %1776 = vmatpush1.msra.mxu0 %v1696
        %1777 = vmatprep.subr.mxu0 %v1694
        %1778 = vmatpush1.msra.mxu0 %v1693
        %1779 = vmatprep.subr.mxu0 %v1691
        %1780 = vmatpush1.msra.mxu0 %v1690
        %1781 = vmatprep.subr.mxu0 %v1688
        %1782 = vmatpush1.msra.mxu0 %v1687
        %1783 = vmatprep.subr.mxu0 %v1685
        %1784 = vmatpush1.msra.mxu0 %v1684
        %1785 = vmatprep.subr.mxu0 %v1682
        %1786 = vmatpush1.msra.mxu0 %v1681
        %1787 = vmatprep.subr.mxu0 %v1679
        %1788 = vmatpush1.msra.mxu0 %v1678
        %1789 = vmatprep.subr.mxu0 %v1676
        %1790 = vmatpush1.msra.mxu0 %v1675
        %1791 = vmatprep.subr.mxu0 0.0
        %1792 = vmatpush2.msra.mxu0 0.0
        %1793 = vmatprep.subr.mxu0 0.0
        %1794 = vmatpush2.msra.mxu0 0.0
        %1795 = vmatprep.subr.mxu0 0.0
        %1796 = vmatpush2.msra.mxu0 0.0
        %1797 = vmatprep.subr.mxu0 0.0
        %1798 = vmatpush2.msra.mxu0 0.0
        %1799 = vmatprep.subr.mxu0 0.0
        %1800 = vmatpush2.msra.mxu0 0.0
        %1801 = vmatprep.subr.mxu0 0.0
        %1802 = vmatpush2.msra.mxu0 0.0
        %1803 = vmatprep.subr.mxu0 0.0
        %1804 = vmatpush2.msra.mxu0 0.0
        %1805 = vmatprep.subr.mxu0 0.0
        %1806 = vmatpush2.msra.mxu0 0.0
        %1807 = vmatprep.subr.mxu0 %v1745
        %1808 = vmatpush2.msra.mxu0 %v1744
        %1809 = vmatprep.subr.mxu0 %v1742
        %1810 = vmatpush2.msra.mxu0 %v1741
        %1811 = vmatprep.subr.mxu0 %v1739
        %1812 = vmatpush2.msra.mxu0 %v1738
        %1813 = vmatprep.subr.mxu0 %v1736
        %1814 = vmatpush2.msra.mxu0 %v1735
        %1815 = vmatprep.subr.mxu0 %v1733
        %1816 = vmatpush2.msra.mxu0 %v1732
        %1817 = vmatprep.subr.mxu0 %v1730
        %1818 = vmatpush2.msra.mxu0 %v1729
        %1819 = vmatprep.subr.mxu0 %v1727
        %1820 = vmatpush2.msra.mxu0 %v1726
        %1821 = vmatprep.subr.mxu0 %v1724
        %1822 = vmatpush2.msra.mxu0 %v1723
        %1823 = vmatprep.mubr.f32.mxu0 %v1755
        %1824 = vmatmul.mubr.f32.gmra.mxu0 %v1749
        %v1825 = vpop.f32.mrf.mxu0
        %v1826 = vadd.f32 0.0, %v1825
        %v1827 = vpop.f32.mrf.mxu0
        %v1828 = vadd.f32 0.0, %v1827
        %1829 = vmatprep.mubr.f32.mxu0 %v1757
        %1830 = vmatmul.mubr.f32.gmra.mxu0 %v1748
        %v1831 = vpop.f32.mrf.mxu0
        %v1832 = vadd.f32 0.0, %v1831
        %v1833 = vpop.f32.mrf.mxu0
        %v1834 = vadd.f32 0.0, %v1833
        %1835 = vdwg.mxu0
        %1836 = vmatprep.subr.mxu0 0.0
        %1837 = vmatpush1.msra.mxu0 %v1722
        %1838 = vmatprep.subr.mxu0 0.0
        %1839 = vmatpush1.msra.mxu0 %v1719
        %1840 = vmatprep.subr.mxu0 0.0
        %1841 = vmatpush1.msra.mxu0 %v1716
        %1842 = vmatprep.subr.mxu0 0.0
        %1843 = vmatpush1.msra.mxu0 %v1713
        %1844 = vmatprep.subr.mxu0 0.0
        %1845 = vmatpush1.msra.mxu0 %v1710
        %1846 = vmatprep.subr.mxu0 0.0
        %1847 = vmatpush1.msra.mxu0 %v1707
        %1848 = vmatprep.subr.mxu0 0.0
        %1849 = vmatpush1.msra.mxu0 %v1704
        %1850 = vmatprep.subr.mxu0 0.0
        %1851 = vmatpush1.msra.mxu0 %v1701
        %1852 = vmatprep.subr.mxu0 0.0
        %1853 = vmatpush1.msra.mxu0 %v1698
        %1854 = vmatprep.subr.mxu0 0.0
        %1855 = vmatpush1.msra.mxu0 %v1695
        %1856 = vmatprep.subr.mxu0 0.0
        %1857 = vmatpush1.msra.mxu0 %v1692
        %1858 = vmatprep.subr.mxu0 0.0
        %1859 = vmatpush1.msra.mxu0 %v1689
        %1860 = vmatprep.subr.mxu0 0.0
        %1861 = vmatpush1.msra.mxu0 %v1686
        %1862 = vmatprep.subr.mxu0 0.0
        %1863 = vmatpush1.msra.mxu0 %v1683
        %1864 = vmatprep.subr.mxu0 0.0
        %1865 = vmatpush1.msra.mxu0 %v1680
        %1866 = vmatprep.subr.mxu0 0.0
        %1867 = vmatpush1.msra.mxu0 %v1677
        %1868 = vmatprep.subr.mxu0 0.0
        %1869 = vmatpush2.msra.mxu0 0.0
        %1870 = vmatprep.subr.mxu0 0.0
        %1871 = vmatpush2.msra.mxu0 0.0
        %1872 = vmatprep.subr.mxu0 0.0
        %1873 = vmatpush2.msra.mxu0 0.0
        %1874 = vmatprep.subr.mxu0 0.0
        %1875 = vmatpush2.msra.mxu0 0.0
        %1876 = vmatprep.subr.mxu0 0.0
        %1877 = vmatpush2.msra.mxu0 0.0
        %1878 = vmatprep.subr.mxu0 0.0
        %1879 = vmatpush2.msra.mxu0 0.0
        %1880 = vmatprep.subr.mxu0 0.0
        %1881 = vmatpush2.msra.mxu0 0.0
        %1882 = vmatprep.subr.mxu0 0.0
        %1883 = vmatpush2.msra.mxu0 0.0
        %1884 = vmatprep.subr.mxu0 0.0
        %1885 = vmatpush2.msra.mxu0 %v1746
        %1886 = vmatprep.subr.mxu0 0.0
        %1887 = vmatpush2.msra.mxu0 %v1743
        %1888 = vmatprep.subr.mxu0 0.0
        %1889 = vmatpush2.msra.mxu0 %v1740
        %1890 = vmatprep.subr.mxu0 0.0
        %1891 = vmatpush2.msra.mxu0 %v1737
        %1892 = vmatprep.subr.mxu0 0.0
        %1893 = vmatpush2.msra.mxu0 %v1734
        %1894 = vmatprep.subr.mxu0 0.0
        %1895 = vmatpush2.msra.mxu0 %v1731
        %1896 = vmatprep.subr.mxu0 0.0
        %1897 = vmatpush2.msra.mxu0 %v1728
        %1898 = vmatprep.subr.mxu0 0.0
        %1899 = vmatpush2.msra.mxu0 %v1725
        %1900 = vmatprep.mubr.f32.mxu0 %v1755
        %1901 = vmatmul.mubr.f32.gmra.mxu0 %v1749
        %v1902 = vpop.f32.mrf.mxu0
        %v1903 = vadd.f32 0.0, %v1902
        %v1904 = vpop.f32.mrf.mxu0
        %1905 = vmatprep.mubr.f32.mxu0 %v1757
        %1906 = vmatmul.mubr.f32.gmra.mxu0 %v1748
        %v1907 = vpop.f32.mrf.mxu0
        %v1908 = vadd.f32 0.0, %v1907
        %v1909 = vpop.f32.mrf.mxu0
        %1910 = vdwg.mxu0
        %v1911 = vadd.f32 %v1589, %v1826
        %v1912 = vadd.f32 %v1591, %v1828
        %v1913 = vadd.f32 %v1666, %v1903
        %v1914 = vadd.f32 %v1595, %v1832
        %v1915 = vadd.f32 %v1597, %v1834
        %v1916 = vadd.f32 %v1671, %v1908
        %v1917 = vld [vmem:[%s11] sm:$0x7]
        %v1919 = vlaneseq
        %v1920 = vshrl.u32 %v1919, 7
        %v1921 = vsub.s32 0, %v1920
        %v1922 = vrot.slane %v1917, %v1921
        %v1923 = vlaneseq
        %v1924 = vshrl.u32 %v1923, 7
        %v1925 = vsub.s32 1, %v1924
        %v1926 = vrot.slane %v1917, %v1925
        %v1927 = vlaneseq
        %v1928 = vshrl.u32 %v1927, 7
        %v1929 = vsub.s32 2, %v1928
        %v1930 = vrot.slane %v1917, %v1929
        %v1934 = vadd.f32 %v1911, %v1922
        %v1935 = vadd.f32 %v1912, %v1926
        %v1936 = vadd.f32 %v1913, %v1930
        %v1937 = vadd.f32 %v1914, %v1922
        %v1938 = vadd.f32 %v1915, %v1926
        %v1939 = vadd.f32 %v1916, %v1930
        %vm1940 = vcmp.gt.f32.partialorder %v1934, 0.0
        %vm1941 = vcmp.gt.f32.partialorder %v1935, 0.0
        %vm1942 = vcmp.gt.f32.partialorder %v1936, 0.0
        %vm1943 = vcmp.gt.f32.partialorder %v1937, 0.0
        %vm1944 = vcmp.gt.f32.partialorder %v1938, 0.0
        %vm1945 = vcmp.gt.f32.partialorder %v1939, 0.0
        %v1946 = vmul.f32 %v1934, 0.01
        %v1947 = vmul.f32 %v1935, 0.01
        %v1948 = vmul.f32 %v1936, 0.01
        %v1949 = vmul.f32 %v1937, 0.01
        %v1950 = vmul.f32 %v1938, 0.01
        %v1951 = vmul.f32 %v1939, 0.01
        %v1952 = vsel %vm1940, %v1934, %v1946
        %v1953 = vsel %vm1941, %v1935, %v1947
        %v1954 = vsel %vm1942, %v1936, %v1948
        %v1955 = vsel %vm1943, %v1937, %v1949
        %v1956 = vsel %vm1944, %v1938, %v1950
        %v1957 = vsel %vm1945, %v1939, %v1951
        %v1958 = vld [vmem:[%s4] sm:$0xff]
        %v1959 = vld [vmem:[%s4 + $0x8] sm:$0xff]
        %v1960 = vld [vmem:[%s4 + $0x10] sm:$0xff]
        %v1961 = vld [vmem:[%s4 + $0x18] sm:$0xff]
        %v1962 = vld [vmem:[%s4 + $0x20] sm:$0xff]
        %v1963 = vld [vmem:[%s4 + $0x28] sm:$0xff]
        %v1964 = vld [vmem:[%s4 + $0x30] sm:$0xff]
        %v1965 = vld [vmem:[%s4 + $0x38] sm:$0xff]
        %v1966 = vld [vmem:[%s4 + $0x40] sm:$0xff]
        %v1967 = vld [vmem:[%s4 + $0x48] sm:$0xff]
        %v1968 = vld [vmem:[%s4 + $0x50] sm:$0xff]
        %v1969 = vld [vmem:[%s4 + $0x58] sm:$0xff]
        %v1970 = vld [vmem:[%s4 + $0x60] sm:$0xff]
        %v1971 = vld [vmem:[%s4 + $0x68] sm:$0xff]
        %v1972 = vld [vmem:[%s4 + $0x70] sm:$0xff]
        %v1973 = vld [vmem:[%s4 + $0x78] sm:$0xff]
        %v1974 = vld [vmem:[%s4 + $0x80] sm:$0xff]
        %v1975 = vld [vmem:[%s4 + $0x88] sm:$0xff]
        %v1976 = vld [vmem:[%s4 + $0x90] sm:$0xff]
        %v1977 = vld [vmem:[%s4 + $0x98] sm:$0xff]
        %v1978 = vld [vmem:[%s4 + $0xa0] sm:$0xff]
        %v1979 = vld [vmem:[%s4 + $0xa8] sm:$0xff]
        %v1980 = vld [vmem:[%s4 + $0xb0] sm:$0xff]
        %v1981 = vld [vmem:[%s4 + $0xb8] sm:$0xff]
        %v1982 = vld [vmem:[%s4 + $0xc0] sm:$0xff]
        %v1983 = vld [vmem:[%s4 + $0xc8] sm:$0xff]
        %v1984 = vld [vmem:[%s4 + $0xd0] sm:$0xff]
        %v1985 = vld [vmem:[%s4 + $0xd8] sm:$0xff]
        %v1986 = vld [vmem:[%s4 + $0xe0] sm:$0xff]
        %v1987 = vld [vmem:[%s4 + $0xe8] sm:$0xff]
        %v1988 = vld [vmem:[%s4 + $0xf0] sm:$0xff]
        %v1989 = vld [vmem:[%s4 + $0xf8] sm:$0xff]
        %v1990 = vld [vmem:[%s4 + $0x100] sm:$0xff]
        %v1991 = vld [vmem:[%s4 + $0x108] sm:$0xff]
        %v1992 = vld [vmem:[%s4 + $0x110] sm:$0xff]
        %v1993 = vld [vmem:[%s4 + $0x118] sm:$0xff]
        %v1994 = vld [vmem:[%s4 + $0x120] sm:$0xff]
        %v1995 = vld [vmem:[%s4 + $0x128] sm:$0xff]
        %v1996 = vld [vmem:[%s4 + $0x130] sm:$0xff]
        %v1997 = vld [vmem:[%s4 + $0x138] sm:$0xff]
        %v1998 = vld [vmem:[%s4 + $0x140] sm:$0xff]
        %v1999 = vld [vmem:[%s4 + $0x148] sm:$0xff]
        %v2000 = vld [vmem:[%s4 + $0x150] sm:$0xff]
        %v2001 = vld [vmem:[%s4 + $0x158] sm:$0xff]
        %v2002 = vld [vmem:[%s4 + $0x160] sm:$0xff]
        %v2003 = vld [vmem:[%s4 + $0x168] sm:$0xff]
        %v2004 = vld [vmem:[%s4 + $0x170] sm:$0xff]
        %v2005 = vld [vmem:[%s4 + $0x178] sm:$0xff]
        %v2006 = vld [vmem:[%s4 + $0x180] sm:$0xff]
        %v2007 = vld [vmem:[%s4 + $0x188] sm:$0xff]
        %v2008 = vld [vmem:[%s4 + $0x190] sm:$0xff]
        %v2009 = vld [vmem:[%s4 + $0x198] sm:$0xff]
        %v2010 = vld [vmem:[%s4 + $0x1a0] sm:$0xff]
        %v2011 = vld [vmem:[%s4 + $0x1a8] sm:$0xff]
        %v2012 = vld [vmem:[%s4 + $0x1b0] sm:$0xff]
        %v2013 = vld [vmem:[%s4 + $0x1b8] sm:$0xff]
        %v2014 = vld [vmem:[%s4 + $0x1c0] sm:$0xff]
        %v2015 = vld [vmem:[%s4 + $0x1c8] sm:$0xff]
        %v2016 = vld [vmem:[%s4 + $0x1d0] sm:$0xff]
        %v2017 = vld [vmem:[%s4 + $0x1d8] sm:$0xff]
        %v2018 = vld [vmem:[%s4 + $0x1e0] sm:$0xff]
        %v2019 = vld [vmem:[%s4 + $0x1e8] sm:$0xff]
        %v2020 = vld [vmem:[%s4 + $0x1f0] sm:$0xff]
        %v2021 = vld [vmem:[%s4 + $0x1f8] sm:$0xff]
        %v2022 = vld [vmem:[%s4 + $0x200] sm:$0xff]
        %v2023 = vld [vmem:[%s4 + $0x208] sm:$0xff]
        %v2024 = vld [vmem:[%s4 + $0x210] sm:$0xff]
        %v2025 = vld [vmem:[%s4 + $0x218] sm:$0xff]
        %v2026 = vld [vmem:[%s4 + $0x220] sm:$0xff]
        %v2027 = vld [vmem:[%s4 + $0x228] sm:$0xff]
        %v2028 = vld [vmem:[%s4 + $0x230] sm:$0xff]
        %v2029 = vld [vmem:[%s4 + $0x238] sm:$0xff]
        %v2030 = vld [vmem:[%s4 + $0x240] sm:$0xff]
        %v2031 = vld [vmem:[%s4 + $0x248] sm:$0xff]
        %v2032 = vld [vmem:[%s4 + $0x250] sm:$0xff]
        %v2033 = vld [vmem:[%s4 + $0x258] sm:$0xff]
        %v2034 = vld [vmem:[%s4 + $0x260] sm:$0xff]
        %v2035 = vld [vmem:[%s4 + $0x268] sm:$0xff]
        %v2036 = vld [vmem:[%s4 + $0x270] sm:$0xff]
        %v2037 = vld [vmem:[%s4 + $0x278] sm:$0xff]
        %v2038 = vld [vmem:[%s4 + $0x280] sm:$0xff]
        %v2039 = vld [vmem:[%s4 + $0x288] sm:$0xff]
        %v2040 = vld [vmem:[%s4 + $0x290] sm:$0xff]
        %v2041 = vld [vmem:[%s4 + $0x298] sm:$0xff]
        %v2042 = vld [vmem:[%s4 + $0x2a0] sm:$0xff]
        %v2043 = vld [vmem:[%s4 + $0x2a8] sm:$0xff]
        %v2044 = vld [vmem:[%s4 + $0x2b0] sm:$0xff]
        %v2045 = vld [vmem:[%s4 + $0x2b8] sm:$0xff]
        %v2046 = vld [vmem:[%s4 + $0x2c0] sm:$0xff]
        %v2047 = vld [vmem:[%s4 + $0x2c8] sm:$0xff]
        %v2048 = vld [vmem:[%s4 + $0x2d0] sm:$0xff]
        %v2049 = vld [vmem:[%s4 + $0x2d8] sm:$0xff]
        %v2050 = vld [vmem:[%s4 + $0x2e0] sm:$0xff]
        %v2051 = vld [vmem:[%s4 + $0x2e8] sm:$0xff]
        %v2052 = vld [vmem:[%s4 + $0x2f0] sm:$0xff]
        %v2053 = vld [vmem:[%s4 + $0x2f8] sm:$0xff]
        %v2054 = vld [vmem:[%s4 + $0x300] sm:$0xff]
        %v2055 = vld [vmem:[%s4 + $0x308] sm:$0xff]
        %v2056 = vld [vmem:[%s4 + $0x310] sm:$0xff]
        %v2057 = vld [vmem:[%s4 + $0x318] sm:$0xff]
        %v2058 = vld [vmem:[%s4 + $0x320] sm:$0xff]
        %v2059 = vld [vmem:[%s4 + $0x328] sm:$0xff]
        %v2060 = vld [vmem:[%s4 + $0x330] sm:$0xff]
        %v2061 = vld [vmem:[%s4 + $0x338] sm:$0xff]
        %v2062 = vld [vmem:[%s4 + $0x340] sm:$0xff]
        %v2063 = vld [vmem:[%s4 + $0x348] sm:$0xff]
        %v2064 = vld [vmem:[%s4 + $0x350] sm:$0xff]
        %v2065 = vld [vmem:[%s4 + $0x358] sm:$0xff]
        %v2066 = vld [vmem:[%s4 + $0x360] sm:$0xff]
        %v2067 = vld [vmem:[%s4 + $0x368] sm:$0xff]
        %v2068 = vld [vmem:[%s4 + $0x370] sm:$0xff]
        %v2069 = vld [vmem:[%s4 + $0x378] sm:$0xff]
        %v2070 = vld [vmem:[%s4 + $0x380] sm:$0xff]
        %v2071 = vld [vmem:[%s4 + $0x388] sm:$0xff]
        %v2072 = vld [vmem:[%s4 + $0x390] sm:$0xff]
        %v2073 = vld [vmem:[%s4 + $0x398] sm:$0xff]
        %v2074 = vld [vmem:[%s4 + $0x3a0] sm:$0xff]
        %v2075 = vld [vmem:[%s4 + $0x3a8] sm:$0xff]
        %v2076 = vld [vmem:[%s4 + $0x3b0] sm:$0xff]
        %v2077 = vld [vmem:[%s4 + $0x3b8] sm:$0xff]
        %v2078 = vld [vmem:[%s4 + $0x3c0] sm:$0xff]
        %v2079 = vld [vmem:[%s4 + $0x3c8] sm:$0xff]
        %v2080 = vld [vmem:[%s4 + $0x3d0] sm:$0xff]
        %v2081 = vld [vmem:[%s4 + $0x3d8] sm:$0xff]
        %v2082 = vld [vmem:[%s4 + $0x3e0] sm:$0xff]
        %v2083 = vld [vmem:[%s4 + $0x3e8] sm:$0xff]
        %v2084 = vld [vmem:[%s4 + $0x3f0] sm:$0xff]
        %v2085 = vld [vmem:[%s4 + $0x3f8] sm:$0xff]
        %v2086 = vld [vmem:[%s4 + $0x400] sm:$0xff]
        %v2087 = vld [vmem:[%s4 + $0x408] sm:$0xff]
        %v2088 = vld [vmem:[%s4 + $0x410] sm:$0xff]
        %v2089 = vld [vmem:[%s4 + $0x418] sm:$0xff]
        %v2090 = vld [vmem:[%s4 + $0x420] sm:$0xff]
        %v2091 = vld [vmem:[%s4 + $0x428] sm:$0xff]
        %v2092 = vld [vmem:[%s4 + $0x430] sm:$0xff]
        %v2093 = vld [vmem:[%s4 + $0x438] sm:$0xff]
        %v2094 = vld [vmem:[%s4 + $0x440] sm:$0xff]
        %v2095 = vld [vmem:[%s4 + $0x448] sm:$0xff]
        %v2096 = vld [vmem:[%s4 + $0x450] sm:$0xff]
        %v2097 = vld [vmem:[%s4 + $0x458] sm:$0xff]
        %v2098 = vld [vmem:[%s4 + $0x460] sm:$0xff]
        %v2099 = vld [vmem:[%s4 + $0x468] sm:$0xff]
        %v2100 = vld [vmem:[%s4 + $0x470] sm:$0xff]
        %v2101 = vld [vmem:[%s4 + $0x478] sm:$0xff]
        %v2102 = vld [vmem:[%s4 + $0x480] sm:$0xff]
        %v2103 = vld [vmem:[%s4 + $0x488] sm:$0xff]
        %v2104 = vld [vmem:[%s4 + $0x490] sm:$0xff]
        %v2105 = vld [vmem:[%s4 + $0x498] sm:$0xff]
        %v2106 = vld [vmem:[%s4 + $0x4a0] sm:$0xff]
        %v2107 = vld [vmem:[%s4 + $0x4a8] sm:$0xff]
        %v2108 = vld [vmem:[%s4 + $0x4b0] sm:$0xff]
        %v2109 = vld [vmem:[%s4 + $0x4b8] sm:$0xff]
        %v2110 = vld [vmem:[%s4 + $0x4c0] sm:$0xff]
        %v2111 = vld [vmem:[%s4 + $0x4c8] sm:$0xff]
        %v2112 = vld [vmem:[%s4 + $0x4d0] sm:$0xff]
        %v2113 = vld [vmem:[%s4 + $0x4d8] sm:$0xff]
        %v2114 = vld [vmem:[%s4 + $0x4e0] sm:$0xff]
        %v2115 = vld [vmem:[%s4 + $0x4e8] sm:$0xff]
        %v2116 = vld [vmem:[%s4 + $0x4f0] sm:$0xff]
        %v2117 = vld [vmem:[%s4 + $0x4f8] sm:$0xff]
        %s2118 = scalar_lea.vmem %s4, 1280
        %v2119 = vld [vmem:[%s2118] sm:$0xff]
        %v2120 = vld [vmem:[%s2118 + $0x8] sm:$0xff]
        %v2121 = vld [vmem:[%s2118 + $0x10] sm:$0xff]
        %v2122 = vld [vmem:[%s2118 + $0x18] sm:$0xff]
        %v2123 = vld [vmem:[%s2118 + $0x20] sm:$0xff]
        %v2124 = vld [vmem:[%s2118 + $0x28] sm:$0xff]
        %v2125 = vld [vmem:[%s2118 + $0x30] sm:$0xff]
        %v2126 = vld [vmem:[%s2118 + $0x38] sm:$0xff]
        %v2127 = vld [vmem:[%s2118 + $0x40] sm:$0xff]
        %v2128 = vld [vmem:[%s2118 + $0x48] sm:$0xff]
        %v2129 = vld [vmem:[%s2118 + $0x50] sm:$0xff]
        %v2130 = vld [vmem:[%s2118 + $0x58] sm:$0xff]
        %v2131 = vld [vmem:[%s2118 + $0x60] sm:$0xff]
        %v2132 = vld [vmem:[%s2118 + $0x68] sm:$0xff]
        %v2133 = vld [vmem:[%s2118 + $0x70] sm:$0xff]
        %v2134 = vld [vmem:[%s2118 + $0x78] sm:$0xff]
        %v2135 = vld [vmem:[%s2118 + $0x80] sm:$0xff]
        %v2136 = vld [vmem:[%s2118 + $0x88] sm:$0xff]
        %v2137 = vld [vmem:[%s2118 + $0x90] sm:$0xff]
        %v2138 = vld [vmem:[%s2118 + $0x98] sm:$0xff]
        %v2139 = vld [vmem:[%s2118 + $0xa0] sm:$0xff]
        %v2140 = vld [vmem:[%s2118 + $0xa8] sm:$0xff]
        %v2141 = vld [vmem:[%s2118 + $0xb0] sm:$0xff]
        %v2142 = vld [vmem:[%s2118 + $0xb8] sm:$0xff]
        %v2143 = vld [vmem:[%s2118 + $0xc0] sm:$0xff]
        %v2144 = vld [vmem:[%s2118 + $0xc8] sm:$0xff]
        %v2145 = vld [vmem:[%s2118 + $0xd0] sm:$0xff]
        %v2146 = vld [vmem:[%s2118 + $0xd8] sm:$0xff]
        %v2147 = vld [vmem:[%s2118 + $0xe0] sm:$0xff]
        %v2148 = vld [vmem:[%s2118 + $0xe8] sm:$0xff]
        %v2149 = vld [vmem:[%s2118 + $0xf0] sm:$0xff]
        %v2150 = vld [vmem:[%s2118 + $0xf8] sm:$0xff]
        %v2151 = vld [vmem:[%s2118 + $0x100] sm:$0xff]
        %v2152 = vld [vmem:[%s2118 + $0x108] sm:$0xff]
        %v2153 = vld [vmem:[%s2118 + $0x110] sm:$0xff]
        %v2154 = vld [vmem:[%s2118 + $0x118] sm:$0xff]
        %v2155 = vld [vmem:[%s2118 + $0x120] sm:$0xff]
        %v2156 = vld [vmem:[%s2118 + $0x128] sm:$0xff]
        %v2157 = vld [vmem:[%s2118 + $0x130] sm:$0xff]
        %v2158 = vld [vmem:[%s2118 + $0x138] sm:$0xff]
        %v2159 = vld [vmem:[%s2118 + $0x140] sm:$0xff]
        %v2160 = vld [vmem:[%s2118 + $0x148] sm:$0xff]
        %v2161 = vld [vmem:[%s2118 + $0x150] sm:$0xff]
        %v2162 = vld [vmem:[%s2118 + $0x158] sm:$0xff]
        %v2163 = vld [vmem:[%s2118 + $0x160] sm:$0xff]
        %v2164 = vld [vmem:[%s2118 + $0x168] sm:$0xff]
        %v2165 = vld [vmem:[%s2118 + $0x170] sm:$0xff]
        %v2166 = vld [vmem:[%s2118 + $0x178] sm:$0xff]
        %v2167 = vld [vmem:[%s2118 + $0x180] sm:$0xff]
        %v2168 = vld [vmem:[%s2118 + $0x188] sm:$0xff]
        %v2169 = vld [vmem:[%s2118 + $0x190] sm:$0xff]
        %v2170 = vld [vmem:[%s2118 + $0x198] sm:$0xff]
        %v2171 = vld [vmem:[%s2118 + $0x1a0] sm:$0xff]
        %v2172 = vld [vmem:[%s2118 + $0x1a8] sm:$0xff]
        %v2173 = vld [vmem:[%s2118 + $0x1b0] sm:$0xff]
        %v2174 = vld [vmem:[%s2118 + $0x1b8] sm:$0xff]
        %v2175 = vld [vmem:[%s2118 + $0x1c0] sm:$0xff]
        %v2176 = vld [vmem:[%s2118 + $0x1c8] sm:$0xff]
        %v2177 = vld [vmem:[%s2118 + $0x1d0] sm:$0xff]
        %v2178 = vld [vmem:[%s2118 + $0x1d8] sm:$0xff]
        %v2179 = vld [vmem:[%s2118 + $0x1e0] sm:$0xff]
        %v2180 = vld [vmem:[%s2118 + $0x1e8] sm:$0xff]
        %v2181 = vld [vmem:[%s2118 + $0x1f0] sm:$0xff]
        %v2182 = vld [vmem:[%s2118 + $0x1f8] sm:$0xff]
        %v2183 = vld [vmem:[%s2118 + $0x200] sm:$0xff]
        %v2184 = vld [vmem:[%s2118 + $0x208] sm:$0xff]
        %v2185 = vld [vmem:[%s2118 + $0x210] sm:$0xff]
        %v2186 = vld [vmem:[%s2118 + $0x218] sm:$0xff]
        %v2187 = vld [vmem:[%s2118 + $0x220] sm:$0xff]
        %v2188 = vld [vmem:[%s2118 + $0x228] sm:$0xff]
        %v2189 = vld [vmem:[%s2118 + $0x230] sm:$0xff]
        %v2190 = vld [vmem:[%s2118 + $0x238] sm:$0xff]
        %v2191 = vld [vmem:[%s2118 + $0x240] sm:$0xff]
        %v2192 = vld [vmem:[%s2118 + $0x248] sm:$0xff]
        %v2193 = vld [vmem:[%s2118 + $0x250] sm:$0xff]
        %v2194 = vld [vmem:[%s2118 + $0x258] sm:$0xff]
        %v2195 = vld [vmem:[%s2118 + $0x260] sm:$0xff]
        %v2196 = vld [vmem:[%s2118 + $0x268] sm:$0xff]
        %v2197 = vld [vmem:[%s2118 + $0x270] sm:$0xff]
        %v2198 = vld [vmem:[%s2118 + $0x278] sm:$0xff]
        %v2199 = vld [vmem:[%s2118 + $0x280] sm:$0xff]
        %v2200 = vld [vmem:[%s2118 + $0x288] sm:$0xff]
        %v2201 = vld [vmem:[%s2118 + $0x290] sm:$0xff]
        %v2202 = vld [vmem:[%s2118 + $0x298] sm:$0xff]
        %v2203 = vld [vmem:[%s2118 + $0x2a0] sm:$0xff]
        %v2204 = vld [vmem:[%s2118 + $0x2a8] sm:$0xff]
        %v2205 = vld [vmem:[%s2118 + $0x2b0] sm:$0xff]
        %v2206 = vld [vmem:[%s2118 + $0x2b8] sm:$0xff]
        %v2207 = vld [vmem:[%s2118 + $0x2c0] sm:$0xff]
        %v2208 = vld [vmem:[%s2118 + $0x2c8] sm:$0xff]
        %v2209 = vld [vmem:[%s2118 + $0x2d0] sm:$0xff]
        %v2210 = vld [vmem:[%s2118 + $0x2d8] sm:$0xff]
        %v2211 = vld [vmem:[%s2118 + $0x2e0] sm:$0xff]
        %v2212 = vld [vmem:[%s2118 + $0x2e8] sm:$0xff]
        %v2213 = vld [vmem:[%s2118 + $0x2f0] sm:$0xff]
        %v2214 = vld [vmem:[%s2118 + $0x2f8] sm:$0xff]
        %v2215 = vld [vmem:[%s2118 + $0x300] sm:$0xff]
        %v2216 = vld [vmem:[%s2118 + $0x308] sm:$0xff]
        %v2217 = vld [vmem:[%s2118 + $0x310] sm:$0xff]
        %v2218 = vld [vmem:[%s2118 + $0x318] sm:$0xff]
        %v2219 = vld [vmem:[%s2118 + $0x320] sm:$0xff]
        %v2220 = vld [vmem:[%s2118 + $0x328] sm:$0xff]
        %v2221 = vld [vmem:[%s2118 + $0x330] sm:$0xff]
        %v2222 = vld [vmem:[%s2118 + $0x338] sm:$0xff]
        %v2223 = vld [vmem:[%s2118 + $0x340] sm:$0xff]
        %v2224 = vld [vmem:[%s2118 + $0x348] sm:$0xff]
        %v2225 = vld [vmem:[%s2118 + $0x350] sm:$0xff]
        %v2226 = vld [vmem:[%s2118 + $0x358] sm:$0xff]
        %v2227 = vld [vmem:[%s2118 + $0x360] sm:$0xff]
        %v2228 = vld [vmem:[%s2118 + $0x368] sm:$0xff]
        %v2229 = vld [vmem:[%s2118 + $0x370] sm:$0xff]
        %v2230 = vld [vmem:[%s2118 + $0x378] sm:$0xff]
        %v2231 = vld [vmem:[%s2118 + $0x380] sm:$0xff]
        %v2232 = vld [vmem:[%s2118 + $0x388] sm:$0xff]
        %v2233 = vld [vmem:[%s2118 + $0x390] sm:$0xff]
        %v2234 = vld [vmem:[%s2118 + $0x398] sm:$0xff]
        %v2235 = vld [vmem:[%s2118 + $0x3a0] sm:$0xff]
        %v2236 = vld [vmem:[%s2118 + $0x3a8] sm:$0xff]
        %v2237 = vld [vmem:[%s2118 + $0x3b0] sm:$0xff]
        %v2238 = vld [vmem:[%s2118 + $0x3b8] sm:$0xff]
        %v2239 = vld [vmem:[%s2118 + $0x3c0] sm:$0xff]
        %v2240 = vld [vmem:[%s2118 + $0x3c8] sm:$0xff]
        %v2241 = vld [vmem:[%s2118 + $0x3d0] sm:$0xff]
        %v2242 = vld [vmem:[%s2118 + $0x3d8] sm:$0xff]
        %v2243 = vld [vmem:[%s2118 + $0x3e0] sm:$0xff]
        %v2244 = vld [vmem:[%s2118 + $0x3e8] sm:$0xff]
        %v2245 = vld [vmem:[%s2118 + $0x3f0] sm:$0xff]
        %v2246 = vld [vmem:[%s2118 + $0x3f8] sm:$0xff]
        %v2247 = vld [vmem:[%s2118 + $0x400] sm:$0xff]
        %v2248 = vld [vmem:[%s2118 + $0x408] sm:$0xff]
        %v2249 = vld [vmem:[%s2118 + $0x410] sm:$0xff]
        %v2250 = vld [vmem:[%s2118 + $0x418] sm:$0xff]
        %v2251 = vld [vmem:[%s2118 + $0x420] sm:$0xff]
        %v2252 = vld [vmem:[%s2118 + $0x428] sm:$0xff]
        %v2253 = vld [vmem:[%s2118 + $0x430] sm:$0xff]
        %v2254 = vld [vmem:[%s2118 + $0x438] sm:$0xff]
        %v2255 = vld [vmem:[%s2118 + $0x440] sm:$0xff]
        %v2256 = vld [vmem:[%s2118 + $0x448] sm:$0xff]
        %v2257 = vld [vmem:[%s2118 + $0x450] sm:$0xff]
        %v2258 = vld [vmem:[%s2118 + $0x458] sm:$0xff]
        %v2259 = vld [vmem:[%s2118 + $0x460] sm:$0xff]
        %v2260 = vld [vmem:[%s2118 + $0x468] sm:$0xff]
        %v2261 = vld [vmem:[%s2118 + $0x470] sm:$0xff]
        %v2262 = vld [vmem:[%s2118 + $0x478] sm:$0xff]
        %v2263 = vld [vmem:[%s2118 + $0x480] sm:$0xff]
        %v2264 = vld [vmem:[%s2118 + $0x488] sm:$0xff]
        %v2265 = vld [vmem:[%s2118 + $0x490] sm:$0xff]
        %v2266 = vld [vmem:[%s2118 + $0x498] sm:$0xff]
        %v2267 = vld [vmem:[%s2118 + $0x4a0] sm:$0xff]
        %v2268 = vld [vmem:[%s2118 + $0x4a8] sm:$0xff]
        %v2269 = vld [vmem:[%s2118 + $0x4b0] sm:$0xff]
        %v2270 = vld [vmem:[%s2118 + $0x4b8] sm:$0xff]
        %v2271 = vld [vmem:[%s2118 + $0x4c0] sm:$0xff]
        %v2272 = vld [vmem:[%s2118 + $0x4c8] sm:$0xff]
        %v2273 = vld [vmem:[%s2118 + $0x4d0] sm:$0xff]
        %v2274 = vld [vmem:[%s2118 + $0x4d8] sm:$0xff]
        %v2275 = vld [vmem:[%s2118 + $0x4e0] sm:$0xff]
        %v2276 = vld [vmem:[%s2118 + $0x4e8] sm:$0xff]
        %v2277 = vld [vmem:[%s2118 + $0x4f0] sm:$0xff]
        %v2278 = vld [vmem:[%s2118 + $0x4f8] sm:$0xff]
        %v2285 = vrot.slane %v1952, 1
        %v2286 = vrot.slane %v1955, 1
        %v2287 = vsel %vm568, %v2285, %v2286
        %v2288 = vrot.slane %v1953, 1
        %v2289 = vrot.slane %v1956, 1
        %v2290 = vsel %vm568, %v2288, %v2289
        %v2291 = vrot.slane %v1954, 1
        %v2292 = vrot.slane %v1957, 1
        %v2293 = vsel %vm568, %v2291, %v2292
        %v2296 = vsel %vm1361, %v2293, 0
        %2298 = vmatprep.subr.mxu0 %v2180
        %2299 = vmatpush1.msra.mxu0 %v2179
        %2300 = vmatprep.subr.mxu0 %v2176
        %2301 = vmatpush1.msra.mxu0 %v2175
        %2302 = vmatprep.subr.mxu0 %v2172
        %2303 = vmatpush1.msra.mxu0 %v2171
        %2304 = vmatprep.subr.mxu0 %v2168
        %2305 = vmatpush1.msra.mxu0 %v2167
        %2306 = vmatprep.subr.mxu0 %v2164
        %2307 = vmatpush1.msra.mxu0 %v2163
        %2308 = vmatprep.subr.mxu0 %v2160
        %2309 = vmatpush1.msra.mxu0 %v2159
        %2310 = vmatprep.subr.mxu0 %v2156
        %2311 = vmatpush1.msra.mxu0 %v2155
        %2312 = vmatprep.subr.mxu0 %v2152
        %2313 = vmatpush1.msra.mxu0 %v2151
        %2314 = vmatprep.subr.mxu0 %v2148
        %2315 = vmatpush1.msra.mxu0 %v2147
        %2316 = vmatprep.subr.mxu0 %v2144
        %2317 = vmatpush1.msra.mxu0 %v2143
        %2318 = vmatprep.subr.mxu0 %v2140
        %2319 = vmatpush1.msra.mxu0 %v2139
        %2320 = vmatprep.subr.mxu0 %v2136
        %2321 = vmatpush1.msra.mxu0 %v2135
        %2322 = vmatprep.subr.mxu0 %v2132
        %2323 = vmatpush1.msra.mxu0 %v2131
        %2324 = vmatprep.subr.mxu0 %v2128
        %2325 = vmatpush1.msra.mxu0 %v2127
        %2326 = vmatprep.subr.mxu0 %v2124
        %2327 = vmatpush1.msra.mxu0 %v2123
        %2328 = vmatprep.subr.mxu0 %v2120
        %2329 = vmatpush1.msra.mxu0 %v2119
        %2330 = vmatprep.subr.mxu0 %v2244
        %2331 = vmatpush2.msra.mxu0 %v2243
        %2332 = vmatprep.subr.mxu0 %v2240
        %2333 = vmatpush2.msra.mxu0 %v2239
        %2334 = vmatprep.subr.mxu0 %v2236
        %2335 = vmatpush2.msra.mxu0 %v2235
        %2336 = vmatprep.subr.mxu0 %v2232
        %2337 = vmatpush2.msra.mxu0 %v2231
        %2338 = vmatprep.subr.mxu0 %v2228
        %2339 = vmatpush2.msra.mxu0 %v2227
        %2340 = vmatprep.subr.mxu0 %v2224
        %2341 = vmatpush2.msra.mxu0 %v2223
        %2342 = vmatprep.subr.mxu0 %v2220
        %2343 = vmatpush2.msra.mxu0 %v2219
        %2344 = vmatprep.subr.mxu0 %v2216
        %2345 = vmatpush2.msra.mxu0 %v2215
        %2346 = vmatprep.subr.mxu0 %v2212
        %2347 = vmatpush2.msra.mxu0 %v2211
        %2348 = vmatprep.subr.mxu0 %v2208
        %2349 = vmatpush2.msra.mxu0 %v2207
        %2350 = vmatprep.subr.mxu0 %v2204
        %2351 = vmatpush2.msra.mxu0 %v2203
        %2352 = vmatprep.subr.mxu0 %v2200
        %2353 = vmatpush2.msra.mxu0 %v2199
        %2354 = vmatprep.subr.mxu0 %v2196
        %2355 = vmatpush2.msra.mxu0 %v2195
        %2356 = vmatprep.subr.mxu0 %v2192
        %2357 = vmatpush2.msra.mxu0 %v2191
        %2358 = vmatprep.subr.mxu0 %v2188
        %2359 = vmatpush2.msra.mxu0 %v2187
        %2360 = vmatprep.subr.mxu0 %v2184
        %2361 = vmatpush2.msra.mxu0 %v2183
        %2362 = vmatprep.mubr.f32.mxu0 %v2290
        %2363 = vmatmul.mubr.f32.gmra.mxu0 %v2287
        %v2364 = vpop.f32.mrf.mxu0
        %v2365 = vadd.f32 0.0, %v2364
        %v2366 = vpop.f32.mrf.mxu0
        %v2367 = vadd.f32 0.0, %v2366
        %2368 = vdwg.mxu0
        %2369 = vmatprep.subr.mxu0 0.0
        %2370 = vmatpush1.msra.mxu0 0.0
        %2371 = vmatprep.subr.mxu0 0.0
        %2372 = vmatpush1.msra.mxu0 0.0
        %2373 = vmatprep.subr.mxu0 0.0
        %2374 = vmatpush1.msra.mxu0 0.0
        %2375 = vmatprep.subr.mxu0 0.0
        %2376 = vmatpush1.msra.mxu0 0.0
        %2377 = vmatprep.subr.mxu0 0.0
        %2378 = vmatpush1.msra.mxu0 0.0
        %2379 = vmatprep.subr.mxu0 0.0
        %2380 = vmatpush1.msra.mxu0 0.0
        %2381 = vmatprep.subr.mxu0 0.0
        %2382 = vmatpush1.msra.mxu0 0.0
        %2383 = vmatprep.subr.mxu0 0.0
        %2384 = vmatpush1.msra.mxu0 0.0
        %2385 = vmatprep.subr.mxu0 %v2276
        %2386 = vmatpush1.msra.mxu0 %v2275
        %2387 = vmatprep.subr.mxu0 %v2272
        %2388 = vmatpush1.msra.mxu0 %v2271
        %2389 = vmatprep.subr.mxu0 %v2268
        %2390 = vmatpush1.msra.mxu0 %v2267
        %2391 = vmatprep.subr.mxu0 %v2264
        %2392 = vmatpush1.msra.mxu0 %v2263
        %2393 = vmatprep.subr.mxu0 %v2260
        %2394 = vmatpush1.msra.mxu0 %v2259
        %2395 = vmatprep.subr.mxu0 %v2256
        %2396 = vmatpush1.msra.mxu0 %v2255
        %2397 = vmatprep.subr.mxu0 %v2252
        %2398 = vmatpush1.msra.mxu0 %v2251
        %2399 = vmatprep.subr.mxu0 %v2248
        %2400 = vmatpush1.msra.mxu0 %v2247
        %2401 = vmatprep.subr.mxu0 0.0
        %2402 = vmatpush2.msra.mxu0 0.0
        %2403 = vmatprep.subr.mxu0 0.0
        %2404 = vmatpush2.msra.mxu0 0.0
        %2405 = vmatprep.subr.mxu0 0.0
        %2406 = vmatpush2.msra.mxu0 0.0
        %2407 = vmatprep.subr.mxu0 0.0
        %2408 = vmatpush2.msra.mxu0 0.0
        %2409 = vmatprep.subr.mxu0 0.0
        %2410 = vmatpush2.msra.mxu0 0.0
        %2411 = vmatprep.subr.mxu0 0.0
        %2412 = vmatpush2.msra.mxu0 0.0
        %2413 = vmatprep.subr.mxu0 0.0
        %2414 = vmatpush2.msra.mxu0 0.0
        %2415 = vmatprep.subr.mxu0 0.0
        %2416 = vmatpush2.msra.mxu0 0.0
        %2417 = vmatprep.subr.mxu0 0.0
        %2418 = vmatpush2.msra.mxu0 0.0
        %2419 = vmatprep.subr.mxu0 0.0
        %2420 = vmatpush2.msra.mxu0 0.0
        %2421 = vmatprep.subr.mxu0 0.0
        %2422 = vmatpush2.msra.mxu0 0.0
        %2423 = vmatprep.subr.mxu0 0.0
        %2424 = vmatpush2.msra.mxu0 0.0
        %2425 = vmatprep.subr.mxu0 0.0
        %2426 = vmatpush2.msra.mxu0 0.0
        %2427 = vmatprep.subr.mxu0 0.0
        %2428 = vmatpush2.msra.mxu0 0.0
        %2429 = vmatprep.subr.mxu0 0.0
        %2430 = vmatpush2.msra.mxu0 0.0
        %2431 = vmatprep.subr.mxu0 0.0
        %2432 = vmatpush2.msra.mxu0 0.0
        %2433 = vmatprep.mubr.f32.mxu0 0.0
        %2434 = vmatmul.mubr.f32.gmra.mxu0 %v2296
        %v2435 = vpop.f32.mrf.mxu0
        %v2436 = vadd.f32 %v2365, %v2435
        %v2437 = vpop.f32.mrf.mxu0
        %v2438 = vadd.f32 %v2367, %v2437
        %2439 = vdwg.mxu0
        %2440 = vmatprep.subr.mxu0 %v2182
        %2441 = vmatpush1.msra.mxu0 %v2181
        %2442 = vmatprep.subr.mxu0 %v2178
        %2443 = vmatpush1.msra.mxu0 %v2177
        %2444 = vmatprep.subr.mxu0 %v2174
        %2445 = vmatpush1.msra.mxu0 %v2173
        %2446 = vmatprep.subr.mxu0 %v2170
        %2447 = vmatpush1.msra.mxu0 %v2169
        %2448 = vmatprep.subr.mxu0 %v2166
        %2449 = vmatpush1.msra.mxu0 %v2165
        %2450 = vmatprep.subr.mxu0 %v2162
        %2451 = vmatpush1.msra.mxu0 %v2161
        %2452 = vmatprep.subr.mxu0 %v2158
        %2453 = vmatpush1.msra.mxu0 %v2157
        %2454 = vmatprep.subr.mxu0 %v2154
        %2455 = vmatpush1.msra.mxu0 %v2153
        %2456 = vmatprep.subr.mxu0 %v2150
        %2457 = vmatpush1.msra.mxu0 %v2149
        %2458 = vmatprep.subr.mxu0 %v2146
        %2459 = vmatpush1.msra.mxu0 %v2145
        %2460 = vmatprep.subr.mxu0 %v2142
        %2461 = vmatpush1.msra.mxu0 %v2141
        %2462 = vmatprep.subr.mxu0 %v2138
        %2463 = vmatpush1.msra.mxu0 %v2137
        %2464 = vmatprep.subr.mxu0 %v2134
        %2465 = vmatpush1.msra.mxu0 %v2133
        %2466 = vmatprep.subr.mxu0 %v2130
        %2467 = vmatpush1.msra.mxu0 %v2129
        %2468 = vmatprep.subr.mxu0 %v2126
        %2469 = vmatpush1.msra.mxu0 %v2125
        %2470 = vmatprep.subr.mxu0 %v2122
        %2471 = vmatpush1.msra.mxu0 %v2121
        %2472 = vmatprep.subr.mxu0 %v2246
        %2473 = vmatpush2.msra.mxu0 %v2245
        %2474 = vmatprep.subr.mxu0 %v2242
        %2475 = vmatpush2.msra.mxu0 %v2241
        %2476 = vmatprep.subr.mxu0 %v2238
        %2477 = vmatpush2.msra.mxu0 %v2237
        %2478 = vmatprep.subr.mxu0 %v2234
        %2479 = vmatpush2.msra.mxu0 %v2233
        %2480 = vmatprep.subr.mxu0 %v2230
        %2481 = vmatpush2.msra.mxu0 %v2229
        %2482 = vmatprep.subr.mxu0 %v2226
        %2483 = vmatpush2.msra.mxu0 %v2225
        %2484 = vmatprep.subr.mxu0 %v2222
        %2485 = vmatpush2.msra.mxu0 %v2221
        %2486 = vmatprep.subr.mxu0 %v2218
        %2487 = vmatpush2.msra.mxu0 %v2217
        %2488 = vmatprep.subr.mxu0 %v2214
        %2489 = vmatpush2.msra.mxu0 %v2213
        %2490 = vmatprep.subr.mxu0 %v2210
        %2491 = vmatpush2.msra.mxu0 %v2209
        %2492 = vmatprep.subr.mxu0 %v2206
        %2493 = vmatpush2.msra.mxu0 %v2205
        %2494 = vmatprep.subr.mxu0 %v2202
        %2495 = vmatpush2.msra.mxu0 %v2201
        %2496 = vmatprep.subr.mxu0 %v2198
        %2497 = vmatpush2.msra.mxu0 %v2197
        %2498 = vmatprep.subr.mxu0 %v2194
        %2499 = vmatpush2.msra.mxu0 %v2193
        %2500 = vmatprep.subr.mxu0 %v2190
        %2501 = vmatpush2.msra.mxu0 %v2189
        %2502 = vmatprep.subr.mxu0 %v2186
        %2503 = vmatpush2.msra.mxu0 %v2185
        %2504 = vmatprep.mubr.f32.mxu0 %v2290
        %2505 = vmatmul.mubr.f32.gmra.mxu0 %v2287
        %v2506 = vpop.f32.mrf.mxu0
        %v2507 = vadd.f32 0.0, %v2506
        %v2508 = vpop.f32.mrf.mxu0
        %v2509 = vadd.f32 0.0, %v2508
        %2510 = vdwg.mxu0
        %2511 = vmatprep.subr.mxu0 0.0
        %2512 = vmatpush1.msra.mxu0 0.0
        %2513 = vmatprep.subr.mxu0 0.0
        %2514 = vmatpush1.msra.mxu0 0.0
        %2515 = vmatprep.subr.mxu0 0.0
        %2516 = vmatpush1.msra.mxu0 0.0
        %2517 = vmatprep.subr.mxu0 0.0
        %2518 = vmatpush1.msra.mxu0 0.0
        %2519 = vmatprep.subr.mxu0 0.0
        %2520 = vmatpush1.msra.mxu0 0.0
        %2521 = vmatprep.subr.mxu0 0.0
        %2522 = vmatpush1.msra.mxu0 0.0
        %2523 = vmatprep.subr.mxu0 0.0
        %2524 = vmatpush1.msra.mxu0 0.0
        %2525 = vmatprep.subr.mxu0 0.0
        %2526 = vmatpush1.msra.mxu0 0.0
        %2527 = vmatprep.subr.mxu0 %v2278
        %2528 = vmatpush1.msra.mxu0 %v2277
        %2529 = vmatprep.subr.mxu0 %v2274
        %2530 = vmatpush1.msra.mxu0 %v2273
        %2531 = vmatprep.subr.mxu0 %v2270
        %2532 = vmatpush1.msra.mxu0 %v2269
        %2533 = vmatprep.subr.mxu0 %v2266
        %2534 = vmatpush1.msra.mxu0 %v2265
        %2535 = vmatprep.subr.mxu0 %v2262
        %2536 = vmatpush1.msra.mxu0 %v2261
        %2537 = vmatprep.subr.mxu0 %v2258
        %2538 = vmatpush1.msra.mxu0 %v2257
        %2539 = vmatprep.subr.mxu0 %v2254
        %2540 = vmatpush1.msra.mxu0 %v2253
        %2541 = vmatprep.subr.mxu0 %v2250
        %2542 = vmatpush1.msra.mxu0 %v2249
        %2543 = vmatprep.subr.mxu0 0.0
        %2544 = vmatpush2.msra.mxu0 0.0
        %2545 = vmatprep.subr.mxu0 0.0
        %2546 = vmatpush2.msra.mxu0 0.0
        %2547 = vmatprep.subr.mxu0 0.0
        %2548 = vmatpush2.msra.mxu0 0.0
        %2549 = vmatprep.subr.mxu0 0.0
        %2550 = vmatpush2.msra.mxu0 0.0
        %2551 = vmatprep.subr.mxu0 0.0
        %2552 = vmatpush2.msra.mxu0 0.0
        %2553 = vmatprep.subr.mxu0 0.0
        %2554 = vmatpush2.msra.mxu0 0.0
        %2555 = vmatprep.subr.mxu0 0.0
        %2556 = vmatpush2.msra.mxu0 0.0
        %2557 = vmatprep.subr.mxu0 0.0
        %2558 = vmatpush2.msra.mxu0 0.0
        %2559 = vmatprep.subr.mxu0 0.0
        %2560 = vmatpush2.msra.mxu0 0.0
        %2561 = vmatprep.subr.mxu0 0.0
        %2562 = vmatpush2.msra.mxu0 0.0
        %2563 = vmatprep.subr.mxu0 0.0
        %2564 = vmatpush2.msra.mxu0 0.0
        %2565 = vmatprep.subr.mxu0 0.0
        %2566 = vmatpush2.msra.mxu0 0.0
        %2567 = vmatprep.subr.mxu0 0.0
        %2568 = vmatpush2.msra.mxu0 0.0
        %2569 = vmatprep.subr.mxu0 0.0
        %2570 = vmatpush2.msra.mxu0 0.0
        %2571 = vmatprep.subr.mxu0 0.0
        %2572 = vmatpush2.msra.mxu0 0.0
        %2573 = vmatprep.subr.mxu0 0.0
        %2574 = vmatpush2.msra.mxu0 0.0
        %2575 = vmatprep.mubr.f32.mxu0 0.0
        %2576 = vmatmul.mubr.f32.gmra.mxu0 %v2296
        %v2577 = vpop.f32.mrf.mxu0
        %v2578 = vadd.f32 %v2507, %v2577
        %v2579 = vpop.f32.mrf.mxu0
        %v2580 = vadd.f32 %v2509, %v2579
        %2581 = vdwg.mxu0
        %v2582 = vsel %vm1361, %v1954, 0
        %2584 = vmatprep.subr.mxu0 %v2019
        %2585 = vmatpush1.msra.mxu0 %v2018
        %2586 = vmatprep.subr.mxu0 %v2015
        %2587 = vmatpush1.msra.mxu0 %v2014
        %2588 = vmatprep.subr.mxu0 %v2011
        %2589 = vmatpush1.msra.mxu0 %v2010
        %2590 = vmatprep.subr.mxu0 %v2007
        %2591 = vmatpush1.msra.mxu0 %v2006
        %2592 = vmatprep.subr.mxu0 %v2003
        %2593 = vmatpush1.msra.mxu0 %v2002
        %2594 = vmatprep.subr.mxu0 %v1999
        %2595 = vmatpush1.msra.mxu0 %v1998
        %2596 = vmatprep.subr.mxu0 %v1995
        %2597 = vmatpush1.msra.mxu0 %v1994
        %2598 = vmatprep.subr.mxu0 %v1991
        %2599 = vmatpush1.msra.mxu0 %v1990
        %2600 = vmatprep.subr.mxu0 %v1987
        %2601 = vmatpush1.msra.mxu0 %v1986
        %2602 = vmatprep.subr.mxu0 %v1983
        %2603 = vmatpush1.msra.mxu0 %v1982
        %2604 = vmatprep.subr.mxu0 %v1979
        %2605 = vmatpush1.msra.mxu0 %v1978
        %2606 = vmatprep.subr.mxu0 %v1975
        %2607 = vmatpush1.msra.mxu0 %v1974
        %2608 = vmatprep.subr.mxu0 %v1971
        %2609 = vmatpush1.msra.mxu0 %v1970
        %2610 = vmatprep.subr.mxu0 %v1967
        %2611 = vmatpush1.msra.mxu0 %v1966
        %2612 = vmatprep.subr.mxu0 %v1963
        %2613 = vmatpush1.msra.mxu0 %v1962
        %2614 = vmatprep.subr.mxu0 %v1959
        %2615 = vmatpush1.msra.mxu0 %v1958
        %2616 = vmatprep.subr.mxu0 %v2083
        %2617 = vmatpush2.msra.mxu0 %v2082
        %2618 = vmatprep.subr.mxu0 %v2079
        %2619 = vmatpush2.msra.mxu0 %v2078
        %2620 = vmatprep.subr.mxu0 %v2075
        %2621 = vmatpush2.msra.mxu0 %v2074
        %2622 = vmatprep.subr.mxu0 %v2071
        %2623 = vmatpush2.msra.mxu0 %v2070
        %2624 = vmatprep.subr.mxu0 %v2067
        %2625 = vmatpush2.msra.mxu0 %v2066
        %2626 = vmatprep.subr.mxu0 %v2063
        %2627 = vmatpush2.msra.mxu0 %v2062
        %2628 = vmatprep.subr.mxu0 %v2059
        %2629 = vmatpush2.msra.mxu0 %v2058
        %2630 = vmatprep.subr.mxu0 %v2055
        %2631 = vmatpush2.msra.mxu0 %v2054
        %2632 = vmatprep.subr.mxu0 %v2051
        %2633 = vmatpush2.msra.mxu0 %v2050
        %2634 = vmatprep.subr.mxu0 %v2047
        %2635 = vmatpush2.msra.mxu0 %v2046
        %2636 = vmatprep.subr.mxu0 %v2043
        %2637 = vmatpush2.msra.mxu0 %v2042
        %2638 = vmatprep.subr.mxu0 %v2039
        %2639 = vmatpush2.msra.mxu0 %v2038
        %2640 = vmatprep.subr.mxu0 %v2035
        %2641 = vmatpush2.msra.mxu0 %v2034
        %2642 = vmatprep.subr.mxu0 %v2031
        %2643 = vmatpush2.msra.mxu0 %v2030
        %2644 = vmatprep.subr.mxu0 %v2027
        %2645 = vmatpush2.msra.mxu0 %v2026
        %2646 = vmatprep.subr.mxu0 %v2023
        %2647 = vmatpush2.msra.mxu0 %v2022
        %2648 = vmatprep.mubr.f32.mxu0 %v1953
        %2649 = vmatmul.mubr.f32.gmra.mxu0 %v1952
        %v2650 = vpop.f32.mrf.mxu0
        %v2651 = vadd.f32 %v2436, %v2650
        %v2652 = vpop.f32.mrf.mxu0
        %v2653 = vadd.f32 %v2438, %v2652
        %2654 = vdwg.mxu0
        %2655 = vmatprep.subr.mxu0 0.0
        %2656 = vmatpush1.msra.mxu0 0.0
        %2657 = vmatprep.subr.mxu0 0.0
        %2658 = vmatpush1.msra.mxu0 0.0
        %2659 = vmatprep.subr.mxu0 0.0
        %2660 = vmatpush1.msra.mxu0 0.0
        %2661 = vmatprep.subr.mxu0 0.0
        %2662 = vmatpush1.msra.mxu0 0.0
        %2663 = vmatprep.subr.mxu0 0.0
        %2664 = vmatpush1.msra.mxu0 0.0
        %2665 = vmatprep.subr.mxu0 0.0
        %2666 = vmatpush1.msra.mxu0 0.0
        %2667 = vmatprep.subr.mxu0 0.0
        %2668 = vmatpush1.msra.mxu0 0.0
        %2669 = vmatprep.subr.mxu0 0.0
        %2670 = vmatpush1.msra.mxu0 0.0
        %2671 = vmatprep.subr.mxu0 %v2115
        %2672 = vmatpush1.msra.mxu0 %v2114
        %2673 = vmatprep.subr.mxu0 %v2111
        %2674 = vmatpush1.msra.mxu0 %v2110
        %2675 = vmatprep.subr.mxu0 %v2107
        %2676 = vmatpush1.msra.mxu0 %v2106
        %2677 = vmatprep.subr.mxu0 %v2103
        %2678 = vmatpush1.msra.mxu0 %v2102
        %2679 = vmatprep.subr.mxu0 %v2099
        %2680 = vmatpush1.msra.mxu0 %v2098
        %2681 = vmatprep.subr.mxu0 %v2095
        %2682 = vmatpush1.msra.mxu0 %v2094
        %2683 = vmatprep.subr.mxu0 %v2091
        %2684 = vmatpush1.msra.mxu0 %v2090
        %2685 = vmatprep.subr.mxu0 %v2087
        %2686 = vmatpush1.msra.mxu0 %v2086
        %2687 = vmatprep.subr.mxu0 0.0
        %2688 = vmatpush2.msra.mxu0 0.0
        %2689 = vmatprep.subr.mxu0 0.0
        %2690 = vmatpush2.msra.mxu0 0.0
        %2691 = vmatprep.subr.mxu0 0.0
        %2692 = vmatpush2.msra.mxu0 0.0
        %2693 = vmatprep.subr.mxu0 0.0
        %2694 = vmatpush2.msra.mxu0 0.0
        %2695 = vmatprep.subr.mxu0 0.0
        %2696 = vmatpush2.msra.mxu0 0.0
        %2697 = vmatprep.subr.mxu0 0.0
        %2698 = vmatpush2.msra.mxu0 0.0
        %2699 = vmatprep.subr.mxu0 0.0
        %2700 = vmatpush2.msra.mxu0 0.0
        %2701 = vmatprep.subr.mxu0 0.0
        %2702 = vmatpush2.msra.mxu0 0.0
        %2703 = vmatprep.subr.mxu0 0.0
        %2704 = vmatpush2.msra.mxu0 0.0
        %2705 = vmatprep.subr.mxu0 0.0
        %2706 = vmatpush2.msra.mxu0 0.0
        %2707 = vmatprep.subr.mxu0 0.0
        %2708 = vmatpush2.msra.mxu0 0.0
        %2709 = vmatprep.subr.mxu0 0.0
        %2710 = vmatpush2.msra.mxu0 0.0
        %2711 = vmatprep.subr.mxu0 0.0
        %2712 = vmatpush2.msra.mxu0 0.0
        %2713 = vmatprep.subr.mxu0 0.0
        %2714 = vmatpush2.msra.mxu0 0.0
        %2715 = vmatprep.subr.mxu0 0.0
        %2716 = vmatpush2.msra.mxu0 0.0
        %2717 = vmatprep.subr.mxu0 0.0
        %2718 = vmatpush2.msra.mxu0 0.0
        %2719 = vmatprep.mubr.f32.mxu0 0.0
        %2720 = vmatmul.mubr.f32.gmra.mxu0 %v2582
        %v2721 = vpop.f32.mrf.mxu0
        %v2722 = vadd.f32 %v2651, %v2721
        %v2723 = vpop.f32.mrf.mxu0
        %v2724 = vadd.f32 %v2653, %v2723
        %2725 = vdwg.mxu0
        %2726 = vmatprep.subr.mxu0 %v2021
        %2727 = vmatpush1.msra.mxu0 %v2020
        %2728 = vmatprep.subr.mxu0 %v2017
        %2729 = vmatpush1.msra.mxu0 %v2016
        %2730 = vmatprep.subr.mxu0 %v2013
        %2731 = vmatpush1.msra.mxu0 %v2012
        %2732 = vmatprep.subr.mxu0 %v2009
        %2733 = vmatpush1.msra.mxu0 %v2008
        %2734 = vmatprep.subr.mxu0 %v2005
        %2735 = vmatpush1.msra.mxu0 %v2004
        %2736 = vmatprep.subr.mxu0 %v2001
        %2737 = vmatpush1.msra.mxu0 %v2000
        %2738 = vmatprep.subr.mxu0 %v1997
        %2739 = vmatpush1.msra.mxu0 %v1996
        %2740 = vmatprep.subr.mxu0 %v1993
        %2741 = vmatpush1.msra.mxu0 %v1992
        %2742 = vmatprep.subr.mxu0 %v1989
        %2743 = vmatpush1.msra.mxu0 %v1988
        %2744 = vmatprep.subr.mxu0 %v1985
        %2745 = vmatpush1.msra.mxu0 %v1984
        %2746 = vmatprep.subr.mxu0 %v1981
        %2747 = vmatpush1.msra.mxu0 %v1980
        %2748 = vmatprep.subr.mxu0 %v1977
        %2749 = vmatpush1.msra.mxu0 %v1976
        %2750 = vmatprep.subr.mxu0 %v1973
        %2751 = vmatpush1.msra.mxu0 %v1972
        %2752 = vmatprep.subr.mxu0 %v1969
        %2753 = vmatpush1.msra.mxu0 %v1968
        %2754 = vmatprep.subr.mxu0 %v1965
        %2755 = vmatpush1.msra.mxu0 %v1964
        %2756 = vmatprep.subr.mxu0 %v1961
        %2757 = vmatpush1.msra.mxu0 %v1960
        %2758 = vmatprep.subr.mxu0 %v2085
        %2759 = vmatpush2.msra.mxu0 %v2084
        %2760 = vmatprep.subr.mxu0 %v2081
        %2761 = vmatpush2.msra.mxu0 %v2080
        %2762 = vmatprep.subr.mxu0 %v2077
        %2763 = vmatpush2.msra.mxu0 %v2076
        %2764 = vmatprep.subr.mxu0 %v2073
        %2765 = vmatpush2.msra.mxu0 %v2072
        %2766 = vmatprep.subr.mxu0 %v2069
        %2767 = vmatpush2.msra.mxu0 %v2068
        %2768 = vmatprep.subr.mxu0 %v2065
        %2769 = vmatpush2.msra.mxu0 %v2064
        %2770 = vmatprep.subr.mxu0 %v2061
        %2771 = vmatpush2.msra.mxu0 %v2060
        %2772 = vmatprep.subr.mxu0 %v2057
        %2773 = vmatpush2.msra.mxu0 %v2056
        %2774 = vmatprep.subr.mxu0 %v2053
        %2775 = vmatpush2.msra.mxu0 %v2052
        %2776 = vmatprep.subr.mxu0 %v2049
        %2777 = vmatpush2.msra.mxu0 %v2048
        %2778 = vmatprep.subr.mxu0 %v2045
        %2779 = vmatpush2.msra.mxu0 %v2044
        %2780 = vmatprep.subr.mxu0 %v2041
        %2781 = vmatpush2.msra.mxu0 %v2040
        %2782 = vmatprep.subr.mxu0 %v2037
        %2783 = vmatpush2.msra.mxu0 %v2036
        %2784 = vmatprep.subr.mxu0 %v2033
        %2785 = vmatpush2.msra.mxu0 %v2032
        %2786 = vmatprep.subr.mxu0 %v2029
        %2787 = vmatpush2.msra.mxu0 %v2028
        %2788 = vmatprep.subr.mxu0 %v2025
        %2789 = vmatpush2.msra.mxu0 %v2024
        %2790 = vmatprep.mubr.f32.mxu0 %v1953
        %2791 = vmatmul.mubr.f32.gmra.mxu0 %v1952
        %v2792 = vpop.f32.mrf.mxu0
        %v2793 = vadd.f32 %v2578, %v2792
        %v2794 = vpop.f32.mrf.mxu0
        %v2795 = vadd.f32 %v2580, %v2794
        %2796 = vdwg.mxu0
        %2797 = vmatprep.subr.mxu0 0.0
        %2798 = vmatpush1.msra.mxu0 0.0
        %2799 = vmatprep.subr.mxu0 0.0
        %2800 = vmatpush1.msra.mxu0 0.0
        %2801 = vmatprep.subr.mxu0 0.0
        %2802 = vmatpush1.msra.mxu0 0.0
        %2803 = vmatprep.subr.mxu0 0.0
        %2804 = vmatpush1.msra.mxu0 0.0
        %2805 = vmatprep.subr.mxu0 0.0
        %2806 = vmatpush1.msra.mxu0 0.0
        %2807 = vmatprep.subr.mxu0 0.0
        %2808 = vmatpush1.msra.mxu0 0.0
        %2809 = vmatprep.subr.mxu0 0.0
        %2810 = vmatpush1.msra.mxu0 0.0
        %2811 = vmatprep.subr.mxu0 0.0
        %2812 = vmatpush1.msra.mxu0 0.0
        %2813 = vmatprep.subr.mxu0 %v2117
        %2814 = vmatpush1.msra.mxu0 %v2116
        %2815 = vmatprep.subr.mxu0 %v2113
        %2816 = vmatpush1.msra.mxu0 %v2112
        %2817 = vmatprep.subr.mxu0 %v2109
        %2818 = vmatpush1.msra.mxu0 %v2108
        %2819 = vmatprep.subr.mxu0 %v2105
        %2820 = vmatpush1.msra.mxu0 %v2104
        %2821 = vmatprep.subr.mxu0 %v2101
        %2822 = vmatpush1.msra.mxu0 %v2100
        %2823 = vmatprep.subr.mxu0 %v2097
        %2824 = vmatpush1.msra.mxu0 %v2096
        %2825 = vmatprep.subr.mxu0 %v2093
        %2826 = vmatpush1.msra.mxu0 %v2092
        %2827 = vmatprep.subr.mxu0 %v2089
        %2828 = vmatpush1.msra.mxu0 %v2088
        %2829 = vmatprep.subr.mxu0 0.0
        %2830 = vmatpush2.msra.mxu0 0.0
        %2831 = vmatprep.subr.mxu0 0.0
        %2832 = vmatpush2.msra.mxu0 0.0
        %2833 = vmatprep.subr.mxu0 0.0
        %2834 = vmatpush2.msra.mxu0 0.0
        %2835 = vmatprep.subr.mxu0 0.0
        %2836 = vmatpush2.msra.mxu0 0.0
        %2837 = vmatprep.subr.mxu0 0.0
        %2838 = vmatpush2.msra.mxu0 0.0
        %2839 = vmatprep.subr.mxu0 0.0
        %2840 = vmatpush2.msra.mxu0 0.0
        %2841 = vmatprep.subr.mxu0 0.0
        %2842 = vmatpush2.msra.mxu0 0.0
        %2843 = vmatprep.subr.mxu0 0.0
        %2844 = vmatpush2.msra.mxu0 0.0
        %2845 = vmatprep.subr.mxu0 0.0
        %2846 = vmatpush2.msra.mxu0 0.0
        %2847 = vmatprep.subr.mxu0 0.0
        %2848 = vmatpush2.msra.mxu0 0.0
        %2849 = vmatprep.subr.mxu0 0.0
        %2850 = vmatpush2.msra.mxu0 0.0
        %2851 = vmatprep.subr.mxu0 0.0
        %2852 = vmatpush2.msra.mxu0 0.0
        %2853 = vmatprep.subr.mxu0 0.0
        %2854 = vmatpush2.msra.mxu0 0.0
        %2855 = vmatprep.subr.mxu0 0.0
        %2856 = vmatpush2.msra.mxu0 0.0
        %2857 = vmatprep.subr.mxu0 0.0
        %2858 = vmatpush2.msra.mxu0 0.0
        %2859 = vmatprep.subr.mxu0 0.0
        %2860 = vmatpush2.msra.mxu0 0.0
        %2861 = vmatprep.mubr.f32.mxu0 0.0
        %2862 = vmatmul.mubr.f32.gmra.mxu0 %v2582
        %v2863 = vpop.f32.mrf.mxu0
        %v2864 = vadd.f32 %v2793, %v2863
        %v2865 = vpop.f32.mrf.mxu0
        %v2866 = vadd.f32 %v2795, %v2865
        %2867 = vdwg.mxu0
        %s2868 = scalar_lea.vmem %s4, 2560
        %v2869 = vld [vmem:[%s2868] sm:$0xff]
        %v2870 = vld [vmem:[%s2868 + $0x8] sm:$0xff]
        %v2871 = vld [vmem:[%s2868 + $0x10] sm:$0xff]
        %v2872 = vld [vmem:[%s2868 + $0x18] sm:$0xff]
        %v2873 = vld [vmem:[%s2868 + $0x20] sm:$0xff]
        %v2874 = vld [vmem:[%s2868 + $0x28] sm:$0xff]
        %v2875 = vld [vmem:[%s2868 + $0x30] sm:$0xff]
        %v2876 = vld [vmem:[%s2868 + $0x38] sm:$0xff]
        %v2877 = vld [vmem:[%s2868 + $0x40] sm:$0xff]
        %v2878 = vld [vmem:[%s2868 + $0x48] sm:$0xff]
        %v2879 = vld [vmem:[%s2868 + $0x50] sm:$0xff]
        %v2880 = vld [vmem:[%s2868 + $0x58] sm:$0xff]
        %v2881 = vld [vmem:[%s2868 + $0x60] sm:$0xff]
        %v2882 = vld [vmem:[%s2868 + $0x68] sm:$0xff]
        %v2883 = vld [vmem:[%s2868 + $0x70] sm:$0xff]
        %v2884 = vld [vmem:[%s2868 + $0x78] sm:$0xff]
        %v2885 = vld [vmem:[%s2868 + $0x80] sm:$0xff]
        %v2886 = vld [vmem:[%s2868 + $0x88] sm:$0xff]
        %v2887 = vld [vmem:[%s2868 + $0x90] sm:$0xff]
        %v2888 = vld [vmem:[%s2868 + $0x98] sm:$0xff]
        %v2889 = vld [vmem:[%s2868 + $0xa0] sm:$0xff]
        %v2890 = vld [vmem:[%s2868 + $0xa8] sm:$0xff]
        %v2891 = vld [vmem:[%s2868 + $0xb0] sm:$0xff]
        %v2892 = vld [vmem:[%s2868 + $0xb8] sm:$0xff]
        %v2893 = vld [vmem:[%s2868 + $0xc0] sm:$0xff]
        %v2894 = vld [vmem:[%s2868 + $0xc8] sm:$0xff]
        %v2895 = vld [vmem:[%s2868 + $0xd0] sm:$0xff]
        %v2896 = vld [vmem:[%s2868 + $0xd8] sm:$0xff]
        %v2897 = vld [vmem:[%s2868 + $0xe0] sm:$0xff]
        %v2898 = vld [vmem:[%s2868 + $0xe8] sm:$0xff]
        %v2899 = vld [vmem:[%s2868 + $0xf0] sm:$0xff]
        %v2900 = vld [vmem:[%s2868 + $0xf8] sm:$0xff]
        %v2901 = vld [vmem:[%s2868 + $0x100] sm:$0xff]
        %v2902 = vld [vmem:[%s2868 + $0x108] sm:$0xff]
        %v2903 = vld [vmem:[%s2868 + $0x110] sm:$0xff]
        %v2904 = vld [vmem:[%s2868 + $0x118] sm:$0xff]
        %v2905 = vld [vmem:[%s2868 + $0x120] sm:$0xff]
        %v2906 = vld [vmem:[%s2868 + $0x128] sm:$0xff]
        %v2907 = vld [vmem:[%s2868 + $0x130] sm:$0xff]
        %v2908 = vld [vmem:[%s2868 + $0x138] sm:$0xff]
        %v2909 = vld [vmem:[%s2868 + $0x140] sm:$0xff]
        %v2910 = vld [vmem:[%s2868 + $0x148] sm:$0xff]
        %v2911 = vld [vmem:[%s2868 + $0x150] sm:$0xff]
        %v2912 = vld [vmem:[%s2868 + $0x158] sm:$0xff]
        %v2913 = vld [vmem:[%s2868 + $0x160] sm:$0xff]
        %v2914 = vld [vmem:[%s2868 + $0x168] sm:$0xff]
        %v2915 = vld [vmem:[%s2868 + $0x170] sm:$0xff]
        %v2916 = vld [vmem:[%s2868 + $0x178] sm:$0xff]
        %v2917 = vld [vmem:[%s2868 + $0x180] sm:$0xff]
        %v2918 = vld [vmem:[%s2868 + $0x188] sm:$0xff]
        %v2919 = vld [vmem:[%s2868 + $0x190] sm:$0xff]
        %v2920 = vld [vmem:[%s2868 + $0x198] sm:$0xff]
        %v2921 = vld [vmem:[%s2868 + $0x1a0] sm:$0xff]
        %v2922 = vld [vmem:[%s2868 + $0x1a8] sm:$0xff]
        %v2923 = vld [vmem:[%s2868 + $0x1b0] sm:$0xff]
        %v2924 = vld [vmem:[%s2868 + $0x1b8] sm:$0xff]
        %v2925 = vld [vmem:[%s2868 + $0x1c0] sm:$0xff]
        %v2926 = vld [vmem:[%s2868 + $0x1c8] sm:$0xff]
        %v2927 = vld [vmem:[%s2868 + $0x1d0] sm:$0xff]
        %v2928 = vld [vmem:[%s2868 + $0x1d8] sm:$0xff]
        %v2929 = vld [vmem:[%s2868 + $0x1e0] sm:$0xff]
        %v2930 = vld [vmem:[%s2868 + $0x1e8] sm:$0xff]
        %v2931 = vld [vmem:[%s2868 + $0x1f0] sm:$0xff]
        %v2932 = vld [vmem:[%s2868 + $0x1f8] sm:$0xff]
        %v2933 = vld [vmem:[%s2868 + $0x200] sm:$0xff]
        %v2934 = vld [vmem:[%s2868 + $0x208] sm:$0xff]
        %v2935 = vld [vmem:[%s2868 + $0x210] sm:$0xff]
        %v2936 = vld [vmem:[%s2868 + $0x218] sm:$0xff]
        %v2937 = vld [vmem:[%s2868 + $0x220] sm:$0xff]
        %v2938 = vld [vmem:[%s2868 + $0x228] sm:$0xff]
        %v2939 = vld [vmem:[%s2868 + $0x230] sm:$0xff]
        %v2940 = vld [vmem:[%s2868 + $0x238] sm:$0xff]
        %v2941 = vld [vmem:[%s2868 + $0x240] sm:$0xff]
        %v2942 = vld [vmem:[%s2868 + $0x248] sm:$0xff]
        %v2943 = vld [vmem:[%s2868 + $0x250] sm:$0xff]
        %v2944 = vld [vmem:[%s2868 + $0x258] sm:$0xff]
        %v2945 = vld [vmem:[%s2868 + $0x260] sm:$0xff]
        %v2946 = vld [vmem:[%s2868 + $0x268] sm:$0xff]
        %v2947 = vld [vmem:[%s2868 + $0x270] sm:$0xff]
        %v2948 = vld [vmem:[%s2868 + $0x278] sm:$0xff]
        %v2949 = vld [vmem:[%s2868 + $0x280] sm:$0xff]
        %v2950 = vld [vmem:[%s2868 + $0x288] sm:$0xff]
        %v2951 = vld [vmem:[%s2868 + $0x290] sm:$0xff]
        %v2952 = vld [vmem:[%s2868 + $0x298] sm:$0xff]
        %v2953 = vld [vmem:[%s2868 + $0x2a0] sm:$0xff]
        %v2954 = vld [vmem:[%s2868 + $0x2a8] sm:$0xff]
        %v2955 = vld [vmem:[%s2868 + $0x2b0] sm:$0xff]
        %v2956 = vld [vmem:[%s2868 + $0x2b8] sm:$0xff]
        %v2957 = vld [vmem:[%s2868 + $0x2c0] sm:$0xff]
        %v2958 = vld [vmem:[%s2868 + $0x2c8] sm:$0xff]
        %v2959 = vld [vmem:[%s2868 + $0x2d0] sm:$0xff]
        %v2960 = vld [vmem:[%s2868 + $0x2d8] sm:$0xff]
        %v2961 = vld [vmem:[%s2868 + $0x2e0] sm:$0xff]
        %v2962 = vld [vmem:[%s2868 + $0x2e8] sm:$0xff]
        %v2963 = vld [vmem:[%s2868 + $0x2f0] sm:$0xff]
        %v2964 = vld [vmem:[%s2868 + $0x2f8] sm:$0xff]
        %v2965 = vld [vmem:[%s2868 + $0x300] sm:$0xff]
        %v2966 = vld [vmem:[%s2868 + $0x308] sm:$0xff]
        %v2967 = vld [vmem:[%s2868 + $0x310] sm:$0xff]
        %v2968 = vld [vmem:[%s2868 + $0x318] sm:$0xff]
        %v2969 = vld [vmem:[%s2868 + $0x320] sm:$0xff]
        %v2970 = vld [vmem:[%s2868 + $0x328] sm:$0xff]
        %v2971 = vld [vmem:[%s2868 + $0x330] sm:$0xff]
        %v2972 = vld [vmem:[%s2868 + $0x338] sm:$0xff]
        %v2973 = vld [vmem:[%s2868 + $0x340] sm:$0xff]
        %v2974 = vld [vmem:[%s2868 + $0x348] sm:$0xff]
        %v2975 = vld [vmem:[%s2868 + $0x350] sm:$0xff]
        %v2976 = vld [vmem:[%s2868 + $0x358] sm:$0xff]
        %v2977 = vld [vmem:[%s2868 + $0x360] sm:$0xff]
        %v2978 = vld [vmem:[%s2868 + $0x368] sm:$0xff]
        %v2979 = vld [vmem:[%s2868 + $0x370] sm:$0xff]
        %v2980 = vld [vmem:[%s2868 + $0x378] sm:$0xff]
        %v2981 = vld [vmem:[%s2868 + $0x380] sm:$0xff]
        %v2982 = vld [vmem:[%s2868 + $0x388] sm:$0xff]
        %v2983 = vld [vmem:[%s2868 + $0x390] sm:$0xff]
        %v2984 = vld [vmem:[%s2868 + $0x398] sm:$0xff]
        %v2985 = vld [vmem:[%s2868 + $0x3a0] sm:$0xff]
        %v2986 = vld [vmem:[%s2868 + $0x3a8] sm:$0xff]
        %v2987 = vld [vmem:[%s2868 + $0x3b0] sm:$0xff]
        %v2988 = vld [vmem:[%s2868 + $0x3b8] sm:$0xff]
        %v2989 = vld [vmem:[%s2868 + $0x3c0] sm:$0xff]
        %v2990 = vld [vmem:[%s2868 + $0x3c8] sm:$0xff]
        %v2991 = vld [vmem:[%s2868 + $0x3d0] sm:$0xff]
        %v2992 = vld [vmem:[%s2868 + $0x3d8] sm:$0xff]
        %v2993 = vld [vmem:[%s2868 + $0x3e0] sm:$0xff]
        %v2994 = vld [vmem:[%s2868 + $0x3e8] sm:$0xff]
        %v2995 = vld [vmem:[%s2868 + $0x3f0] sm:$0xff]
        %v2996 = vld [vmem:[%s2868 + $0x3f8] sm:$0xff]
        %v2997 = vld [vmem:[%s2868 + $0x400] sm:$0xff]
        %v2998 = vld [vmem:[%s2868 + $0x408] sm:$0xff]
        %v2999 = vld [vmem:[%s2868 + $0x410] sm:$0xff]
        %v3000 = vld [vmem:[%s2868 + $0x418] sm:$0xff]
        %v3001 = vld [vmem:[%s2868 + $0x420] sm:$0xff]
        %v3002 = vld [vmem:[%s2868 + $0x428] sm:$0xff]
        %v3003 = vld [vmem:[%s2868 + $0x430] sm:$0xff]
        %v3004 = vld [vmem:[%s2868 + $0x438] sm:$0xff]
        %v3005 = vld [vmem:[%s2868 + $0x440] sm:$0xff]
        %v3006 = vld [vmem:[%s2868 + $0x448] sm:$0xff]
        %v3007 = vld [vmem:[%s2868 + $0x450] sm:$0xff]
        %v3008 = vld [vmem:[%s2868 + $0x458] sm:$0xff]
        %v3009 = vld [vmem:[%s2868 + $0x460] sm:$0xff]
        %v3010 = vld [vmem:[%s2868 + $0x468] sm:$0xff]
        %v3011 = vld [vmem:[%s2868 + $0x470] sm:$0xff]
        %v3012 = vld [vmem:[%s2868 + $0x478] sm:$0xff]
        %v3013 = vld [vmem:[%s2868 + $0x480] sm:$0xff]
        %v3014 = vld [vmem:[%s2868 + $0x488] sm:$0xff]
        %v3015 = vld [vmem:[%s2868 + $0x490] sm:$0xff]
        %v3016 = vld [vmem:[%s2868 + $0x498] sm:$0xff]
        %v3017 = vld [vmem:[%s2868 + $0x4a0] sm:$0xff]
        %v3018 = vld [vmem:[%s2868 + $0x4a8] sm:$0xff]
        %v3019 = vld [vmem:[%s2868 + $0x4b0] sm:$0xff]
        %v3020 = vld [vmem:[%s2868 + $0x4b8] sm:$0xff]
        %v3021 = vld [vmem:[%s2868 + $0x4c0] sm:$0xff]
        %v3022 = vld [vmem:[%s2868 + $0x4c8] sm:$0xff]
        %v3023 = vld [vmem:[%s2868 + $0x4d0] sm:$0xff]
        %v3024 = vld [vmem:[%s2868 + $0x4d8] sm:$0xff]
        %v3025 = vld [vmem:[%s2868 + $0x4e0] sm:$0xff]
        %v3026 = vld [vmem:[%s2868 + $0x4e8] sm:$0xff]
        %v3027 = vld [vmem:[%s2868 + $0x4f0] sm:$0xff]
        %v3028 = vld [vmem:[%s2868 + $0x4f8] sm:$0xff]
        %v3029 = vrot.slane %v1952, 2
        %v3030 = vrot.slane %v1955, 2
        %v3031 = vsel %vm734, %v3029, %v3030
        %v3032 = vrot.slane %v1953, 2
        %v3033 = vrot.slane %v1956, 2
        %v3034 = vsel %vm734, %v3032, %v3033
        %v3035 = vrot.slane %v1954, 2
        %v3036 = vrot.slane %v1957, 2
        %v3037 = vsel %vm734, %v3035, %v3036
        %v3040 = vsel %vm1361, %v3037, 0
        %3042 = vmatprep.subr.mxu0 %v2930
        %3043 = vmatpush1.msra.mxu0 %v2929
        %3044 = vmatprep.subr.mxu0 %v2926
        %3045 = vmatpush1.msra.mxu0 %v2925
        %3046 = vmatprep.subr.mxu0 %v2922
        %3047 = vmatpush1.msra.mxu0 %v2921
        %3048 = vmatprep.subr.mxu0 %v2918
        %3049 = vmatpush1.msra.mxu0 %v2917
        %3050 = vmatprep.subr.mxu0 %v2914
        %3051 = vmatpush1.msra.mxu0 %v2913
        %3052 = vmatprep.subr.mxu0 %v2910
        %3053 = vmatpush1.msra.mxu0 %v2909
        %3054 = vmatprep.subr.mxu0 %v2906
        %3055 = vmatpush1.msra.mxu0 %v2905
        %3056 = vmatprep.subr.mxu0 %v2902
        %3057 = vmatpush1.msra.mxu0 %v2901
        %3058 = vmatprep.subr.mxu0 %v2898
        %3059 = vmatpush1.msra.mxu0 %v2897
        %3060 = vmatprep.subr.mxu0 %v2894
        %3061 = vmatpush1.msra.mxu0 %v2893
        %3062 = vmatprep.subr.mxu0 %v2890
        %3063 = vmatpush1.msra.mxu0 %v2889
        %3064 = vmatprep.subr.mxu0 %v2886
        %3065 = vmatpush1.msra.mxu0 %v2885
        %3066 = vmatprep.subr.mxu0 %v2882
        %3067 = vmatpush1.msra.mxu0 %v2881
        %3068 = vmatprep.subr.mxu0 %v2878
        %3069 = vmatpush1.msra.mxu0 %v2877
        %3070 = vmatprep.subr.mxu0 %v2874
        %3071 = vmatpush1.msra.mxu0 %v2873
        %3072 = vmatprep.subr.mxu0 %v2870
        %3073 = vmatpush1.msra.mxu0 %v2869
        %3074 = vmatprep.subr.mxu0 %v2994
        %3075 = vmatpush2.msra.mxu0 %v2993
        %3076 = vmatprep.subr.mxu0 %v2990
        %3077 = vmatpush2.msra.mxu0 %v2989
        %3078 = vmatprep.subr.mxu0 %v2986
        %3079 = vmatpush2.msra.mxu0 %v2985
        %3080 = vmatprep.subr.mxu0 %v2982
        %3081 = vmatpush2.msra.mxu0 %v2981
        %3082 = vmatprep.subr.mxu0 %v2978
        %3083 = vmatpush2.msra.mxu0 %v2977
        %3084 = vmatprep.subr.mxu0 %v2974
        %3085 = vmatpush2.msra.mxu0 %v2973
        %3086 = vmatprep.subr.mxu0 %v2970
        %3087 = vmatpush2.msra.mxu0 %v2969
        %3088 = vmatprep.subr.mxu0 %v2966
        %3089 = vmatpush2.msra.mxu0 %v2965
        %3090 = vmatprep.subr.mxu0 %v2962
        %3091 = vmatpush2.msra.mxu0 %v2961
        %3092 = vmatprep.subr.mxu0 %v2958
        %3093 = vmatpush2.msra.mxu0 %v2957
        %3094 = vmatprep.subr.mxu0 %v2954
        %3095 = vmatpush2.msra.mxu0 %v2953
        %3096 = vmatprep.subr.mxu0 %v2950
        %3097 = vmatpush2.msra.mxu0 %v2949
        %3098 = vmatprep.subr.mxu0 %v2946
        %3099 = vmatpush2.msra.mxu0 %v2945
        %3100 = vmatprep.subr.mxu0 %v2942
        %3101 = vmatpush2.msra.mxu0 %v2941
        %3102 = vmatprep.subr.mxu0 %v2938
        %3103 = vmatpush2.msra.mxu0 %v2937
        %3104 = vmatprep.subr.mxu0 %v2934
        %3105 = vmatpush2.msra.mxu0 %v2933
        %3106 = vmatprep.mubr.f32.mxu0 %v3034
        %3107 = vmatmul.mubr.f32.gmra.mxu0 %v3031
        %v3108 = vpop.f32.mrf.mxu0
        %v3109 = vadd.f32 0.0, %v3108
        %v3110 = vpop.f32.mrf.mxu0
        %v3111 = vadd.f32 0.0, %v3110
        %3112 = vdwg.mxu0
        %3113 = vmatprep.subr.mxu0 0.0
        %3114 = vmatpush1.msra.mxu0 0.0
        %3115 = vmatprep.subr.mxu0 0.0
        %3116 = vmatpush1.msra.mxu0 0.0
        %3117 = vmatprep.subr.mxu0 0.0
        %3118 = vmatpush1.msra.mxu0 0.0
        %3119 = vmatprep.subr.mxu0 0.0
        %3120 = vmatpush1.msra.mxu0 0.0
        %3121 = vmatprep.subr.mxu0 0.0
        %3122 = vmatpush1.msra.mxu0 0.0
        %3123 = vmatprep.subr.mxu0 0.0
        %3124 = vmatpush1.msra.mxu0 0.0
        %3125 = vmatprep.subr.mxu0 0.0
        %3126 = vmatpush1.msra.mxu0 0.0
        %3127 = vmatprep.subr.mxu0 0.0
        %3128 = vmatpush1.msra.mxu0 0.0
        %3129 = vmatprep.subr.mxu0 %v3026
        %3130 = vmatpush1.msra.mxu0 %v3025
        %3131 = vmatprep.subr.mxu0 %v3022
        %3132 = vmatpush1.msra.mxu0 %v3021
        %3133 = vmatprep.subr.mxu0 %v3018
        %3134 = vmatpush1.msra.mxu0 %v3017
        %3135 = vmatprep.subr.mxu0 %v3014
        %3136 = vmatpush1.msra.mxu0 %v3013
        %3137 = vmatprep.subr.mxu0 %v3010
        %3138 = vmatpush1.msra.mxu0 %v3009
        %3139 = vmatprep.subr.mxu0 %v3006
        %3140 = vmatpush1.msra.mxu0 %v3005
        %3141 = vmatprep.subr.mxu0 %v3002
        %3142 = vmatpush1.msra.mxu0 %v3001
        %3143 = vmatprep.subr.mxu0 %v2998
        %3144 = vmatpush1.msra.mxu0 %v2997
        %3145 = vmatprep.subr.mxu0 0.0
        %3146 = vmatpush2.msra.mxu0 0.0
        %3147 = vmatprep.subr.mxu0 0.0
        %3148 = vmatpush2.msra.mxu0 0.0
        %3149 = vmatprep.subr.mxu0 0.0
        %3150 = vmatpush2.msra.mxu0 0.0
        %3151 = vmatprep.subr.mxu0 0.0
        %3152 = vmatpush2.msra.mxu0 0.0
        %3153 = vmatprep.subr.mxu0 0.0
        %3154 = vmatpush2.msra.mxu0 0.0
        %3155 = vmatprep.subr.mxu0 0.0
        %3156 = vmatpush2.msra.mxu0 0.0
        %3157 = vmatprep.subr.mxu0 0.0
        %3158 = vmatpush2.msra.mxu0 0.0
        %3159 = vmatprep.subr.mxu0 0.0
        %3160 = vmatpush2.msra.mxu0 0.0
        %3161 = vmatprep.subr.mxu0 0.0
        %3162 = vmatpush2.msra.mxu0 0.0
        %3163 = vmatprep.subr.mxu0 0.0
        %3164 = vmatpush2.msra.mxu0 0.0
        %3165 = vmatprep.subr.mxu0 0.0
        %3166 = vmatpush2.msra.mxu0 0.0
        %3167 = vmatprep.subr.mxu0 0.0
        %3168 = vmatpush2.msra.mxu0 0.0
        %3169 = vmatprep.subr.mxu0 0.0
        %3170 = vmatpush2.msra.mxu0 0.0
        %3171 = vmatprep.subr.mxu0 0.0
        %3172 = vmatpush2.msra.mxu0 0.0
        %3173 = vmatprep.subr.mxu0 0.0
        %3174 = vmatpush2.msra.mxu0 0.0
        %3175 = vmatprep.subr.mxu0 0.0
        %3176 = vmatpush2.msra.mxu0 0.0
        %3177 = vmatprep.mubr.f32.mxu0 0.0
        %3178 = vmatmul.mubr.f32.gmra.mxu0 %v3040
        %v3179 = vpop.f32.mrf.mxu0
        %v3180 = vadd.f32 %v3109, %v3179
        %v3181 = vpop.f32.mrf.mxu0
        %v3182 = vadd.f32 %v3111, %v3181
        %3183 = vdwg.mxu0
        %3184 = vmatprep.subr.mxu0 %v2932
        %3185 = vmatpush1.msra.mxu0 %v2931
        %3186 = vmatprep.subr.mxu0 %v2928
        %3187 = vmatpush1.msra.mxu0 %v2927
        %3188 = vmatprep.subr.mxu0 %v2924
        %3189 = vmatpush1.msra.mxu0 %v2923
        %3190 = vmatprep.subr.mxu0 %v2920
        %3191 = vmatpush1.msra.mxu0 %v2919
        %3192 = vmatprep.subr.mxu0 %v2916
        %3193 = vmatpush1.msra.mxu0 %v2915
        %3194 = vmatprep.subr.mxu0 %v2912
        %3195 = vmatpush1.msra.mxu0 %v2911
        %3196 = vmatprep.subr.mxu0 %v2908
        %3197 = vmatpush1.msra.mxu0 %v2907
        %3198 = vmatprep.subr.mxu0 %v2904
        %3199 = vmatpush1.msra.mxu0 %v2903
        %3200 = vmatprep.subr.mxu0 %v2900
        %3201 = vmatpush1.msra.mxu0 %v2899
        %3202 = vmatprep.subr.mxu0 %v2896
        %3203 = vmatpush1.msra.mxu0 %v2895
        %3204 = vmatprep.subr.mxu0 %v2892
        %3205 = vmatpush1.msra.mxu0 %v2891
        %3206 = vmatprep.subr.mxu0 %v2888
        %3207 = vmatpush1.msra.mxu0 %v2887
        %3208 = vmatprep.subr.mxu0 %v2884
        %3209 = vmatpush1.msra.mxu0 %v2883
        %3210 = vmatprep.subr.mxu0 %v2880
        %3211 = vmatpush1.msra.mxu0 %v2879
        %3212 = vmatprep.subr.mxu0 %v2876
        %3213 = vmatpush1.msra.mxu0 %v2875
        %3214 = vmatprep.subr.mxu0 %v2872
        %3215 = vmatpush1.msra.mxu0 %v2871
        %3216 = vmatprep.subr.mxu0 %v2996
        %3217 = vmatpush2.msra.mxu0 %v2995
        %3218 = vmatprep.subr.mxu0 %v2992
        %3219 = vmatpush2.msra.mxu0 %v2991
        %3220 = vmatprep.subr.mxu0 %v2988
        %3221 = vmatpush2.msra.mxu0 %v2987
        %3222 = vmatprep.subr.mxu0 %v2984
        %3223 = vmatpush2.msra.mxu0 %v2983
        %3224 = vmatprep.subr.mxu0 %v2980
        %3225 = vmatpush2.msra.mxu0 %v2979
        %3226 = vmatprep.subr.mxu0 %v2976
        %3227 = vmatpush2.msra.mxu0 %v2975
        %3228 = vmatprep.subr.mxu0 %v2972
        %3229 = vmatpush2.msra.mxu0 %v2971
        %3230 = vmatprep.subr.mxu0 %v2968
        %3231 = vmatpush2.msra.mxu0 %v2967
        %3232 = vmatprep.subr.mxu0 %v2964
        %3233 = vmatpush2.msra.mxu0 %v2963
        %3234 = vmatprep.subr.mxu0 %v2960
        %3235 = vmatpush2.msra.mxu0 %v2959
        %3236 = vmatprep.subr.mxu0 %v2956
        %3237 = vmatpush2.msra.mxu0 %v2955
        %3238 = vmatprep.subr.mxu0 %v2952
        %3239 = vmatpush2.msra.mxu0 %v2951
        %3240 = vmatprep.subr.mxu0 %v2948
        %3241 = vmatpush2.msra.mxu0 %v2947
        %3242 = vmatprep.subr.mxu0 %v2944
        %3243 = vmatpush2.msra.mxu0 %v2943
        %3244 = vmatprep.subr.mxu0 %v2940
        %3245 = vmatpush2.msra.mxu0 %v2939
        %3246 = vmatprep.subr.mxu0 %v2936
        %3247 = vmatpush2.msra.mxu0 %v2935
        %3248 = vmatprep.mubr.f32.mxu0 %v3034
        %3249 = vmatmul.mubr.f32.gmra.mxu0 %v3031
        %v3250 = vpop.f32.mrf.mxu0
        %v3251 = vadd.f32 0.0, %v3250
        %v3252 = vpop.f32.mrf.mxu0
        %v3253 = vadd.f32 0.0, %v3252
        %3254 = vdwg.mxu0
        %3255 = vmatprep.subr.mxu0 0.0
        %3256 = vmatpush1.msra.mxu0 0.0
        %3257 = vmatprep.subr.mxu0 0.0
        %3258 = vmatpush1.msra.mxu0 0.0
        %3259 = vmatprep.subr.mxu0 0.0
        %3260 = vmatpush1.msra.mxu0 0.0
        %3261 = vmatprep.subr.mxu0 0.0
        %3262 = vmatpush1.msra.mxu0 0.0
        %3263 = vmatprep.subr.mxu0 0.0
        %3264 = vmatpush1.msra.mxu0 0.0
        %3265 = vmatprep.subr.mxu0 0.0
        %3266 = vmatpush1.msra.mxu0 0.0
        %3267 = vmatprep.subr.mxu0 0.0
        %3268 = vmatpush1.msra.mxu0 0.0
        %3269 = vmatprep.subr.mxu0 0.0
        %3270 = vmatpush1.msra.mxu0 0.0
        %3271 = vmatprep.subr.mxu0 %v3028
        %3272 = vmatpush1.msra.mxu0 %v3027
        %3273 = vmatprep.subr.mxu0 %v3024
        %3274 = vmatpush1.msra.mxu0 %v3023
        %3275 = vmatprep.subr.mxu0 %v3020
        %3276 = vmatpush1.msra.mxu0 %v3019
        %3277 = vmatprep.subr.mxu0 %v3016
        %3278 = vmatpush1.msra.mxu0 %v3015
        %3279 = vmatprep.subr.mxu0 %v3012
        %3280 = vmatpush1.msra.mxu0 %v3011
        %3281 = vmatprep.subr.mxu0 %v3008
        %3282 = vmatpush1.msra.mxu0 %v3007
        %3283 = vmatprep.subr.mxu0 %v3004
        %3284 = vmatpush1.msra.mxu0 %v3003
        %3285 = vmatprep.subr.mxu0 %v3000
        %3286 = vmatpush1.msra.mxu0 %v2999
        %3287 = vmatprep.subr.mxu0 0.0
        %3288 = vmatpush2.msra.mxu0 0.0
        %3289 = vmatprep.subr.mxu0 0.0
        %3290 = vmatpush2.msra.mxu0 0.0
        %3291 = vmatprep.subr.mxu0 0.0
        %3292 = vmatpush2.msra.mxu0 0.0
        %3293 = vmatprep.subr.mxu0 0.0
        %3294 = vmatpush2.msra.mxu0 0.0
        %3295 = vmatprep.subr.mxu0 0.0
        %3296 = vmatpush2.msra.mxu0 0.0
        %3297 = vmatprep.subr.mxu0 0.0
        %3298 = vmatpush2.msra.mxu0 0.0
        %3299 = vmatprep.subr.mxu0 0.0
        %3300 = vmatpush2.msra.mxu0 0.0
        %3301 = vmatprep.subr.mxu0 0.0
        %3302 = vmatpush2.msra.mxu0 0.0
        %3303 = vmatprep.subr.mxu0 0.0
        %3304 = vmatpush2.msra.mxu0 0.0
        %3305 = vmatprep.subr.mxu0 0.0
        %3306 = vmatpush2.msra.mxu0 0.0
        %3307 = vmatprep.subr.mxu0 0.0
        %3308 = vmatpush2.msra.mxu0 0.0
        %3309 = vmatprep.subr.mxu0 0.0
        %3310 = vmatpush2.msra.mxu0 0.0
        %3311 = vmatprep.subr.mxu0 0.0
        %3312 = vmatpush2.msra.mxu0 0.0
        %3313 = vmatprep.subr.mxu0 0.0
        %3314 = vmatpush2.msra.mxu0 0.0
        %3315 = vmatprep.subr.mxu0 0.0
        %3316 = vmatpush2.msra.mxu0 0.0
        %3317 = vmatprep.subr.mxu0 0.0
        %3318 = vmatpush2.msra.mxu0 0.0
        %3319 = vmatprep.mubr.f32.mxu0 0.0
        %3320 = vmatmul.mubr.f32.gmra.mxu0 %v3040
        %v3321 = vpop.f32.mrf.mxu0
        %v3322 = vadd.f32 %v3251, %v3321
        %v3323 = vpop.f32.mrf.mxu0
        %v3324 = vadd.f32 %v3253, %v3323
        %3325 = vdwg.mxu0
        %v3326 = vadd.f32 %v2722, %v3180
        %v3327 = vadd.f32 %v2724, %v3182
        %v3328 = vadd.f32 %v2864, %v3322
        %v3329 = vadd.f32 %v2866, %v3324
        %v3330 = vld [vmem:[%s12] sm:$0xf]
        %v3332 = vlaneseq
        %v3333 = vshrl.u32 %v3332, 7
        %v3334 = vsub.s32 0, %v3333
        %v3335 = vrot.slane %v3330, %v3334
        %v3336 = vlaneseq
        %v3337 = vshrl.u32 %v3336, 7
        %v3338 = vsub.s32 1, %v3337
        %v3339 = vrot.slane %v3330, %v3338
        %v3340 = vlaneseq
        %v3341 = vshrl.u32 %v3340, 7
        %v3342 = vsub.s32 2, %v3341
        %v3343 = vrot.slane %v3330, %v3342
        %v3344 = vlaneseq
        %v3345 = vshrl.u32 %v3344, 7
        %v3346 = vsub.s32 3, %v3345
        %v3347 = vrot.slane %v3330, %v3346
        %v3352 = vadd.f32 %v3326, %v3335
        %v3353 = vadd.f32 %v3327, %v3339
        %v3354 = vadd.f32 %v3328, %v3343
        %v3355 = vadd.f32 %v3329, %v3347
        %vm3356 = vcmp.gt.f32.partialorder %v3352, 0.0
        %vm3357 = vcmp.gt.f32.partialorder %v3353, 0.0
        %vm3358 = vcmp.gt.f32.partialorder %v3354, 0.0
        %vm3359 = vcmp.gt.f32.partialorder %v3355, 0.0
        %v3360 = vmul.f32 %v3352, 0.01
        %v3361 = vmul.f32 %v3353, 0.01
        %v3362 = vmul.f32 %v3354, 0.01
        %v3363 = vmul.f32 %v3355, 0.01
        %v3364 = vsel %vm3356, %v3352, %v3360
        %v3365 = vsel %vm3357, %v3353, %v3361
        %v3366 = vsel %vm3358, %v3354, %v3362
        %v3367 = vsel %vm3359, %v3355, %v3363
        %v3372 = vrot.slane %v3364, 6
        %v3373 = vrot.slane %v3365, 6
        %v3374 = vrot.slane %v3366, 6
        %v3375 = vrot.slane %v3367, 6
        %3380 = vst [vmem:[#allocation2] sm:$0xfc] %v3372
        %3381 = vst [vmem:[#allocation2 + $0x8] sm:$0xfc] %v3373
        %3382 = vst [vmem:[#allocation2 + $0x10] sm:$0xfc] %v3374
        %3383 = vst [vmem:[#allocation2 + $0x18] sm:$0xfc] %v3375
        %3384 = vst [vmem:[#allocation2 + $0x20] sm:$0x3] %v3372
        %3385 = vst [vmem:[#allocation2 + $0x28] sm:$0x3] %v3373
        %3386 = vst [vmem:[#allocation2 + $0x30] sm:$0x3] %v3374
        %3387 = vst [vmem:[#allocation2 + $0x38] sm:$0x3] %v3375
        %v3388 = vld [vmem:[#allocation2] sm:$0xff]
        %v3389 = vld [vmem:[#allocation2 + $0x8] sm:$0xff]
        %v3390 = vld [vmem:[#allocation2 + $0x10] sm:$0xff]
        %v3391 = vld [vmem:[#allocation2 + $0x18] sm:$0xff]
        %v3392 = vld [vmem:[#allocation2 + $0x20] sm:$0x3]
        %v3393 = vld [vmem:[#allocation2 + $0x28] sm:$0x3]
        %v3394 = vld [vmem:[#allocation2 + $0x30] sm:$0x3]
        %v3395 = vld [vmem:[#allocation2 + $0x38] sm:$0x3]
        %v3396 = vld [vmem:[%s5] sm:$0xff]
        %v3397 = vld [vmem:[%s5 + $0x8] sm:$0xff]
        %v3398 = vld [vmem:[%s5 + $0x10] sm:$0xff]
        %v3399 = vld [vmem:[%s5 + $0x18] sm:$0xff]
        %v3400 = vld [vmem:[%s5 + $0x20] sm:$0xff]
        %v3401 = vld [vmem:[%s5 + $0x28] sm:$0xff]
        %v3402 = vld [vmem:[%s5 + $0x30] sm:$0xff]
        %v3403 = vld [vmem:[%s5 + $0x38] sm:$0xff]
        %v3404 = vld [vmem:[%s5 + $0x40] sm:$0xff]
        %v3405 = vld [vmem:[%s5 + $0x48] sm:$0xff]
        %v3406 = vld [vmem:[%s5 + $0x50] sm:$0xff]
        %v3407 = vld [vmem:[%s5 + $0x58] sm:$0xff]
        %v3408 = vld [vmem:[%s5 + $0x60] sm:$0xff]
        %v3409 = vld [vmem:[%s5 + $0x68] sm:$0xff]
        %v3410 = vld [vmem:[%s5 + $0x70] sm:$0xff]
        %v3411 = vld [vmem:[%s5 + $0x78] sm:$0xff]
        %v3412 = vld [vmem:[%s5 + $0x80] sm:$0xff]
        %v3413 = vld [vmem:[%s5 + $0x88] sm:$0xff]
        %v3414 = vld [vmem:[%s5 + $0x90] sm:$0xff]
        %v3415 = vld [vmem:[%s5 + $0x98] sm:$0xff]
        %v3416 = vld [vmem:[%s5 + $0xa0] sm:$0xff]
        %v3417 = vld [vmem:[%s5 + $0xa8] sm:$0xff]
        %v3418 = vld [vmem:[%s5 + $0xb0] sm:$0xff]
        %v3419 = vld [vmem:[%s5 + $0xb8] sm:$0xff]
        %v3420 = vld [vmem:[%s5 + $0xc0] sm:$0xff]
        %v3421 = vld [vmem:[%s5 + $0xc8] sm:$0xff]
        %v3422 = vld [vmem:[%s5 + $0xd0] sm:$0xff]
        %v3423 = vld [vmem:[%s5 + $0xd8] sm:$0xff]
        %v3424 = vld [vmem:[%s5 + $0xe0] sm:$0xff]
        %v3425 = vld [vmem:[%s5 + $0xe8] sm:$0xff]
        %v3426 = vld [vmem:[%s5 + $0xf0] sm:$0xff]
        %v3427 = vld [vmem:[%s5 + $0xf8] sm:$0xff]
        %v3428 = vld [vmem:[%s5 + $0x100] sm:$0xff]
        %v3429 = vld [vmem:[%s5 + $0x108] sm:$0xff]
        %v3430 = vld [vmem:[%s5 + $0x110] sm:$0xff]
        %v3431 = vld [vmem:[%s5 + $0x118] sm:$0xff]
        %v3432 = vld [vmem:[%s5 + $0x120] sm:$0xff]
        %v3433 = vld [vmem:[%s5 + $0x128] sm:$0xff]
        %v3434 = vld [vmem:[%s5 + $0x130] sm:$0xff]
        %v3435 = vld [vmem:[%s5 + $0x138] sm:$0xff]
        %v3436 = vld [vmem:[%s5 + $0x140] sm:$0xff]
        %v3437 = vld [vmem:[%s5 + $0x148] sm:$0xff]
        %v3438 = vld [vmem:[%s5 + $0x150] sm:$0xff]
        %v3439 = vld [vmem:[%s5 + $0x158] sm:$0xff]
        %v3440 = vld [vmem:[%s5 + $0x160] sm:$0xff]
        %v3441 = vld [vmem:[%s5 + $0x168] sm:$0xff]
        %v3442 = vld [vmem:[%s5 + $0x170] sm:$0xff]
        %v3443 = vld [vmem:[%s5 + $0x178] sm:$0xff]
        %v3444 = vld [vmem:[%s5 + $0x180] sm:$0xff]
        %v3445 = vld [vmem:[%s5 + $0x188] sm:$0xff]
        %v3446 = vld [vmem:[%s5 + $0x190] sm:$0xff]
        %v3447 = vld [vmem:[%s5 + $0x198] sm:$0xff]
        %v3448 = vld [vmem:[%s5 + $0x1a0] sm:$0xff]
        %v3449 = vld [vmem:[%s5 + $0x1a8] sm:$0xff]
        %v3450 = vld [vmem:[%s5 + $0x1b0] sm:$0xff]
        %v3451 = vld [vmem:[%s5 + $0x1b8] sm:$0xff]
        %v3452 = vld [vmem:[%s5 + $0x1c0] sm:$0xff]
        %v3453 = vld [vmem:[%s5 + $0x1c8] sm:$0xff]
        %v3454 = vld [vmem:[%s5 + $0x1d0] sm:$0xff]
        %v3455 = vld [vmem:[%s5 + $0x1d8] sm:$0xff]
        %v3456 = vld [vmem:[%s5 + $0x1e0] sm:$0xff]
        %v3457 = vld [vmem:[%s5 + $0x1e8] sm:$0xff]
        %v3458 = vld [vmem:[%s5 + $0x1f0] sm:$0xff]
        %v3459 = vld [vmem:[%s5 + $0x1f8] sm:$0xff]
        %v3460 = vld [vmem:[%s5 + $0x200] sm:$0xff]
        %v3461 = vld [vmem:[%s5 + $0x208] sm:$0xff]
        %v3462 = vld [vmem:[%s5 + $0x210] sm:$0xff]
        %v3463 = vld [vmem:[%s5 + $0x218] sm:$0xff]
        %v3464 = vld [vmem:[%s5 + $0x220] sm:$0xff]
        %v3465 = vld [vmem:[%s5 + $0x228] sm:$0xff]
        %v3466 = vld [vmem:[%s5 + $0x230] sm:$0xff]
        %v3467 = vld [vmem:[%s5 + $0x238] sm:$0xff]
        %v3468 = vld [vmem:[%s5 + $0x240] sm:$0xff]
        %v3469 = vld [vmem:[%s5 + $0x248] sm:$0xff]
        %v3470 = vld [vmem:[%s5 + $0x250] sm:$0xff]
        %v3471 = vld [vmem:[%s5 + $0x258] sm:$0xff]
        %v3472 = vld [vmem:[%s5 + $0x260] sm:$0xff]
        %v3473 = vld [vmem:[%s5 + $0x268] sm:$0xff]
        %v3474 = vld [vmem:[%s5 + $0x270] sm:$0xff]
        %v3475 = vld [vmem:[%s5 + $0x278] sm:$0xff]
        %v3476 = vld [vmem:[%s5 + $0x280] sm:$0xff]
        %v3477 = vld [vmem:[%s5 + $0x288] sm:$0xff]
        %v3478 = vld [vmem:[%s5 + $0x290] sm:$0xff]
        %v3479 = vld [vmem:[%s5 + $0x298] sm:$0xff]
        %v3480 = vld [vmem:[%s5 + $0x2a0] sm:$0xff]
        %v3481 = vld [vmem:[%s5 + $0x2a8] sm:$0xff]
        %v3482 = vld [vmem:[%s5 + $0x2b0] sm:$0xff]
        %v3483 = vld [vmem:[%s5 + $0x2b8] sm:$0xff]
        %v3484 = vld [vmem:[%s5 + $0x2c0] sm:$0xff]
        %v3485 = vld [vmem:[%s5 + $0x2c8] sm:$0xff]
        %v3486 = vld [vmem:[%s5 + $0x2d0] sm:$0xff]
        %v3487 = vld [vmem:[%s5 + $0x2d8] sm:$0xff]
        %v3488 = vld [vmem:[%s5 + $0x2e0] sm:$0xff]
        %v3489 = vld [vmem:[%s5 + $0x2e8] sm:$0xff]
        %v3490 = vld [vmem:[%s5 + $0x2f0] sm:$0xff]
        %v3491 = vld [vmem:[%s5 + $0x2f8] sm:$0xff]
        %v3492 = vld [vmem:[%s5 + $0x300] sm:$0xff]
        %v3493 = vld [vmem:[%s5 + $0x308] sm:$0xff]
        %v3494 = vld [vmem:[%s5 + $0x310] sm:$0xff]
        %v3495 = vld [vmem:[%s5 + $0x318] sm:$0xff]
        %v3496 = vld [vmem:[%s5 + $0x320] sm:$0xff]
        %v3497 = vld [vmem:[%s5 + $0x328] sm:$0xff]
        %v3498 = vld [vmem:[%s5 + $0x330] sm:$0xff]
        %v3499 = vld [vmem:[%s5 + $0x338] sm:$0xff]
        %v3500 = vld [vmem:[%s5 + $0x340] sm:$0xff]
        %v3501 = vld [vmem:[%s5 + $0x348] sm:$0xff]
        %v3502 = vld [vmem:[%s5 + $0x350] sm:$0xff]
        %v3503 = vld [vmem:[%s5 + $0x358] sm:$0xff]
        %v3504 = vld [vmem:[%s5 + $0x360] sm:$0xff]
        %v3505 = vld [vmem:[%s5 + $0x368] sm:$0xff]
        %v3506 = vld [vmem:[%s5 + $0x370] sm:$0xff]
        %v3507 = vld [vmem:[%s5 + $0x378] sm:$0xff]
        %v3508 = vld [vmem:[%s5 + $0x380] sm:$0xff]
        %v3509 = vld [vmem:[%s5 + $0x388] sm:$0xff]
        %v3510 = vld [vmem:[%s5 + $0x390] sm:$0xff]
        %v3511 = vld [vmem:[%s5 + $0x398] sm:$0xff]
        %v3512 = vld [vmem:[%s5 + $0x3a0] sm:$0xff]
        %v3513 = vld [vmem:[%s5 + $0x3a8] sm:$0xff]
        %v3514 = vld [vmem:[%s5 + $0x3b0] sm:$0xff]
        %v3515 = vld [vmem:[%s5 + $0x3b8] sm:$0xff]
        %v3516 = vld [vmem:[%s5 + $0x3c0] sm:$0xff]
        %v3517 = vld [vmem:[%s5 + $0x3c8] sm:$0xff]
        %v3518 = vld [vmem:[%s5 + $0x3d0] sm:$0xff]
        %v3519 = vld [vmem:[%s5 + $0x3d8] sm:$0xff]
        %v3520 = vld [vmem:[%s5 + $0x3e0] sm:$0xff]
        %v3521 = vld [vmem:[%s5 + $0x3e8] sm:$0xff]
        %v3522 = vld [vmem:[%s5 + $0x3f0] sm:$0xff]
        %v3523 = vld [vmem:[%s5 + $0x3f8] sm:$0xff]
        %v3524 = vld [vmem:[%s5 + $0x400] sm:$0xff]
        %v3525 = vld [vmem:[%s5 + $0x408] sm:$0xff]
        %v3526 = vld [vmem:[%s5 + $0x410] sm:$0xff]
        %v3527 = vld [vmem:[%s5 + $0x418] sm:$0xff]
        %v3528 = vld [vmem:[%s5 + $0x420] sm:$0xff]
        %v3529 = vld [vmem:[%s5 + $0x428] sm:$0xff]
        %v3530 = vld [vmem:[%s5 + $0x430] sm:$0xff]
        %v3531 = vld [vmem:[%s5 + $0x438] sm:$0xff]
        %v3532 = vld [vmem:[%s5 + $0x440] sm:$0xff]
        %v3533 = vld [vmem:[%s5 + $0x448] sm:$0xff]
        %v3534 = vld [vmem:[%s5 + $0x450] sm:$0xff]
        %v3535 = vld [vmem:[%s5 + $0x458] sm:$0xff]
        %v3536 = vld [vmem:[%s5 + $0x460] sm:$0xff]
        %v3537 = vld [vmem:[%s5 + $0x468] sm:$0xff]
        %v3538 = vld [vmem:[%s5 + $0x470] sm:$0xff]
        %v3539 = vld [vmem:[%s5 + $0x478] sm:$0xff]
        %v3540 = vld [vmem:[%s5 + $0x480] sm:$0xff]
        %v3541 = vld [vmem:[%s5 + $0x488] sm:$0xff]
        %v3542 = vld [vmem:[%s5 + $0x490] sm:$0xff]
        %v3543 = vld [vmem:[%s5 + $0x498] sm:$0xff]
        %v3544 = vld [vmem:[%s5 + $0x4a0] sm:$0xff]
        %v3545 = vld [vmem:[%s5 + $0x4a8] sm:$0xff]
        %v3546 = vld [vmem:[%s5 + $0x4b0] sm:$0xff]
        %v3547 = vld [vmem:[%s5 + $0x4b8] sm:$0xff]
        %v3548 = vld [vmem:[%s5 + $0x4c0] sm:$0xff]
        %v3549 = vld [vmem:[%s5 + $0x4c8] sm:$0xff]
        %v3550 = vld [vmem:[%s5 + $0x4d0] sm:$0xff]
        %v3551 = vld [vmem:[%s5 + $0x4d8] sm:$0xff]
        %v3552 = vld [vmem:[%s5 + $0x4e0] sm:$0xff]
        %v3553 = vld [vmem:[%s5 + $0x4e8] sm:$0xff]
        %v3554 = vld [vmem:[%s5 + $0x4f0] sm:$0xff]
        %v3555 = vld [vmem:[%s5 + $0x4f8] sm:$0xff]
        %v3556 = vld [vmem:[%s5 + $0x500] sm:$0xff]
        %v3557 = vld [vmem:[%s5 + $0x508] sm:$0xff]
        %v3558 = vld [vmem:[%s5 + $0x510] sm:$0xff]
        %v3559 = vld [vmem:[%s5 + $0x518] sm:$0xff]
        %v3560 = vld [vmem:[%s5 + $0x520] sm:$0xff]
        %v3561 = vld [vmem:[%s5 + $0x528] sm:$0xff]
        %v3562 = vld [vmem:[%s5 + $0x530] sm:$0xff]
        %v3563 = vld [vmem:[%s5 + $0x538] sm:$0xff]
        %v3564 = vld [vmem:[%s5 + $0x540] sm:$0xff]
        %v3565 = vld [vmem:[%s5 + $0x548] sm:$0xff]
        %v3566 = vld [vmem:[%s5 + $0x550] sm:$0xff]
        %v3567 = vld [vmem:[%s5 + $0x558] sm:$0xff]
        %v3568 = vld [vmem:[%s5 + $0x560] sm:$0xff]
        %v3569 = vld [vmem:[%s5 + $0x568] sm:$0xff]
        %v3570 = vld [vmem:[%s5 + $0x570] sm:$0xff]
        %v3571 = vld [vmem:[%s5 + $0x578] sm:$0xff]
        %v3572 = vld [vmem:[%s5 + $0x580] sm:$0xff]
        %v3573 = vld [vmem:[%s5 + $0x588] sm:$0xff]
        %v3574 = vld [vmem:[%s5 + $0x590] sm:$0xff]
        %v3575 = vld [vmem:[%s5 + $0x598] sm:$0xff]
        %v3576 = vld [vmem:[%s5 + $0x5a0] sm:$0xff]
        %v3577 = vld [vmem:[%s5 + $0x5a8] sm:$0xff]
        %v3578 = vld [vmem:[%s5 + $0x5b0] sm:$0xff]
        %v3579 = vld [vmem:[%s5 + $0x5b8] sm:$0xff]
        %v3580 = vld [vmem:[%s5 + $0x5c0] sm:$0xff]
        %v3581 = vld [vmem:[%s5 + $0x5c8] sm:$0xff]
        %v3582 = vld [vmem:[%s5 + $0x5d0] sm:$0xff]
        %v3583 = vld [vmem:[%s5 + $0x5d8] sm:$0xff]
        %v3584 = vld [vmem:[%s5 + $0x5e0] sm:$0xff]
        %v3585 = vld [vmem:[%s5 + $0x5e8] sm:$0xff]
        %v3586 = vld [vmem:[%s5 + $0x5f0] sm:$0xff]
        %v3587 = vld [vmem:[%s5 + $0x5f8] sm:$0xff]
        %v3588 = vld [vmem:[#allocation2] sm:$0xfe]
        %v3589 = vld [vmem:[#allocation2 + $0x8] sm:$0xfe]
        %v3590 = vld [vmem:[#allocation2 + $0x10] sm:$0xfe]
        %v3591 = vld [vmem:[#allocation2 + $0x18] sm:$0xfe]
        %v3592 = vld [vmem:[#allocation2 + $0x20] sm:$0x7]
        %v3593 = vld [vmem:[#allocation2 + $0x28] sm:$0x7]
        %v3594 = vld [vmem:[#allocation2 + $0x30] sm:$0x7]
        %v3595 = vld [vmem:[#allocation2 + $0x38] sm:$0x7]
        %s3596 = scalar_lea.vmem %s5, 1536
        %v3597 = vld [vmem:[%s3596] sm:$0xff]
        %v3598 = vld [vmem:[%s3596 + $0x8] sm:$0xff]
        %v3599 = vld [vmem:[%s3596 + $0x10] sm:$0xff]
        %v3600 = vld [vmem:[%s3596 + $0x18] sm:$0xff]
        %v3601 = vld [vmem:[%s3596 + $0x20] sm:$0xff]
        %v3602 = vld [vmem:[%s3596 + $0x28] sm:$0xff]
        %v3603 = vld [vmem:[%s3596 + $0x30] sm:$0xff]
        %v3604 = vld [vmem:[%s3596 + $0x38] sm:$0xff]
        %v3605 = vld [vmem:[%s3596 + $0x40] sm:$0xff]
        %v3606 = vld [vmem:[%s3596 + $0x48] sm:$0xff]
        %v3607 = vld [vmem:[%s3596 + $0x50] sm:$0xff]
        %v3608 = vld [vmem:[%s3596 + $0x58] sm:$0xff]
        %v3609 = vld [vmem:[%s3596 + $0x60] sm:$0xff]
        %v3610 = vld [vmem:[%s3596 + $0x68] sm:$0xff]
        %v3611 = vld [vmem:[%s3596 + $0x70] sm:$0xff]
        %v3612 = vld [vmem:[%s3596 + $0x78] sm:$0xff]
        %v3613 = vld [vmem:[%s3596 + $0x80] sm:$0xff]
        %v3614 = vld [vmem:[%s3596 + $0x88] sm:$0xff]
        %v3615 = vld [vmem:[%s3596 + $0x90] sm:$0xff]
        %v3616 = vld [vmem:[%s3596 + $0x98] sm:$0xff]
        %v3617 = vld [vmem:[%s3596 + $0xa0] sm:$0xff]
        %v3618 = vld [vmem:[%s3596 + $0xa8] sm:$0xff]
        %v3619 = vld [vmem:[%s3596 + $0xb0] sm:$0xff]
        %v3620 = vld [vmem:[%s3596 + $0xb8] sm:$0xff]
        %v3621 = vld [vmem:[%s3596 + $0xc0] sm:$0xff]
        %v3622 = vld [vmem:[%s3596 + $0xc8] sm:$0xff]
        %v3623 = vld [vmem:[%s3596 + $0xd0] sm:$0xff]
        %v3624 = vld [vmem:[%s3596 + $0xd8] sm:$0xff]
        %v3625 = vld [vmem:[%s3596 + $0xe0] sm:$0xff]
        %v3626 = vld [vmem:[%s3596 + $0xe8] sm:$0xff]
        %v3627 = vld [vmem:[%s3596 + $0xf0] sm:$0xff]
        %v3628 = vld [vmem:[%s3596 + $0xf8] sm:$0xff]
        %v3629 = vld [vmem:[%s3596 + $0x100] sm:$0xff]
        %v3630 = vld [vmem:[%s3596 + $0x108] sm:$0xff]
        %v3631 = vld [vmem:[%s3596 + $0x110] sm:$0xff]
        %v3632 = vld [vmem:[%s3596 + $0x118] sm:$0xff]
        %v3633 = vld [vmem:[%s3596 + $0x120] sm:$0xff]
        %v3634 = vld [vmem:[%s3596 + $0x128] sm:$0xff]
        %v3635 = vld [vmem:[%s3596 + $0x130] sm:$0xff]
        %v3636 = vld [vmem:[%s3596 + $0x138] sm:$0xff]
        %v3637 = vld [vmem:[%s3596 + $0x140] sm:$0xff]
        %v3638 = vld [vmem:[%s3596 + $0x148] sm:$0xff]
        %v3639 = vld [vmem:[%s3596 + $0x150] sm:$0xff]
        %v3640 = vld [vmem:[%s3596 + $0x158] sm:$0xff]
        %v3641 = vld [vmem:[%s3596 + $0x160] sm:$0xff]
        %v3642 = vld [vmem:[%s3596 + $0x168] sm:$0xff]
        %v3643 = vld [vmem:[%s3596 + $0x170] sm:$0xff]
        %v3644 = vld [vmem:[%s3596 + $0x178] sm:$0xff]
        %v3645 = vld [vmem:[%s3596 + $0x180] sm:$0xff]
        %v3646 = vld [vmem:[%s3596 + $0x188] sm:$0xff]
        %v3647 = vld [vmem:[%s3596 + $0x190] sm:$0xff]
        %v3648 = vld [vmem:[%s3596 + $0x198] sm:$0xff]
        %v3649 = vld [vmem:[%s3596 + $0x1a0] sm:$0xff]
        %v3650 = vld [vmem:[%s3596 + $0x1a8] sm:$0xff]
        %v3651 = vld [vmem:[%s3596 + $0x1b0] sm:$0xff]
        %v3652 = vld [vmem:[%s3596 + $0x1b8] sm:$0xff]
        %v3653 = vld [vmem:[%s3596 + $0x1c0] sm:$0xff]
        %v3654 = vld [vmem:[%s3596 + $0x1c8] sm:$0xff]
        %v3655 = vld [vmem:[%s3596 + $0x1d0] sm:$0xff]
        %v3656 = vld [vmem:[%s3596 + $0x1d8] sm:$0xff]
        %v3657 = vld [vmem:[%s3596 + $0x1e0] sm:$0xff]
        %v3658 = vld [vmem:[%s3596 + $0x1e8] sm:$0xff]
        %v3659 = vld [vmem:[%s3596 + $0x1f0] sm:$0xff]
        %v3660 = vld [vmem:[%s3596 + $0x1f8] sm:$0xff]
        %v3661 = vld [vmem:[%s3596 + $0x200] sm:$0xff]
        %v3662 = vld [vmem:[%s3596 + $0x208] sm:$0xff]
        %v3663 = vld [vmem:[%s3596 + $0x210] sm:$0xff]
        %v3664 = vld [vmem:[%s3596 + $0x218] sm:$0xff]
        %v3665 = vld [vmem:[%s3596 + $0x220] sm:$0xff]
        %v3666 = vld [vmem:[%s3596 + $0x228] sm:$0xff]
        %v3667 = vld [vmem:[%s3596 + $0x230] sm:$0xff]
        %v3668 = vld [vmem:[%s3596 + $0x238] sm:$0xff]
        %v3669 = vld [vmem:[%s3596 + $0x240] sm:$0xff]
        %v3670 = vld [vmem:[%s3596 + $0x248] sm:$0xff]
        %v3671 = vld [vmem:[%s3596 + $0x250] sm:$0xff]
        %v3672 = vld [vmem:[%s3596 + $0x258] sm:$0xff]
        %v3673 = vld [vmem:[%s3596 + $0x260] sm:$0xff]
        %v3674 = vld [vmem:[%s3596 + $0x268] sm:$0xff]
        %v3675 = vld [vmem:[%s3596 + $0x270] sm:$0xff]
        %v3676 = vld [vmem:[%s3596 + $0x278] sm:$0xff]
        %v3677 = vld [vmem:[%s3596 + $0x280] sm:$0xff]
        %v3678 = vld [vmem:[%s3596 + $0x288] sm:$0xff]
        %v3679 = vld [vmem:[%s3596 + $0x290] sm:$0xff]
        %v3680 = vld [vmem:[%s3596 + $0x298] sm:$0xff]
        %v3681 = vld [vmem:[%s3596 + $0x2a0] sm:$0xff]
        %v3682 = vld [vmem:[%s3596 + $0x2a8] sm:$0xff]
        %v3683 = vld [vmem:[%s3596 + $0x2b0] sm:$0xff]
        %v3684 = vld [vmem:[%s3596 + $0x2b8] sm:$0xff]
        %v3685 = vld [vmem:[%s3596 + $0x2c0] sm:$0xff]
        %v3686 = vld [vmem:[%s3596 + $0x2c8] sm:$0xff]
        %v3687 = vld [vmem:[%s3596 + $0x2d0] sm:$0xff]
        %v3688 = vld [vmem:[%s3596 + $0x2d8] sm:$0xff]
        %v3689 = vld [vmem:[%s3596 + $0x2e0] sm:$0xff]
        %v3690 = vld [vmem:[%s3596 + $0x2e8] sm:$0xff]
        %v3691 = vld [vmem:[%s3596 + $0x2f0] sm:$0xff]
        %v3692 = vld [vmem:[%s3596 + $0x2f8] sm:$0xff]
        %v3693 = vld [vmem:[%s3596 + $0x300] sm:$0xff]
        %v3694 = vld [vmem:[%s3596 + $0x308] sm:$0xff]
        %v3695 = vld [vmem:[%s3596 + $0x310] sm:$0xff]
        %v3696 = vld [vmem:[%s3596 + $0x318] sm:$0xff]
        %v3697 = vld [vmem:[%s3596 + $0x320] sm:$0xff]
        %v3698 = vld [vmem:[%s3596 + $0x328] sm:$0xff]
        %v3699 = vld [vmem:[%s3596 + $0x330] sm:$0xff]
        %v3700 = vld [vmem:[%s3596 + $0x338] sm:$0xff]
        %v3701 = vld [vmem:[%s3596 + $0x340] sm:$0xff]
        %v3702 = vld [vmem:[%s3596 + $0x348] sm:$0xff]
        %v3703 = vld [vmem:[%s3596 + $0x350] sm:$0xff]
        %v3704 = vld [vmem:[%s3596 + $0x358] sm:$0xff]
        %v3705 = vld [vmem:[%s3596 + $0x360] sm:$0xff]
        %v3706 = vld [vmem:[%s3596 + $0x368] sm:$0xff]
        %v3707 = vld [vmem:[%s3596 + $0x370] sm:$0xff]
        %v3708 = vld [vmem:[%s3596 + $0x378] sm:$0xff]
        %v3709 = vld [vmem:[%s3596 + $0x380] sm:$0xff]
        %v3710 = vld [vmem:[%s3596 + $0x388] sm:$0xff]
        %v3711 = vld [vmem:[%s3596 + $0x390] sm:$0xff]
        %v3712 = vld [vmem:[%s3596 + $0x398] sm:$0xff]
        %v3713 = vld [vmem:[%s3596 + $0x3a0] sm:$0xff]
        %v3714 = vld [vmem:[%s3596 + $0x3a8] sm:$0xff]
        %v3715 = vld [vmem:[%s3596 + $0x3b0] sm:$0xff]
        %v3716 = vld [vmem:[%s3596 + $0x3b8] sm:$0xff]
        %v3717 = vld [vmem:[%s3596 + $0x3c0] sm:$0xff]
        %v3718 = vld [vmem:[%s3596 + $0x3c8] sm:$0xff]
        %v3719 = vld [vmem:[%s3596 + $0x3d0] sm:$0xff]
        %v3720 = vld [vmem:[%s3596 + $0x3d8] sm:$0xff]
        %v3721 = vld [vmem:[%s3596 + $0x3e0] sm:$0xff]
        %v3722 = vld [vmem:[%s3596 + $0x3e8] sm:$0xff]
        %v3723 = vld [vmem:[%s3596 + $0x3f0] sm:$0xff]
        %v3724 = vld [vmem:[%s3596 + $0x3f8] sm:$0xff]
        %v3725 = vld [vmem:[%s3596 + $0x400] sm:$0xff]
        %v3726 = vld [vmem:[%s3596 + $0x408] sm:$0xff]
        %v3727 = vld [vmem:[%s3596 + $0x410] sm:$0xff]
        %v3728 = vld [vmem:[%s3596 + $0x418] sm:$0xff]
        %v3729 = vld [vmem:[%s3596 + $0x420] sm:$0xff]
        %v3730 = vld [vmem:[%s3596 + $0x428] sm:$0xff]
        %v3731 = vld [vmem:[%s3596 + $0x430] sm:$0xff]
        %v3732 = vld [vmem:[%s3596 + $0x438] sm:$0xff]
        %v3733 = vld [vmem:[%s3596 + $0x440] sm:$0xff]
        %v3734 = vld [vmem:[%s3596 + $0x448] sm:$0xff]
        %v3735 = vld [vmem:[%s3596 + $0x450] sm:$0xff]
        %v3736 = vld [vmem:[%s3596 + $0x458] sm:$0xff]
        %v3737 = vld [vmem:[%s3596 + $0x460] sm:$0xff]
        %v3738 = vld [vmem:[%s3596 + $0x468] sm:$0xff]
        %v3739 = vld [vmem:[%s3596 + $0x470] sm:$0xff]
        %v3740 = vld [vmem:[%s3596 + $0x478] sm:$0xff]
        %v3741 = vld [vmem:[%s3596 + $0x480] sm:$0xff]
        %v3742 = vld [vmem:[%s3596 + $0x488] sm:$0xff]
        %v3743 = vld [vmem:[%s3596 + $0x490] sm:$0xff]
        %v3744 = vld [vmem:[%s3596 + $0x498] sm:$0xff]
        %v3745 = vld [vmem:[%s3596 + $0x4a0] sm:$0xff]
        %v3746 = vld [vmem:[%s3596 + $0x4a8] sm:$0xff]
        %v3747 = vld [vmem:[%s3596 + $0x4b0] sm:$0xff]
        %v3748 = vld [vmem:[%s3596 + $0x4b8] sm:$0xff]
        %v3749 = vld [vmem:[%s3596 + $0x4c0] sm:$0xff]
        %v3750 = vld [vmem:[%s3596 + $0x4c8] sm:$0xff]
        %v3751 = vld [vmem:[%s3596 + $0x4d0] sm:$0xff]
        %v3752 = vld [vmem:[%s3596 + $0x4d8] sm:$0xff]
        %v3753 = vld [vmem:[%s3596 + $0x4e0] sm:$0xff]
        %v3754 = vld [vmem:[%s3596 + $0x4e8] sm:$0xff]
        %v3755 = vld [vmem:[%s3596 + $0x4f0] sm:$0xff]
        %v3756 = vld [vmem:[%s3596 + $0x4f8] sm:$0xff]
        %v3757 = vld [vmem:[%s3596 + $0x500] sm:$0xff]
        %v3758 = vld [vmem:[%s3596 + $0x508] sm:$0xff]
        %v3759 = vld [vmem:[%s3596 + $0x510] sm:$0xff]
        %v3760 = vld [vmem:[%s3596 + $0x518] sm:$0xff]
        %v3761 = vld [vmem:[%s3596 + $0x520] sm:$0xff]
        %v3762 = vld [vmem:[%s3596 + $0x528] sm:$0xff]
        %v3763 = vld [vmem:[%s3596 + $0x530] sm:$0xff]
        %v3764 = vld [vmem:[%s3596 + $0x538] sm:$0xff]
        %v3765 = vld [vmem:[%s3596 + $0x540] sm:$0xff]
        %v3766 = vld [vmem:[%s3596 + $0x548] sm:$0xff]
        %v3767 = vld [vmem:[%s3596 + $0x550] sm:$0xff]
        %v3768 = vld [vmem:[%s3596 + $0x558] sm:$0xff]
        %v3769 = vld [vmem:[%s3596 + $0x560] sm:$0xff]
        %v3770 = vld [vmem:[%s3596 + $0x568] sm:$0xff]
        %v3771 = vld [vmem:[%s3596 + $0x570] sm:$0xff]
        %v3772 = vld [vmem:[%s3596 + $0x578] sm:$0xff]
        %v3773 = vld [vmem:[%s3596 + $0x580] sm:$0xff]
        %v3774 = vld [vmem:[%s3596 + $0x588] sm:$0xff]
        %v3775 = vld [vmem:[%s3596 + $0x590] sm:$0xff]
        %v3776 = vld [vmem:[%s3596 + $0x598] sm:$0xff]
        %v3777 = vld [vmem:[%s3596 + $0x5a0] sm:$0xff]
        %v3778 = vld [vmem:[%s3596 + $0x5a8] sm:$0xff]
        %v3779 = vld [vmem:[%s3596 + $0x5b0] sm:$0xff]
        %v3780 = vld [vmem:[%s3596 + $0x5b8] sm:$0xff]
        %v3781 = vld [vmem:[%s3596 + $0x5c0] sm:$0xff]
        %v3782 = vld [vmem:[%s3596 + $0x5c8] sm:$0xff]
        %v3783 = vld [vmem:[%s3596 + $0x5d0] sm:$0xff]
        %v3784 = vld [vmem:[%s3596 + $0x5d8] sm:$0xff]
        %v3785 = vld [vmem:[%s3596 + $0x5e0] sm:$0xff]
        %v3786 = vld [vmem:[%s3596 + $0x5e8] sm:$0xff]
        %v3787 = vld [vmem:[%s3596 + $0x5f0] sm:$0xff]
        %v3788 = vld [vmem:[%s3596 + $0x5f8] sm:$0xff]
        %v3797 = vrot.slane %v3588, 1
        %v3798 = vrot.slane %v3592, 1
        %v3799 = vsel %vm568, %v3797, %v3798
        %v3800 = vrot.slane %v3589, 1
        %v3801 = vrot.slane %v3593, 1
        %v3802 = vsel %vm568, %v3800, %v3801
        %v3803 = vrot.slane %v3590, 1
        %v3804 = vrot.slane %v3594, 1
        %v3805 = vsel %vm568, %v3803, %v3804
        %v3806 = vrot.slane %v3591, 1
        %v3807 = vrot.slane %v3595, 1
        %v3808 = vsel %vm568, %v3806, %v3807
        %3817 = vmatprep.subr.mxu0 %v3643
        %3818 = vmatpush1.msra.mxu0 %v3642
        %3819 = vmatprep.subr.mxu0 %v3640
        %3820 = vmatpush1.msra.mxu0 %v3639
        %3821 = vmatprep.subr.mxu0 %v3637
        %3822 = vmatpush1.msra.mxu0 %v3636
        %3823 = vmatprep.subr.mxu0 %v3634
        %3824 = vmatpush1.msra.mxu0 %v3633
        %3825 = vmatprep.subr.mxu0 %v3631
        %3826 = vmatpush1.msra.mxu0 %v3630
        %3827 = vmatprep.subr.mxu0 %v3628
        %3828 = vmatpush1.msra.mxu0 %v3627
        %3829 = vmatprep.subr.mxu0 %v3625
        %3830 = vmatpush1.msra.mxu0 %v3624
        %3831 = vmatprep.subr.mxu0 %v3622
        %3832 = vmatpush1.msra.mxu0 %v3621
        %3833 = vmatprep.subr.mxu0 %v3619
        %3834 = vmatpush1.msra.mxu0 %v3618
        %3835 = vmatprep.subr.mxu0 %v3616
        %3836 = vmatpush1.msra.mxu0 %v3615
        %3837 = vmatprep.subr.mxu0 %v3613
        %3838 = vmatpush1.msra.mxu0 %v3612
        %3839 = vmatprep.subr.mxu0 %v3610
        %3840 = vmatpush1.msra.mxu0 %v3609
        %3841 = vmatprep.subr.mxu0 %v3607
        %3842 = vmatpush1.msra.mxu0 %v3606
        %3843 = vmatprep.subr.mxu0 %v3604
        %3844 = vmatpush1.msra.mxu0 %v3603
        %3845 = vmatprep.subr.mxu0 %v3601
        %3846 = vmatpush1.msra.mxu0 %v3600
        %3847 = vmatprep.subr.mxu0 %v3598
        %3848 = vmatpush1.msra.mxu0 %v3597
        %3849 = vmatprep.subr.mxu0 %v3691
        %3850 = vmatpush2.msra.mxu0 %v3690
        %3851 = vmatprep.subr.mxu0 %v3688
        %3852 = vmatpush2.msra.mxu0 %v3687
        %3853 = vmatprep.subr.mxu0 %v3685
        %3854 = vmatpush2.msra.mxu0 %v3684
        %3855 = vmatprep.subr.mxu0 %v3682
        %3856 = vmatpush2.msra.mxu0 %v3681
        %3857 = vmatprep.subr.mxu0 %v3679
        %3858 = vmatpush2.msra.mxu0 %v3678
        %3859 = vmatprep.subr.mxu0 %v3676
        %3860 = vmatpush2.msra.mxu0 %v3675
        %3861 = vmatprep.subr.mxu0 %v3673
        %3862 = vmatpush2.msra.mxu0 %v3672
        %3863 = vmatprep.subr.mxu0 %v3670
        %3864 = vmatpush2.msra.mxu0 %v3669
        %3865 = vmatprep.subr.mxu0 %v3667
        %3866 = vmatpush2.msra.mxu0 %v3666
        %3867 = vmatprep.subr.mxu0 %v3664
        %3868 = vmatpush2.msra.mxu0 %v3663
        %3869 = vmatprep.subr.mxu0 %v3661
        %3870 = vmatpush2.msra.mxu0 %v3660
        %3871 = vmatprep.subr.mxu0 %v3658
        %3872 = vmatpush2.msra.mxu0 %v3657
        %3873 = vmatprep.subr.mxu0 %v3655
        %3874 = vmatpush2.msra.mxu0 %v3654
        %3875 = vmatprep.subr.mxu0 %v3652
        %3876 = vmatpush2.msra.mxu0 %v3651
        %3877 = vmatprep.subr.mxu0 %v3649
        %3878 = vmatpush2.msra.mxu0 %v3648
        %3879 = vmatprep.subr.mxu0 %v3646
        %3880 = vmatpush2.msra.mxu0 %v3645
        %3881 = vmatprep.mubr.f32.mxu0 %v3802
        %3882 = vmatmul.mubr.f32.gmra.mxu0 %v3799
        %v3883 = vpop.f32.mrf.mxu0
        %v3884 = vadd.f32 0.0, %v3883
        %v3885 = vpop.f32.mrf.mxu0
        %v3886 = vadd.f32 0.0, %v3885
        %3887 = vmatprep.mubr.f32.mxu0 %v3801
        %3888 = vmatmul.mubr.f32.gmra.mxu0 %v3798
        %v3889 = vpop.f32.mrf.mxu0
        %v3890 = vadd.f32 0.0, %v3889
        %v3891 = vpop.f32.mrf.mxu0
        %v3892 = vadd.f32 0.0, %v3891
        %3893 = vdwg.mxu0
        %3894 = vmatprep.subr.mxu0 %v3739
        %3895 = vmatpush1.msra.mxu0 %v3738
        %3896 = vmatprep.subr.mxu0 %v3736
        %3897 = vmatpush1.msra.mxu0 %v3735
        %3898 = vmatprep.subr.mxu0 %v3733
        %3899 = vmatpush1.msra.mxu0 %v3732
        %3900 = vmatprep.subr.mxu0 %v3730
        %3901 = vmatpush1.msra.mxu0 %v3729
        %3902 = vmatprep.subr.mxu0 %v3727
        %3903 = vmatpush1.msra.mxu0 %v3726
        %3904 = vmatprep.subr.mxu0 %v3724
        %3905 = vmatpush1.msra.mxu0 %v3723
        %3906 = vmatprep.subr.mxu0 %v3721
        %3907 = vmatpush1.msra.mxu0 %v3720
        %3908 = vmatprep.subr.mxu0 %v3718
        %3909 = vmatpush1.msra.mxu0 %v3717
        %3910 = vmatprep.subr.mxu0 %v3715
        %3911 = vmatpush1.msra.mxu0 %v3714
        %3912 = vmatprep.subr.mxu0 %v3712
        %3913 = vmatpush1.msra.mxu0 %v3711
        %3914 = vmatprep.subr.mxu0 %v3709
        %3915 = vmatpush1.msra.mxu0 %v3708
        %3916 = vmatprep.subr.mxu0 %v3706
        %3917 = vmatpush1.msra.mxu0 %v3705
        %3918 = vmatprep.subr.mxu0 %v3703
        %3919 = vmatpush1.msra.mxu0 %v3702
        %3920 = vmatprep.subr.mxu0 %v3700
        %3921 = vmatpush1.msra.mxu0 %v3699
        %3922 = vmatprep.subr.mxu0 %v3697
        %3923 = vmatpush1.msra.mxu0 %v3696
        %3924 = vmatprep.subr.mxu0 %v3694
        %3925 = vmatpush1.msra.mxu0 %v3693
        %3926 = vmatprep.subr.mxu0 %v3787
        %3927 = vmatpush2.msra.mxu0 %v3786
        %3928 = vmatprep.subr.mxu0 %v3784
        %3929 = vmatpush2.msra.mxu0 %v3783
        %3930 = vmatprep.subr.mxu0 %v3781
        %3931 = vmatpush2.msra.mxu0 %v3780
        %3932 = vmatprep.subr.mxu0 %v3778
        %3933 = vmatpush2.msra.mxu0 %v3777
        %3934 = vmatprep.subr.mxu0 %v3775
        %3935 = vmatpush2.msra.mxu0 %v3774
        %3936 = vmatprep.subr.mxu0 %v3772
        %3937 = vmatpush2.msra.mxu0 %v3771
        %3938 = vmatprep.subr.mxu0 %v3769
        %3939 = vmatpush2.msra.mxu0 %v3768
        %3940 = vmatprep.subr.mxu0 %v3766
        %3941 = vmatpush2.msra.mxu0 %v3765
        %3942 = vmatprep.subr.mxu0 %v3763
        %3943 = vmatpush2.msra.mxu0 %v3762
        %3944 = vmatprep.subr.mxu0 %v3760
        %3945 = vmatpush2.msra.mxu0 %v3759
        %3946 = vmatprep.subr.mxu0 %v3757
        %3947 = vmatpush2.msra.mxu0 %v3756
        %3948 = vmatprep.subr.mxu0 %v3754
        %3949 = vmatpush2.msra.mxu0 %v3753
        %3950 = vmatprep.subr.mxu0 %v3751
        %3951 = vmatpush2.msra.mxu0 %v3750
        %3952 = vmatprep.subr.mxu0 %v3748
        %3953 = vmatpush2.msra.mxu0 %v3747
        %3954 = vmatprep.subr.mxu0 %v3745
        %3955 = vmatpush2.msra.mxu0 %v3744
        %3956 = vmatprep.subr.mxu0 %v3742
        %3957 = vmatpush2.msra.mxu0 %v3741
        %3958 = vmatprep.mubr.f32.mxu0 %v3808
        %3959 = vmatmul.mubr.f32.gmra.mxu0 %v3805
        %v3960 = vpop.f32.mrf.mxu0
        %v3961 = vadd.f32 %v3884, %v3960
        %v3962 = vpop.f32.mrf.mxu0
        %v3963 = vadd.f32 %v3886, %v3962
        %3964 = vmatprep.mubr.f32.mxu0 %v3807
        %3965 = vmatmul.mubr.f32.gmra.mxu0 %v3804
        %v3966 = vpop.f32.mrf.mxu0
        %v3967 = vadd.f32 %v3890, %v3966
        %v3968 = vpop.f32.mrf.mxu0
        %v3969 = vadd.f32 %v3892, %v3968
        %3970 = vdwg.mxu0
        %3971 = vmatprep.subr.mxu0 0.0
        %3972 = vmatpush1.msra.mxu0 %v3644
        %3973 = vmatprep.subr.mxu0 0.0
        %3974 = vmatpush1.msra.mxu0 %v3641
        %3975 = vmatprep.subr.mxu0 0.0
        %3976 = vmatpush1.msra.mxu0 %v3638
        %3977 = vmatprep.subr.mxu0 0.0
        %3978 = vmatpush1.msra.mxu0 %v3635
        %3979 = vmatprep.subr.mxu0 0.0
        %3980 = vmatpush1.msra.mxu0 %v3632
        %3981 = vmatprep.subr.mxu0 0.0
        %3982 = vmatpush1.msra.mxu0 %v3629
        %3983 = vmatprep.subr.mxu0 0.0
        %3984 = vmatpush1.msra.mxu0 %v3626
        %3985 = vmatprep.subr.mxu0 0.0
        %3986 = vmatpush1.msra.mxu0 %v3623
        %3987 = vmatprep.subr.mxu0 0.0
        %3988 = vmatpush1.msra.mxu0 %v3620
        %3989 = vmatprep.subr.mxu0 0.0
        %3990 = vmatpush1.msra.mxu0 %v3617
        %3991 = vmatprep.subr.mxu0 0.0
        %3992 = vmatpush1.msra.mxu0 %v3614
        %3993 = vmatprep.subr.mxu0 0.0
        %3994 = vmatpush1.msra.mxu0 %v3611
        %3995 = vmatprep.subr.mxu0 0.0
        %3996 = vmatpush1.msra.mxu0 %v3608
        %3997 = vmatprep.subr.mxu0 0.0
        %3998 = vmatpush1.msra.mxu0 %v3605
        %3999 = vmatprep.subr.mxu0 0.0
        %4000 = vmatpush1.msra.mxu0 %v3602
        %4001 = vmatprep.subr.mxu0 0.0
        %4002 = vmatpush1.msra.mxu0 %v3599
        %4003 = vmatprep.subr.mxu0 0.0
        %4004 = vmatpush2.msra.mxu0 %v3692
        %4005 = vmatprep.subr.mxu0 0.0
        %4006 = vmatpush2.msra.mxu0 %v3689
        %4007 = vmatprep.subr.mxu0 0.0
        %4008 = vmatpush2.msra.mxu0 %v3686
        %4009 = vmatprep.subr.mxu0 0.0
        %4010 = vmatpush2.msra.mxu0 %v3683
        %4011 = vmatprep.subr.mxu0 0.0
        %4012 = vmatpush2.msra.mxu0 %v3680
        %4013 = vmatprep.subr.mxu0 0.0
        %4014 = vmatpush2.msra.mxu0 %v3677
        %4015 = vmatprep.subr.mxu0 0.0
        %4016 = vmatpush2.msra.mxu0 %v3674
        %4017 = vmatprep.subr.mxu0 0.0
        %4018 = vmatpush2.msra.mxu0 %v3671
        %4019 = vmatprep.subr.mxu0 0.0
        %4020 = vmatpush2.msra.mxu0 %v3668
        %4021 = vmatprep.subr.mxu0 0.0
        %4022 = vmatpush2.msra.mxu0 %v3665
        %4023 = vmatprep.subr.mxu0 0.0
        %4024 = vmatpush2.msra.mxu0 %v3662
        %4025 = vmatprep.subr.mxu0 0.0
        %4026 = vmatpush2.msra.mxu0 %v3659
        %4027 = vmatprep.subr.mxu0 0.0
        %4028 = vmatpush2.msra.mxu0 %v3656
        %4029 = vmatprep.subr.mxu0 0.0
        %4030 = vmatpush2.msra.mxu0 %v3653
        %4031 = vmatprep.subr.mxu0 0.0
        %4032 = vmatpush2.msra.mxu0 %v3650
        %4033 = vmatprep.subr.mxu0 0.0
        %4034 = vmatpush2.msra.mxu0 %v3647
        %4035 = vmatprep.mubr.f32.mxu0 %v3802
        %4036 = vmatmul.mubr.f32.gmra.mxu0 %v3799
        %v4037 = vpop.f32.mrf.mxu0
        %v4038 = vadd.f32 0.0, %v4037
        %v4039 = vpop.f32.mrf.mxu0
        %4040 = vmatprep.mubr.f32.mxu0 %v3801
        %4041 = vmatmul.mubr.f32.gmra.mxu0 %v3798
        %v4042 = vpop.f32.mrf.mxu0
        %v4043 = vadd.f32 0.0, %v4042
        %v4044 = vpop.f32.mrf.mxu0
        %4045 = vdwg.mxu0
        %4046 = vmatprep.subr.mxu0 0.0
        %4047 = vmatpush1.msra.mxu0 %v3740
        %4048 = vmatprep.subr.mxu0 0.0
        %4049 = vmatpush1.msra.mxu0 %v3737
        %4050 = vmatprep.subr.mxu0 0.0
        %4051 = vmatpush1.msra.mxu0 %v3734
        %4052 = vmatprep.subr.mxu0 0.0
        %4053 = vmatpush1.msra.mxu0 %v3731
        %4054 = vmatprep.subr.mxu0 0.0
        %4055 = vmatpush1.msra.mxu0 %v3728
        %4056 = vmatprep.subr.mxu0 0.0
        %4057 = vmatpush1.msra.mxu0 %v3725
        %4058 = vmatprep.subr.mxu0 0.0
        %4059 = vmatpush1.msra.mxu0 %v3722
        %4060 = vmatprep.subr.mxu0 0.0
        %4061 = vmatpush1.msra.mxu0 %v3719
        %4062 = vmatprep.subr.mxu0 0.0
        %4063 = vmatpush1.msra.mxu0 %v3716
        %4064 = vmatprep.subr.mxu0 0.0
        %4065 = vmatpush1.msra.mxu0 %v3713
        %4066 = vmatprep.subr.mxu0 0.0
        %4067 = vmatpush1.msra.mxu0 %v3710
        %4068 = vmatprep.subr.mxu0 0.0
        %4069 = vmatpush1.msra.mxu0 %v3707
        %4070 = vmatprep.subr.mxu0 0.0
        %4071 = vmatpush1.msra.mxu0 %v3704
        %4072 = vmatprep.subr.mxu0 0.0
        %4073 = vmatpush1.msra.mxu0 %v3701
        %4074 = vmatprep.subr.mxu0 0.0
        %4075 = vmatpush1.msra.mxu0 %v3698
        %4076 = vmatprep.subr.mxu0 0.0
        %4077 = vmatpush1.msra.mxu0 %v3695
        %4078 = vmatprep.subr.mxu0 0.0
        %4079 = vmatpush2.msra.mxu0 %v3788
        %4080 = vmatprep.subr.mxu0 0.0
        %4081 = vmatpush2.msra.mxu0 %v3785
        %4082 = vmatprep.subr.mxu0 0.0
        %4083 = vmatpush2.msra.mxu0 %v3782
        %4084 = vmatprep.subr.mxu0 0.0
        %4085 = vmatpush2.msra.mxu0 %v3779
        %4086 = vmatprep.subr.mxu0 0.0
        %4087 = vmatpush2.msra.mxu0 %v3776
        %4088 = vmatprep.subr.mxu0 0.0
        %4089 = vmatpush2.msra.mxu0 %v3773
        %4090 = vmatprep.subr.mxu0 0.0
        %4091 = vmatpush2.msra.mxu0 %v3770
        %4092 = vmatprep.subr.mxu0 0.0
        %4093 = vmatpush2.msra.mxu0 %v3767
        %4094 = vmatprep.subr.mxu0 0.0
        %4095 = vmatpush2.msra.mxu0 %v3764
        %4096 = vmatprep.subr.mxu0 0.0
        %4097 = vmatpush2.msra.mxu0 %v3761
        %4098 = vmatprep.subr.mxu0 0.0
        %4099 = vmatpush2.msra.mxu0 %v3758
        %4100 = vmatprep.subr.mxu0 0.0
        %4101 = vmatpush2.msra.mxu0 %v3755
        %4102 = vmatprep.subr.mxu0 0.0
        %4103 = vmatpush2.msra.mxu0 %v3752
        %4104 = vmatprep.subr.mxu0 0.0
        %4105 = vmatpush2.msra.mxu0 %v3749
        %4106 = vmatprep.subr.mxu0 0.0
        %4107 = vmatpush2.msra.mxu0 %v3746
        %4108 = vmatprep.subr.mxu0 0.0
        %4109 = vmatpush2.msra.mxu0 %v3743
        %4110 = vmatprep.mubr.f32.mxu0 %v3808
        %4111 = vmatmul.mubr.f32.gmra.mxu0 %v3805
        %v4112 = vpop.f32.mrf.mxu0
        %v4113 = vadd.f32 %v4038, %v4112
        %v4114 = vpop.f32.mrf.mxu0
        %4115 = vmatprep.mubr.f32.mxu0 %v3807
        %4116 = vmatmul.mubr.f32.gmra.mxu0 %v3804
        %v4117 = vpop.f32.mrf.mxu0
        %v4118 = vadd.f32 %v4043, %v4117
        %v4119 = vpop.f32.mrf.mxu0
        %4120 = vdwg.mxu0
        %4121 = vmatprep.subr.mxu0 %v3442
        %4122 = vmatpush1.msra.mxu0 %v3441
        %4123 = vmatprep.subr.mxu0 %v3439
        %4124 = vmatpush1.msra.mxu0 %v3438
        %4125 = vmatprep.subr.mxu0 %v3436
        %4126 = vmatpush1.msra.mxu0 %v3435
        %4127 = vmatprep.subr.mxu0 %v3433
        %4128 = vmatpush1.msra.mxu0 %v3432
        %4129 = vmatprep.subr.mxu0 %v3430
        %4130 = vmatpush1.msra.mxu0 %v3429
        %4131 = vmatprep.subr.mxu0 %v3427
        %4132 = vmatpush1.msra.mxu0 %v3426
        %4133 = vmatprep.subr.mxu0 %v3424
        %4134 = vmatpush1.msra.mxu0 %v3423
        %4135 = vmatprep.subr.mxu0 %v3421
        %4136 = vmatpush1.msra.mxu0 %v3420
        %4137 = vmatprep.subr.mxu0 %v3418
        %4138 = vmatpush1.msra.mxu0 %v3417
        %4139 = vmatprep.subr.mxu0 %v3415
        %4140 = vmatpush1.msra.mxu0 %v3414
        %4141 = vmatprep.subr.mxu0 %v3412
        %4142 = vmatpush1.msra.mxu0 %v3411
        %4143 = vmatprep.subr.mxu0 %v3409
        %4144 = vmatpush1.msra.mxu0 %v3408
        %4145 = vmatprep.subr.mxu0 %v3406
        %4146 = vmatpush1.msra.mxu0 %v3405
        %4147 = vmatprep.subr.mxu0 %v3403
        %4148 = vmatpush1.msra.mxu0 %v3402
        %4149 = vmatprep.subr.mxu0 %v3400
        %4150 = vmatpush1.msra.mxu0 %v3399
        %4151 = vmatprep.subr.mxu0 %v3397
        %4152 = vmatpush1.msra.mxu0 %v3396
        %4153 = vmatprep.subr.mxu0 %v3490
        %4154 = vmatpush2.msra.mxu0 %v3489
        %4155 = vmatprep.subr.mxu0 %v3487
        %4156 = vmatpush2.msra.mxu0 %v3486
        %4157 = vmatprep.subr.mxu0 %v3484
        %4158 = vmatpush2.msra.mxu0 %v3483
        %4159 = vmatprep.subr.mxu0 %v3481
        %4160 = vmatpush2.msra.mxu0 %v3480
        %4161 = vmatprep.subr.mxu0 %v3478
        %4162 = vmatpush2.msra.mxu0 %v3477
        %4163 = vmatprep.subr.mxu0 %v3475
        %4164 = vmatpush2.msra.mxu0 %v3474
        %4165 = vmatprep.subr.mxu0 %v3472
        %4166 = vmatpush2.msra.mxu0 %v3471
        %4167 = vmatprep.subr.mxu0 %v3469
        %4168 = vmatpush2.msra.mxu0 %v3468
        %4169 = vmatprep.subr.mxu0 %v3466
        %4170 = vmatpush2.msra.mxu0 %v3465
        %4171 = vmatprep.subr.mxu0 %v3463
        %4172 = vmatpush2.msra.mxu0 %v3462
        %4173 = vmatprep.subr.mxu0 %v3460
        %4174 = vmatpush2.msra.mxu0 %v3459
        %4175 = vmatprep.subr.mxu0 %v3457
        %4176 = vmatpush2.msra.mxu0 %v3456
        %4177 = vmatprep.subr.mxu0 %v3454
        %4178 = vmatpush2.msra.mxu0 %v3453
        %4179 = vmatprep.subr.mxu0 %v3451
        %4180 = vmatpush2.msra.mxu0 %v3450
        %4181 = vmatprep.subr.mxu0 %v3448
        %4182 = vmatpush2.msra.mxu0 %v3447
        %4183 = vmatprep.subr.mxu0 %v3445
        %4184 = vmatpush2.msra.mxu0 %v3444
        %4185 = vmatprep.mubr.f32.mxu0 %v3389
        %4186 = vmatmul.mubr.f32.gmra.mxu0 %v3388
        %v4187 = vpop.f32.mrf.mxu0
        %v4188 = vadd.f32 %v3961, %v4187
        %v4189 = vpop.f32.mrf.mxu0
        %v4190 = vadd.f32 %v3963, %v4189
        %4191 = vmatprep.mubr.f32.mxu0 %v3393
        %4192 = vmatmul.mubr.f32.gmra.mxu0 %v3392
        %v4193 = vpop.f32.mrf.mxu0
        %v4194 = vadd.f32 %v3967, %v4193
        %v4195 = vpop.f32.mrf.mxu0
        %v4196 = vadd.f32 %v3969, %v4195
        %4197 = vdwg.mxu0
        %4198 = vmatprep.subr.mxu0 %v3538
        %4199 = vmatpush1.msra.mxu0 %v3537
        %4200 = vmatprep.subr.mxu0 %v3535
        %4201 = vmatpush1.msra.mxu0 %v3534
        %4202 = vmatprep.subr.mxu0 %v3532
        %4203 = vmatpush1.msra.mxu0 %v3531
        %4204 = vmatprep.subr.mxu0 %v3529
        %4205 = vmatpush1.msra.mxu0 %v3528
        %4206 = vmatprep.subr.mxu0 %v3526
        %4207 = vmatpush1.msra.mxu0 %v3525
        %4208 = vmatprep.subr.mxu0 %v3523
        %4209 = vmatpush1.msra.mxu0 %v3522
        %4210 = vmatprep.subr.mxu0 %v3520
        %4211 = vmatpush1.msra.mxu0 %v3519
        %4212 = vmatprep.subr.mxu0 %v3517
        %4213 = vmatpush1.msra.mxu0 %v3516
        %4214 = vmatprep.subr.mxu0 %v3514
        %4215 = vmatpush1.msra.mxu0 %v3513
        %4216 = vmatprep.subr.mxu0 %v3511
        %4217 = vmatpush1.msra.mxu0 %v3510
        %4218 = vmatprep.subr.mxu0 %v3508
        %4219 = vmatpush1.msra.mxu0 %v3507
        %4220 = vmatprep.subr.mxu0 %v3505
        %4221 = vmatpush1.msra.mxu0 %v3504
        %4222 = vmatprep.subr.mxu0 %v3502
        %4223 = vmatpush1.msra.mxu0 %v3501
        %4224 = vmatprep.subr.mxu0 %v3499
        %4225 = vmatpush1.msra.mxu0 %v3498
        %4226 = vmatprep.subr.mxu0 %v3496
        %4227 = vmatpush1.msra.mxu0 %v3495
        %4228 = vmatprep.subr.mxu0 %v3493
        %4229 = vmatpush1.msra.mxu0 %v3492
        %4230 = vmatprep.subr.mxu0 %v3586
        %4231 = vmatpush2.msra.mxu0 %v3585
        %4232 = vmatprep.subr.mxu0 %v3583
        %4233 = vmatpush2.msra.mxu0 %v3582
        %4234 = vmatprep.subr.mxu0 %v3580
        %4235 = vmatpush2.msra.mxu0 %v3579
        %4236 = vmatprep.subr.mxu0 %v3577
        %4237 = vmatpush2.msra.mxu0 %v3576
        %4238 = vmatprep.subr.mxu0 %v3574
        %4239 = vmatpush2.msra.mxu0 %v3573
        %4240 = vmatprep.subr.mxu0 %v3571
        %4241 = vmatpush2.msra.mxu0 %v3570
        %4242 = vmatprep.subr.mxu0 %v3568
        %4243 = vmatpush2.msra.mxu0 %v3567
        %4244 = vmatprep.subr.mxu0 %v3565
        %4245 = vmatpush2.msra.mxu0 %v3564
        %4246 = vmatprep.subr.mxu0 %v3562
        %4247 = vmatpush2.msra.mxu0 %v3561
        %4248 = vmatprep.subr.mxu0 %v3559
        %4249 = vmatpush2.msra.mxu0 %v3558
        %4250 = vmatprep.subr.mxu0 %v3556
        %4251 = vmatpush2.msra.mxu0 %v3555
        %4252 = vmatprep.subr.mxu0 %v3553
        %4253 = vmatpush2.msra.mxu0 %v3552
        %4254 = vmatprep.subr.mxu0 %v3550
        %4255 = vmatpush2.msra.mxu0 %v3549
        %4256 = vmatprep.subr.mxu0 %v3547
        %4257 = vmatpush2.msra.mxu0 %v3546
        %4258 = vmatprep.subr.mxu0 %v3544
        %4259 = vmatpush2.msra.mxu0 %v3543
        %4260 = vmatprep.subr.mxu0 %v3541
        %4261 = vmatpush2.msra.mxu0 %v3540
        %4262 = vmatprep.mubr.f32.mxu0 %v3391
        %4263 = vmatmul.mubr.f32.gmra.mxu0 %v3390
        %v4264 = vpop.f32.mrf.mxu0
        %v4265 = vadd.f32 %v4188, %v4264
        %v4266 = vpop.f32.mrf.mxu0
        %v4267 = vadd.f32 %v4190, %v4266
        %4268 = vmatprep.mubr.f32.mxu0 %v3395
        %4269 = vmatmul.mubr.f32.gmra.mxu0 %v3394
        %v4270 = vpop.f32.mrf.mxu0
        %v4271 = vadd.f32 %v4194, %v4270
        %v4272 = vpop.f32.mrf.mxu0
        %v4273 = vadd.f32 %v4196, %v4272
        %4274 = vdwg.mxu0
        %4275 = vmatprep.subr.mxu0 0.0
        %4276 = vmatpush1.msra.mxu0 %v3443
        %4277 = vmatprep.subr.mxu0 0.0
        %4278 = vmatpush1.msra.mxu0 %v3440
        %4279 = vmatprep.subr.mxu0 0.0
        %4280 = vmatpush1.msra.mxu0 %v3437
        %4281 = vmatprep.subr.mxu0 0.0
        %4282 = vmatpush1.msra.mxu0 %v3434
        %4283 = vmatprep.subr.mxu0 0.0
        %4284 = vmatpush1.msra.mxu0 %v3431
        %4285 = vmatprep.subr.mxu0 0.0
        %4286 = vmatpush1.msra.mxu0 %v3428
        %4287 = vmatprep.subr.mxu0 0.0
        %4288 = vmatpush1.msra.mxu0 %v3425
        %4289 = vmatprep.subr.mxu0 0.0
        %4290 = vmatpush1.msra.mxu0 %v3422
        %4291 = vmatprep.subr.mxu0 0.0
        %4292 = vmatpush1.msra.mxu0 %v3419
        %4293 = vmatprep.subr.mxu0 0.0
        %4294 = vmatpush1.msra.mxu0 %v3416
        %4295 = vmatprep.subr.mxu0 0.0
        %4296 = vmatpush1.msra.mxu0 %v3413
        %4297 = vmatprep.subr.mxu0 0.0
        %4298 = vmatpush1.msra.mxu0 %v3410
        %4299 = vmatprep.subr.mxu0 0.0
        %4300 = vmatpush1.msra.mxu0 %v3407
        %4301 = vmatprep.subr.mxu0 0.0
        %4302 = vmatpush1.msra.mxu0 %v3404
        %4303 = vmatprep.subr.mxu0 0.0
        %4304 = vmatpush1.msra.mxu0 %v3401
        %4305 = vmatprep.subr.mxu0 0.0
        %4306 = vmatpush1.msra.mxu0 %v3398
        %4307 = vmatprep.subr.mxu0 0.0
        %4308 = vmatpush2.msra.mxu0 %v3491
        %4309 = vmatprep.subr.mxu0 0.0
        %4310 = vmatpush2.msra.mxu0 %v3488
        %4311 = vmatprep.subr.mxu0 0.0
        %4312 = vmatpush2.msra.mxu0 %v3485
        %4313 = vmatprep.subr.mxu0 0.0
        %4314 = vmatpush2.msra.mxu0 %v3482
        %4315 = vmatprep.subr.mxu0 0.0
        %4316 = vmatpush2.msra.mxu0 %v3479
        %4317 = vmatprep.subr.mxu0 0.0
        %4318 = vmatpush2.msra.mxu0 %v3476
        %4319 = vmatprep.subr.mxu0 0.0
        %4320 = vmatpush2.msra.mxu0 %v3473
        %4321 = vmatprep.subr.mxu0 0.0
        %4322 = vmatpush2.msra.mxu0 %v3470
        %4323 = vmatprep.subr.mxu0 0.0
        %4324 = vmatpush2.msra.mxu0 %v3467
        %4325 = vmatprep.subr.mxu0 0.0
        %4326 = vmatpush2.msra.mxu0 %v3464
        %4327 = vmatprep.subr.mxu0 0.0
        %4328 = vmatpush2.msra.mxu0 %v3461
        %4329 = vmatprep.subr.mxu0 0.0
        %4330 = vmatpush2.msra.mxu0 %v3458
        %4331 = vmatprep.subr.mxu0 0.0
        %4332 = vmatpush2.msra.mxu0 %v3455
        %4333 = vmatprep.subr.mxu0 0.0
        %4334 = vmatpush2.msra.mxu0 %v3452
        %4335 = vmatprep.subr.mxu0 0.0
        %4336 = vmatpush2.msra.mxu0 %v3449
        %4337 = vmatprep.subr.mxu0 0.0
        %4338 = vmatpush2.msra.mxu0 %v3446
        %4339 = vmatprep.mubr.f32.mxu0 %v3389
        %4340 = vmatmul.mubr.f32.gmra.mxu0 %v3388
        %v4341 = vpop.f32.mrf.mxu0
        %v4342 = vadd.f32 %v4113, %v4341
        %v4343 = vpop.f32.mrf.mxu0
        %4344 = vmatprep.mubr.f32.mxu0 %v3393
        %4345 = vmatmul.mubr.f32.gmra.mxu0 %v3392
        %v4346 = vpop.f32.mrf.mxu0
        %v4347 = vadd.f32 %v4118, %v4346
        %v4348 = vpop.f32.mrf.mxu0
        %4349 = vdwg.mxu0
        %4350 = vmatprep.subr.mxu0 0.0
        %4351 = vmatpush1.msra.mxu0 %v3539
        %4352 = vmatprep.subr.mxu0 0.0
        %4353 = vmatpush1.msra.mxu0 %v3536
        %4354 = vmatprep.subr.mxu0 0.0
        %4355 = vmatpush1.msra.mxu0 %v3533
        %4356 = vmatprep.subr.mxu0 0.0
        %4357 = vmatpush1.msra.mxu0 %v3530
        %4358 = vmatprep.subr.mxu0 0.0
        %4359 = vmatpush1.msra.mxu0 %v3527
        %4360 = vmatprep.subr.mxu0 0.0
        %4361 = vmatpush1.msra.mxu0 %v3524
        %4362 = vmatprep.subr.mxu0 0.0
        %4363 = vmatpush1.msra.mxu0 %v3521
        %4364 = vmatprep.subr.mxu0 0.0
        %4365 = vmatpush1.msra.mxu0 %v3518
        %4366 = vmatprep.subr.mxu0 0.0
        %4367 = vmatpush1.msra.mxu0 %v3515
        %4368 = vmatprep.subr.mxu0 0.0
        %4369 = vmatpush1.msra.mxu0 %v3512
        %4370 = vmatprep.subr.mxu0 0.0
        %4371 = vmatpush1.msra.mxu0 %v3509
        %4372 = vmatprep.subr.mxu0 0.0
        %4373 = vmatpush1.msra.mxu0 %v3506
        %4374 = vmatprep.subr.mxu0 0.0
        %4375 = vmatpush1.msra.mxu0 %v3503
        %4376 = vmatprep.subr.mxu0 0.0
        %4377 = vmatpush1.msra.mxu0 %v3500
        %4378 = vmatprep.subr.mxu0 0.0
        %4379 = vmatpush1.msra.mxu0 %v3497
        %4380 = vmatprep.subr.mxu0 0.0
        %4381 = vmatpush1.msra.mxu0 %v3494
        %4382 = vmatprep.subr.mxu0 0.0
        %4383 = vmatpush2.msra.mxu0 %v3587
        %4384 = vmatprep.subr.mxu0 0.0
        %4385 = vmatpush2.msra.mxu0 %v3584
        %4386 = vmatprep.subr.mxu0 0.0
        %4387 = vmatpush2.msra.mxu0 %v3581
        %4388 = vmatprep.subr.mxu0 0.0
        %4389 = vmatpush2.msra.mxu0 %v3578
        %4390 = vmatprep.subr.mxu0 0.0
        %4391 = vmatpush2.msra.mxu0 %v3575
        %4392 = vmatprep.subr.mxu0 0.0
        %4393 = vmatpush2.msra.mxu0 %v3572
        %4394 = vmatprep.subr.mxu0 0.0
        %4395 = vmatpush2.msra.mxu0 %v3569
        %4396 = vmatprep.subr.mxu0 0.0
        %4397 = vmatpush2.msra.mxu0 %v3566
        %4398 = vmatprep.subr.mxu0 0.0
        %4399 = vmatpush2.msra.mxu0 %v3563
        %4400 = vmatprep.subr.mxu0 0.0
        %4401 = vmatpush2.msra.mxu0 %v3560
        %4402 = vmatprep.subr.mxu0 0.0
        %4403 = vmatpush2.msra.mxu0 %v3557
        %4404 = vmatprep.subr.mxu0 0.0
        %4405 = vmatpush2.msra.mxu0 %v3554
        %4406 = vmatprep.subr.mxu0 0.0
        %4407 = vmatpush2.msra.mxu0 %v3551
        %4408 = vmatprep.subr.mxu0 0.0
        %4409 = vmatpush2.msra.mxu0 %v3548
        %4410 = vmatprep.subr.mxu0 0.0
        %4411 = vmatpush2.msra.mxu0 %v3545
        %4412 = vmatprep.subr.mxu0 0.0
        %4413 = vmatpush2.msra.mxu0 %v3542
        %4414 = vmatprep.mubr.f32.mxu0 %v3391
        %4415 = vmatmul.mubr.f32.gmra.mxu0 %v3390
        %v4416 = vpop.f32.mrf.mxu0
        %v4417 = vadd.f32 %v4342, %v4416
        %v4418 = vpop.f32.mrf.mxu0
        %4419 = vmatprep.mubr.f32.mxu0 %v3395
        %4420 = vmatmul.mubr.f32.gmra.mxu0 %v3394
        %v4421 = vpop.f32.mrf.mxu0
        %v4422 = vadd.f32 %v4347, %v4421
        %v4423 = vpop.f32.mrf.mxu0
        %4424 = vdwg.mxu0
        %v4425 = vld [vmem:[#allocation2] sm:$0xfc]
        %v4426 = vld [vmem:[#allocation2 + $0x8] sm:$0xfc]
        %v4427 = vld [vmem:[#allocation2 + $0x10] sm:$0xfc]
        %v4428 = vld [vmem:[#allocation2 + $0x18] sm:$0xfc]
        %v4429 = vld [vmem:[#allocation2 + $0x20] sm:$0xf]
        %v4430 = vld [vmem:[#allocation2 + $0x28] sm:$0xf]
        %v4431 = vld [vmem:[#allocation2 + $0x30] sm:$0xf]
        %v4432 = vld [vmem:[#allocation2 + $0x38] sm:$0xf]
        %s4433 = scalar_lea.vmem %s5, 3072
        %v4434 = vld [vmem:[%s4433] sm:$0xff]
        %v4435 = vld [vmem:[%s4433 + $0x8] sm:$0xff]
        %v4436 = vld [vmem:[%s4433 + $0x10] sm:$0xff]
        %v4437 = vld [vmem:[%s4433 + $0x18] sm:$0xff]
        %v4438 = vld [vmem:[%s4433 + $0x20] sm:$0xff]
        %v4439 = vld [vmem:[%s4433 + $0x28] sm:$0xff]
        %v4440 = vld [vmem:[%s4433 + $0x30] sm:$0xff]
        %v4441 = vld [vmem:[%s4433 + $0x38] sm:$0xff]
        %v4442 = vld [vmem:[%s4433 + $0x40] sm:$0xff]
        %v4443 = vld [vmem:[%s4433 + $0x48] sm:$0xff]
        %v4444 = vld [vmem:[%s4433 + $0x50] sm:$0xff]
        %v4445 = vld [vmem:[%s4433 + $0x58] sm:$0xff]
        %v4446 = vld [vmem:[%s4433 + $0x60] sm:$0xff]
        %v4447 = vld [vmem:[%s4433 + $0x68] sm:$0xff]
        %v4448 = vld [vmem:[%s4433 + $0x70] sm:$0xff]
        %v4449 = vld [vmem:[%s4433 + $0x78] sm:$0xff]
        %v4450 = vld [vmem:[%s4433 + $0x80] sm:$0xff]
        %v4451 = vld [vmem:[%s4433 + $0x88] sm:$0xff]
        %v4452 = vld [vmem:[%s4433 + $0x90] sm:$0xff]
        %v4453 = vld [vmem:[%s4433 + $0x98] sm:$0xff]
        %v4454 = vld [vmem:[%s4433 + $0xa0] sm:$0xff]
        %v4455 = vld [vmem:[%s4433 + $0xa8] sm:$0xff]
        %v4456 = vld [vmem:[%s4433 + $0xb0] sm:$0xff]
        %v4457 = vld [vmem:[%s4433 + $0xb8] sm:$0xff]
        %v4458 = vld [vmem:[%s4433 + $0xc0] sm:$0xff]
        %v4459 = vld [vmem:[%s4433 + $0xc8] sm:$0xff]
        %v4460 = vld [vmem:[%s4433 + $0xd0] sm:$0xff]
        %v4461 = vld [vmem:[%s4433 + $0xd8] sm:$0xff]
        %v4462 = vld [vmem:[%s4433 + $0xe0] sm:$0xff]
        %v4463 = vld [vmem:[%s4433 + $0xe8] sm:$0xff]
        %v4464 = vld [vmem:[%s4433 + $0xf0] sm:$0xff]
        %v4465 = vld [vmem:[%s4433 + $0xf8] sm:$0xff]
        %v4466 = vld [vmem:[%s4433 + $0x100] sm:$0xff]
        %v4467 = vld [vmem:[%s4433 + $0x108] sm:$0xff]
        %v4468 = vld [vmem:[%s4433 + $0x110] sm:$0xff]
        %v4469 = vld [vmem:[%s4433 + $0x118] sm:$0xff]
        %v4470 = vld [vmem:[%s4433 + $0x120] sm:$0xff]
        %v4471 = vld [vmem:[%s4433 + $0x128] sm:$0xff]
        %v4472 = vld [vmem:[%s4433 + $0x130] sm:$0xff]
        %v4473 = vld [vmem:[%s4433 + $0x138] sm:$0xff]
        %v4474 = vld [vmem:[%s4433 + $0x140] sm:$0xff]
        %v4475 = vld [vmem:[%s4433 + $0x148] sm:$0xff]
        %v4476 = vld [vmem:[%s4433 + $0x150] sm:$0xff]
        %v4477 = vld [vmem:[%s4433 + $0x158] sm:$0xff]
        %v4478 = vld [vmem:[%s4433 + $0x160] sm:$0xff]
        %v4479 = vld [vmem:[%s4433 + $0x168] sm:$0xff]
        %v4480 = vld [vmem:[%s4433 + $0x170] sm:$0xff]
        %v4481 = vld [vmem:[%s4433 + $0x178] sm:$0xff]
        %v4482 = vld [vmem:[%s4433 + $0x180] sm:$0xff]
        %v4483 = vld [vmem:[%s4433 + $0x188] sm:$0xff]
        %v4484 = vld [vmem:[%s4433 + $0x190] sm:$0xff]
        %v4485 = vld [vmem:[%s4433 + $0x198] sm:$0xff]
        %v4486 = vld [vmem:[%s4433 + $0x1a0] sm:$0xff]
        %v4487 = vld [vmem:[%s4433 + $0x1a8] sm:$0xff]
        %v4488 = vld [vmem:[%s4433 + $0x1b0] sm:$0xff]
        %v4489 = vld [vmem:[%s4433 + $0x1b8] sm:$0xff]
        %v4490 = vld [vmem:[%s4433 + $0x1c0] sm:$0xff]
        %v4491 = vld [vmem:[%s4433 + $0x1c8] sm:$0xff]
        %v4492 = vld [vmem:[%s4433 + $0x1d0] sm:$0xff]
        %v4493 = vld [vmem:[%s4433 + $0x1d8] sm:$0xff]
        %v4494 = vld [vmem:[%s4433 + $0x1e0] sm:$0xff]
        %v4495 = vld [vmem:[%s4433 + $0x1e8] sm:$0xff]
        %v4496 = vld [vmem:[%s4433 + $0x1f0] sm:$0xff]
        %v4497 = vld [vmem:[%s4433 + $0x1f8] sm:$0xff]
        %v4498 = vld [vmem:[%s4433 + $0x200] sm:$0xff]
        %v4499 = vld [vmem:[%s4433 + $0x208] sm:$0xff]
        %v4500 = vld [vmem:[%s4433 + $0x210] sm:$0xff]
        %v4501 = vld [vmem:[%s4433 + $0x218] sm:$0xff]
        %v4502 = vld [vmem:[%s4433 + $0x220] sm:$0xff]
        %v4503 = vld [vmem:[%s4433 + $0x228] sm:$0xff]
        %v4504 = vld [vmem:[%s4433 + $0x230] sm:$0xff]
        %v4505 = vld [vmem:[%s4433 + $0x238] sm:$0xff]
        %v4506 = vld [vmem:[%s4433 + $0x240] sm:$0xff]
        %v4507 = vld [vmem:[%s4433 + $0x248] sm:$0xff]
        %v4508 = vld [vmem:[%s4433 + $0x250] sm:$0xff]
        %v4509 = vld [vmem:[%s4433 + $0x258] sm:$0xff]
        %v4510 = vld [vmem:[%s4433 + $0x260] sm:$0xff]
        %v4511 = vld [vmem:[%s4433 + $0x268] sm:$0xff]
        %v4512 = vld [vmem:[%s4433 + $0x270] sm:$0xff]
        %v4513 = vld [vmem:[%s4433 + $0x278] sm:$0xff]
        %v4514 = vld [vmem:[%s4433 + $0x280] sm:$0xff]
        %v4515 = vld [vmem:[%s4433 + $0x288] sm:$0xff]
        %v4516 = vld [vmem:[%s4433 + $0x290] sm:$0xff]
        %v4517 = vld [vmem:[%s4433 + $0x298] sm:$0xff]
        %v4518 = vld [vmem:[%s4433 + $0x2a0] sm:$0xff]
        %v4519 = vld [vmem:[%s4433 + $0x2a8] sm:$0xff]
        %v4520 = vld [vmem:[%s4433 + $0x2b0] sm:$0xff]
        %v4521 = vld [vmem:[%s4433 + $0x2b8] sm:$0xff]
        %v4522 = vld [vmem:[%s4433 + $0x2c0] sm:$0xff]
        %v4523 = vld [vmem:[%s4433 + $0x2c8] sm:$0xff]
        %v4524 = vld [vmem:[%s4433 + $0x2d0] sm:$0xff]
        %v4525 = vld [vmem:[%s4433 + $0x2d8] sm:$0xff]
        %v4526 = vld [vmem:[%s4433 + $0x2e0] sm:$0xff]
        %v4527 = vld [vmem:[%s4433 + $0x2e8] sm:$0xff]
        %v4528 = vld [vmem:[%s4433 + $0x2f0] sm:$0xff]
        %v4529 = vld [vmem:[%s4433 + $0x2f8] sm:$0xff]
        %v4530 = vld [vmem:[%s4433 + $0x300] sm:$0xff]
        %v4531 = vld [vmem:[%s4433 + $0x308] sm:$0xff]
        %v4532 = vld [vmem:[%s4433 + $0x310] sm:$0xff]
        %v4533 = vld [vmem:[%s4433 + $0x318] sm:$0xff]
        %v4534 = vld [vmem:[%s4433 + $0x320] sm:$0xff]
        %v4535 = vld [vmem:[%s4433 + $0x328] sm:$0xff]
        %v4536 = vld [vmem:[%s4433 + $0x330] sm:$0xff]
        %v4537 = vld [vmem:[%s4433 + $0x338] sm:$0xff]
        %v4538 = vld [vmem:[%s4433 + $0x340] sm:$0xff]
        %v4539 = vld [vmem:[%s4433 + $0x348] sm:$0xff]
        %v4540 = vld [vmem:[%s4433 + $0x350] sm:$0xff]
        %v4541 = vld [vmem:[%s4433 + $0x358] sm:$0xff]
        %v4542 = vld [vmem:[%s4433 + $0x360] sm:$0xff]
        %v4543 = vld [vmem:[%s4433 + $0x368] sm:$0xff]
        %v4544 = vld [vmem:[%s4433 + $0x370] sm:$0xff]
        %v4545 = vld [vmem:[%s4433 + $0x378] sm:$0xff]
        %v4546 = vld [vmem:[%s4433 + $0x380] sm:$0xff]
        %v4547 = vld [vmem:[%s4433 + $0x388] sm:$0xff]
        %v4548 = vld [vmem:[%s4433 + $0x390] sm:$0xff]
        %v4549 = vld [vmem:[%s4433 + $0x398] sm:$0xff]
        %v4550 = vld [vmem:[%s4433 + $0x3a0] sm:$0xff]
        %v4551 = vld [vmem:[%s4433 + $0x3a8] sm:$0xff]
        %v4552 = vld [vmem:[%s4433 + $0x3b0] sm:$0xff]
        %v4553 = vld [vmem:[%s4433 + $0x3b8] sm:$0xff]
        %v4554 = vld [vmem:[%s4433 + $0x3c0] sm:$0xff]
        %v4555 = vld [vmem:[%s4433 + $0x3c8] sm:$0xff]
        %v4556 = vld [vmem:[%s4433 + $0x3d0] sm:$0xff]
        %v4557 = vld [vmem:[%s4433 + $0x3d8] sm:$0xff]
        %v4558 = vld [vmem:[%s4433 + $0x3e0] sm:$0xff]
        %v4559 = vld [vmem:[%s4433 + $0x3e8] sm:$0xff]
        %v4560 = vld [vmem:[%s4433 + $0x3f0] sm:$0xff]
        %v4561 = vld [vmem:[%s4433 + $0x3f8] sm:$0xff]
        %v4562 = vld [vmem:[%s4433 + $0x400] sm:$0xff]
        %v4563 = vld [vmem:[%s4433 + $0x408] sm:$0xff]
        %v4564 = vld [vmem:[%s4433 + $0x410] sm:$0xff]
        %v4565 = vld [vmem:[%s4433 + $0x418] sm:$0xff]
        %v4566 = vld [vmem:[%s4433 + $0x420] sm:$0xff]
        %v4567 = vld [vmem:[%s4433 + $0x428] sm:$0xff]
        %v4568 = vld [vmem:[%s4433 + $0x430] sm:$0xff]
        %v4569 = vld [vmem:[%s4433 + $0x438] sm:$0xff]
        %v4570 = vld [vmem:[%s4433 + $0x440] sm:$0xff]
        %v4571 = vld [vmem:[%s4433 + $0x448] sm:$0xff]
        %v4572 = vld [vmem:[%s4433 + $0x450] sm:$0xff]
        %v4573 = vld [vmem:[%s4433 + $0x458] sm:$0xff]
        %v4574 = vld [vmem:[%s4433 + $0x460] sm:$0xff]
        %v4575 = vld [vmem:[%s4433 + $0x468] sm:$0xff]
        %v4576 = vld [vmem:[%s4433 + $0x470] sm:$0xff]
        %v4577 = vld [vmem:[%s4433 + $0x478] sm:$0xff]
        %v4578 = vld [vmem:[%s4433 + $0x480] sm:$0xff]
        %v4579 = vld [vmem:[%s4433 + $0x488] sm:$0xff]
        %v4580 = vld [vmem:[%s4433 + $0x490] sm:$0xff]
        %v4581 = vld [vmem:[%s4433 + $0x498] sm:$0xff]
        %v4582 = vld [vmem:[%s4433 + $0x4a0] sm:$0xff]
        %v4583 = vld [vmem:[%s4433 + $0x4a8] sm:$0xff]
        %v4584 = vld [vmem:[%s4433 + $0x4b0] sm:$0xff]
        %v4585 = vld [vmem:[%s4433 + $0x4b8] sm:$0xff]
        %v4586 = vld [vmem:[%s4433 + $0x4c0] sm:$0xff]
        %v4587 = vld [vmem:[%s4433 + $0x4c8] sm:$0xff]
        %v4588 = vld [vmem:[%s4433 + $0x4d0] sm:$0xff]
        %v4589 = vld [vmem:[%s4433 + $0x4d8] sm:$0xff]
        %v4590 = vld [vmem:[%s4433 + $0x4e0] sm:$0xff]
        %v4591 = vld [vmem:[%s4433 + $0x4e8] sm:$0xff]
        %v4592 = vld [vmem:[%s4433 + $0x4f0] sm:$0xff]
        %v4593 = vld [vmem:[%s4433 + $0x4f8] sm:$0xff]
        %v4594 = vld [vmem:[%s4433 + $0x500] sm:$0xff]
        %v4595 = vld [vmem:[%s4433 + $0x508] sm:$0xff]
        %v4596 = vld [vmem:[%s4433 + $0x510] sm:$0xff]
        %v4597 = vld [vmem:[%s4433 + $0x518] sm:$0xff]
        %v4598 = vld [vmem:[%s4433 + $0x520] sm:$0xff]
        %v4599 = vld [vmem:[%s4433 + $0x528] sm:$0xff]
        %v4600 = vld [vmem:[%s4433 + $0x530] sm:$0xff]
        %v4601 = vld [vmem:[%s4433 + $0x538] sm:$0xff]
        %v4602 = vld [vmem:[%s4433 + $0x540] sm:$0xff]
        %v4603 = vld [vmem:[%s4433 + $0x548] sm:$0xff]
        %v4604 = vld [vmem:[%s4433 + $0x550] sm:$0xff]
        %v4605 = vld [vmem:[%s4433 + $0x558] sm:$0xff]
        %v4606 = vld [vmem:[%s4433 + $0x560] sm:$0xff]
        %v4607 = vld [vmem:[%s4433 + $0x568] sm:$0xff]
        %v4608 = vld [vmem:[%s4433 + $0x570] sm:$0xff]
        %v4609 = vld [vmem:[%s4433 + $0x578] sm:$0xff]
        %v4610 = vld [vmem:[%s4433 + $0x580] sm:$0xff]
        %v4611 = vld [vmem:[%s4433 + $0x588] sm:$0xff]
        %v4612 = vld [vmem:[%s4433 + $0x590] sm:$0xff]
        %v4613 = vld [vmem:[%s4433 + $0x598] sm:$0xff]
        %v4614 = vld [vmem:[%s4433 + $0x5a0] sm:$0xff]
        %v4615 = vld [vmem:[%s4433 + $0x5a8] sm:$0xff]
        %v4616 = vld [vmem:[%s4433 + $0x5b0] sm:$0xff]
        %v4617 = vld [vmem:[%s4433 + $0x5b8] sm:$0xff]
        %v4618 = vld [vmem:[%s4433 + $0x5c0] sm:$0xff]
        %v4619 = vld [vmem:[%s4433 + $0x5c8] sm:$0xff]
        %v4620 = vld [vmem:[%s4433 + $0x5d0] sm:$0xff]
        %v4621 = vld [vmem:[%s4433 + $0x5d8] sm:$0xff]
        %v4622 = vld [vmem:[%s4433 + $0x5e0] sm:$0xff]
        %v4623 = vld [vmem:[%s4433 + $0x5e8] sm:$0xff]
        %v4624 = vld [vmem:[%s4433 + $0x5f0] sm:$0xff]
        %v4625 = vld [vmem:[%s4433 + $0x5f8] sm:$0xff]
        %v4634 = vrot.slane %v4425, 2
        %v4635 = vrot.slane %v4429, 2
        %v4636 = vsel %vm734, %v4634, %v4635
        %v4637 = vrot.slane %v4426, 2
        %v4638 = vrot.slane %v4430, 2
        %v4639 = vsel %vm734, %v4637, %v4638
        %v4640 = vrot.slane %v4427, 2
        %v4641 = vrot.slane %v4431, 2
        %v4642 = vsel %vm734, %v4640, %v4641
        %v4643 = vrot.slane %v4428, 2
        %v4644 = vrot.slane %v4432, 2
        %v4645 = vsel %vm734, %v4643, %v4644
        %4654 = vmatprep.subr.mxu0 %v4480
        %4655 = vmatpush1.msra.mxu0 %v4479
        %4656 = vmatprep.subr.mxu0 %v4477
        %4657 = vmatpush1.msra.mxu0 %v4476
        %4658 = vmatprep.subr.mxu0 %v4474
        %4659 = vmatpush1.msra.mxu0 %v4473
        %4660 = vmatprep.subr.mxu0 %v4471
        %4661 = vmatpush1.msra.mxu0 %v4470
        %4662 = vmatprep.subr.mxu0 %v4468
        %4663 = vmatpush1.msra.mxu0 %v4467
        %4664 = vmatprep.subr.mxu0 %v4465
        %4665 = vmatpush1.msra.mxu0 %v4464
        %4666 = vmatprep.subr.mxu0 %v4462
        %4667 = vmatpush1.msra.mxu0 %v4461
        %4668 = vmatprep.subr.mxu0 %v4459
        %4669 = vmatpush1.msra.mxu0 %v4458
        %4670 = vmatprep.subr.mxu0 %v4456
        %4671 = vmatpush1.msra.mxu0 %v4455
        %4672 = vmatprep.subr.mxu0 %v4453
        %4673 = vmatpush1.msra.mxu0 %v4452
        %4674 = vmatprep.subr.mxu0 %v4450
        %4675 = vmatpush1.msra.mxu0 %v4449
        %4676 = vmatprep.subr.mxu0 %v4447
        %4677 = vmatpush1.msra.mxu0 %v4446
        %4678 = vmatprep.subr.mxu0 %v4444
        %4679 = vmatpush1.msra.mxu0 %v4443
        %4680 = vmatprep.subr.mxu0 %v4441
        %4681 = vmatpush1.msra.mxu0 %v4440
        %4682 = vmatprep.subr.mxu0 %v4438
        %4683 = vmatpush1.msra.mxu0 %v4437
        %4684 = vmatprep.subr.mxu0 %v4435
        %4685 = vmatpush1.msra.mxu0 %v4434
        %4686 = vmatprep.subr.mxu0 %v4528
        %4687 = vmatpush2.msra.mxu0 %v4527
        %4688 = vmatprep.subr.mxu0 %v4525
        %4689 = vmatpush2.msra.mxu0 %v4524
        %4690 = vmatprep.subr.mxu0 %v4522
        %4691 = vmatpush2.msra.mxu0 %v4521
        %4692 = vmatprep.subr.mxu0 %v4519
        %4693 = vmatpush2.msra.mxu0 %v4518
        %4694 = vmatprep.subr.mxu0 %v4516
        %4695 = vmatpush2.msra.mxu0 %v4515
        %4696 = vmatprep.subr.mxu0 %v4513
        %4697 = vmatpush2.msra.mxu0 %v4512
        %4698 = vmatprep.subr.mxu0 %v4510
        %4699 = vmatpush2.msra.mxu0 %v4509
        %4700 = vmatprep.subr.mxu0 %v4507
        %4701 = vmatpush2.msra.mxu0 %v4506
        %4702 = vmatprep.subr.mxu0 %v4504
        %4703 = vmatpush2.msra.mxu0 %v4503
        %4704 = vmatprep.subr.mxu0 %v4501
        %4705 = vmatpush2.msra.mxu0 %v4500
        %4706 = vmatprep.subr.mxu0 %v4498
        %4707 = vmatpush2.msra.mxu0 %v4497
        %4708 = vmatprep.subr.mxu0 %v4495
        %4709 = vmatpush2.msra.mxu0 %v4494
        %4710 = vmatprep.subr.mxu0 %v4492
        %4711 = vmatpush2.msra.mxu0 %v4491
        %4712 = vmatprep.subr.mxu0 %v4489
        %4713 = vmatpush2.msra.mxu0 %v4488
        %4714 = vmatprep.subr.mxu0 %v4486
        %4715 = vmatpush2.msra.mxu0 %v4485
        %4716 = vmatprep.subr.mxu0 %v4483
        %4717 = vmatpush2.msra.mxu0 %v4482
        %4718 = vmatprep.mubr.f32.mxu0 %v4639
        %4719 = vmatmul.mubr.f32.gmra.mxu0 %v4636
        %v4720 = vpop.f32.mrf.mxu0
        %v4721 = vadd.f32 0.0, %v4720
        %v4722 = vpop.f32.mrf.mxu0
        %v4723 = vadd.f32 0.0, %v4722
        %4724 = vmatprep.mubr.f32.mxu0 %v4638
        %4725 = vmatmul.mubr.f32.gmra.mxu0 %v4635
        %v4726 = vpop.f32.mrf.mxu0
        %v4727 = vadd.f32 0.0, %v4726
        %v4728 = vpop.f32.mrf.mxu0
        %v4729 = vadd.f32 0.0, %v4728
        %4730 = vdwg.mxu0
        %4731 = vmatprep.subr.mxu0 %v4576
        %4732 = vmatpush1.msra.mxu0 %v4575
        %4733 = vmatprep.subr.mxu0 %v4573
        %4734 = vmatpush1.msra.mxu0 %v4572
        %4735 = vmatprep.subr.mxu0 %v4570
        %4736 = vmatpush1.msra.mxu0 %v4569
        %4737 = vmatprep.subr.mxu0 %v4567
        %4738 = vmatpush1.msra.mxu0 %v4566
        %4739 = vmatprep.subr.mxu0 %v4564
        %4740 = vmatpush1.msra.mxu0 %v4563
        %4741 = vmatprep.subr.mxu0 %v4561
        %4742 = vmatpush1.msra.mxu0 %v4560
        %4743 = vmatprep.subr.mxu0 %v4558
        %4744 = vmatpush1.msra.mxu0 %v4557
        %4745 = vmatprep.subr.mxu0 %v4555
        %4746 = vmatpush1.msra.mxu0 %v4554
        %4747 = vmatprep.subr.mxu0 %v4552
        %4748 = vmatpush1.msra.mxu0 %v4551
        %4749 = vmatprep.subr.mxu0 %v4549
        %4750 = vmatpush1.msra.mxu0 %v4548
        %4751 = vmatprep.subr.mxu0 %v4546
        %4752 = vmatpush1.msra.mxu0 %v4545
        %4753 = vmatprep.subr.mxu0 %v4543
        %4754 = vmatpush1.msra.mxu0 %v4542
        %4755 = vmatprep.subr.mxu0 %v4540
        %4756 = vmatpush1.msra.mxu0 %v4539
        %4757 = vmatprep.subr.mxu0 %v4537
        %4758 = vmatpush1.msra.mxu0 %v4536
        %4759 = vmatprep.subr.mxu0 %v4534
        %4760 = vmatpush1.msra.mxu0 %v4533
        %4761 = vmatprep.subr.mxu0 %v4531
        %4762 = vmatpush1.msra.mxu0 %v4530
        %4763 = vmatprep.subr.mxu0 %v4624
        %4764 = vmatpush2.msra.mxu0 %v4623
        %4765 = vmatprep.subr.mxu0 %v4621
        %4766 = vmatpush2.msra.mxu0 %v4620
        %4767 = vmatprep.subr.mxu0 %v4618
        %4768 = vmatpush2.msra.mxu0 %v4617
        %4769 = vmatprep.subr.mxu0 %v4615
        %4770 = vmatpush2.msra.mxu0 %v4614
        %4771 = vmatprep.subr.mxu0 %v4612
        %4772 = vmatpush2.msra.mxu0 %v4611
        %4773 = vmatprep.subr.mxu0 %v4609
        %4774 = vmatpush2.msra.mxu0 %v4608
        %4775 = vmatprep.subr.mxu0 %v4606
        %4776 = vmatpush2.msra.mxu0 %v4605
        %4777 = vmatprep.subr.mxu0 %v4603
        %4778 = vmatpush2.msra.mxu0 %v4602
        %4779 = vmatprep.subr.mxu0 %v4600
        %4780 = vmatpush2.msra.mxu0 %v4599
        %4781 = vmatprep.subr.mxu0 %v4597
        %4782 = vmatpush2.msra.mxu0 %v4596
        %4783 = vmatprep.subr.mxu0 %v4594
        %4784 = vmatpush2.msra.mxu0 %v4593
        %4785 = vmatprep.subr.mxu0 %v4591
        %4786 = vmatpush2.msra.mxu0 %v4590
        %4787 = vmatprep.subr.mxu0 %v4588
        %4788 = vmatpush2.msra.mxu0 %v4587
        %4789 = vmatprep.subr.mxu0 %v4585
        %4790 = vmatpush2.msra.mxu0 %v4584
        %4791 = vmatprep.subr.mxu0 %v4582
        %4792 = vmatpush2.msra.mxu0 %v4581
        %4793 = vmatprep.subr.mxu0 %v4579
        %4794 = vmatpush2.msra.mxu0 %v4578
        %4795 = vmatprep.mubr.f32.mxu0 %v4645
        %4796 = vmatmul.mubr.f32.gmra.mxu0 %v4642
        %v4797 = vpop.f32.mrf.mxu0
        %v4798 = vadd.f32 %v4721, %v4797
        %v4799 = vpop.f32.mrf.mxu0
        %v4800 = vadd.f32 %v4723, %v4799
        %4801 = vmatprep.mubr.f32.mxu0 %v4644
        %4802 = vmatmul.mubr.f32.gmra.mxu0 %v4641
        %v4803 = vpop.f32.mrf.mxu0
        %v4804 = vadd.f32 %v4727, %v4803
        %v4805 = vpop.f32.mrf.mxu0
        %v4806 = vadd.f32 %v4729, %v4805
        %4807 = vdwg.mxu0
        %4808 = vmatprep.subr.mxu0 0.0
        %4809 = vmatpush1.msra.mxu0 %v4481
        %4810 = vmatprep.subr.mxu0 0.0
        %4811 = vmatpush1.msra.mxu0 %v4478
        %4812 = vmatprep.subr.mxu0 0.0
        %4813 = vmatpush1.msra.mxu0 %v4475
        %4814 = vmatprep.subr.mxu0 0.0
        %4815 = vmatpush1.msra.mxu0 %v4472
        %4816 = vmatprep.subr.mxu0 0.0
        %4817 = vmatpush1.msra.mxu0 %v4469
        %4818 = vmatprep.subr.mxu0 0.0
        %4819 = vmatpush1.msra.mxu0 %v4466
        %4820 = vmatprep.subr.mxu0 0.0
        %4821 = vmatpush1.msra.mxu0 %v4463
        %4822 = vmatprep.subr.mxu0 0.0
        %4823 = vmatpush1.msra.mxu0 %v4460
        %4824 = vmatprep.subr.mxu0 0.0
        %4825 = vmatpush1.msra.mxu0 %v4457
        %4826 = vmatprep.subr.mxu0 0.0
        %4827 = vmatpush1.msra.mxu0 %v4454
        %4828 = vmatprep.subr.mxu0 0.0
        %4829 = vmatpush1.msra.mxu0 %v4451
        %4830 = vmatprep.subr.mxu0 0.0
        %4831 = vmatpush1.msra.mxu0 %v4448
        %4832 = vmatprep.subr.mxu0 0.0
        %4833 = vmatpush1.msra.mxu0 %v4445
        %4834 = vmatprep.subr.mxu0 0.0
        %4835 = vmatpush1.msra.mxu0 %v4442
        %4836 = vmatprep.subr.mxu0 0.0
        %4837 = vmatpush1.msra.mxu0 %v4439
        %4838 = vmatprep.subr.mxu0 0.0
        %4839 = vmatpush1.msra.mxu0 %v4436
        %4840 = vmatprep.subr.mxu0 0.0
        %4841 = vmatpush2.msra.mxu0 %v4529
        %4842 = vmatprep.subr.mxu0 0.0
        %4843 = vmatpush2.msra.mxu0 %v4526
        %4844 = vmatprep.subr.mxu0 0.0
        %4845 = vmatpush2.msra.mxu0 %v4523
        %4846 = vmatprep.subr.mxu0 0.0
        %4847 = vmatpush2.msra.mxu0 %v4520
        %4848 = vmatprep.subr.mxu0 0.0
        %4849 = vmatpush2.msra.mxu0 %v4517
        %4850 = vmatprep.subr.mxu0 0.0
        %4851 = vmatpush2.msra.mxu0 %v4514
        %4852 = vmatprep.subr.mxu0 0.0
        %4853 = vmatpush2.msra.mxu0 %v4511
        %4854 = vmatprep.subr.mxu0 0.0
        %4855 = vmatpush2.msra.mxu0 %v4508
        %4856 = vmatprep.subr.mxu0 0.0
        %4857 = vmatpush2.msra.mxu0 %v4505
        %4858 = vmatprep.subr.mxu0 0.0
        %4859 = vmatpush2.msra.mxu0 %v4502
        %4860 = vmatprep.subr.mxu0 0.0
        %4861 = vmatpush2.msra.mxu0 %v4499
        %4862 = vmatprep.subr.mxu0 0.0
        %4863 = vmatpush2.msra.mxu0 %v4496
        %4864 = vmatprep.subr.mxu0 0.0
        %4865 = vmatpush2.msra.mxu0 %v4493
        %4866 = vmatprep.subr.mxu0 0.0
        %4867 = vmatpush2.msra.mxu0 %v4490
        %4868 = vmatprep.subr.mxu0 0.0
        %4869 = vmatpush2.msra.mxu0 %v4487
        %4870 = vmatprep.subr.mxu0 0.0
        %4871 = vmatpush2.msra.mxu0 %v4484
        %4872 = vmatprep.mubr.f32.mxu0 %v4639
        %4873 = vmatmul.mubr.f32.gmra.mxu0 %v4636
        %v4874 = vpop.f32.mrf.mxu0
        %v4875 = vadd.f32 0.0, %v4874
        %v4876 = vpop.f32.mrf.mxu0
        %4877 = vmatprep.mubr.f32.mxu0 %v4638
        %4878 = vmatmul.mubr.f32.gmra.mxu0 %v4635
        %v4879 = vpop.f32.mrf.mxu0
        %v4880 = vadd.f32 0.0, %v4879
        %v4881 = vpop.f32.mrf.mxu0
        %4882 = vdwg.mxu0
        %4883 = vmatprep.subr.mxu0 0.0
        %4884 = vmatpush1.msra.mxu0 %v4577
        %4885 = vmatprep.subr.mxu0 0.0
        %4886 = vmatpush1.msra.mxu0 %v4574
        %4887 = vmatprep.subr.mxu0 0.0
        %4888 = vmatpush1.msra.mxu0 %v4571
        %4889 = vmatprep.subr.mxu0 0.0
        %4890 = vmatpush1.msra.mxu0 %v4568
        %4891 = vmatprep.subr.mxu0 0.0
        %4892 = vmatpush1.msra.mxu0 %v4565
        %4893 = vmatprep.subr.mxu0 0.0
        %4894 = vmatpush1.msra.mxu0 %v4562
        %4895 = vmatprep.subr.mxu0 0.0
        %4896 = vmatpush1.msra.mxu0 %v4559
        %4897 = vmatprep.subr.mxu0 0.0
        %4898 = vmatpush1.msra.mxu0 %v4556
        %4899 = vmatprep.subr.mxu0 0.0
        %4900 = vmatpush1.msra.mxu0 %v4553
        %4901 = vmatprep.subr.mxu0 0.0
        %4902 = vmatpush1.msra.mxu0 %v4550
        %4903 = vmatprep.subr.mxu0 0.0
        %4904 = vmatpush1.msra.mxu0 %v4547
        %4905 = vmatprep.subr.mxu0 0.0
        %4906 = vmatpush1.msra.mxu0 %v4544
        %4907 = vmatprep.subr.mxu0 0.0
        %4908 = vmatpush1.msra.mxu0 %v4541
        %4909 = vmatprep.subr.mxu0 0.0
        %4910 = vmatpush1.msra.mxu0 %v4538
        %4911 = vmatprep.subr.mxu0 0.0
        %4912 = vmatpush1.msra.mxu0 %v4535
        %4913 = vmatprep.subr.mxu0 0.0
        %4914 = vmatpush1.msra.mxu0 %v4532
        %4915 = vmatprep.subr.mxu0 0.0
        %4916 = vmatpush2.msra.mxu0 %v4625
        %4917 = vmatprep.subr.mxu0 0.0
        %4918 = vmatpush2.msra.mxu0 %v4622
        %4919 = vmatprep.subr.mxu0 0.0
        %4920 = vmatpush2.msra.mxu0 %v4619
        %4921 = vmatprep.subr.mxu0 0.0
        %4922 = vmatpush2.msra.mxu0 %v4616
        %4923 = vmatprep.subr.mxu0 0.0
        %4924 = vmatpush2.msra.mxu0 %v4613
        %4925 = vmatprep.subr.mxu0 0.0
        %4926 = vmatpush2.msra.mxu0 %v4610
        %4927 = vmatprep.subr.mxu0 0.0
        %4928 = vmatpush2.msra.mxu0 %v4607
        %4929 = vmatprep.subr.mxu0 0.0
        %4930 = vmatpush2.msra.mxu0 %v4604
        %4931 = vmatprep.subr.mxu0 0.0
        %4932 = vmatpush2.msra.mxu0 %v4601
        %4933 = vmatprep.subr.mxu0 0.0
        %4934 = vmatpush2.msra.mxu0 %v4598
        %4935 = vmatprep.subr.mxu0 0.0
        %4936 = vmatpush2.msra.mxu0 %v4595
        %4937 = vmatprep.subr.mxu0 0.0
        %4938 = vmatpush2.msra.mxu0 %v4592
        %4939 = vmatprep.subr.mxu0 0.0
        %4940 = vmatpush2.msra.mxu0 %v4589
        %4941 = vmatprep.subr.mxu0 0.0
        %4942 = vmatpush2.msra.mxu0 %v4586
        %4943 = vmatprep.subr.mxu0 0.0
        %4944 = vmatpush2.msra.mxu0 %v4583
        %4945 = vmatprep.subr.mxu0 0.0
        %4946 = vmatpush2.msra.mxu0 %v4580
        %4947 = vmatprep.mubr.f32.mxu0 %v4645
        %4948 = vmatmul.mubr.f32.gmra.mxu0 %v4642
        %v4949 = vpop.f32.mrf.mxu0
        %v4950 = vadd.f32 %v4875, %v4949
        %v4951 = vpop.f32.mrf.mxu0
        %4952 = vmatprep.mubr.f32.mxu0 %v4644
        %4953 = vmatmul.mubr.f32.gmra.mxu0 %v4641
        %v4954 = vpop.f32.mrf.mxu0
        %v4955 = vadd.f32 %v4880, %v4954
        %v4956 = vpop.f32.mrf.mxu0
        %4957 = vdwg.mxu0
        %v4958 = vadd.f32 %v4265, %v4798
        %v4959 = vadd.f32 %v4267, %v4800
        %v4960 = vadd.f32 %v4417, %v4950
        %v4961 = vadd.f32 %v4271, %v4804
        %v4962 = vadd.f32 %v4273, %v4806
        %v4963 = vadd.f32 %v4422, %v4955
        %v4964 = vld [vmem:[%s13] sm:$0x7]
        %v4966 = vlaneseq
        %v4967 = vshrl.u32 %v4966, 7
        %v4968 = vsub.s32 0, %v4967
        %v4969 = vrot.slane %v4964, %v4968
        %v4970 = vlaneseq
        %v4971 = vshrl.u32 %v4970, 7
        %v4972 = vsub.s32 1, %v4971
        %v4973 = vrot.slane %v4964, %v4972
        %v4974 = vlaneseq
        %v4975 = vshrl.u32 %v4974, 7
        %v4976 = vsub.s32 2, %v4975
        %v4977 = vrot.slane %v4964, %v4976
        %v4981 = vadd.f32 %v4958, %v4969
        %v4982 = vadd.f32 %v4959, %v4973
        %v4983 = vadd.f32 %v4960, %v4977
        %v4984 = vadd.f32 %v4961, %v4969
        %v4985 = vadd.f32 %v4962, %v4973
        %v4986 = vadd.f32 %v4963, %v4977
        %vm4987 = vcmp.gt.f32.partialorder %v4981, 0.0
        %vm4988 = vcmp.gt.f32.partialorder %v4982, 0.0
        %vm4989 = vcmp.gt.f32.partialorder %v4983, 0.0
        %vm4990 = vcmp.gt.f32.partialorder %v4984, 0.0
        %vm4991 = vcmp.gt.f32.partialorder %v4985, 0.0
        %vm4992 = vcmp.gt.f32.partialorder %v4986, 0.0
        %v4993 = vmul.f32 %v4981, 0.01
        %v4994 = vmul.f32 %v4982, 0.01
        %v4995 = vmul.f32 %v4983, 0.01
        %v4996 = vmul.f32 %v4984, 0.01
        %v4997 = vmul.f32 %v4985, 0.01
        %v4998 = vmul.f32 %v4986, 0.01
        %v4999 = vsel %vm4987, %v4981, %v4993
        %v5000 = vsel %vm4988, %v4982, %v4994
        %v5001 = vsel %vm4989, %v4983, %v4995
        %v5002 = vsel %vm4990, %v4984, %v4996
        %v5003 = vsel %vm4991, %v4985, %v4997
        %v5004 = vsel %vm4992, %v4986, %v4998
        %vm5011 = vcmask 1041408
        %v5012 = vrot.slane %v4999, 6
        %v5013 = vrot.slane %v5000, 6
        %v5014 = vrot.slane %v5001, 6
        %v5015 = vrot.slane %v5002, 6
        %v5016 = vsel %vm5011, %v5012, %v5015
        %v5017 = vrot.slane %v5003, 6
        %v5018 = vsel %vm5011, %v5013, %v5017
        %v5019 = vrot.slane %v5004, 6
        %v5020 = vsel %vm5011, %v5014, %v5019
        %5027 = vst [vmem:[#allocation2] sm:$0xfc] %v5012
        %5028 = vst [vmem:[#allocation2 + $0x8] sm:$0xfc] %v5013
        %vm5029 = vcmask 523266
        %5030 = vst.msk [vmem:[#allocation2 + $0x10] sm:$0xfc] %vm5029, %v5014
        %5031 = vst [vmem:[#allocation2 + $0x20] sm:$0xf] %v5016
        %5032 = vst [vmem:[#allocation2 + $0x28] sm:$0xf] %v5018
        %vm5033 = vcmask 519168
        %5034 = vst.msk [vmem:[#allocation2 + $0x30] sm:$0xf] %vm5033, %v5020
        %v5035 = vld [vmem:[#allocation2] sm:$0xff]
        %v5036 = vld [vmem:[#allocation2 + $0x8] sm:$0xff]
        %v5037 = vld [vmem:[#allocation2 + $0x10] sm:$0xff]
        %v5038 = vld [vmem:[#allocation2 + $0x20] sm:$0xf]
        %v5039 = vld [vmem:[#allocation2 + $0x28] sm:$0xf]
        %v5040 = vld [vmem:[#allocation2 + $0x30] sm:$0xf]
        %v5041 = vld [vmem:[%s6] sm:$0xff]
        %v5042 = vld [vmem:[%s6 + $0x8] sm:$0xff]
        %v5043 = vld [vmem:[%s6 + $0x10] sm:$0xff]
        %v5044 = vld [vmem:[%s6 + $0x18] sm:$0xff]
        %v5045 = vld [vmem:[%s6 + $0x20] sm:$0xff]
        %v5046 = vld [vmem:[%s6 + $0x28] sm:$0xff]
        %v5047 = vld [vmem:[%s6 + $0x30] sm:$0xff]
        %v5048 = vld [vmem:[%s6 + $0x38] sm:$0xff]
        %v5049 = vld [vmem:[%s6 + $0x40] sm:$0xff]
        %v5050 = vld [vmem:[%s6 + $0x48] sm:$0xff]
        %v5051 = vld [vmem:[%s6 + $0x50] sm:$0xff]
        %v5052 = vld [vmem:[%s6 + $0x58] sm:$0xff]
        %v5053 = vld [vmem:[%s6 + $0x60] sm:$0xff]
        %v5054 = vld [vmem:[%s6 + $0x68] sm:$0xff]
        %v5055 = vld [vmem:[%s6 + $0x70] sm:$0xff]
        %v5056 = vld [vmem:[%s6 + $0x78] sm:$0xff]
        %v5057 = vld [vmem:[%s6 + $0x80] sm:$0xff]
        %v5058 = vld [vmem:[%s6 + $0x88] sm:$0xff]
        %v5059 = vld [vmem:[%s6 + $0x90] sm:$0xff]
        %v5060 = vld [vmem:[%s6 + $0x98] sm:$0xff]
        %v5061 = vld [vmem:[%s6 + $0xa0] sm:$0xff]
        %v5062 = vld [vmem:[%s6 + $0xa8] sm:$0xff]
        %v5063 = vld [vmem:[%s6 + $0xb0] sm:$0xff]
        %v5064 = vld [vmem:[%s6 + $0xb8] sm:$0xff]
        %v5065 = vld [vmem:[%s6 + $0xc0] sm:$0xff]
        %v5066 = vld [vmem:[%s6 + $0xc8] sm:$0xff]
        %v5067 = vld [vmem:[%s6 + $0xd0] sm:$0xff]
        %v5068 = vld [vmem:[%s6 + $0xd8] sm:$0xff]
        %v5069 = vld [vmem:[%s6 + $0xe0] sm:$0xff]
        %v5070 = vld [vmem:[%s6 + $0xe8] sm:$0xff]
        %v5071 = vld [vmem:[%s6 + $0xf0] sm:$0xff]
        %v5072 = vld [vmem:[%s6 + $0xf8] sm:$0xff]
        %v5073 = vld [vmem:[%s6 + $0x100] sm:$0xff]
        %v5074 = vld [vmem:[%s6 + $0x108] sm:$0xff]
        %v5075 = vld [vmem:[%s6 + $0x110] sm:$0xff]
        %v5076 = vld [vmem:[%s6 + $0x118] sm:$0xff]
        %v5077 = vld [vmem:[%s6 + $0x120] sm:$0xff]
        %v5078 = vld [vmem:[%s6 + $0x128] sm:$0xff]
        %v5079 = vld [vmem:[%s6 + $0x130] sm:$0xff]
        %v5080 = vld [vmem:[%s6 + $0x138] sm:$0xff]
        %v5081 = vld [vmem:[%s6 + $0x140] sm:$0xff]
        %v5082 = vld [vmem:[%s6 + $0x148] sm:$0xff]
        %v5083 = vld [vmem:[%s6 + $0x150] sm:$0xff]
        %v5084 = vld [vmem:[%s6 + $0x158] sm:$0xff]
        %v5085 = vld [vmem:[%s6 + $0x160] sm:$0xff]
        %v5086 = vld [vmem:[%s6 + $0x168] sm:$0xff]
        %v5087 = vld [vmem:[%s6 + $0x170] sm:$0xff]
        %v5088 = vld [vmem:[%s6 + $0x178] sm:$0xff]
        %v5089 = vld [vmem:[%s6 + $0x180] sm:$0xff]
        %v5090 = vld [vmem:[%s6 + $0x188] sm:$0xff]
        %v5091 = vld [vmem:[%s6 + $0x190] sm:$0xff]
        %v5092 = vld [vmem:[%s6 + $0x198] sm:$0xff]
        %v5093 = vld [vmem:[%s6 + $0x1a0] sm:$0xff]
        %v5094 = vld [vmem:[%s6 + $0x1a8] sm:$0xff]
        %v5095 = vld [vmem:[%s6 + $0x1b0] sm:$0xff]
        %v5096 = vld [vmem:[%s6 + $0x1b8] sm:$0xff]
        %v5097 = vld [vmem:[%s6 + $0x1c0] sm:$0xff]
        %v5098 = vld [vmem:[%s6 + $0x1c8] sm:$0xff]
        %v5099 = vld [vmem:[%s6 + $0x1d0] sm:$0xff]
        %v5100 = vld [vmem:[%s6 + $0x1d8] sm:$0xff]
        %v5101 = vld [vmem:[%s6 + $0x1e0] sm:$0xff]
        %v5102 = vld [vmem:[%s6 + $0x1e8] sm:$0xff]
        %v5103 = vld [vmem:[%s6 + $0x1f0] sm:$0xff]
        %v5104 = vld [vmem:[%s6 + $0x1f8] sm:$0xff]
        %v5105 = vld [vmem:[%s6 + $0x200] sm:$0xff]
        %v5106 = vld [vmem:[%s6 + $0x208] sm:$0xff]
        %v5107 = vld [vmem:[%s6 + $0x210] sm:$0xff]
        %v5108 = vld [vmem:[%s6 + $0x218] sm:$0xff]
        %v5109 = vld [vmem:[%s6 + $0x220] sm:$0xff]
        %v5110 = vld [vmem:[%s6 + $0x228] sm:$0xff]
        %v5111 = vld [vmem:[%s6 + $0x230] sm:$0xff]
        %v5112 = vld [vmem:[%s6 + $0x238] sm:$0xff]
        %v5113 = vld [vmem:[%s6 + $0x240] sm:$0xff]
        %v5114 = vld [vmem:[%s6 + $0x248] sm:$0xff]
        %v5115 = vld [vmem:[%s6 + $0x250] sm:$0xff]
        %v5116 = vld [vmem:[%s6 + $0x258] sm:$0xff]
        %v5117 = vld [vmem:[%s6 + $0x260] sm:$0xff]
        %v5118 = vld [vmem:[%s6 + $0x268] sm:$0xff]
        %v5119 = vld [vmem:[%s6 + $0x270] sm:$0xff]
        %v5120 = vld [vmem:[%s6 + $0x278] sm:$0xff]
        %v5121 = vld [vmem:[#allocation2] sm:$0xfe]
        %v5122 = vld [vmem:[#allocation2 + $0x8] sm:$0xfe]
        %v5123 = vld [vmem:[#allocation2 + $0x10] sm:$0xfe]
        %v5124 = vld [vmem:[#allocation2 + $0x20] sm:$0x1f]
        %v5125 = vld [vmem:[#allocation2 + $0x28] sm:$0x1f]
        %v5126 = vld [vmem:[#allocation2 + $0x30] sm:$0x1f]
        %s5127 = scalar_lea.vmem %s6, 640
        %v5128 = vld [vmem:[%s5127] sm:$0xff]
        %v5129 = vld [vmem:[%s5127 + $0x8] sm:$0xff]
        %v5130 = vld [vmem:[%s5127 + $0x10] sm:$0xff]
        %v5131 = vld [vmem:[%s5127 + $0x18] sm:$0xff]
        %v5132 = vld [vmem:[%s5127 + $0x20] sm:$0xff]
        %v5133 = vld [vmem:[%s5127 + $0x28] sm:$0xff]
        %v5134 = vld [vmem:[%s5127 + $0x30] sm:$0xff]
        %v5135 = vld [vmem:[%s5127 + $0x38] sm:$0xff]
        %v5136 = vld [vmem:[%s5127 + $0x40] sm:$0xff]
        %v5137 = vld [vmem:[%s5127 + $0x48] sm:$0xff]
        %v5138 = vld [vmem:[%s5127 + $0x50] sm:$0xff]
        %v5139 = vld [vmem:[%s5127 + $0x58] sm:$0xff]
        %v5140 = vld [vmem:[%s5127 + $0x60] sm:$0xff]
        %v5141 = vld [vmem:[%s5127 + $0x68] sm:$0xff]
        %v5142 = vld [vmem:[%s5127 + $0x70] sm:$0xff]
        %v5143 = vld [vmem:[%s5127 + $0x78] sm:$0xff]
        %v5144 = vld [vmem:[%s5127 + $0x80] sm:$0xff]
        %v5145 = vld [vmem:[%s5127 + $0x88] sm:$0xff]
        %v5146 = vld [vmem:[%s5127 + $0x90] sm:$0xff]
        %v5147 = vld [vmem:[%s5127 + $0x98] sm:$0xff]
        %v5148 = vld [vmem:[%s5127 + $0xa0] sm:$0xff]
        %v5149 = vld [vmem:[%s5127 + $0xa8] sm:$0xff]
        %v5150 = vld [vmem:[%s5127 + $0xb0] sm:$0xff]
        %v5151 = vld [vmem:[%s5127 + $0xb8] sm:$0xff]
        %v5152 = vld [vmem:[%s5127 + $0xc0] sm:$0xff]
        %v5153 = vld [vmem:[%s5127 + $0xc8] sm:$0xff]
        %v5154 = vld [vmem:[%s5127 + $0xd0] sm:$0xff]
        %v5155 = vld [vmem:[%s5127 + $0xd8] sm:$0xff]
        %v5156 = vld [vmem:[%s5127 + $0xe0] sm:$0xff]
        %v5157 = vld [vmem:[%s5127 + $0xe8] sm:$0xff]
        %v5158 = vld [vmem:[%s5127 + $0xf0] sm:$0xff]
        %v5159 = vld [vmem:[%s5127 + $0xf8] sm:$0xff]
        %v5160 = vld [vmem:[%s5127 + $0x100] sm:$0xff]
        %v5161 = vld [vmem:[%s5127 + $0x108] sm:$0xff]
        %v5162 = vld [vmem:[%s5127 + $0x110] sm:$0xff]
        %v5163 = vld [vmem:[%s5127 + $0x118] sm:$0xff]
        %v5164 = vld [vmem:[%s5127 + $0x120] sm:$0xff]
        %v5165 = vld [vmem:[%s5127 + $0x128] sm:$0xff]
        %v5166 = vld [vmem:[%s5127 + $0x130] sm:$0xff]
        %v5167 = vld [vmem:[%s5127 + $0x138] sm:$0xff]
        %v5168 = vld [vmem:[%s5127 + $0x140] sm:$0xff]
        %v5169 = vld [vmem:[%s5127 + $0x148] sm:$0xff]
        %v5170 = vld [vmem:[%s5127 + $0x150] sm:$0xff]
        %v5171 = vld [vmem:[%s5127 + $0x158] sm:$0xff]
        %v5172 = vld [vmem:[%s5127 + $0x160] sm:$0xff]
        %v5173 = vld [vmem:[%s5127 + $0x168] sm:$0xff]
        %v5174 = vld [vmem:[%s5127 + $0x170] sm:$0xff]
        %v5175 = vld [vmem:[%s5127 + $0x178] sm:$0xff]
        %v5176 = vld [vmem:[%s5127 + $0x180] sm:$0xff]
        %v5177 = vld [vmem:[%s5127 + $0x188] sm:$0xff]
        %v5178 = vld [vmem:[%s5127 + $0x190] sm:$0xff]
        %v5179 = vld [vmem:[%s5127 + $0x198] sm:$0xff]
        %v5180 = vld [vmem:[%s5127 + $0x1a0] sm:$0xff]
        %v5181 = vld [vmem:[%s5127 + $0x1a8] sm:$0xff]
        %v5182 = vld [vmem:[%s5127 + $0x1b0] sm:$0xff]
        %v5183 = vld [vmem:[%s5127 + $0x1b8] sm:$0xff]
        %v5184 = vld [vmem:[%s5127 + $0x1c0] sm:$0xff]
        %v5185 = vld [vmem:[%s5127 + $0x1c8] sm:$0xff]
        %v5186 = vld [vmem:[%s5127 + $0x1d0] sm:$0xff]
        %v5187 = vld [vmem:[%s5127 + $0x1d8] sm:$0xff]
        %v5188 = vld [vmem:[%s5127 + $0x1e0] sm:$0xff]
        %v5189 = vld [vmem:[%s5127 + $0x1e8] sm:$0xff]
        %v5190 = vld [vmem:[%s5127 + $0x1f0] sm:$0xff]
        %v5191 = vld [vmem:[%s5127 + $0x1f8] sm:$0xff]
        %v5192 = vld [vmem:[%s5127 + $0x200] sm:$0xff]
        %v5193 = vld [vmem:[%s5127 + $0x208] sm:$0xff]
        %v5194 = vld [vmem:[%s5127 + $0x210] sm:$0xff]
        %v5195 = vld [vmem:[%s5127 + $0x218] sm:$0xff]
        %v5196 = vld [vmem:[%s5127 + $0x220] sm:$0xff]
        %v5197 = vld [vmem:[%s5127 + $0x228] sm:$0xff]
        %v5198 = vld [vmem:[%s5127 + $0x230] sm:$0xff]
        %v5199 = vld [vmem:[%s5127 + $0x238] sm:$0xff]
        %v5200 = vld [vmem:[%s5127 + $0x240] sm:$0xff]
        %v5201 = vld [vmem:[%s5127 + $0x248] sm:$0xff]
        %v5202 = vld [vmem:[%s5127 + $0x250] sm:$0xff]
        %v5203 = vld [vmem:[%s5127 + $0x258] sm:$0xff]
        %v5204 = vld [vmem:[%s5127 + $0x260] sm:$0xff]
        %v5205 = vld [vmem:[%s5127 + $0x268] sm:$0xff]
        %v5206 = vld [vmem:[%s5127 + $0x270] sm:$0xff]
        %v5207 = vld [vmem:[%s5127 + $0x278] sm:$0xff]
        %v5214 = vrot.slane %v5121, 1
        %v5215 = vrot.slane %v5124, 1
        %v5216 = vsel %vm568, %v5214, %v5215
        %v5217 = vrot.slane %v5122, 1
        %v5218 = vrot.slane %v5125, 1
        %v5219 = vsel %vm568, %v5217, %v5218
        %v5220 = vrot.slane %v5123, 1
        %v5221 = vrot.slane %v5126, 1
        %v5222 = vsel %vm568, %v5220, %v5221
        %v5227 = vsel %vm1361, %v5222, 0
        %v5229 = vsel %vm1361, %v5221, 0
        %5231 = vmatprep.subr.mxu0 %v5159
        %5232 = vmatpush1.msra.mxu0 %v5158
        %5233 = vmatprep.subr.mxu0 %v5157
        %5234 = vmatpush1.msra.mxu0 %v5156
        %5235 = vmatprep.subr.mxu0 %v5155
        %5236 = vmatpush1.msra.mxu0 %v5154
        %5237 = vmatprep.subr.mxu0 %v5153
        %5238 = vmatpush1.msra.mxu0 %v5152
        %5239 = vmatprep.subr.mxu0 %v5151
        %5240 = vmatpush1.msra.mxu0 %v5150
        %5241 = vmatprep.subr.mxu0 %v5149
        %5242 = vmatpush1.msra.mxu0 %v5148
        %5243 = vmatprep.subr.mxu0 %v5147
        %5244 = vmatpush1.msra.mxu0 %v5146
        %5245 = vmatprep.subr.mxu0 %v5145
        %5246 = vmatpush1.msra.mxu0 %v5144
        %5247 = vmatprep.subr.mxu0 %v5143
        %5248 = vmatpush1.msra.mxu0 %v5142
        %5249 = vmatprep.subr.mxu0 %v5141
        %5250 = vmatpush1.msra.mxu0 %v5140
        %5251 = vmatprep.subr.mxu0 %v5139
        %5252 = vmatpush1.msra.mxu0 %v5138
        %5253 = vmatprep.subr.mxu0 %v5137
        %5254 = vmatpush1.msra.mxu0 %v5136
        %5255 = vmatprep.subr.mxu0 %v5135
        %5256 = vmatpush1.msra.mxu0 %v5134
        %5257 = vmatprep.subr.mxu0 %v5133
        %5258 = vmatpush1.msra.mxu0 %v5132
        %5259 = vmatprep.subr.mxu0 %v5131
        %5260 = vmatpush1.msra.mxu0 %v5130
        %5261 = vmatprep.subr.mxu0 %v5129
        %5262 = vmatpush1.msra.mxu0 %v5128
        %5263 = vmatprep.subr.mxu0 %v5191
        %5264 = vmatpush2.msra.mxu0 %v5190
        %5265 = vmatprep.subr.mxu0 %v5189
        %5266 = vmatpush2.msra.mxu0 %v5188
        %5267 = vmatprep.subr.mxu0 %v5187
        %5268 = vmatpush2.msra.mxu0 %v5186
        %5269 = vmatprep.subr.mxu0 %v5185
        %5270 = vmatpush2.msra.mxu0 %v5184
        %5271 = vmatprep.subr.mxu0 %v5183
        %5272 = vmatpush2.msra.mxu0 %v5182
        %5273 = vmatprep.subr.mxu0 %v5181
        %5274 = vmatpush2.msra.mxu0 %v5180
        %5275 = vmatprep.subr.mxu0 %v5179
        %5276 = vmatpush2.msra.mxu0 %v5178
        %5277 = vmatprep.subr.mxu0 %v5177
        %5278 = vmatpush2.msra.mxu0 %v5176
        %5279 = vmatprep.subr.mxu0 %v5175
        %5280 = vmatpush2.msra.mxu0 %v5174
        %5281 = vmatprep.subr.mxu0 %v5173
        %5282 = vmatpush2.msra.mxu0 %v5172
        %5283 = vmatprep.subr.mxu0 %v5171
        %5284 = vmatpush2.msra.mxu0 %v5170
        %5285 = vmatprep.subr.mxu0 %v5169
        %5286 = vmatpush2.msra.mxu0 %v5168
        %5287 = vmatprep.subr.mxu0 %v5167
        %5288 = vmatpush2.msra.mxu0 %v5166
        %5289 = vmatprep.subr.mxu0 %v5165
        %5290 = vmatpush2.msra.mxu0 %v5164
        %5291 = vmatprep.subr.mxu0 %v5163
        %5292 = vmatpush2.msra.mxu0 %v5162
        %5293 = vmatprep.subr.mxu0 %v5161
        %5294 = vmatpush2.msra.mxu0 %v5160
        %5295 = vmatprep.mubr.f32.mxu0 %v5219
        %5296 = vmatmul.mubr.f32.gmra.mxu0 %v5216
        %v5297 = vpop.f32.mrf.mxu0
        %v5298 = vadd.f32 0.0, %v5297
        %v5299 = vpop.f32.mrf.mxu0
        %v5300 = vadd.f32 0.0, %v5299
        %5301 = vmatprep.mubr.f32.mxu0 %v5218
        %5302 = vmatmul.mubr.f32.gmra.mxu0 %v5215
        %v5303 = vpop.f32.mrf.mxu0
        %v5304 = vadd.f32 0.0, %v5303
        %v5305 = vpop.f32.mrf.mxu0
        %v5306 = vadd.f32 0.0, %v5305
        %5307 = vdwg.mxu0
        %5308 = vmatprep.subr.mxu0 0.0
        %5309 = vmatpush1.msra.mxu0 0.0
        %5310 = vmatprep.subr.mxu0 0.0
        %5311 = vmatpush1.msra.mxu0 0.0
        %5312 = vmatprep.subr.mxu0 0.0
        %5313 = vmatpush1.msra.mxu0 0.0
        %5314 = vmatprep.subr.mxu0 0.0
        %5315 = vmatpush1.msra.mxu0 0.0
        %5316 = vmatprep.subr.mxu0 0.0
        %5317 = vmatpush1.msra.mxu0 0.0
        %5318 = vmatprep.subr.mxu0 0.0
        %5319 = vmatpush1.msra.mxu0 0.0
        %5320 = vmatprep.subr.mxu0 0.0
        %5321 = vmatpush1.msra.mxu0 0.0
        %5322 = vmatprep.subr.mxu0 0.0
        %5323 = vmatpush1.msra.mxu0 0.0
        %5324 = vmatprep.subr.mxu0 %v5207
        %5325 = vmatpush1.msra.mxu0 %v5206
        %5326 = vmatprep.subr.mxu0 %v5205
        %5327 = vmatpush1.msra.mxu0 %v5204
        %5328 = vmatprep.subr.mxu0 %v5203
        %5329 = vmatpush1.msra.mxu0 %v5202
        %5330 = vmatprep.subr.mxu0 %v5201
        %5331 = vmatpush1.msra.mxu0 %v5200
        %5332 = vmatprep.subr.mxu0 %v5199
        %5333 = vmatpush1.msra.mxu0 %v5198
        %5334 = vmatprep.subr.mxu0 %v5197
        %5335 = vmatpush1.msra.mxu0 %v5196
        %5336 = vmatprep.subr.mxu0 %v5195
        %5337 = vmatpush1.msra.mxu0 %v5194
        %5338 = vmatprep.subr.mxu0 %v5193
        %5339 = vmatpush1.msra.mxu0 %v5192
        %5340 = vmatprep.subr.mxu0 0.0
        %5341 = vmatpush2.msra.mxu0 0.0
        %5342 = vmatprep.subr.mxu0 0.0
        %5343 = vmatpush2.msra.mxu0 0.0
        %5344 = vmatprep.subr.mxu0 0.0
        %5345 = vmatpush2.msra.mxu0 0.0
        %5346 = vmatprep.subr.mxu0 0.0
        %5347 = vmatpush2.msra.mxu0 0.0
        %5348 = vmatprep.subr.mxu0 0.0
        %5349 = vmatpush2.msra.mxu0 0.0
        %5350 = vmatprep.subr.mxu0 0.0
        %5351 = vmatpush2.msra.mxu0 0.0
        %5352 = vmatprep.subr.mxu0 0.0
        %5353 = vmatpush2.msra.mxu0 0.0
        %5354 = vmatprep.subr.mxu0 0.0
        %5355 = vmatpush2.msra.mxu0 0.0
        %5356 = vmatprep.subr.mxu0 0.0
        %5357 = vmatpush2.msra.mxu0 0.0
        %5358 = vmatprep.subr.mxu0 0.0
        %5359 = vmatpush2.msra.mxu0 0.0
        %5360 = vmatprep.subr.mxu0 0.0
        %5361 = vmatpush2.msra.mxu0 0.0
        %5362 = vmatprep.subr.mxu0 0.0
        %5363 = vmatpush2.msra.mxu0 0.0
        %5364 = vmatprep.subr.mxu0 0.0
        %5365 = vmatpush2.msra.mxu0 0.0
        %5366 = vmatprep.subr.mxu0 0.0
        %5367 = vmatpush2.msra.mxu0 0.0
        %5368 = vmatprep.subr.mxu0 0.0
        %5369 = vmatpush2.msra.mxu0 0.0
        %5370 = vmatprep.subr.mxu0 0.0
        %5371 = vmatpush2.msra.mxu0 0.0
        %5372 = vmatprep.mubr.f32.mxu0 0.0
        %5373 = vmatmul.mubr.f32.gmra.mxu0 %v5227
        %v5374 = vpop.f32.mrf.mxu0
        %v5375 = vadd.f32 %v5298, %v5374
        %v5376 = vpop.f32.mrf.mxu0
        %v5377 = vadd.f32 %v5300, %v5376
        %5378 = vmatprep.mubr.f32.mxu0 0.0
        %5379 = vmatmul.mubr.f32.gmra.mxu0 %v5229
        %v5380 = vpop.f32.mrf.mxu0
        %v5381 = vadd.f32 %v5304, %v5380
        %v5382 = vpop.f32.mrf.mxu0
        %v5383 = vadd.f32 %v5306, %v5382
        %5384 = vdwg.mxu0
        %v5386 = vsel %vm1361, %v5037, 0
        %v5389 = vsel %vm1361, %v5040, 0
        %5391 = vmatprep.subr.mxu0 %v5072
        %5392 = vmatpush1.msra.mxu0 %v5071
        %5393 = vmatprep.subr.mxu0 %v5070
        %5394 = vmatpush1.msra.mxu0 %v5069
        %5395 = vmatprep.subr.mxu0 %v5068
        %5396 = vmatpush1.msra.mxu0 %v5067
        %5397 = vmatprep.subr.mxu0 %v5066
        %5398 = vmatpush1.msra.mxu0 %v5065
        %5399 = vmatprep.subr.mxu0 %v5064
        %5400 = vmatpush1.msra.mxu0 %v5063
        %5401 = vmatprep.subr.mxu0 %v5062
        %5402 = vmatpush1.msra.mxu0 %v5061
        %5403 = vmatprep.subr.mxu0 %v5060
        %5404 = vmatpush1.msra.mxu0 %v5059
        %5405 = vmatprep.subr.mxu0 %v5058
        %5406 = vmatpush1.msra.mxu0 %v5057
        %5407 = vmatprep.subr.mxu0 %v5056
        %5408 = vmatpush1.msra.mxu0 %v5055
        %5409 = vmatprep.subr.mxu0 %v5054
        %5410 = vmatpush1.msra.mxu0 %v5053
        %5411 = vmatprep.subr.mxu0 %v5052
        %5412 = vmatpush1.msra.mxu0 %v5051
        %5413 = vmatprep.subr.mxu0 %v5050
        %5414 = vmatpush1.msra.mxu0 %v5049
        %5415 = vmatprep.subr.mxu0 %v5048
        %5416 = vmatpush1.msra.mxu0 %v5047
        %5417 = vmatprep.subr.mxu0 %v5046
        %5418 = vmatpush1.msra.mxu0 %v5045
        %5419 = vmatprep.subr.mxu0 %v5044
        %5420 = vmatpush1.msra.mxu0 %v5043
        %5421 = vmatprep.subr.mxu0 %v5042
        %5422 = vmatpush1.msra.mxu0 %v5041
        %5423 = vmatprep.subr.mxu0 %v5104
        %5424 = vmatpush2.msra.mxu0 %v5103
        %5425 = vmatprep.subr.mxu0 %v5102
        %5426 = vmatpush2.msra.mxu0 %v5101
        %5427 = vmatprep.subr.mxu0 %v5100
        %5428 = vmatpush2.msra.mxu0 %v5099
        %5429 = vmatprep.subr.mxu0 %v5098
        %5430 = vmatpush2.msra.mxu0 %v5097
        %5431 = vmatprep.subr.mxu0 %v5096
        %5432 = vmatpush2.msra.mxu0 %v5095
        %5433 = vmatprep.subr.mxu0 %v5094
        %5434 = vmatpush2.msra.mxu0 %v5093
        %5435 = vmatprep.subr.mxu0 %v5092
        %5436 = vmatpush2.msra.mxu0 %v5091
        %5437 = vmatprep.subr.mxu0 %v5090
        %5438 = vmatpush2.msra.mxu0 %v5089
        %5439 = vmatprep.subr.mxu0 %v5088
        %5440 = vmatpush2.msra.mxu0 %v5087
        %5441 = vmatprep.subr.mxu0 %v5086
        %5442 = vmatpush2.msra.mxu0 %v5085
        %5443 = vmatprep.subr.mxu0 %v5084
        %5444 = vmatpush2.msra.mxu0 %v5083
        %5445 = vmatprep.subr.mxu0 %v5082
        %5446 = vmatpush2.msra.mxu0 %v5081
        %5447 = vmatprep.subr.mxu0 %v5080
        %5448 = vmatpush2.msra.mxu0 %v5079
        %5449 = vmatprep.subr.mxu0 %v5078
        %5450 = vmatpush2.msra.mxu0 %v5077
        %5451 = vmatprep.subr.mxu0 %v5076
        %5452 = vmatpush2.msra.mxu0 %v5075
        %5453 = vmatprep.subr.mxu0 %v5074
        %5454 = vmatpush2.msra.mxu0 %v5073
        %5455 = vmatprep.mubr.f32.mxu0 %v5036
        %5456 = vmatmul.mubr.f32.gmra.mxu0 %v5035
        %v5457 = vpop.f32.mrf.mxu0
        %v5458 = vadd.f32 %v5375, %v5457
        %v5459 = vpop.f32.mrf.mxu0
        %v5460 = vadd.f32 %v5377, %v5459
        %5461 = vmatprep.mubr.f32.mxu0 %v5039
        %5462 = vmatmul.mubr.f32.gmra.mxu0 %v5038
        %v5463 = vpop.f32.mrf.mxu0
        %v5464 = vadd.f32 %v5381, %v5463
        %v5465 = vpop.f32.mrf.mxu0
        %v5466 = vadd.f32 %v5383, %v5465
        %5467 = vdwg.mxu0
        %5468 = vmatprep.subr.mxu0 0.0
        %5469 = vmatpush1.msra.mxu0 0.0
        %5470 = vmatprep.subr.mxu0 0.0
        %5471 = vmatpush1.msra.mxu0 0.0
        %5472 = vmatprep.subr.mxu0 0.0
        %5473 = vmatpush1.msra.mxu0 0.0
        %5474 = vmatprep.subr.mxu0 0.0
        %5475 = vmatpush1.msra.mxu0 0.0
        %5476 = vmatprep.subr.mxu0 0.0
        %5477 = vmatpush1.msra.mxu0 0.0
        %5478 = vmatprep.subr.mxu0 0.0
        %5479 = vmatpush1.msra.mxu0 0.0
        %5480 = vmatprep.subr.mxu0 0.0
        %5481 = vmatpush1.msra.mxu0 0.0
        %5482 = vmatprep.subr.mxu0 0.0
        %5483 = vmatpush1.msra.mxu0 0.0
        %5484 = vmatprep.subr.mxu0 %v5120
        %5485 = vmatpush1.msra.mxu0 %v5119
        %5486 = vmatprep.subr.mxu0 %v5118
        %5487 = vmatpush1.msra.mxu0 %v5117
        %5488 = vmatprep.subr.mxu0 %v5116
        %5489 = vmatpush1.msra.mxu0 %v5115
        %5490 = vmatprep.subr.mxu0 %v5114
        %5491 = vmatpush1.msra.mxu0 %v5113
        %5492 = vmatprep.subr.mxu0 %v5112
        %5493 = vmatpush1.msra.mxu0 %v5111
        %5494 = vmatprep.subr.mxu0 %v5110
        %5495 = vmatpush1.msra.mxu0 %v5109
        %5496 = vmatprep.subr.mxu0 %v5108
        %5497 = vmatpush1.msra.mxu0 %v5107
        %5498 = vmatprep.subr.mxu0 %v5106
        %5499 = vmatpush1.msra.mxu0 %v5105
        %5500 = vmatprep.subr.mxu0 0.0
        %5501 = vmatpush2.msra.mxu0 0.0
        %5502 = vmatprep.subr.mxu0 0.0
        %5503 = vmatpush2.msra.mxu0 0.0
        %5504 = vmatprep.subr.mxu0 0.0
        %5505 = vmatpush2.msra.mxu0 0.0
        %5506 = vmatprep.subr.mxu0 0.0
        %5507 = vmatpush2.msra.mxu0 0.0
        %5508 = vmatprep.subr.mxu0 0.0
        %5509 = vmatpush2.msra.mxu0 0.0
        %5510 = vmatprep.subr.mxu0 0.0
        %5511 = vmatpush2.msra.mxu0 0.0
        %5512 = vmatprep.subr.mxu0 0.0
        %5513 = vmatpush2.msra.mxu0 0.0
        %5514 = vmatprep.subr.mxu0 0.0
        %5515 = vmatpush2.msra.mxu0 0.0
        %5516 = vmatprep.subr.mxu0 0.0
        %5517 = vmatpush2.msra.mxu0 0.0
        %5518 = vmatprep.subr.mxu0 0.0
        %5519 = vmatpush2.msra.mxu0 0.0
        %5520 = vmatprep.subr.mxu0 0.0
        %5521 = vmatpush2.msra.mxu0 0.0
        %5522 = vmatprep.subr.mxu0 0.0
        %5523 = vmatpush2.msra.mxu0 0.0
        %5524 = vmatprep.subr.mxu0 0.0
        %5525 = vmatpush2.msra.mxu0 0.0
        %5526 = vmatprep.subr.mxu0 0.0
        %5527 = vmatpush2.msra.mxu0 0.0
        %5528 = vmatprep.subr.mxu0 0.0
        %5529 = vmatpush2.msra.mxu0 0.0
        %5530 = vmatprep.subr.mxu0 0.0
        %5531 = vmatpush2.msra.mxu0 0.0
        %5532 = vmatprep.mubr.f32.mxu0 0.0
        %5533 = vmatmul.mubr.f32.gmra.mxu0 %v5386
        %v5534 = vpop.f32.mrf.mxu0
        %v5535 = vadd.f32 %v5458, %v5534
        %v5536 = vpop.f32.mrf.mxu0
        %v5537 = vadd.f32 %v5460, %v5536
        %5538 = vmatprep.mubr.f32.mxu0 0.0
        %5539 = vmatmul.mubr.f32.gmra.mxu0 %v5389
        %v5540 = vpop.f32.mrf.mxu0
        %v5541 = vadd.f32 %v5464, %v5540
        %v5542 = vpop.f32.mrf.mxu0
        %v5543 = vadd.f32 %v5466, %v5542
        %5544 = vdwg.mxu0
        %v5545 = vld [vmem:[#allocation2] sm:$0xfc]
        %v5546 = vld [vmem:[#allocation2 + $0x8] sm:$0xfc]
        %v5547 = vld [vmem:[#allocation2 + $0x10] sm:$0xfc]
        %v5548 = vld [vmem:[#allocation2 + $0x20] sm:$0x3f]
        %v5549 = vld [vmem:[#allocation2 + $0x28] sm:$0x3f]
        %v5550 = vld [vmem:[#allocation2 + $0x30] sm:$0x3f]
        %s5551 = scalar_lea.vmem %s6, 1280
        %v5552 = vld [vmem:[%s5551] sm:$0xff]
        %v5553 = vld [vmem:[%s5551 + $0x8] sm:$0xff]
        %v5554 = vld [vmem:[%s5551 + $0x10] sm:$0xff]
        %v5555 = vld [vmem:[%s5551 + $0x18] sm:$0xff]
        %v5556 = vld [vmem:[%s5551 + $0x20] sm:$0xff]
        %v5557 = vld [vmem:[%s5551 + $0x28] sm:$0xff]
        %v5558 = vld [vmem:[%s5551 + $0x30] sm:$0xff]
        %v5559 = vld [vmem:[%s5551 + $0x38] sm:$0xff]
        %v5560 = vld [vmem:[%s5551 + $0x40] sm:$0xff]
        %v5561 = vld [vmem:[%s5551 + $0x48] sm:$0xff]
        %v5562 = vld [vmem:[%s5551 + $0x50] sm:$0xff]
        %v5563 = vld [vmem:[%s5551 + $0x58] sm:$0xff]
        %v5564 = vld [vmem:[%s5551 + $0x60] sm:$0xff]
        %v5565 = vld [vmem:[%s5551 + $0x68] sm:$0xff]
        %v5566 = vld [vmem:[%s5551 + $0x70] sm:$0xff]
        %v5567 = vld [vmem:[%s5551 + $0x78] sm:$0xff]
        %v5568 = vld [vmem:[%s5551 + $0x80] sm:$0xff]
        %v5569 = vld [vmem:[%s5551 + $0x88] sm:$0xff]
        %v5570 = vld [vmem:[%s5551 + $0x90] sm:$0xff]
        %v5571 = vld [vmem:[%s5551 + $0x98] sm:$0xff]
        %v5572 = vld [vmem:[%s5551 + $0xa0] sm:$0xff]
        %v5573 = vld [vmem:[%s5551 + $0xa8] sm:$0xff]
        %v5574 = vld [vmem:[%s5551 + $0xb0] sm:$0xff]
        %v5575 = vld [vmem:[%s5551 + $0xb8] sm:$0xff]
        %v5576 = vld [vmem:[%s5551 + $0xc0] sm:$0xff]
        %v5577 = vld [vmem:[%s5551 + $0xc8] sm:$0xff]
        %v5578 = vld [vmem:[%s5551 + $0xd0] sm:$0xff]
        %v5579 = vld [vmem:[%s5551 + $0xd8] sm:$0xff]
        %v5580 = vld [vmem:[%s5551 + $0xe0] sm:$0xff]
        %v5581 = vld [vmem:[%s5551 + $0xe8] sm:$0xff]
        %v5582 = vld [vmem:[%s5551 + $0xf0] sm:$0xff]
        %v5583 = vld [vmem:[%s5551 + $0xf8] sm:$0xff]
        %v5584 = vld [vmem:[%s5551 + $0x100] sm:$0xff]
        %v5585 = vld [vmem:[%s5551 + $0x108] sm:$0xff]
        %v5586 = vld [vmem:[%s5551 + $0x110] sm:$0xff]
        %v5587 = vld [vmem:[%s5551 + $0x118] sm:$0xff]
        %v5588 = vld [vmem:[%s5551 + $0x120] sm:$0xff]
        %v5589 = vld [vmem:[%s5551 + $0x128] sm:$0xff]
        %v5590 = vld [vmem:[%s5551 + $0x130] sm:$0xff]
        %v5591 = vld [vmem:[%s5551 + $0x138] sm:$0xff]
        %v5592 = vld [vmem:[%s5551 + $0x140] sm:$0xff]
        %v5593 = vld [vmem:[%s5551 + $0x148] sm:$0xff]
        %v5594 = vld [vmem:[%s5551 + $0x150] sm:$0xff]
        %v5595 = vld [vmem:[%s5551 + $0x158] sm:$0xff]
        %v5596 = vld [vmem:[%s5551 + $0x160] sm:$0xff]
        %v5597 = vld [vmem:[%s5551 + $0x168] sm:$0xff]
        %v5598 = vld [vmem:[%s5551 + $0x170] sm:$0xff]
        %v5599 = vld [vmem:[%s5551 + $0x178] sm:$0xff]
        %v5600 = vld [vmem:[%s5551 + $0x180] sm:$0xff]
        %v5601 = vld [vmem:[%s5551 + $0x188] sm:$0xff]
        %v5602 = vld [vmem:[%s5551 + $0x190] sm:$0xff]
        %v5603 = vld [vmem:[%s5551 + $0x198] sm:$0xff]
        %v5604 = vld [vmem:[%s5551 + $0x1a0] sm:$0xff]
        %v5605 = vld [vmem:[%s5551 + $0x1a8] sm:$0xff]
        %v5606 = vld [vmem:[%s5551 + $0x1b0] sm:$0xff]
        %v5607 = vld [vmem:[%s5551 + $0x1b8] sm:$0xff]
        %v5608 = vld [vmem:[%s5551 + $0x1c0] sm:$0xff]
        %v5609 = vld [vmem:[%s5551 + $0x1c8] sm:$0xff]
        %v5610 = vld [vmem:[%s5551 + $0x1d0] sm:$0xff]
        %v5611 = vld [vmem:[%s5551 + $0x1d8] sm:$0xff]
        %v5612 = vld [vmem:[%s5551 + $0x1e0] sm:$0xff]
        %v5613 = vld [vmem:[%s5551 + $0x1e8] sm:$0xff]
        %v5614 = vld [vmem:[%s5551 + $0x1f0] sm:$0xff]
        %v5615 = vld [vmem:[%s5551 + $0x1f8] sm:$0xff]
        %v5616 = vld [vmem:[%s5551 + $0x200] sm:$0xff]
        %v5617 = vld [vmem:[%s5551 + $0x208] sm:$0xff]
        %v5618 = vld [vmem:[%s5551 + $0x210] sm:$0xff]
        %v5619 = vld [vmem:[%s5551 + $0x218] sm:$0xff]
        %v5620 = vld [vmem:[%s5551 + $0x220] sm:$0xff]
        %v5621 = vld [vmem:[%s5551 + $0x228] sm:$0xff]
        %v5622 = vld [vmem:[%s5551 + $0x230] sm:$0xff]
        %v5623 = vld [vmem:[%s5551 + $0x238] sm:$0xff]
        %v5624 = vld [vmem:[%s5551 + $0x240] sm:$0xff]
        %v5625 = vld [vmem:[%s5551 + $0x248] sm:$0xff]
        %v5626 = vld [vmem:[%s5551 + $0x250] sm:$0xff]
        %v5627 = vld [vmem:[%s5551 + $0x258] sm:$0xff]
        %v5628 = vld [vmem:[%s5551 + $0x260] sm:$0xff]
        %v5629 = vld [vmem:[%s5551 + $0x268] sm:$0xff]
        %v5630 = vld [vmem:[%s5551 + $0x270] sm:$0xff]
        %v5631 = vld [vmem:[%s5551 + $0x278] sm:$0xff]
        %v5638 = vrot.slane %v5545, 2
        %v5639 = vrot.slane %v5548, 2
        %v5640 = vsel %vm734, %v5638, %v5639
        %v5641 = vrot.slane %v5546, 2
        %v5642 = vrot.slane %v5549, 2
        %v5643 = vsel %vm734, %v5641, %v5642
        %v5644 = vrot.slane %v5547, 2
        %v5645 = vrot.slane %v5550, 2
        %v5646 = vsel %vm734, %v5644, %v5645
        %v5651 = vsel %vm1361, %v5646, 0
        %v5653 = vsel %vm1361, %v5645, 0
        %5655 = vmatprep.subr.mxu0 %v5583
        %5656 = vmatpush1.msra.mxu0 %v5582
        %5657 = vmatprep.subr.mxu0 %v5581
        %5658 = vmatpush1.msra.mxu0 %v5580
        %5659 = vmatprep.subr.mxu0 %v5579
        %5660 = vmatpush1.msra.mxu0 %v5578
        %5661 = vmatprep.subr.mxu0 %v5577
        %5662 = vmatpush1.msra.mxu0 %v5576
        %5663 = vmatprep.subr.mxu0 %v5575
        %5664 = vmatpush1.msra.mxu0 %v5574
        %5665 = vmatprep.subr.mxu0 %v5573
        %5666 = vmatpush1.msra.mxu0 %v5572
        %5667 = vmatprep.subr.mxu0 %v5571
        %5668 = vmatpush1.msra.mxu0 %v5570
        %5669 = vmatprep.subr.mxu0 %v5569
        %5670 = vmatpush1.msra.mxu0 %v5568
        %5671 = vmatprep.subr.mxu0 %v5567
        %5672 = vmatpush1.msra.mxu0 %v5566
        %5673 = vmatprep.subr.mxu0 %v5565
        %5674 = vmatpush1.msra.mxu0 %v5564
        %5675 = vmatprep.subr.mxu0 %v5563
        %5676 = vmatpush1.msra.mxu0 %v5562
        %5677 = vmatprep.subr.mxu0 %v5561
        %5678 = vmatpush1.msra.mxu0 %v5560
        %5679 = vmatprep.subr.mxu0 %v5559
        %5680 = vmatpush1.msra.mxu0 %v5558
        %5681 = vmatprep.subr.mxu0 %v5557
        %5682 = vmatpush1.msra.mxu0 %v5556
        %5683 = vmatprep.subr.mxu0 %v5555
        %5684 = vmatpush1.msra.mxu0 %v5554
        %5685 = vmatprep.subr.mxu0 %v5553
        %5686 = vmatpush1.msra.mxu0 %v5552
        %5687 = vmatprep.subr.mxu0 %v5615
        %5688 = vmatpush2.msra.mxu0 %v5614
        %5689 = vmatprep.subr.mxu0 %v5613
        %5690 = vmatpush2.msra.mxu0 %v5612
        %5691 = vmatprep.subr.mxu0 %v5611
        %5692 = vmatpush2.msra.mxu0 %v5610
        %5693 = vmatprep.subr.mxu0 %v5609
        %5694 = vmatpush2.msra.mxu0 %v5608
        %5695 = vmatprep.subr.mxu0 %v5607
        %5696 = vmatpush2.msra.mxu0 %v5606
        %5697 = vmatprep.subr.mxu0 %v5605
        %5698 = vmatpush2.msra.mxu0 %v5604
        %5699 = vmatprep.subr.mxu0 %v5603
        %5700 = vmatpush2.msra.mxu0 %v5602
        %5701 = vmatprep.subr.mxu0 %v5601
        %5702 = vmatpush2.msra.mxu0 %v5600
        %5703 = vmatprep.subr.mxu0 %v5599
        %5704 = vmatpush2.msra.mxu0 %v5598
        %5705 = vmatprep.subr.mxu0 %v5597
        %5706 = vmatpush2.msra.mxu0 %v5596
        %5707 = vmatprep.subr.mxu0 %v5595
        %5708 = vmatpush2.msra.mxu0 %v5594
        %5709 = vmatprep.subr.mxu0 %v5593
        %5710 = vmatpush2.msra.mxu0 %v5592
        %5711 = vmatprep.subr.mxu0 %v5591
        %5712 = vmatpush2.msra.mxu0 %v5590
        %5713 = vmatprep.subr.mxu0 %v5589
        %5714 = vmatpush2.msra.mxu0 %v5588
        %5715 = vmatprep.subr.mxu0 %v5587
        %5716 = vmatpush2.msra.mxu0 %v5586
        %5717 = vmatprep.subr.mxu0 %v5585
        %5718 = vmatpush2.msra.mxu0 %v5584
        %5719 = vmatprep.mubr.f32.mxu0 %v5643
        %5720 = vmatmul.mubr.f32.gmra.mxu0 %v5640
        %v5721 = vpop.f32.mrf.mxu0
        %v5722 = vadd.f32 0.0, %v5721
        %v5723 = vpop.f32.mrf.mxu0
        %v5724 = vadd.f32 0.0, %v5723
        %5725 = vmatprep.mubr.f32.mxu0 %v5642
        %5726 = vmatmul.mubr.f32.gmra.mxu0 %v5639
        %v5727 = vpop.f32.mrf.mxu0
        %v5728 = vadd.f32 0.0, %v5727
        %v5729 = vpop.f32.mrf.mxu0
        %v5730 = vadd.f32 0.0, %v5729
        %5731 = vdwg.mxu0
        %5732 = vmatprep.subr.mxu0 0.0
        %5733 = vmatpush1.msra.mxu0 0.0
        %5734 = vmatprep.subr.mxu0 0.0
        %5735 = vmatpush1.msra.mxu0 0.0
        %5736 = vmatprep.subr.mxu0 0.0
        %5737 = vmatpush1.msra.mxu0 0.0
        %5738 = vmatprep.subr.mxu0 0.0
        %5739 = vmatpush1.msra.mxu0 0.0
        %5740 = vmatprep.subr.mxu0 0.0
        %5741 = vmatpush1.msra.mxu0 0.0
        %5742 = vmatprep.subr.mxu0 0.0
        %5743 = vmatpush1.msra.mxu0 0.0
        %5744 = vmatprep.subr.mxu0 0.0
        %5745 = vmatpush1.msra.mxu0 0.0
        %5746 = vmatprep.subr.mxu0 0.0
        %5747 = vmatpush1.msra.mxu0 0.0
        %5748 = vmatprep.subr.mxu0 %v5631
        %5749 = vmatpush1.msra.mxu0 %v5630
        %5750 = vmatprep.subr.mxu0 %v5629
        %5751 = vmatpush1.msra.mxu0 %v5628
        %5752 = vmatprep.subr.mxu0 %v5627
        %5753 = vmatpush1.msra.mxu0 %v5626
        %5754 = vmatprep.subr.mxu0 %v5625
        %5755 = vmatpush1.msra.mxu0 %v5624
        %5756 = vmatprep.subr.mxu0 %v5623
        %5757 = vmatpush1.msra.mxu0 %v5622
        %5758 = vmatprep.subr.mxu0 %v5621
        %5759 = vmatpush1.msra.mxu0 %v5620
        %5760 = vmatprep.subr.mxu0 %v5619
        %5761 = vmatpush1.msra.mxu0 %v5618
        %5762 = vmatprep.subr.mxu0 %v5617
        %5763 = vmatpush1.msra.mxu0 %v5616
        %5764 = vmatprep.subr.mxu0 0.0
        %5765 = vmatpush2.msra.mxu0 0.0
        %5766 = vmatprep.subr.mxu0 0.0
        %5767 = vmatpush2.msra.mxu0 0.0
        %5768 = vmatprep.subr.mxu0 0.0
        %5769 = vmatpush2.msra.mxu0 0.0
        %5770 = vmatprep.subr.mxu0 0.0
        %5771 = vmatpush2.msra.mxu0 0.0
        %5772 = vmatprep.subr.mxu0 0.0
        %5773 = vmatpush2.msra.mxu0 0.0
        %5774 = vmatprep.subr.mxu0 0.0
        %5775 = vmatpush2.msra.mxu0 0.0
        %5776 = vmatprep.subr.mxu0 0.0
        %5777 = vmatpush2.msra.mxu0 0.0
        %5778 = vmatprep.subr.mxu0 0.0
        %5779 = vmatpush2.msra.mxu0 0.0
        %5780 = vmatprep.subr.mxu0 0.0
        %5781 = vmatpush2.msra.mxu0 0.0
        %5782 = vmatprep.subr.mxu0 0.0
        %5783 = vmatpush2.msra.mxu0 0.0
        %5784 = vmatprep.subr.mxu0 0.0
        %5785 = vmatpush2.msra.mxu0 0.0
        %5786 = vmatprep.subr.mxu0 0.0
        %5787 = vmatpush2.msra.mxu0 0.0
        %5788 = vmatprep.subr.mxu0 0.0
        %5789 = vmatpush2.msra.mxu0 0.0
        %5790 = vmatprep.subr.mxu0 0.0
        %5791 = vmatpush2.msra.mxu0 0.0
        %5792 = vmatprep.subr.mxu0 0.0
        %5793 = vmatpush2.msra.mxu0 0.0
        %5794 = vmatprep.subr.mxu0 0.0
        %5795 = vmatpush2.msra.mxu0 0.0
        %5796 = vmatprep.mubr.f32.mxu0 0.0
        %5797 = vmatmul.mubr.f32.gmra.mxu0 %v5651
        %v5798 = vpop.f32.mrf.mxu0
        %v5799 = vadd.f32 %v5722, %v5798
        %v5800 = vpop.f32.mrf.mxu0
        %v5801 = vadd.f32 %v5724, %v5800
        %5802 = vmatprep.mubr.f32.mxu0 0.0
        %5803 = vmatmul.mubr.f32.gmra.mxu0 %v5653
        %v5804 = vpop.f32.mrf.mxu0
        %v5805 = vadd.f32 %v5728, %v5804
        %v5806 = vpop.f32.mrf.mxu0
        %v5807 = vadd.f32 %v5730, %v5806
        %5808 = vdwg.mxu0
        %v5809 = vadd.f32 %v5535, %v5799
        %v5810 = vadd.f32 %v5537, %v5801
        %v5811 = vadd.f32 %v5541, %v5805
        %v5812 = vadd.f32 %v5543, %v5807
        %v5813 = vld [vmem:[%s14] sm:$0x3]
        %v5815 = vlaneseq
        %v5816 = vshrl.u32 %v5815, 7
        %v5817 = vsub.s32 0, %v5816
        %v5818 = vrot.slane %v5813, %v5817
        %v5819 = vlaneseq
        %v5820 = vshrl.u32 %v5819, 7
        %v5821 = vsub.s32 1, %v5820
        %v5822 = vrot.slane %v5813, %v5821
        %v5825 = vadd.f32 %v5809, %v5818
        %v5826 = vadd.f32 %v5810, %v5822
        %v5827 = vadd.f32 %v5811, %v5818
        %v5828 = vadd.f32 %v5812, %v5822
        %vm5829 = vcmp.gt.f32.partialorder %v5825, 0.0
        %vm5830 = vcmp.gt.f32.partialorder %v5826, 0.0
        %vm5831 = vcmp.gt.f32.partialorder %v5827, 0.0
        %vm5832 = vcmp.gt.f32.partialorder %v5828, 0.0
        %v5833 = vmul.f32 %v5825, 0.01
        %v5834 = vmul.f32 %v5826, 0.01
        %v5835 = vmul.f32 %v5827, 0.01
        %v5836 = vmul.f32 %v5828, 0.01
        %v5837 = vsel %vm5829, %v5825, %v5833
        %v5838 = vsel %vm5830, %v5826, %v5834
        %v5839 = vsel %vm5831, %v5827, %v5835
        %v5840 = vsel %vm5832, %v5828, %v5836
        %v5845 = vrot.slane %v5837, 6
        %v5846 = vrot.slane %v5838, 6
        %v5847 = vrot.slane %v5839, 6
        %v5848 = vsel %vm5011, %v5845, %v5847
        %v5849 = vrot.slane %v5840, 6
        %v5850 = vsel %vm5011, %v5846, %v5849
        %5855 = vst [vmem:[#allocation2] sm:$0xfc] %v5845
        %5856 = vst.msk [vmem:[#allocation2 + $0x8] sm:$0xfc] %vm5029, %v5846
        %5857 = vst [vmem:[#allocation2 + $0x20] sm:$0x3f] %v5848
        %vm5858 = vcmask 521216
        %5859 = vst.msk [vmem:[#allocation2 + $0x28] sm:$0x3f] %vm5858, %v5850
        %v5860 = vld [vmem:[#allocation2] sm:$0xff]
        %v5861 = vld [vmem:[#allocation2 + $0x8] sm:$0xff]
        %v5862 = vld [vmem:[#allocation2 + $0x20] sm:$0x3f]
        %v5863 = vld [vmem:[#allocation2 + $0x28] sm:$0x3f]
        %v5864 = vld [vmem:[%s7] sm:$0xff]
        %v5865 = vld [vmem:[%s7 + $0x8] sm:$0xff]
        %v5866 = vld [vmem:[%s7 + $0x10] sm:$0xff]
        %v5867 = vld [vmem:[%s7 + $0x18] sm:$0xff]
        %v5868 = vld [vmem:[%s7 + $0x20] sm:$0xff]
        %v5869 = vld [vmem:[%s7 + $0x28] sm:$0xff]
        %v5870 = vld [vmem:[%s7 + $0x30] sm:$0xff]
        %v5871 = vld [vmem:[%s7 + $0x38] sm:$0xff]
        %v5872 = vld [vmem:[%s7 + $0x40] sm:$0xff]
        %v5873 = vld [vmem:[%s7 + $0x48] sm:$0xff]
        %v5874 = vld [vmem:[%s7 + $0x50] sm:$0xff]
        %v5875 = vld [vmem:[%s7 + $0x58] sm:$0xff]
        %v5876 = vld [vmem:[%s7 + $0x60] sm:$0xff]
        %v5877 = vld [vmem:[%s7 + $0x68] sm:$0xff]
        %v5878 = vld [vmem:[%s7 + $0x70] sm:$0xff]
        %v5879 = vld [vmem:[%s7 + $0x78] sm:$0xff]
        %v5880 = vld [vmem:[%s7 + $0x80] sm:$0xff]
        %v5881 = vld [vmem:[%s7 + $0x88] sm:$0xff]
        %v5882 = vld [vmem:[%s7 + $0x90] sm:$0xff]
        %v5883 = vld [vmem:[%s7 + $0x98] sm:$0xff]
        %v5884 = vld [vmem:[%s7 + $0xa0] sm:$0xff]
        %v5885 = vld [vmem:[%s7 + $0xa8] sm:$0xff]
        %v5886 = vld [vmem:[%s7 + $0xb0] sm:$0xff]
        %v5887 = vld [vmem:[%s7 + $0xb8] sm:$0xff]
        %v5888 = vld [vmem:[#allocation2] sm:$0xfe]
        %v5889 = vld [vmem:[#allocation2 + $0x8] sm:$0xfe]
        %v5890 = vld [vmem:[#allocation2 + $0x20] sm:$0x7f]
        %v5891 = vld [vmem:[#allocation2 + $0x28] sm:$0x7f]
        %s5892 = scalar_lea.vmem %s7, 192
        %v5893 = vld [vmem:[%s5892] sm:$0xff]
        %v5894 = vld [vmem:[%s5892 + $0x8] sm:$0xff]
        %v5895 = vld [vmem:[%s5892 + $0x10] sm:$0xff]
        %v5896 = vld [vmem:[%s5892 + $0x18] sm:$0xff]
        %v5897 = vld [vmem:[%s5892 + $0x20] sm:$0xff]
        %v5898 = vld [vmem:[%s5892 + $0x28] sm:$0xff]
        %v5899 = vld [vmem:[%s5892 + $0x30] sm:$0xff]
        %v5900 = vld [vmem:[%s5892 + $0x38] sm:$0xff]
        %v5901 = vld [vmem:[%s5892 + $0x40] sm:$0xff]
        %v5902 = vld [vmem:[%s5892 + $0x48] sm:$0xff]
        %v5903 = vld [vmem:[%s5892 + $0x50] sm:$0xff]
        %v5904 = vld [vmem:[%s5892 + $0x58] sm:$0xff]
        %v5905 = vld [vmem:[%s5892 + $0x60] sm:$0xff]
        %v5906 = vld [vmem:[%s5892 + $0x68] sm:$0xff]
        %v5907 = vld [vmem:[%s5892 + $0x70] sm:$0xff]
        %v5908 = vld [vmem:[%s5892 + $0x78] sm:$0xff]
        %v5909 = vld [vmem:[%s5892 + $0x80] sm:$0xff]
        %v5910 = vld [vmem:[%s5892 + $0x88] sm:$0xff]
        %v5911 = vld [vmem:[%s5892 + $0x90] sm:$0xff]
        %v5912 = vld [vmem:[%s5892 + $0x98] sm:$0xff]
        %v5913 = vld [vmem:[%s5892 + $0xa0] sm:$0xff]
        %v5914 = vld [vmem:[%s5892 + $0xa8] sm:$0xff]
        %v5915 = vld [vmem:[%s5892 + $0xb0] sm:$0xff]
        %v5916 = vld [vmem:[%s5892 + $0xb8] sm:$0xff]
        %v5921 = vrot.slane %v5888, 1
        %v5922 = vrot.slane %v5890, 1
        %v5923 = vsel %vm568, %v5921, %v5922
        %v5924 = vrot.slane %v5889, 1
        %v5925 = vrot.slane %v5891, 1
        %v5926 = vsel %vm568, %v5924, %v5925
        %v5929 = vsel %vm1361, %v5926, 0
        %v5931 = vsel %vm1361, %v5925, 0
        %5933 = vmatprep.subr.mxu0 0.0
        %5934 = vmatpush1.msra.mxu0 %v5908
        %5935 = vmatprep.subr.mxu0 0.0
        %5936 = vmatpush1.msra.mxu0 %v5907
        %5937 = vmatprep.subr.mxu0 0.0
        %5938 = vmatpush1.msra.mxu0 %v5906
        %5939 = vmatprep.subr.mxu0 0.0
        %5940 = vmatpush1.msra.mxu0 %v5905
        %5941 = vmatprep.subr.mxu0 0.0
        %5942 = vmatpush1.msra.mxu0 %v5904
        %5943 = vmatprep.subr.mxu0 0.0
        %5944 = vmatpush1.msra.mxu0 %v5903
        %5945 = vmatprep.subr.mxu0 0.0
        %5946 = vmatpush1.msra.mxu0 %v5902
        %5947 = vmatprep.subr.mxu0 0.0
        %5948 = vmatpush1.msra.mxu0 %v5901
        %5949 = vmatprep.subr.mxu0 0.0
        %5950 = vmatpush1.msra.mxu0 %v5900
        %5951 = vmatprep.subr.mxu0 0.0
        %5952 = vmatpush1.msra.mxu0 %v5899
        %5953 = vmatprep.subr.mxu0 0.0
        %5954 = vmatpush1.msra.mxu0 %v5898
        %5955 = vmatprep.subr.mxu0 0.0
        %5956 = vmatpush1.msra.mxu0 %v5897
        %5957 = vmatprep.subr.mxu0 0.0
        %5958 = vmatpush1.msra.mxu0 %v5896
        %5959 = vmatprep.subr.mxu0 0.0
        %5960 = vmatpush1.msra.mxu0 %v5895
        %5961 = vmatprep.subr.mxu0 0.0
        %5962 = vmatpush1.msra.mxu0 %v5894
        %5963 = vmatprep.subr.mxu0 0.0
        %5964 = vmatpush1.msra.mxu0 %v5893
        %5965 = vmatprep.subr.mxu0 0.0
        %5966 = vmatpush2.msra.mxu0 0.0
        %5967 = vmatprep.subr.mxu0 0.0
        %5968 = vmatpush2.msra.mxu0 0.0
        %5969 = vmatprep.subr.mxu0 0.0
        %5970 = vmatpush2.msra.mxu0 0.0
        %5971 = vmatprep.subr.mxu0 0.0
        %5972 = vmatpush2.msra.mxu0 0.0
        %5973 = vmatprep.subr.mxu0 0.0
        %5974 = vmatpush2.msra.mxu0 0.0
        %5975 = vmatprep.subr.mxu0 0.0
        %5976 = vmatpush2.msra.mxu0 0.0
        %5977 = vmatprep.subr.mxu0 0.0
        %5978 = vmatpush2.msra.mxu0 0.0
        %5979 = vmatprep.subr.mxu0 0.0
        %5980 = vmatpush2.msra.mxu0 0.0
        %5981 = vmatprep.subr.mxu0 0.0
        %5982 = vmatpush2.msra.mxu0 %v5916
        %5983 = vmatprep.subr.mxu0 0.0
        %5984 = vmatpush2.msra.mxu0 %v5915
        %5985 = vmatprep.subr.mxu0 0.0
        %5986 = vmatpush2.msra.mxu0 %v5914
        %5987 = vmatprep.subr.mxu0 0.0
        %5988 = vmatpush2.msra.mxu0 %v5913
        %5989 = vmatprep.subr.mxu0 0.0
        %5990 = vmatpush2.msra.mxu0 %v5912
        %5991 = vmatprep.subr.mxu0 0.0
        %5992 = vmatpush2.msra.mxu0 %v5911
        %5993 = vmatprep.subr.mxu0 0.0
        %5994 = vmatpush2.msra.mxu0 %v5910
        %5995 = vmatprep.subr.mxu0 0.0
        %5996 = vmatpush2.msra.mxu0 %v5909
        %5997 = vmatprep.mubr.f32.mxu0 %v5929
        %5998 = vmatmul.mubr.f32.gmra.mxu0 %v5923
        %v5999 = vpop.f32.mrf.mxu0
        %v6000 = vadd.f32 0.0, %v5999
        %v6001 = vpop.f32.mrf.mxu0
        %6002 = vmatprep.mubr.f32.mxu0 %v5931
        %6003 = vmatmul.mubr.f32.gmra.mxu0 %v5922
        %v6004 = vpop.f32.mrf.mxu0
        %v6005 = vadd.f32 0.0, %v6004
        %v6006 = vpop.f32.mrf.mxu0
        %6007 = vdwg.mxu0
        %v6009 = vsel %vm1361, %v5861, 0
        %v6012 = vsel %vm1361, %v5863, 0
        %6014 = vmatprep.subr.mxu0 0.0
        %6015 = vmatpush1.msra.mxu0 %v5879
        %6016 = vmatprep.subr.mxu0 0.0
        %6017 = vmatpush1.msra.mxu0 %v5878
        %6018 = vmatprep.subr.mxu0 0.0
        %6019 = vmatpush1.msra.mxu0 %v5877
        %6020 = vmatprep.subr.mxu0 0.0
        %6021 = vmatpush1.msra.mxu0 %v5876
        %6022 = vmatprep.subr.mxu0 0.0
        %6023 = vmatpush1.msra.mxu0 %v5875
        %6024 = vmatprep.subr.mxu0 0.0
        %6025 = vmatpush1.msra.mxu0 %v5874
        %6026 = vmatprep.subr.mxu0 0.0
        %6027 = vmatpush1.msra.mxu0 %v5873
        %6028 = vmatprep.subr.mxu0 0.0
        %6029 = vmatpush1.msra.mxu0 %v5872
        %6030 = vmatprep.subr.mxu0 0.0
        %6031 = vmatpush1.msra.mxu0 %v5871
        %6032 = vmatprep.subr.mxu0 0.0
        %6033 = vmatpush1.msra.mxu0 %v5870
        %6034 = vmatprep.subr.mxu0 0.0
        %6035 = vmatpush1.msra.mxu0 %v5869
        %6036 = vmatprep.subr.mxu0 0.0
        %6037 = vmatpush1.msra.mxu0 %v5868
        %6038 = vmatprep.subr.mxu0 0.0
        %6039 = vmatpush1.msra.mxu0 %v5867
        %6040 = vmatprep.subr.mxu0 0.0
        %6041 = vmatpush1.msra.mxu0 %v5866
        %6042 = vmatprep.subr.mxu0 0.0
        %6043 = vmatpush1.msra.mxu0 %v5865
        %6044 = vmatprep.subr.mxu0 0.0
        %6045 = vmatpush1.msra.mxu0 %v5864
        %6046 = vmatprep.subr.mxu0 0.0
        %6047 = vmatpush2.msra.mxu0 0.0
        %6048 = vmatprep.subr.mxu0 0.0
        %6049 = vmatpush2.msra.mxu0 0.0
        %6050 = vmatprep.subr.mxu0 0.0
        %6051 = vmatpush2.msra.mxu0 0.0
        %6052 = vmatprep.subr.mxu0 0.0
        %6053 = vmatpush2.msra.mxu0 0.0
        %6054 = vmatprep.subr.mxu0 0.0
        %6055 = vmatpush2.msra.mxu0 0.0
        %6056 = vmatprep.subr.mxu0 0.0
        %6057 = vmatpush2.msra.mxu0 0.0
        %6058 = vmatprep.subr.mxu0 0.0
        %6059 = vmatpush2.msra.mxu0 0.0
        %6060 = vmatprep.subr.mxu0 0.0
        %6061 = vmatpush2.msra.mxu0 0.0
        %6062 = vmatprep.subr.mxu0 0.0
        %6063 = vmatpush2.msra.mxu0 %v5887
        %6064 = vmatprep.subr.mxu0 0.0
        %6065 = vmatpush2.msra.mxu0 %v5886
        %6066 = vmatprep.subr.mxu0 0.0
        %6067 = vmatpush2.msra.mxu0 %v5885
        %6068 = vmatprep.subr.mxu0 0.0
        %6069 = vmatpush2.msra.mxu0 %v5884
        %6070 = vmatprep.subr.mxu0 0.0
        %6071 = vmatpush2.msra.mxu0 %v5883
        %6072 = vmatprep.subr.mxu0 0.0
        %6073 = vmatpush2.msra.mxu0 %v5882
        %6074 = vmatprep.subr.mxu0 0.0
        %6075 = vmatpush2.msra.mxu0 %v5881
        %6076 = vmatprep.subr.mxu0 0.0
        %6077 = vmatpush2.msra.mxu0 %v5880
        %6078 = vmatprep.mubr.f32.mxu0 %v6009
        %6079 = vmatmul.mubr.f32.gmra.mxu0 %v5860
        %v6080 = vpop.f32.mrf.mxu0
        %v6081 = vadd.f32 %v6000, %v6080
        %v6082 = vpop.f32.mrf.mxu0
        %6083 = vmatprep.mubr.f32.mxu0 %v6012
        %6084 = vmatmul.mubr.f32.gmra.mxu0 %v5862
        %v6085 = vpop.f32.mrf.mxu0
        %v6086 = vadd.f32 %v6005, %v6085
        %v6087 = vpop.f32.mrf.mxu0
        %6088 = vdwg.mxu0
        %v6089 = vld [vmem:[#allocation2] sm:$0xfc]
        %v6090 = vld [vmem:[#allocation2 + $0x8] sm:$0xfc]
        %v6091 = vld [vmem:[#allocation2 + $0x20] sm:$0xff]
        %v6092 = vld [vmem:[#allocation2 + $0x28] sm:$0xff]
        %s6093 = scalar_lea.vmem %s7, 384
        %v6094 = vld [vmem:[%s6093] sm:$0xff]
        %v6095 = vld [vmem:[%s6093 + $0x8] sm:$0xff]
        %v6096 = vld [vmem:[%s6093 + $0x10] sm:$0xff]
        %v6097 = vld [vmem:[%s6093 + $0x18] sm:$0xff]
        %v6098 = vld [vmem:[%s6093 + $0x20] sm:$0xff]
        %v6099 = vld [vmem:[%s6093 + $0x28] sm:$0xff]
        %v6100 = vld [vmem:[%s6093 + $0x30] sm:$0xff]
        %v6101 = vld [vmem:[%s6093 + $0x38] sm:$0xff]
        %v6102 = vld [vmem:[%s6093 + $0x40] sm:$0xff]
        %v6103 = vld [vmem:[%s6093 + $0x48] sm:$0xff]
        %v6104 = vld [vmem:[%s6093 + $0x50] sm:$0xff]
        %v6105 = vld [vmem:[%s6093 + $0x58] sm:$0xff]
        %v6106 = vld [vmem:[%s6093 + $0x60] sm:$0xff]
        %v6107 = vld [vmem:[%s6093 + $0x68] sm:$0xff]
        %v6108 = vld [vmem:[%s6093 + $0x70] sm:$0xff]
        %v6109 = vld [vmem:[%s6093 + $0x78] sm:$0xff]
        %v6110 = vld [vmem:[%s6093 + $0x80] sm:$0xff]
        %v6111 = vld [vmem:[%s6093 + $0x88] sm:$0xff]
        %v6112 = vld [vmem:[%s6093 + $0x90] sm:$0xff]
        %v6113 = vld [vmem:[%s6093 + $0x98] sm:$0xff]
        %v6114 = vld [vmem:[%s6093 + $0xa0] sm:$0xff]
        %v6115 = vld [vmem:[%s6093 + $0xa8] sm:$0xff]
        %v6116 = vld [vmem:[%s6093 + $0xb0] sm:$0xff]
        %v6117 = vld [vmem:[%s6093 + $0xb8] sm:$0xff]
        %v6122 = vrot.slane %v6089, 2
        %v6123 = vrot.slane %v6091, 2
        %v6124 = vsel %vm734, %v6122, %v6123
        %v6125 = vrot.slane %v6090, 2
        %v6126 = vrot.slane %v6092, 2
        %v6127 = vsel %vm734, %v6125, %v6126
        %v6130 = vsel %vm1361, %v6127, 0
        %v6132 = vsel %vm1361, %v6126, 0
        %6134 = vmatprep.subr.mxu0 0.0
        %6135 = vmatpush1.msra.mxu0 %v6109
        %6136 = vmatprep.subr.mxu0 0.0
        %6137 = vmatpush1.msra.mxu0 %v6108
        %6138 = vmatprep.subr.mxu0 0.0
        %6139 = vmatpush1.msra.mxu0 %v6107
        %6140 = vmatprep.subr.mxu0 0.0
        %6141 = vmatpush1.msra.mxu0 %v6106
        %6142 = vmatprep.subr.mxu0 0.0
        %6143 = vmatpush1.msra.mxu0 %v6105
        %6144 = vmatprep.subr.mxu0 0.0
        %6145 = vmatpush1.msra.mxu0 %v6104
        %6146 = vmatprep.subr.mxu0 0.0
        %6147 = vmatpush1.msra.mxu0 %v6103
        %6148 = vmatprep.subr.mxu0 0.0
        %6149 = vmatpush1.msra.mxu0 %v6102
        %6150 = vmatprep.subr.mxu0 0.0
        %6151 = vmatpush1.msra.mxu0 %v6101
        %6152 = vmatprep.subr.mxu0 0.0
        %6153 = vmatpush1.msra.mxu0 %v6100
        %6154 = vmatprep.subr.mxu0 0.0
        %6155 = vmatpush1.msra.mxu0 %v6099
        %6156 = vmatprep.subr.mxu0 0.0
        %6157 = vmatpush1.msra.mxu0 %v6098
        %6158 = vmatprep.subr.mxu0 0.0
        %6159 = vmatpush1.msra.mxu0 %v6097
        %6160 = vmatprep.subr.mxu0 0.0
        %6161 = vmatpush1.msra.mxu0 %v6096
        %6162 = vmatprep.subr.mxu0 0.0
        %6163 = vmatpush1.msra.mxu0 %v6095
        %6164 = vmatprep.subr.mxu0 0.0
        %6165 = vmatpush1.msra.mxu0 %v6094
        %6166 = vmatprep.subr.mxu0 0.0
        %6167 = vmatpush2.msra.mxu0 0.0
        %6168 = vmatprep.subr.mxu0 0.0
        %6169 = vmatpush2.msra.mxu0 0.0
        %6170 = vmatprep.subr.mxu0 0.0
        %6171 = vmatpush2.msra.mxu0 0.0
        %6172 = vmatprep.subr.mxu0 0.0
        %6173 = vmatpush2.msra.mxu0 0.0
        %6174 = vmatprep.subr.mxu0 0.0
        %6175 = vmatpush2.msra.mxu0 0.0
        %6176 = vmatprep.subr.mxu0 0.0
        %6177 = vmatpush2.msra.mxu0 0.0
        %6178 = vmatprep.subr.mxu0 0.0
        %6179 = vmatpush2.msra.mxu0 0.0
        %6180 = vmatprep.subr.mxu0 0.0
        %6181 = vmatpush2.msra.mxu0 0.0
        %6182 = vmatprep.subr.mxu0 0.0
        %6183 = vmatpush2.msra.mxu0 %v6117
        %6184 = vmatprep.subr.mxu0 0.0
        %6185 = vmatpush2.msra.mxu0 %v6116
        %6186 = vmatprep.subr.mxu0 0.0
        %6187 = vmatpush2.msra.mxu0 %v6115
        %6188 = vmatprep.subr.mxu0 0.0
        %6189 = vmatpush2.msra.mxu0 %v6114
        %6190 = vmatprep.subr.mxu0 0.0
        %6191 = vmatpush2.msra.mxu0 %v6113
        %6192 = vmatprep.subr.mxu0 0.0
        %6193 = vmatpush2.msra.mxu0 %v6112
        %6194 = vmatprep.subr.mxu0 0.0
        %6195 = vmatpush2.msra.mxu0 %v6111
        %6196 = vmatprep.subr.mxu0 0.0
        %6197 = vmatpush2.msra.mxu0 %v6110
        %6198 = vmatprep.mubr.f32.mxu0 %v6130
        %6199 = vmatmul.mubr.f32.gmra.mxu0 %v6124
        %v6200 = vpop.f32.mrf.mxu0
        %v6201 = vadd.f32 0.0, %v6200
        %v6202 = vpop.f32.mrf.mxu0
        %6203 = vmatprep.mubr.f32.mxu0 %v6132
        %6204 = vmatmul.mubr.f32.gmra.mxu0 %v6123
        %v6205 = vpop.f32.mrf.mxu0
        %v6206 = vadd.f32 0.0, %v6205
        %v6207 = vpop.f32.mrf.mxu0
        %6208 = vdwg.mxu0
        %v6209 = vadd.f32 %v6081, %v6201
        %v6210 = vadd.f32 %v6086, %v6206
        %v6211 = vld [vmem:[%s15] sm:$0x1]
        %v6213 = vlaneseq
        %v6214 = vshrl.u32 %v6213, 7
        %v6215 = vsub.s32 0, %v6214
        %v6216 = vrot.slane %v6211, %v6215
        %v6218 = vadd.f32 %v6209, %v6216
        %v6219 = vadd.f32 %v6210, %v6216
        %vm6220 = vcmp.gt.f32.partialorder %v6218, 0.0
        %vm6221 = vcmp.gt.f32.partialorder %v6219, 0.0
        %v6222 = vmul.f32 %v6218, 0.01
        %v6223 = vmul.f32 %v6219, 0.01
        %v6224 = vsel %vm6220, %v6218, %v6222
        %v6225 = vsel %vm6221, %v6219, %v6223
        %v6228 = vrot.slane %v6224, 6
        %v6229 = vrot.slane %v6225, 6
        %v6230 = vsel %vm5011, %v6228, %v6229
        %vm6233 = vcmask 916482
        %6234 = vst.msk [vmem:[#allocation2] sm:$0xfc] %vm6233, %v6228
        %6235 = vst.msk [vmem:[#allocation2 + $0x20] sm:$0xff] %vm896, %v6230
        %v6236 = vld [vmem:[#allocation2] sm:$0xff]
        %v6237 = vld [vmem:[#allocation2 + $0x20] sm:$0xff]
        %v6238 = vld [vmem:[%s8] sm:$0xff]
        %v6239 = vld [vmem:[%s8 + $0x8] sm:$0xff]
        %v6240 = vld [vmem:[%s8 + $0x10] sm:$0xff]
        %v6241 = vld [vmem:[%s8 + $0x18] sm:$0xff]
        %v6242 = vld [vmem:[%s8 + $0x20] sm:$0xff]
        %v6243 = vld [vmem:[%s8 + $0x28] sm:$0xff]
        %v6244 = vld [vmem:[%s8 + $0x30] sm:$0xff]
        %v6245 = vld [vmem:[%s8 + $0x38] sm:$0xff]
        %v6246 = vld [vmem:[%s8 + $0x40] sm:$0xff]
        %v6247 = vld [vmem:[%s8 + $0x48] sm:$0xff]
        %v6248 = vld [vmem:[%s8 + $0x50] sm:$0xff]
        %v6249 = vld [vmem:[%s8 + $0x58] sm:$0xff]
        %v6250 = vld [vmem:[%s8 + $0x60] sm:$0xff]
        %v6251 = vld [vmem:[%s8 + $0x68] sm:$0xff]
        %v6252 = vld [vmem:[#allocation2] sm:$0xfe]
        %v6253 = vld [vmem:[#allocation2 + $0x40] sm:$0x1]
        %s6254 = scalar_lea.vmem %s8, 112
        %v6255 = vld [vmem:[%s6254] sm:$0xff]
        %v6256 = vld [vmem:[%s6254 + $0x8] sm:$0xff]
        %v6257 = vld [vmem:[%s6254 + $0x10] sm:$0xff]
        %v6258 = vld [vmem:[%s6254 + $0x18] sm:$0xff]
        %v6259 = vld [vmem:[%s6254 + $0x20] sm:$0xff]
        %v6260 = vld [vmem:[%s6254 + $0x28] sm:$0xff]
        %v6261 = vld [vmem:[%s6254 + $0x30] sm:$0xff]
        %v6262 = vld [vmem:[%s6254 + $0x38] sm:$0xff]
        %v6263 = vld [vmem:[%s6254 + $0x40] sm:$0xff]
        %v6264 = vld [vmem:[%s6254 + $0x48] sm:$0xff]
        %v6265 = vld [vmem:[%s6254 + $0x50] sm:$0xff]
        %v6266 = vld [vmem:[%s6254 + $0x58] sm:$0xff]
        %v6267 = vld [vmem:[%s6254 + $0x60] sm:$0xff]
        %v6268 = vld [vmem:[%s6254 + $0x68] sm:$0xff]
        %v6272 = vrot.slane %v6252, 1
        %v6273 = vrot.slane %v6237, 1
        %v6274 = vsel %vm568, %v6272, %v6273
        %v6275 = vrot.slane %v6253, 1
        %v6276 = vsel %vm568, %v6273, %v6275
        %v6277 = vsel %vm896, %v6274, 0
        %v6279 = vsel %vm896, %v6276, 0
        %6281 = vmatprep.subr.mxu0 0.0
        %6282 = vmatpush1.msra.mxu0 0.0
        %6283 = vmatprep.subr.mxu0 0.0
        %6284 = vmatpush1.msra.mxu0 0.0
        %6285 = vmatprep.subr.mxu0 0.0
        %6286 = vmatpush1.msra.mxu0 %v6268
        %6287 = vmatprep.subr.mxu0 0.0
        %6288 = vmatpush1.msra.mxu0 %v6267
        %6289 = vmatprep.subr.mxu0 0.0
        %6290 = vmatpush1.msra.mxu0 %v6266
        %6291 = vmatprep.subr.mxu0 0.0
        %6292 = vmatpush1.msra.mxu0 %v6265
        %6293 = vmatprep.subr.mxu0 0.0
        %6294 = vmatpush1.msra.mxu0 %v6264
        %6295 = vmatprep.subr.mxu0 0.0
        %6296 = vmatpush1.msra.mxu0 %v6263
        %6297 = vmatprep.subr.mxu0 0.0
        %6298 = vmatpush1.msra.mxu0 %v6262
        %6299 = vmatprep.subr.mxu0 0.0
        %6300 = vmatpush1.msra.mxu0 %v6261
        %6301 = vmatprep.subr.mxu0 0.0
        %6302 = vmatpush1.msra.mxu0 %v6260
        %6303 = vmatprep.subr.mxu0 0.0
        %6304 = vmatpush1.msra.mxu0 %v6259
        %6305 = vmatprep.subr.mxu0 0.0
        %6306 = vmatpush1.msra.mxu0 %v6258
        %6307 = vmatprep.subr.mxu0 0.0
        %6308 = vmatpush1.msra.mxu0 %v6257
        %6309 = vmatprep.subr.mxu0 0.0
        %6310 = vmatpush1.msra.mxu0 %v6256
        %6311 = vmatprep.subr.mxu0 0.0
        %6312 = vmatpush1.msra.mxu0 %v6255
        %6313 = vmatprep.subr.mxu0 0.0
        %6314 = vmatpush2.msra.mxu0 0.0
        %6315 = vmatprep.subr.mxu0 0.0
        %6316 = vmatpush2.msra.mxu0 0.0
        %6317 = vmatprep.subr.mxu0 0.0
        %6318 = vmatpush2.msra.mxu0 0.0
        %6319 = vmatprep.subr.mxu0 0.0
        %6320 = vmatpush2.msra.mxu0 0.0
        %6321 = vmatprep.subr.mxu0 0.0
        %6322 = vmatpush2.msra.mxu0 0.0
        %6323 = vmatprep.subr.mxu0 0.0
        %6324 = vmatpush2.msra.mxu0 0.0
        %6325 = vmatprep.subr.mxu0 0.0
        %6326 = vmatpush2.msra.mxu0 0.0
        %6327 = vmatprep.subr.mxu0 0.0
        %6328 = vmatpush2.msra.mxu0 0.0
        %6329 = vmatprep.subr.mxu0 0.0
        %6330 = vmatpush2.msra.mxu0 0.0
        %6331 = vmatprep.subr.mxu0 0.0
        %6332 = vmatpush2.msra.mxu0 0.0
        %6333 = vmatprep.subr.mxu0 0.0
        %6334 = vmatpush2.msra.mxu0 0.0
        %6335 = vmatprep.subr.mxu0 0.0
        %6336 = vmatpush2.msra.mxu0 0.0
        %6337 = vmatprep.subr.mxu0 0.0
        %6338 = vmatpush2.msra.mxu0 0.0
        %6339 = vmatprep.subr.mxu0 0.0
        %6340 = vmatpush2.msra.mxu0 0.0
        %6341 = vmatprep.subr.mxu0 0.0
        %6342 = vmatpush2.msra.mxu0 0.0
        %6343 = vmatprep.subr.mxu0 0.0
        %6344 = vmatpush2.msra.mxu0 0.0
        %6345 = vmatprep.mubr.f32.mxu0 0.0
        %6346 = vmatmul.mubr.f32.gmra.mxu0 %v6277
        %v6347 = vpop.f32.mrf.mxu0
        %v6348 = vadd.f32 0.0, %v6347
        %v6349 = vpop.f32.mrf.mxu0
        %6350 = vmatprep.mubr.f32.mxu0 0.0
        %6351 = vmatmul.mubr.f32.gmra.mxu0 %v6279
        %v6352 = vpop.f32.mrf.mxu0
        %v6353 = vadd.f32 0.0, %v6352
        %v6354 = vpop.f32.mrf.mxu0
        %6355 = vdwg.mxu0
        %v6357 = vsel %vm896, %v6236, 0
        %v6359 = vsel %vm896, %v6237, 0
        %6361 = vmatprep.subr.mxu0 0.0
        %6362 = vmatpush1.msra.mxu0 0.0
        %6363 = vmatprep.subr.mxu0 0.0
        %6364 = vmatpush1.msra.mxu0 0.0
        %6365 = vmatprep.subr.mxu0 0.0
        %6366 = vmatpush1.msra.mxu0 %v6251
        %6367 = vmatprep.subr.mxu0 0.0
        %6368 = vmatpush1.msra.mxu0 %v6250
        %6369 = vmatprep.subr.mxu0 0.0
        %6370 = vmatpush1.msra.mxu0 %v6249
        %6371 = vmatprep.subr.mxu0 0.0
        %6372 = vmatpush1.msra.mxu0 %v6248
        %6373 = vmatprep.subr.mxu0 0.0
        %6374 = vmatpush1.msra.mxu0 %v6247
        %6375 = vmatprep.subr.mxu0 0.0
        %6376 = vmatpush1.msra.mxu0 %v6246
        %6377 = vmatprep.subr.mxu0 0.0
        %6378 = vmatpush1.msra.mxu0 %v6245
        %6379 = vmatprep.subr.mxu0 0.0
        %6380 = vmatpush1.msra.mxu0 %v6244
        %6381 = vmatprep.subr.mxu0 0.0
        %6382 = vmatpush1.msra.mxu0 %v6243
        %6383 = vmatprep.subr.mxu0 0.0
        %6384 = vmatpush1.msra.mxu0 %v6242
        %6385 = vmatprep.subr.mxu0 0.0
        %6386 = vmatpush1.msra.mxu0 %v6241
        %6387 = vmatprep.subr.mxu0 0.0
        %6388 = vmatpush1.msra.mxu0 %v6240
        %6389 = vmatprep.subr.mxu0 0.0
        %6390 = vmatpush1.msra.mxu0 %v6239
        %6391 = vmatprep.subr.mxu0 0.0
        %6392 = vmatpush1.msra.mxu0 %v6238
        %6393 = vmatprep.subr.mxu0 0.0
        %6394 = vmatpush2.msra.mxu0 0.0
        %6395 = vmatprep.subr.mxu0 0.0
        %6396 = vmatpush2.msra.mxu0 0.0
        %6397 = vmatprep.subr.mxu0 0.0
        %6398 = vmatpush2.msra.mxu0 0.0
        %6399 = vmatprep.subr.mxu0 0.0
        %6400 = vmatpush2.msra.mxu0 0.0
        %6401 = vmatprep.subr.mxu0 0.0
        %6402 = vmatpush2.msra.mxu0 0.0
        %6403 = vmatprep.subr.mxu0 0.0
        %6404 = vmatpush2.msra.mxu0 0.0
        %6405 = vmatprep.subr.mxu0 0.0
        %6406 = vmatpush2.msra.mxu0 0.0
        %6407 = vmatprep.subr.mxu0 0.0
        %6408 = vmatpush2.msra.mxu0 0.0
        %6409 = vmatprep.subr.mxu0 0.0
        %6410 = vmatpush2.msra.mxu0 0.0
        %6411 = vmatprep.subr.mxu0 0.0
        %6412 = vmatpush2.msra.mxu0 0.0
        %6413 = vmatprep.subr.mxu0 0.0
        %6414 = vmatpush2.msra.mxu0 0.0
        %6415 = vmatprep.subr.mxu0 0.0
        %6416 = vmatpush2.msra.mxu0 0.0
        %6417 = vmatprep.subr.mxu0 0.0
        %6418 = vmatpush2.msra.mxu0 0.0
        %6419 = vmatprep.subr.mxu0 0.0
        %6420 = vmatpush2.msra.mxu0 0.0
        %6421 = vmatprep.subr.mxu0 0.0
        %6422 = vmatpush2.msra.mxu0 0.0
        %6423 = vmatprep.subr.mxu0 0.0
        %6424 = vmatpush2.msra.mxu0 0.0
        %6425 = vmatprep.mubr.f32.mxu0 0.0
        %6426 = vmatmul.mubr.f32.gmra.mxu0 %v6357
        %v6427 = vpop.f32.mrf.mxu0
        %v6428 = vadd.f32 %v6348, %v6427
        %v6429 = vpop.f32.mrf.mxu0
        %6430 = vmatprep.mubr.f32.mxu0 0.0
        %6431 = vmatmul.mubr.f32.gmra.mxu0 %v6359
        %v6432 = vpop.f32.mrf.mxu0
        %v6433 = vadd.f32 %v6353, %v6432
        %v6434 = vpop.f32.mrf.mxu0
        %6435 = vdwg.mxu0
        %v6436 = vld [vmem:[#allocation2] sm:$0xfc]
        %v6437 = vld [vmem:[#allocation2 + $0x40] sm:$0x3]
        %s6438 = scalar_lea.vmem %s8, 224
        %v6439 = vld [vmem:[%s6438] sm:$0xff]
        %v6440 = vld [vmem:[%s6438 + $0x8] sm:$0xff]
        %v6441 = vld [vmem:[%s6438 + $0x10] sm:$0xff]
        %v6442 = vld [vmem:[%s6438 + $0x18] sm:$0xff]
        %v6443 = vld [vmem:[%s6438 + $0x20] sm:$0xff]
        %v6444 = vld [vmem:[%s6438 + $0x28] sm:$0xff]
        %v6445 = vld [vmem:[%s6438 + $0x30] sm:$0xff]
        %v6446 = vld [vmem:[%s6438 + $0x38] sm:$0xff]
        %v6447 = vld [vmem:[%s6438 + $0x40] sm:$0xff]
        %v6448 = vld [vmem:[%s6438 + $0x48] sm:$0xff]
        %v6449 = vld [vmem:[%s6438 + $0x50] sm:$0xff]
        %v6450 = vld [vmem:[%s6438 + $0x58] sm:$0xff]
        %v6451 = vld [vmem:[%s6438 + $0x60] sm:$0xff]
        %v6452 = vld [vmem:[%s6438 + $0x68] sm:$0xff]
        %v6455 = vrot.slane %v6436, 2
        %v6456 = vrot.slane %v6237, 2
        %v6457 = vsel %vm734, %v6455, %v6456
        %v6458 = vrot.slane %v6437, 2
        %v6459 = vsel %vm734, %v6456, %v6458
        %v6460 = vsel %vm896, %v6457, 0
        %v6462 = vsel %vm896, %v6459, 0
        %6464 = vmatprep.subr.mxu0 0.0
        %6465 = vmatpush1.msra.mxu0 0.0
        %6466 = vmatprep.subr.mxu0 0.0
        %6467 = vmatpush1.msra.mxu0 0.0
        %6468 = vmatprep.subr.mxu0 0.0
        %6469 = vmatpush1.msra.mxu0 %v6452
        %6470 = vmatprep.subr.mxu0 0.0
        %6471 = vmatpush1.msra.mxu0 %v6451
        %6472 = vmatprep.subr.mxu0 0.0
        %6473 = vmatpush1.msra.mxu0 %v6450
        %6474 = vmatprep.subr.mxu0 0.0
        %6475 = vmatpush1.msra.mxu0 %v6449
        %6476 = vmatprep.subr.mxu0 0.0
        %6477 = vmatpush1.msra.mxu0 %v6448
        %6478 = vmatprep.subr.mxu0 0.0
        %6479 = vmatpush1.msra.mxu0 %v6447
        %6480 = vmatprep.subr.mxu0 0.0
        %6481 = vmatpush1.msra.mxu0 %v6446
        %6482 = vmatprep.subr.mxu0 0.0
        %6483 = vmatpush1.msra.mxu0 %v6445
        %6484 = vmatprep.subr.mxu0 0.0
        %6485 = vmatpush1.msra.mxu0 %v6444
        %6486 = vmatprep.subr.mxu0 0.0
        %6487 = vmatpush1.msra.mxu0 %v6443
        %6488 = vmatprep.subr.mxu0 0.0
        %6489 = vmatpush1.msra.mxu0 %v6442
        %6490 = vmatprep.subr.mxu0 0.0
        %6491 = vmatpush1.msra.mxu0 %v6441
        %6492 = vmatprep.subr.mxu0 0.0
        %6493 = vmatpush1.msra.mxu0 %v6440
        %6494 = vmatprep.subr.mxu0 0.0
        %6495 = vmatpush1.msra.mxu0 %v6439
        %6496 = vmatprep.subr.mxu0 0.0
        %6497 = vmatpush2.msra.mxu0 0.0
        %6498 = vmatprep.subr.mxu0 0.0
        %6499 = vmatpush2.msra.mxu0 0.0
        %6500 = vmatprep.subr.mxu0 0.0
        %6501 = vmatpush2.msra.mxu0 0.0
        %6502 = vmatprep.subr.mxu0 0.0
        %6503 = vmatpush2.msra.mxu0 0.0
        %6504 = vmatprep.subr.mxu0 0.0
        %6505 = vmatpush2.msra.mxu0 0.0
        %6506 = vmatprep.subr.mxu0 0.0
        %6507 = vmatpush2.msra.mxu0 0.0
        %6508 = vmatprep.subr.mxu0 0.0
        %6509 = vmatpush2.msra.mxu0 0.0
        %6510 = vmatprep.subr.mxu0 0.0
        %6511 = vmatpush2.msra.mxu0 0.0
        %6512 = vmatprep.subr.mxu0 0.0
        %6513 = vmatpush2.msra.mxu0 0.0
        %6514 = vmatprep.subr.mxu0 0.0
        %6515 = vmatpush2.msra.mxu0 0.0
        %6516 = vmatprep.subr.mxu0 0.0
        %6517 = vmatpush2.msra.mxu0 0.0
        %6518 = vmatprep.subr.mxu0 0.0
        %6519 = vmatpush2.msra.mxu0 0.0
        %6520 = vmatprep.subr.mxu0 0.0
        %6521 = vmatpush2.msra.mxu0 0.0
        %6522 = vmatprep.subr.mxu0 0.0
        %6523 = vmatpush2.msra.mxu0 0.0
        %6524 = vmatprep.subr.mxu0 0.0
        %6525 = vmatpush2.msra.mxu0 0.0
        %6526 = vmatprep.subr.mxu0 0.0
        %6527 = vmatpush2.msra.mxu0 0.0
        %6528 = vmatprep.mubr.f32.mxu0 0.0
        %6529 = vmatmul.mubr.f32.gmra.mxu0 %v6460
        %v6530 = vpop.f32.mrf.mxu0
        %v6531 = vadd.f32 0.0, %v6530
        %v6532 = vpop.f32.mrf.mxu0
        %6533 = vmatprep.mubr.f32.mxu0 0.0
        %6534 = vmatmul.mubr.f32.gmra.mxu0 %v6462
        %v6535 = vpop.f32.mrf.mxu0
        %v6536 = vadd.f32 0.0, %v6535
        %v6537 = vpop.f32.mrf.mxu0
        %6538 = vdwg.mxu0
        %v6539 = vadd.f32 %v6428, %v6531
        %v6540 = vadd.f32 %v6433, %v6536
        %v6541 = vld [vmem:[%s16] sm:$0x1]
        %v6543 = vlaneseq
        %v6544 = vshrl.u32 %v6543, 7
        %v6545 = vsub.s32 0, %v6544
        %v6546 = vrot.slane %v6541, %v6545
        %v6548 = vadd.f32 %v6539, %v6546
        %v6549 = vadd.f32 %v6540, %v6546
        %vm6550 = vcmp.gt.f32.partialorder %v6548, 0.0
        %vm6551 = vcmp.gt.f32.partialorder %v6549, 0.0
        %v6552 = vmul.f32 %v6548, 0.01
        %v6553 = vmul.f32 %v6549, 0.01
        %v6554 = vsel %vm6550, %v6548, %v6552
        %v6555 = vsel %vm6551, %v6549, %v6553
        %v6556 = vsub.f32 0.0, %v6554
        %v6557 = vsub.f32 0.0, %v6555
        %v6558 = vmul.f32 %v6556, 1.442695
        %v6559 = vpow.pop %v6558
        %v6560 = vmul.f32 %v6557, 1.442695
        %v6561 = vpow.pop %v6560
        %v6562 = vadd.f32 %v6559, 1.0
        %v6563 = vadd.f32 %v6561, 1.0
        %v6564 = vrcp.pop %v6562
        %v6565 = vrcp.pop %v6563
        %6566 = vst.msk [vmem:[%s541] sm:$0xff] %vm572, %v6564
        %6567 = vst.msk [vmem:[%s541 + $0x8] sm:$0xff] %vm572, %v6565
        %s6568 = sand.u32 %s401, 1
        %s6569 = scalar_lea.sflag [#allocation4], %s6568
        %s6570 = sand.u32 %s401, 1
        %s6571 = smul.addr %s6570, 16
        %s6572 = scalar_lea.vmem [#allocation3], %s6571
        // Predicated region
        $region89: #{autoencoder_forward.1} parent=87 // pred_check
          %p6573 = pneg %p411
        $region90: #{autoencoder_forward.1} parent=87 // pred_check_branch
          %6575 = sbr.rel (%p6573) target = $region92
        $region91: #{autoencoder_forward.1} parent=87 // pred_region
          %s6577 = ssub.s32 256, 256
          %6578 = vsyncadd %s6569, %s6577
          %s6579 = smul.addr %s31, 2
          %s6580 = smul.addr %s6579, 128
          %s6581 = scalar_lea.hbm %s17, %s6580
          %s6582 = sshll.u32 %s6572, 4
          %s6583 = int_to_ptr.vmem [resolvable:$true] %s6582
          %6588 = dma.vmem_to_hbm [thread:$0]  %s6583, 256, %s6581, %s6569, 128, 128, 8
        $region92: #{autoencoder_forward.1} parent=87 // pred_fallthru
          _
      $region88: #{autoencoder_forward.1} parent=5 // pred_fallthru
        _
      %p6589 = scmp.le.s32.totalorder 2, %s26
      // Predicated region
      $region93: #{autoencoder_forward.1} parent=5 // pred_check
        %p6590 = pneg %p6589
      $region94: #{autoencoder_forward.1} parent=5 // pred_check_branch
        %6592 = sbr.rel (%p6590) target = $region96
      $region95: #{autoencoder_forward.1} parent=5 // pred_region
        %s6593 = ssub.s32 %s26, 2
        // Predicated region
        $region97: #{autoencoder_forward.1} parent=95 // pred_check
          %p6594 = pneg %p417
        $region98: #{autoencoder_forward.1} parent=95 // pred_check_branch
          %6596 = sbr.rel (%p6594) target = $region100
        $region99: #{autoencoder_forward.1} parent=95 // pred_region
          %s6597 = sand.u32 %s402, 1
          %s6598 = scalar_lea.sflag [#allocation4], %s6597
          %s6599 = sand.u32 %s402, 1
          %s6600 = smul.addr %s6599, 16
          %s6601 = scalar_lea.vmem [#allocation3], %s6600
          %6602 = dma.done %s6598, 256
        $region100: #{autoencoder_forward.1} parent=95 // pred_fallthru
          _
      $region96: #{autoencoder_forward.1} parent=5 // pred_fallthru
        _
    $region6: #{autoencoder_forward.1} parent=1 // loop_footer
      %s30 = sadd.s32 1, %s26
    $region7: #{autoencoder_forward.1} parent=1 // loop_footer_branch
      %25 = sbr.rel target = $region3
    $region8: #{autoencoder_forward.1} parent=1 // loop_exit
      _
    %6603 = vsyncpa [#allocation4], 1
    %s6604 = scalar_lea.sflag [#allocation4], 1
    %6605 = vsyncpa %s6604, 1

</llo_original>
